<compile_context>
chip_gen: v7x
topology: tpu7x:2x2x1
jax: 0.10.0
libtpu: 0.0.40
codegen_flags: <defaults>
</compile_context>

<pallas_src>
import functools

import jax
import jax.numpy as jnp
from jax.experimental import pallas as pl
from jax.experimental.pallas import tpu as pltpu


# Scoped-VMEM budget for the transformer kernel.  Re-derive per generation:
# v7x has 64 MiB physical VMEM per TensorCore (32 MiB default scoped limit),
# v5e/v6e have 128 MiB physical (16 / 32 MiB default scoped limits).  48 MiB
# is above every default (so double-buffered layer weights + the Bb*S*D*4 f32
# activation carry fit at realistic ViT sizes) while leaving headroom on v7x.
_VMEM_LIMIT_BYTES = 48 * 1024 * 1024


# ------------------------- in-kernel math helpers -------------------------

def _ln(x, g, b):
    """LayerNorm over the last dim, eps=1e-5 (PyTorch default). f32 math."""
    mu = jnp.mean(x, axis=-1, keepdims=True)
    xc = x - mu
    var = jnp.mean(xc * xc, axis=-1, keepdims=True)
    return xc * jax.lax.rsqrt(var + 1e-5) * g.astype(jnp.float32) + b.astype(jnp.float32)


def _log_softmax(z):
    zs = z - jnp.max(z, axis=-1, keepdims=True)
    return zs - jnp.log(jnp.sum(jnp.exp(zs), axis=-1, keepdims=True))


def _gelu_exact(x):
    # exact (erf) GELU, matching torch.nn.GELU() default
    return 0.5 * x * (1.0 + jax.lax.erf(x * 0.7071067811865476))


# ------------------------ fused patch-embedding kernel ---------------------

def _patch_embed_kernel(x_ref, g1_ref, b1_ref, w_ref, b_ref, g2_ref, b2_ref,
                        pos_ref, cls_ref, *rest):
    o_ref = rest[-1]
    dist_ref = rest[0] if len(rest) == 2 else None

    bb, n, _ = x_ref.shape

    # hoist shared weight / pos loads out of the static batch-row loop
    pos = pos_ref[0].astype(jnp.float32)                       # (N+1, D)
    cls_row = cls_ref[0].astype(jnp.float32) + pos[0:1, :]     # (1, D)  cls gets pos[0]
    pos_patch = pos[1:1 + n, :]                                # (N, D)
    w = w_ref[...]                                             # bf16
    bias = b_ref[...].astype(jnp.float32)
    g1, b1 = g1_ref[...], b1_ref[...]
    g2, b2 = g2_ref[...], b2_ref[...]

    for b in range(bb):                                        # static unroll (Bb small)
        x = x_ref[b].astype(jnp.float32)                       # (N, patch_dim)
        xn = _ln(x, g1, b1)
        y = jnp.dot(xn.astype(jnp.bfloat16), w,
                    preferred_element_type=jnp.float32) + bias
        y = _ln(y, g2, b2)
        o_ref[b, 0:1, :] = cls_row                             # cls token + pos[0]
        o_ref[b, 1:1 + n, :] = y + pos_patch                   # patches + pos[1:]
        if dist_ref is not None:
            # distillation token is appended AFTER pos is added (gets no pos)
            o_ref[b, 1 + n:2 + n, :] = dist_ref[0].astype(jnp.float32)


def pallas_patch_embed(x, params, distill_token=None, block_b=None):
    B, N, patch_dim = x.shape
    D = params["patch_ln2_g"].shape[-1]
    has_distill = distill_token is not None
    S = N + 1 + (1 if has_distill else 0)

    Bb = block_b if block_b is not None else min(B, 8)
    assert B % Bb == 0

    args = [x, params["patch_ln1_g"], params["patch_ln1_b"],
            params["patch_w"], params["patch_b"],
            params["patch_ln2_g"], params["patch_ln2_b"],
            params["pos_embedding"], params["cls_token"]]
    in_specs = [pl.BlockSpec((Bb, N, patch_dim), lambda b: (b, 0, 0)),
                pl.BlockSpec((1, patch_dim), lambda b: (0, 0)),
                pl.BlockSpec((1, patch_dim), lambda b: (0, 0)),
                pl.BlockSpec((patch_dim, D), lambda b: (0, 0)),
                pl.BlockSpec((1, D), lambda b: (0, 0)),
                pl.BlockSpec((1, D), lambda b: (0, 0)),
                pl.BlockSpec((1, D), lambda b: (0, 0)),
                pl.BlockSpec((1, N + 1, D), lambda b: (0, 0, 0)),
                pl.BlockSpec((1, 1, D), lambda b: (0, 0, 0))]
    if has_distill:
        args.append(distill_token)
        in_specs.append(pl.BlockSpec((1, 1, D), lambda b: (0, 0, 0)))

    return pl.pallas_call(
        _patch_embed_kernel,
        grid=(B // Bb,),
        in_specs=in_specs,
        out_specs=pl.BlockSpec((Bb, S, D), lambda b: (b, 0, 0)),
        out_shape=jax.ShapeDtypeStruct((B, S, D), jnp.float32),
        compiler_params=pltpu.CompilerParams(
            dimension_semantics=("parallel",),
            vmem_limit_bytes=_VMEM_LIMIT_BYTES),
    )(*args)


# -------------------- fused full-depth transformer kernel ------------------

def _transformer_kernel(x_ref,
                        aln_g_ref, aln_b_ref, w_qkv_ref, w_out_ref, b_out_ref,
                        fln_g_ref, fln_b_ref, w1_ref, b1_ref, w2_ref, b2_ref,
                        o_ref, *, heads, dim_head, scale):
    layer = pl.program_id(1)

    @pl.when(layer == 0)
    def _():
        # Load this batch block's activations into the output block once; the
        # output block index is constant along the depth ("arbitrary") axis so
        # it stays resident in VMEM and is only written back to HBM at the end.
        o_ref[...] = x_ref[...].astype(jnp.float32)

    bb = o_ref.shape[0]
    inner = heads * dim_head

    # hoist per-layer weight loads out of the static batch-row loop
    aln_g, aln_b = aln_g_ref[0], aln_b_ref[0]
    w_qkv = w_qkv_ref[0]                               # (D, 3*inner) bf16
    w_out = w_out_ref[0]                               # (inner, D)  bf16
    b_out = b_out_ref[0].astype(jnp.float32)
    fln_g, fln_b = fln_g_ref[0], fln_b_ref[0]
    w1 = w1_ref[0]                                     # (D, mlp)    bf16
    b1 = b1_ref[0].astype(jnp.float32)
    w2 = w2_ref[0]                                     # (mlp, D)    bf16
    b2 = b2_ref[0].astype(jnp.float32)

    # Static unroll over the Bb rows of this batch block: layer weights are
    # streamed from HBM once per Bb rows (not once per row).  Per-row matmuls
    # keep all tensors (8,128)-layout friendly at small / odd sequence lengths;
    # for lane/sublane-aligned S the rows could be merged to raise matmul M.
    for b in range(bb):
        x = o_ref[b]                                   # (S, D) f32 carry

        # ------------- pre-norm multi-head attention -------------
        xn = _ln(x, aln_g, aln_b)
        qkv = jnp.dot(xn.astype(jnp.bfloat16), w_qkv,
                      preferred_element_type=jnp.float32)          # (S, 3*inner)
        qkv = qkv.astype(jnp.bfloat16)                 # bf16 operands for the MXU

        head_ctx = []
        for h in range(heads):                         # static unroll
            lo = h * dim_head
            qh = qkv[:, lo:lo + dim_head]
            kh = qkv[:, inner + lo:inner + lo + dim_head]
            vh = qkv[:, 2 * inner + lo:2 * inner + lo + dim_head]
            # QK^T via dot_general contracting dims (no materialized K^T copy),
            # bf16 operands, f32 accumulation.
            s = jax.lax.dot_general(qh, kh, (((1,), (1,)), ((), ())),
                                    preferred_element_type=jnp.float32) * scale
            s = s - jnp.max(s, axis=-1, keepdims=True)
            p = jnp.exp(s)
            # softmax normalization on the EUP slot instead of a VALU divide
            p = p * pl.reciprocal(jnp.sum(p, axis=-1, keepdims=True), approx=True)
            oh = jnp.dot(p.astype(jnp.bfloat16), vh,
                         preferred_element_type=jnp.float32)        # (S, dh)
            head_ctx.append(oh.astype(jnp.bfloat16))

        # merged head-concat output projection: ONE matmul with K = inner
        ctx = jnp.concatenate(head_ctx, axis=-1)       # (S, inner) bf16
        attn = jnp.dot(ctx, w_out, preferred_element_type=jnp.float32)
        x = x + attn + b_out

        # ------------------ pre-norm feed-forward ------------------
        xn = _ln(x, fln_g, fln_b)
        h1 = _gelu_exact(jnp.dot(xn.astype(jnp.bfloat16), w1,
                                 preferred_element_type=jnp.float32) + b1)
        h2 = jnp.dot(h1.astype(jnp.bfloat16), w2,
                     preferred_element_type=jnp.float32) + b2

        o_ref[b] = x + h2                              # carry to next layer


def pallas_transformer(x, p, heads, dim_head, block_b=None):
    B, S, D = x.shape
    depth = p["w_qkv"].shape[0]
    inner = heads * dim_head
    mlp_dim = p["ff_w1"].shape[-1]
    scale = dim_head ** -0.5

    # Batch blocking: Bb rows share one streaming of each layer's weights, so
    # arithmetic intensity vs weight bytes grows by Bb and the kernel moves
    # from HBM-bound toward compute-bound.  Pick Bb so that double-buffered
    # bf16 layer weights + Bb*S*D*4 f32 carry fit _VMEM_LIMIT_BYTES; on v7x
    # also keep B//Bb a multiple of 2 so both TensorCores get even work.
    Bb = block_b if block_b is not None else min(B, 8)
    assert B % Bb == 0

    xmap = lambda b, l: (b, 0, 0)   # constant along depth -> resident in VMEM
    wmap = lambda b, l: (l, 0, 0)   # per-layer weight prefetch along depth

    return pl.pallas_call(
        functools.partial(_transformer_kernel, heads=heads, dim_head=dim_head,
                          scale=scale),
        grid=(B // Bb, depth),
        in_specs=[
            pl.BlockSpec((Bb, S, D), xmap),             # activations (layer-0 init)
            pl.BlockSpec((1, 1, D), wmap),              # attn LN gamma
            pl.BlockSpec((1, 1, D), wmap),              # attn LN beta
            pl.BlockSpec((1, D, 3 * inner), wmap),      # qkv weight (no bias in ViT)
            pl.BlockSpec((1, inner, D), wmap),          # out-proj weight
            pl.BlockSpec((1, 1, D), wmap),              # out-proj bias
            pl.BlockSpec((1, 1, D), wmap),              # ff LN gamma
            pl.BlockSpec((1, 1, D), wmap),              # ff LN beta
            pl.BlockSpec((1, D, mlp_dim), wmap),        # ff W1
            pl.BlockSpec((1, 1, mlp_dim), wmap),        # ff b1
            pl.BlockSpec((1, mlp_dim, D), wmap),        # ff W2
            pl.BlockSpec((1, 1, D), wmap),              # ff b2
        ],
        out_specs=pl.BlockSpec((Bb, S, D), xmap),       # activation carry / result
        out_shape=jax.ShapeDtypeStruct((B, S, D), jnp.float32),
        compiler_params=pltpu.CompilerParams(
            dimension_semantics=("parallel", "arbitrary"),
            vmem_limit_bytes=_VMEM_LIMIT_BYTES),
    )(x, p["attn_ln_g"], p["attn_ln_b"], p["w_qkv"], p["w_out"], p["b_out"],
      p["ff_ln_g"], p["ff_ln_b"], p["ff_w1"], p["ff_b1"], p["ff_w2"], p["ff_b2"])


# ------------------ fused (final LN + 3 heads + distill loss) ---------------

def _heads_loss_kernel(t_cls_ref, s_cls_ref, s_dist_ref,
                       t_g_ref, t_b_ref, t_hw_ref, t_hb_ref,
                       s_g_ref, s_b_ref, s_hw_ref, s_hb_ref,
                       d_w_ref, d_b_ref, onehot_ref,
                       o_ref, *, temperature, alpha, batch):
    # teacher: final LN (cls token only) + head  (teacher runs under no_grad)
    t_feat = _ln(t_cls_ref[...].astype(jnp.float32), t_g_ref[...], t_b_ref[...])
    t_log = jnp.dot(t_feat.astype(jnp.bfloat16), t_hw_ref[...],
                    preferred_element_type=jnp.float32) + t_hb_ref[...].astype(jnp.float32)

    # student: final LN on cls and distill tokens + heads
    s_feat = _ln(s_cls_ref[...].astype(jnp.float32), s_g_ref[...], s_b_ref[...])
    s_log = jnp.dot(s_feat.astype(jnp.bfloat16), s_hw_ref[...],
                    preferred_element_type=jnp.float32) + s_hb_ref[...].astype(jnp.float32)

    d_feat = _ln(s_dist_ref[...].astype(jnp.float32), s_g_ref[...], s_b_ref[...])
    # distill_mlp = Identity (mlp_layernorm=False) + Linear(dim, num_classes)
    d_log = jnp.dot(d_feat.astype(jnp.bfloat16), d_w_ref[...],
                    preferred_element_type=jnp.float32) + d_b_ref[...].astype(jnp.float32)

    # F.cross_entropy(student_logits, labels)   (mean over batch)
    ce = -jnp.sum(onehot_ref[...].astype(jnp.float32) * _log_softmax(s_log)) / batch

    # F.kl_div(log_softmax(d/T), softmax(t/T), reduction='batchmean') * T^2
    log_q = _log_softmax(d_log / temperature)
    log_p = _log_softmax(t_log / temperature)
    kl = jnp.sum(jnp.exp(log_p) * (log_p - log_q)) / batch
    kl = kl * (temperature * temperature)

    total = ce * (1.0 - alpha) + kl * alpha
    o_ref[...] = jnp.reshape(total, (1, 1))


def pallas_heads_and_loss(t_cls, s_cls, s_dist, tp, sp, dist_w, dist_b, onehot,
                          temperature, alpha):
    B = s_cls.shape[0]
    args = (t_cls, s_cls, s_dist,
            tp["final_ln_g"], tp["final_ln_b"], tp["head_w"], tp["head_b"],
            sp["final_ln_g"], sp["final_ln_b"], sp["head_w"], sp["head_b"],
            dist_w, dist_b, onehot)
    in_specs = [pl.BlockSpec(a.shape, lambda i: (0, 0)) for a in args]
    return pl.pallas_call(
        functools.partial(_heads_loss_kernel, temperature=float(temperature),
                          alpha=float(alpha), batch=float(B)),
        grid=(1,),
        in_specs=in_specs,
        out_specs=pl.BlockSpec((1, 1), lambda i: (0, 0)),
        out_shape=jax.ShapeDtypeStruct((1, 1), jnp.float32),
    )(*args)


# ------------------------------ ViT forward -------------------------------

def patchify(img, patch_size):
    # 'b c (h p1) (w p2) -> b (h w) (p1 p2 c)'
    B, C, H, W = img.shape
    p = patch_size
    h, w = H // p, W // p
    x = img.reshape(B, C, h, p, w, p)
    x = jnp.transpose(x, (0, 2, 4, 3, 5, 1))  # b h w p1 p2 c
    return x.reshape(B, h * w, p * p * C)


def vit_encode(params, img, cfg, distill_token=None):
    """Patch-embed (cls/distill/pos written in-kernel) + full transformer stack.
    Returns pre-final-LN tokens; the final LN is per-token and fused into the
    heads/loss kernel.  Dropout: eval mode -> identity."""
    x = patchify(img, cfg["patch_size"])                     # (B, N, patch_dim)
    x = pallas_patch_embed(x, params, distill_token=distill_token)  # (B, S, D)
    return pallas_transformer(x, params, cfg["heads"], cfg["dim_head"])


# --------------------------- DistillWrapper ---------------------------

def distill_wrapper_forward(params, img, labels, cfg, temperature=1.0, alpha=0.5):
    # teacher forward under torch.no_grad() -> stop_gradient
    t_x = vit_encode(params["teacher"], img, cfg)
    t_cls = jax.lax.stop_gradient(t_x[:, 0])

    s_x = vit_encode(params["student"], img, cfg,
                     distill_token=params["distillation_token"])
    s_cls = s_x[:, 0]            # pool = 'cls'; to_latent = Identity
    s_dist = s_x[:, -1]          # distillation token (post transformer)

    onehot = jax.nn.one_hot(labels, cfg["num_classes"], dtype=jnp.float32)
    # TODO(synk): hard=True branch (CE against teacher argmax) not implemented; default hard=False.
    loss = pallas_heads_and_loss(t_cls, s_cls, s_dist,
                                 params["teacher"], params["student"],
                                 params["distill_w"], params["distill_b"],
                                 onehot, temperature, alpha)
    return loss[0, 0]


# --------------------------- parameter init ---------------------------

def init_vit_params(key, cfg):
    dim, heads, dh = cfg["dim"], cfg["heads"], cfg["dim_head"]
    inner = heads * dh
    depth, mlp, C = cfg["depth"], cfg["mlp_dim"], cfg["num_classes"]
    patch_dim = cfg["channels"] * cfg["patch_size"] ** 2
    num_patches = (cfg["image_size"] // cfg["patch_size"]) ** 2

    keys = iter(jax.random.split(key, 16))

    def rnd(shape, dtype=jnp.float32):
        return (0.02 * jax.random.normal(next(keys), shape, jnp.float32)).astype(dtype)

    bf16 = jnp.bfloat16
    return {
        "patch_ln1_g": jnp.ones((1, patch_dim), jnp.float32),
        "patch_ln1_b": jnp.zeros((1, patch_dim), jnp.float32),
        "patch_w": rnd((patch_dim, dim), bf16),
        "patch_b": jnp.zeros((1, dim), jnp.float32),
        "patch_ln2_g": jnp.ones((1, dim), jnp.float32),
        "patch_ln2_b": jnp.zeros((1, dim), jnp.float32),
        "pos_embedding": rnd((1, num_patches + 1, dim)),
        "cls_token": rnd((1, 1, dim)),
        # per-layer transformer weights stacked on a leading depth axis
        "attn_ln_g": jnp.ones((depth, 1, dim), jnp.float32),
        "attn_ln_b": jnp.zeros((depth, 1, dim), jnp.float32),
        "w_qkv": rnd((depth, dim, 3 * inner), bf16),
        "w_out": rnd((depth, inner, dim), bf16),
        "b_out": jnp.zeros((depth, 1, dim), jnp.float32),
        "ff_ln_g": jnp.ones((depth, 1, dim), jnp.float32),
        "ff_ln_b": jnp.zeros((depth, 1, dim), jnp.float32),
        "ff_w1": rnd((depth, dim, mlp), bf16),
        "ff_b1": jnp.zeros((depth, 1, mlp), jnp.float32),
        "ff_w2": rnd((depth, mlp, dim), bf16),
        "ff_b2": jnp.zeros((depth, 1, dim), jnp.float32),
        "final_ln_g": jnp.ones((1, dim), jnp.float32),
        "final_ln_b": jnp.zeros((1, dim), jnp.float32),
        "head_w": rnd((dim, C), bf16),
        "head_b": jnp.zeros((1, C), jnp.float32),
    }


def init_distill_wrapper(key, cfg):
    kt, ks, kd, km = jax.random.split(key, 4)
    return {
        "teacher": init_vit_params(kt, cfg),
        "student": init_vit_params(ks, cfg),
        "distillation_token": jax.random.normal(kd, (1, 1, cfg["dim"]), jnp.float32),
        "distill_w": (0.02 * jax.random.normal(
            km, (cfg["dim"], cfg["num_classes"]), jnp.float32)).astype(jnp.bfloat16),
        "distill_b": jnp.zeros((1, cfg["num_classes"]), jnp.float32),
    }


# --------------------------------- main ---------------------------------

if __name__ == "__main__":
    # Toy config for the smoke test.  For real benchmarking pick lane-dense
    # dims (dim / inner / mlp_dim multiples of 128, dim_head >= 64, classes
    # padded to 128) per the TPU layout rules.
    cfg = dict(image_size=16, patch_size=8, channels=3, dim=32, depth=2,
               heads=2, dim_head=16, mlp_dim=64, num_classes=10)

    key = jax.random.PRNGKey(0)
    k_img, k_lab, k_par = jax.random.split(key, 3)

    img = jax.random.normal(
        k_img, (2, cfg["channels"], cfg["image_size"], cfg["image_size"]), jnp.float32)
    labels = jax.random.randint(k_lab, (2,), 0, cfg["num_classes"], jnp.int32)

    params = init_distill_wrapper(k_par, cfg)

    # TODO(synk): forward-only; no custom_vjp is defined, so jax.grad through
    # the pallas_calls is not supported.
    loss_fn = jax.jit(functools.partial(distill_wrapper_forward, cfg=cfg,
                                        temperature=1.0, alpha=0.5))
    loss = loss_fn(params, img, labels)
    jax.block_until_ready(loss)
    assert loss.shape == () and jnp.isfinite(loss)
    print("KERNEL_OK")
</pallas_src>

<mosaic_0001>
module attributes {stable_mosaic.version = 11 : i64} {
  func.func @_patch_embed_kernel(%arg0: i32, %arg1: memref<2x4x192xf32, #tpu.memory_space<vmem>>, %arg2: memref<1x192xf32, #tpu.memory_space<vmem>>, %arg3: memref<1x192xf32, #tpu.memory_space<vmem>>, %arg4: memref<192x32xbf16, #tpu.memory_space<vmem>>, %arg5: memref<1x32xf32, #tpu.memory_space<vmem>>, %arg6: memref<1x32xf32, #tpu.memory_space<vmem>>, %arg7: memref<1x32xf32, #tpu.memory_space<vmem>>, %arg8: memref<1x5x32xf32, #tpu.memory_space<vmem>>, %arg9: memref<1x1x32xf32, #tpu.memory_space<vmem>>, %arg10: memref<1x1x32xf32, #tpu.memory_space<vmem>>, %arg11: memref<2x6x32xf32, #tpu.memory_space<vmem>>) attributes {dimension_semantics = [#tpu.dimension_semantics<parallel>], iteration_bounds = array<i64: 1>, scalar_prefetch = 0 : i64, scratch_operands = 0 : i64, tpu.core_type = #tpu.core_type<tc>, window_params = [{transform_indices = @transform_0, window_bounds = array<i64: 2, 4, 192>}, {pipeline_mode = #tpu.pipeline_mode<synchronous>, transform_indices = @transform_1, window_bounds = array<i64: 1, 192>}, {pipeline_mode = #tpu.pipeline_mode<synchronous>, transform_indices = @transform_2, window_bounds = array<i64: 1, 192>}, {pipeline_mode = #tpu.pipeline_mode<synchronous>, transform_indices = @transform_3, window_bounds = array<i64: 192, 32>}, {pipeline_mode = #tpu.pipeline_mode<synchronous>, transform_indices = @transform_4, window_bounds = array<i64: 1, 32>}, {pipeline_mode = #tpu.pipeline_mode<synchronous>, transform_indices = @transform_5, window_bounds = array<i64: 1, 32>}, {pipeline_mode = #tpu.pipeline_mode<synchronous>, transform_indices = @transform_6, window_bounds = array<i64: 1, 32>}, {pipeline_mode = #tpu.pipeline_mode<synchronous>, transform_indices = @transform_7, window_bounds = array<i64: 1, 5, 32>}, {pipeline_mode = #tpu.pipeline_mode<synchronous>, transform_indices = @transform_8, window_bounds = array<i64: 1, 1, 32>}, {pipeline_mode = #tpu.pipeline_mode<synchronous>, transform_indices = @transform_9, window_bounds = array<i64: 1, 1, 32>}, {transform_indices = @transform_10, window_bounds = array<i64: 2, 6, 32>}]} {
    %c0 = arith.constant 0 : index
    %c0_0 = arith.constant 0 : index
    %c0_1 = arith.constant 0 : index
    %0 = vector.load %arg8[%c0, %c0_0, %c0_1] : memref<1x5x32xf32, #tpu.memory_space<vmem>>, vector<1x5x32xf32>
    %1 = vector.shape_cast %0 : vector<1x5x32xf32> to vector<5x32xf32>
    %c0_2 = arith.constant 0 : index
    %c0_3 = arith.constant 0 : index
    %c0_4 = arith.constant 0 : index
    %2 = vector.load %arg9[%c0_2, %c0_3, %c0_4] : memref<1x1x32xf32, #tpu.memory_space<vmem>>, vector<1x1x32xf32>
    %3 = vector.shape_cast %2 : vector<1x1x32xf32> to vector<1x32xf32>
    %4 = vector.extract_strided_slice %1 {offsets = [0, 0], sizes = [1, 32], strides = [1, 1]} : vector<5x32xf32> to vector<1x32xf32>
    %5 = arith.addf %3, %4 : vector<1x32xf32>
    %6 = vector.extract_strided_slice %1 {offsets = [1, 0], sizes = [4, 32], strides = [1, 1]} : vector<5x32xf32> to vector<4x32xf32>
    %c0_5 = arith.constant 0 : index
    %c0_6 = arith.constant 0 : index
    %7 = vector.load %arg4[%c0_5, %c0_6] : memref<192x32xbf16, #tpu.memory_space<vmem>>, vector<192x32xbf16>
    %c0_7 = arith.constant 0 : index
    %c0_8 = arith.constant 0 : index
    %8 = vector.load %arg5[%c0_7, %c0_8] : memref<1x32xf32, #tpu.memory_space<vmem>>, vector<1x32xf32>
    %c0_9 = arith.constant 0 : index
    %c0_10 = arith.constant 0 : index
    %9 = vector.load %arg2[%c0_9, %c0_10] : memref<1x192xf32, #tpu.memory_space<vmem>>, vector<1x192xf32>
    %c0_11 = arith.constant 0 : index
    %c0_12 = arith.constant 0 : index
    %10 = vector.load %arg3[%c0_11, %c0_12] : memref<1x192xf32, #tpu.memory_space<vmem>>, vector<1x192xf32>
    %c0_13 = arith.constant 0 : index
    %c0_14 = arith.constant 0 : index
    %11 = vector.load %arg6[%c0_13, %c0_14] : memref<1x32xf32, #tpu.memory_space<vmem>>, vector<1x32xf32>
    %c0_15 = arith.constant 0 : index
    %c0_16 = arith.constant 0 : index
    %12 = vector.load %arg7[%c0_15, %c0_16] : memref<1x32xf32, #tpu.memory_space<vmem>>, vector<1x32xf32>
    %c0_17 = arith.constant 0 : index
    %c0_18 = arith.constant 0 : index
    %c0_19 = arith.constant 0 : index
    %13 = vector.load %arg1[%c0_17, %c0_18, %c0_19] : memref<2x4x192xf32, #tpu.memory_space<vmem>>, vector<1x4x192xf32>
    %14 = vector.shape_cast %13 : vector<1x4x192xf32> to vector<4x192xf32>
    %cst = arith.constant dense<0.000000e+00> : vector<4xf32>
    %15 = vector.multi_reduction <add>, %14, %cst [1] : vector<4x192xf32> to vector<4xf32>
    %16 = vector.shape_cast %15 : vector<4xf32> to vector<4x1xf32>
    %cst_20 = arith.constant 1.920000e+02 : f32
    %17 = vector.broadcast %cst_20 : f32 to vector<4x1xf32>
    %18 = arith.divf %16, %17 : vector<4x1xf32>
    %19 = vector.broadcast %18 : vector<4x1xf32> to vector<4x192xf32>
    %20 = arith.subf %14, %19 : vector<4x192xf32>
    %21 = arith.mulf %20, %20 : vector<4x192xf32>
    %cst_21 = arith.constant dense<0.000000e+00> : vector<4xf32>
    %22 = vector.multi_reduction <add>, %21, %cst_21 [1] : vector<4x192xf32> to vector<4xf32>
    %23 = vector.shape_cast %22 : vector<4xf32> to vector<4x1xf32>
    %cst_22 = arith.constant 1.920000e+02 : f32
    %24 = vector.broadcast %cst_22 : f32 to vector<4x1xf32>
    %25 = arith.divf %23, %24 : vector<4x1xf32>
    %cst_23 = arith.constant 9.99999974E-6 : f32
    %26 = vector.broadcast %cst_23 : f32 to vector<4x1xf32>
    %27 = arith.addf %25, %26 : vector<4x1xf32>
    %28 = math.rsqrt %27 : vector<4x1xf32>
    %29 = vector.broadcast %28 : vector<4x1xf32> to vector<4x192xf32>
    %30 = arith.mulf %20, %29 : vector<4x192xf32>
    %31 = vector.broadcast %9 : vector<1x192xf32> to vector<4x192xf32>
    %32 = arith.mulf %30, %31 : vector<4x192xf32>
    %33 = vector.broadcast %10 : vector<1x192xf32> to vector<4x192xf32>
    %34 = arith.addf %32, %33 : vector<4x192xf32>
    %35 = arith.truncf %34 : vector<4x192xf32> to vector<4x192xbf16>
    %cst_24 = arith.constant dense<0.000000e+00> : vector<4x32xf32>
    %36 = tpu.matmul %35, %7, %cst_24 {dimension_numbers = #tpu.dot_dimension_numbers<[1], [0], [0], [1], [0, 0, 1, 1], [], []>} : vector<4x192xbf16>, vector<192x32xbf16>, vector<4x32xf32> -> vector<4x32xf32>
    %37 = vector.broadcast %8 : vector<1x32xf32> to vector<4x32xf32>
    %38 = arith.addf %36, %37 : vector<4x32xf32>
    %cst_25 = arith.constant dense<0.000000e+00> : vector<4xf32>
    %39 = vector.multi_reduction <add>, %38, %cst_25 [1] : vector<4x32xf32> to vector<4xf32>
    %40 = vector.shape_cast %39 : vector<4xf32> to vector<4x1xf32>
    %cst_26 = arith.constant 3.200000e+01 : f32
    %41 = vector.broadcast %cst_26 : f32 to vector<4x1xf32>
    %42 = arith.divf %40, %41 : vector<4x1xf32>
    %43 = vector.broadcast %42 : vector<4x1xf32> to vector<4x32xf32>
    %44 = arith.subf %38, %43 : vector<4x32xf32>
    %45 = arith.mulf %44, %44 : vector<4x32xf32>
    %cst_27 = arith.constant dense<0.000000e+00> : vector<4xf32>
    %46 = vector.multi_reduction <add>, %45, %cst_27 [1] : vector<4x32xf32> to vector<4xf32>
    %47 = vector.shape_cast %46 : vector<4xf32> to vector<4x1xf32>
    %cst_28 = arith.constant 3.200000e+01 : f32
    %48 = vector.broadcast %cst_28 : f32 to vector<4x1xf32>
    %49 = arith.divf %47, %48 : vector<4x1xf32>
    %cst_29 = arith.constant 9.99999974E-6 : f32
    %50 = vector.broadcast %cst_29 : f32 to vector<4x1xf32>
    %51 = arith.addf %49, %50 : vector<4x1xf32>
    %52 = math.rsqrt %51 : vector<4x1xf32>
    %53 = vector.broadcast %52 : vector<4x1xf32> to vector<4x32xf32>
    %54 = arith.mulf %44, %53 : vector<4x32xf32>
    %55 = vector.broadcast %11 : vector<1x32xf32> to vector<4x32xf32>
    %56 = arith.mulf %54, %55 : vector<4x32xf32>
    %57 = vector.broadcast %12 : vector<1x32xf32> to vector<4x32xf32>
    %58 = arith.addf %56, %57 : vector<4x32xf32>
    %c0_30 = arith.constant 0 : index
    %c0_31 = arith.constant 0 : index
    %c0_32 = arith.constant 0 : index
    %59 = vector.load %arg11[%c0_30, %c0_31, %c0_32] : memref<2x6x32xf32, #tpu.memory_space<vmem>>, vector<1x1x32xf32>
    %60 = vector.shape_cast %59 : vector<1x1x32xf32> to vector<1x32xf32>
    %61 = vector.shape_cast %5 : vector<1x32xf32> to vector<1x1x32xf32>
    tpu.vector_store %arg11[%c0_30, %c0_31, %c0_32], %61 {strides = array<i32>} : memref<2x6x32xf32, #tpu.memory_space<vmem>>, vector<1x1x32xf32>,
    %62 = arith.addf %58, %6 : vector<4x32xf32>
    %c0_33 = arith.constant 0 : index
    %c1 = arith.constant 1 : index
    %c0_34 = arith.constant 0 : index
    %63 = vector.load %arg11[%c0_33, %c1, %c0_34] : memref<2x6x32xf32, #tpu.memory_space<vmem>>, vector<1x4x32xf32>
    %64 = vector.shape_cast %63 : vector<1x4x32xf32> to vector<4x32xf32>
    %65 = vector.shape_cast %62 : vector<4x32xf32> to vector<1x4x32xf32>
    tpu.vector_store %arg11[%c0_33, %c1, %c0_34], %65 {strides = array<i32>} : memref<2x6x32xf32, #tpu.memory_space<vmem>>, vector<1x4x32xf32>,
    %c0_35 = arith.constant 0 : index
    %c0_36 = arith.constant 0 : index
    %c0_37 = arith.constant 0 : index
    %66 = vector.load %arg10[%c0_35, %c0_36, %c0_37] : memref<1x1x32xf32, #tpu.memory_space<vmem>>, vector<1x1x32xf32>
    %67 = vector.shape_cast %66 : vector<1x1x32xf32> to vector<1x32xf32>
    %c0_38 = arith.constant 0 : index
    %c5 = arith.constant 5 : index
    %c0_39 = arith.constant 0 : index
    %68 = vector.load %arg11[%c0_38, %c5, %c0_39] : memref<2x6x32xf32, #tpu.memory_space<vmem>>, vector<1x1x32xf32>
    %69 = vector.shape_cast %68 : vector<1x1x32xf32> to vector<1x32xf32>
    %70 = vector.shape_cast %67 : vector<1x32xf32> to vector<1x1x32xf32>
    tpu.vector_store %arg11[%c0_38, %c5, %c0_39], %70 {strides = array<i32>} : memref<2x6x32xf32, #tpu.memory_space<vmem>>, vector<1x1x32xf32>,
    %c1_40 = arith.constant 1 : index
    %c0_41 = arith.constant 0 : index
    %c0_42 = arith.constant 0 : index
    %71 = vector.load %arg1[%c1_40, %c0_41, %c0_42] : memref<2x4x192xf32, #tpu.memory_space<vmem>>, vector<1x4x192xf32>
    %72 = vector.shape_cast %71 : vector<1x4x192xf32> to vector<4x192xf32>
    %cst_43 = arith.constant dense<0.000000e+00> : vector<4xf32>
    %73 = vector.multi_reduction <add>, %72, %cst_43 [1] : vector<4x192xf32> to vector<4xf32>
    %74 = vector.shape_cast %73 : vector<4xf32> to vector<4x1xf32>
    %cst_44 = arith.constant 1.920000e+02 : f32
    %75 = vector.broadcast %cst_44 : f32 to vector<4x1xf32>
    %76 = arith.divf %74, %75 : vector<4x1xf32>
    %77 = vector.broadcast %76 : vector<4x1xf32> to vector<4x192xf32>
    %78 = arith.subf %72, %77 : vector<4x192xf32>
    %79 = arith.mulf %78, %78 : vector<4x192xf32>
    %cst_45 = arith.constant dense<0.000000e+00> : vector<4xf32>
    %80 = vector.multi_reduction <add>, %79, %cst_45 [1] : vector<4x192xf32> to vector<4xf32>
    %81 = vector.shape_cast %80 : vector<4xf32> to vector<4x1xf32>
    %cst_46 = arith.constant 1.920000e+02 : f32
    %82 = vector.broadcast %cst_46 : f32 to vector<4x1xf32>
    %83 = arith.divf %81, %82 : vector<4x1xf32>
    %cst_47 = arith.constant 9.99999974E-6 : f32
    %84 = vector.broadcast %cst_47 : f32 to vector<4x1xf32>
    %85 = arith.addf %83, %84 : vector<4x1xf32>
    %86 = math.rsqrt %85 : vector<4x1xf32>
    %87 = vector.broadcast %86 : vector<4x1xf32> to vector<4x192xf32>
    %88 = arith.mulf %78, %87 : vector<4x192xf32>
    %89 = vector.broadcast %9 : vector<1x192xf32> to vector<4x192xf32>
    %90 = arith.mulf %88, %89 : vector<4x192xf32>
    %91 = vector.broadcast %10 : vector<1x192xf32> to vector<4x192xf32>
    %92 = arith.addf %90, %91 : vector<4x192xf32>
    %93 = arith.truncf %92 : vector<4x192xf32> to vector<4x192xbf16>
    %cst_48 = arith.constant dense<0.000000e+00> : vector<4x32xf32>
    %94 = tpu.matmul %93, %7, %cst_48 {dimension_numbers = #tpu.dot_dimension_numbers<[1], [0], [0], [1], [0, 0, 1, 1], [], []>} : vector<4x192xbf16>, vector<192x32xbf16>, vector<4x32xf32> -> vector<4x32xf32>
    %95 = vector.broadcast %8 : vector<1x32xf32> to vector<4x32xf32>
    %96 = arith.addf %94, %95 : vector<4x32xf32>
    %cst_49 = arith.constant dense<0.000000e+00> : vector<4xf32>
    %97 = vector.multi_reduction <add>, %96, %cst_49 [1] : vector<4x32xf32> to vector<4xf32>
    %98 = vector.shape_cast %97 : vector<4xf32> to vector<4x1xf32>
    %cst_50 = arith.constant 3.200000e+01 : f32
    %99 = vector.broadcast %cst_50 : f32 to vector<4x1xf32>
    %100 = arith.divf %98, %99 : vector<4x1xf32>
    %101 = vector.broadcast %100 : vector<4x1xf32> to vector<4x32xf32>
    %102 = arith.subf %96, %101 : vector<4x32xf32>
    %103 = arith.mulf %102, %102 : vector<4x32xf32>
    %cst_51 = arith.constant dense<0.000000e+00> : vector<4xf32>
    %104 = vector.multi_reduction <add>, %103, %cst_51 [1] : vector<4x32xf32> to vector<4xf32>
    %105 = vector.shape_cast %104 : vector<4xf32> to vector<4x1xf32>
    %cst_52 = arith.constant 3.200000e+01 : f32
    %106 = vector.broadcast %cst_52 : f32 to vector<4x1xf32>
    %107 = arith.divf %105, %106 : vector<4x1xf32>
    %cst_53 = arith.constant 9.99999974E-6 : f32
    %108 = vector.broadcast %cst_53 : f32 to vector<4x1xf32>
    %109 = arith.addf %107, %108 : vector<4x1xf32>
    %110 = math.rsqrt %109 : vector<4x1xf32>
    %111 = vector.broadcast %110 : vector<4x1xf32> to vector<4x32xf32>
    %112 = arith.mulf %102, %111 : vector<4x32xf32>
    %113 = vector.broadcast %11 : vector<1x32xf32> to vector<4x32xf32>
    %114 = arith.mulf %112, %113 : vector<4x32xf32>
    %115 = vector.broadcast %12 : vector<1x32xf32> to vector<4x32xf32>
    %116 = arith.addf %114, %115 : vector<4x32xf32>
    %c1_54 = arith.constant 1 : index
    %c0_55 = arith.constant 0 : index
    %c0_56 = arith.constant 0 : index
    %117 = vector.load %arg11[%c1_54, %c0_55, %c0_56] : memref<2x6x32xf32, #tpu.memory_space<vmem>>, vector<1x1x32xf32>
    %118 = vector.shape_cast %117 : vector<1x1x32xf32> to vector<1x32xf32>
    %119 = vector.shape_cast %5 : vector<1x32xf32> to vector<1x1x32xf32>
    tpu.vector_store %arg11[%c1_54, %c0_55, %c0_56], %119 {strides = array<i32>} : memref<2x6x32xf32, #tpu.memory_space<vmem>>, vector<1x1x32xf32>,
    %120 = arith.addf %116, %6 : vector<4x32xf32>
    %c1_57 = arith.constant 1 : index
    %c1_58 = arith.constant 1 : index
    %c0_59 = arith.constant 0 : index
    %121 = vector.load %arg11[%c1_57, %c1_58, %c0_59] : memref<2x6x32xf32, #tpu.memory_space<vmem>>, vector<1x4x32xf32>
    %122 = vector.shape_cast %121 : vector<1x4x32xf32> to vector<4x32xf32>
    %123 = vector.shape_cast %120 : vector<4x32xf32> to vector<1x4x32xf32>
    tpu.vector_store %arg11[%c1_57, %c1_58, %c0_59], %123 {strides = array<i32>} : memref<2x6x32xf32, #tpu.memory_space<vmem>>, vector<1x4x32xf32>,
    %c0_60 = arith.constant 0 : index
    %c0_61 = arith.constant 0 : index
    %c0_62 = arith.constant 0 : index
    %124 = vector.load %arg10[%c0_60, %c0_61, %c0_62] : memref<1x1x32xf32, #tpu.memory_space<vmem>>, vector<1x1x32xf32>
    %125 = vector.shape_cast %124 : vector<1x1x32xf32> to vector<1x32xf32>
    %c1_63 = arith.constant 1 : index
    %c5_64 = arith.constant 5 : index
    %c0_65 = arith.constant 0 : index
    %126 = vector.load %arg11[%c1_63, %c5_64, %c0_65] : memref<2x6x32xf32, #tpu.memory_space<vmem>>, vector<1x1x32xf32>
    %127 = vector.shape_cast %126 : vector<1x1x32xf32> to vector<1x32xf32>
    %128 = vector.shape_cast %125 : vector<1x32xf32> to vector<1x1x32xf32>
    tpu.vector_store %arg11[%c1_63, %c5_64, %c0_65], %128 {strides = array<i32>} : memref<2x6x32xf32, #tpu.memory_space<vmem>>, vector<1x1x32xf32>,
    return
  }
  func.func @transform_0(%arg0: i32) -> (i32, i32, i32) {
    %c0_i32 = arith.constant 0 : i32
    %c0_i32_0 = arith.constant 0 : i32
    %c0_i32_1 = arith.constant 0 : i32
    return %arg0, %c0_i32, %c0_i32_0 : i32, i32, i32
  }
  func.func @transform_1(%arg0: i32) -> (i32, i32) {
    %c0_i32 = arith.constant 0 : i32
    %c0_i32_0 = arith.constant 0 : i32
    %c0_i32_1 = arith.constant 0 : i32
    return %c0_i32, %c0_i32_0 : i32, i32
  }
  func.func @transform_2(%arg0: i32) -> (i32, i32) {
    %c0_i32 = arith.constant 0 : i32
    %c0_i32_0 = arith.constant 0 : i32
    %c0_i32_1 = arith.constant 0 : i32
    return %c0_i32, %c0_i32_0 : i32, i32
  }
  func.func @transform_3(%arg0: i32) -> (i32, i32) {
    %c0_i32 = arith.constant 0 : i32
    %c0_i32_0 = arith.constant 0 : i32
    %c0_i32_1 = arith.constant 0 : i32
    return %c0_i32, %c0_i32_0 : i32, i32
  }
  func.func @transform_4(%arg0: i32) -> (i32, i32) {
    %c0_i32 = arith.constant 0 : i32
    %c0_i32_0 = arith.constant 0 : i32
    %c0_i32_1 = arith.constant 0 : i32
    return %c0_i32, %c0_i32_0 : i32, i32
  }
  func.func @transform_5(%arg0: i32) -> (i32, i32) {
    %c0_i32 = arith.constant 0 : i32
    %c0_i32_0 = arith.constant 0 : i32
    %c0_i32_1 = arith.constant 0 : i32
    return %c0_i32, %c0_i32_0 : i32, i32
  }
  func.func @transform_6(%arg0: i32) -> (i32, i32) {
    %c0_i32 = arith.constant 0 : i32
    %c0_i32_0 = arith.constant 0 : i32
    %c0_i32_1 = arith.constant 0 : i32
    return %c0_i32, %c0_i32_0 : i32, i32
  }
  func.func @transform_7(%arg0: i32) -> (i32, i32, i32) {
    %c0_i32 = arith.constant 0 : i32
    %c0_i32_0 = arith.constant 0 : i32
    %c0_i32_1 = arith.constant 0 : i32
    %c0_i32_2 = arith.constant 0 : i32
    return %c0_i32, %c0_i32_0, %c0_i32_1 : i32, i32, i32
  }
  func.func @transform_8(%arg0: i32) -> (i32, i32, i32) {
    %c0_i32 = arith.constant 0 : i32
    %c0_i32_0 = arith.constant 0 : i32
    %c0_i32_1 = arith.constant 0 : i32
    %c0_i32_2 = arith.constant 0 : i32
    return %c0_i32, %c0_i32_0, %c0_i32_1 : i32, i32, i32
  }
  func.func @transform_9(%arg0: i32) -> (i32, i32, i32) {
    %c0_i32 = arith.constant 0 : i32
    %c0_i32_0 = arith.constant 0 : i32
    %c0_i32_1 = arith.constant 0 : i32
    %c0_i32_2 = arith.constant 0 : i32
    return %c0_i32, %c0_i32_0, %c0_i32_1 : i32, i32, i32
  }
  func.func @transform_10(%arg0: i32) -> (i32, i32, i32) {
    %c0_i32 = arith.constant 0 : i32
    %c0_i32_0 = arith.constant 0 : i32
    %c0_i32_1 = arith.constant 0 : i32
    return %arg0, %c0_i32, %c0_i32_0 : i32, i32, i32
  }
}

module attributes {stable_mosaic.version = 11 : i64} {
  func.func @_transformer_kernel(%arg0: i32, %arg1: i32, %arg2: memref<2x6x32xf32, #tpu.memory_space<vmem>>, %arg3: memref<1x1x32xf32, #tpu.memory_space<vmem>>, %arg4: memref<1x1x32xf32, #tpu.memory_space<vmem>>, %arg5: memref<1x32x96xbf16, #tpu.memory_space<vmem>>, %arg6: memref<1x32x32xbf16, #tpu.memory_space<vmem>>, %arg7: memref<1x1x32xf32, #tpu.memory_space<vmem>>, %arg8: memref<1x1x32xf32, #tpu.memory_space<vmem>>, %arg9: memref<1x1x32xf32, #tpu.memory_space<vmem>>, %arg10: memref<1x32x64xbf16, #tpu.memory_space<vmem>>, %arg11: memref<1x1x64xf32, #tpu.memory_space<vmem>>, %arg12: memref<1x64x32xbf16, #tpu.memory_space<vmem>>, %arg13: memref<1x1x32xf32, #tpu.memory_space<vmem>>, %arg14: memref<2x6x32xf32, #tpu.memory_space<vmem>>) attributes {dimension_semantics = [#tpu.dimension_semantics<parallel>, #tpu.dimension_semantics<arbitrary>], iteration_bounds = array<i64: 1, 2>, scalar_prefetch = 0 : i64, scratch_operands = 0 : i64, tpu.core_type = #tpu.core_type<tc>, window_params = [{transform_indices = @transform_0, window_bounds = array<i64: 2, 6, 32>}, {transform_indices = @transform_1, window_bounds = array<i64: 1, 1, 32>}, {transform_indices = @transform_2, window_bounds = array<i64: 1, 1, 32>}, {transform_indices = @transform_3, window_bounds = array<i64: 1, 32, 96>}, {transform_indices = @transform_4, window_bounds = array<i64: 1, 32, 32>}, {transform_indices = @transform_5, window_bounds = array<i64: 1, 1, 32>}, {transform_indices = @transform_6, window_bounds = array<i64: 1, 1, 32>}, {transform_indices = @transform_7, window_bounds = array<i64: 1, 1, 32>}, {transform_indices = @transform_8, window_bounds = array<i64: 1, 32, 64>}, {transform_indices = @transform_9, window_bounds = array<i64: 1, 1, 64>}, {transform_indices = @transform_10, window_bounds = array<i64: 1, 64, 32>}, {transform_indices = @transform_11, window_bounds = array<i64: 1, 1, 32>}, {transform_indices = @transform_12, window_bounds = array<i64: 2, 6, 32>}]} {
    %c0_i32 = arith.constant 0 : i32
    %0 = arith.cmpi eq, %arg1, %c0_i32 : i32
    %1 = arith.extui %0 : i1 to i32
    %c0_i32_0 = arith.constant 0 : i32
    %2 = arith.cmpi ne, %1, %c0_i32_0 : i32
    scf.if %2 {
      %c0_97 = arith.constant 0 : index
      %c0_98 = arith.constant 0 : index
      %c0_99 = arith.constant 0 : index
      %241 = vector.load %arg2[%c0_97, %c0_98, %c0_99] : memref<2x6x32xf32, #tpu.memory_space<vmem>>, vector<2x6x32xf32>
      %c0_100 = arith.constant 0 : index
      %c0_101 = arith.constant 0 : index
      %c0_102 = arith.constant 0 : index
      %242 = vector.load %arg14[%c0_100, %c0_101, %c0_102] : memref<2x6x32xf32, #tpu.memory_space<vmem>>, vector<2x6x32xf32>
      tpu.vector_store %arg14[%c0_100, %c0_101, %c0_102], %241 {strides = array<i32>} : memref<2x6x32xf32, #tpu.memory_space<vmem>>, vector<2x6x32xf32>,
    } else {
    }
    %c0 = arith.constant 0 : index
    %c0_1 = arith.constant 0 : index
    %c0_2 = arith.constant 0 : index
    %3 = vector.load %arg3[%c0, %c0_1, %c0_2] : memref<1x1x32xf32, #tpu.memory_space<vmem>>, vector<1x1x32xf32>
    %4 = vector.shape_cast %3 : vector<1x1x32xf32> to vector<1x32xf32>
    %c0_3 = arith.constant 0 : index
    %c0_4 = arith.constant 0 : index
    %c0_5 = arith.constant 0 : index
    %5 = vector.load %arg4[%c0_3, %c0_4, %c0_5] : memref<1x1x32xf32, #tpu.memory_space<vmem>>, vector<1x1x32xf32>
    %6 = vector.shape_cast %5 : vector<1x1x32xf32> to vector<1x32xf32>
    %c0_6 = arith.constant 0 : index
    %c0_7 = arith.constant 0 : index
    %c0_8 = arith.constant 0 : index
    %7 = vector.load %arg5[%c0_6, %c0_7, %c0_8] : memref<1x32x96xbf16, #tpu.memory_space<vmem>>, vector<1x32x96xbf16>
    %8 = vector.shape_cast %7 : vector<1x32x96xbf16> to vector<32x96xbf16>
    %c0_9 = arith.constant 0 : index
    %c0_10 = arith.constant 0 : index
    %c0_11 = arith.constant 0 : index
    %9 = vector.load %arg6[%c0_9, %c0_10, %c0_11] : memref<1x32x32xbf16, #tpu.memory_space<vmem>>, vector<1x32x32xbf16>
    %10 = vector.shape_cast %9 : vector<1x32x32xbf16> to vector<32x32xbf16>
    %c0_12 = arith.constant 0 : index
    %c0_13 = arith.constant 0 : index
    %c0_14 = arith.constant 0 : index
    %11 = vector.load %arg7[%c0_12, %c0_13, %c0_14] : memref<1x1x32xf32, #tpu.memory_space<vmem>>, vector<1x1x32xf32>
    %12 = vector.shape_cast %11 : vector<1x1x32xf32> to vector<1x32xf32>
    %c0_15 = arith.constant 0 : index
    %c0_16 = arith.constant 0 : index
    %c0_17 = arith.constant 0 : index
    %13 = vector.load %arg8[%c0_15, %c0_16, %c0_17] : memref<1x1x32xf32, #tpu.memory_space<vmem>>, vector<1x1x32xf32>
    %14 = vector.shape_cast %13 : vector<1x1x32xf32> to vector<1x32xf32>
    %c0_18 = arith.constant 0 : index
    %c0_19 = arith.constant 0 : index
    %c0_20 = arith.constant 0 : index
    %15 = vector.load %arg9[%c0_18, %c0_19, %c0_20] : memref<1x1x32xf32, #tpu.memory_space<vmem>>, vector<1x1x32xf32>
    %16 = vector.shape_cast %15 : vector<1x1x32xf32> to vector<1x32xf32>
    %c0_21 = arith.constant 0 : index
    %c0_22 = arith.constant 0 : index
    %c0_23 = arith.constant 0 : index
    %17 = vector.load %arg10[%c0_21, %c0_22, %c0_23] : memref<1x32x64xbf16, #tpu.memory_space<vmem>>, vector<1x32x64xbf16>
    %18 = vector.shape_cast %17 : vector<1x32x64xbf16> to vector<32x64xbf16>
    %c0_24 = arith.constant 0 : index
    %c0_25 = arith.constant 0 : index
    %c0_26 = arith.constant 0 : index
    %19 = vector.load %arg11[%c0_24, %c0_25, %c0_26] : memref<1x1x64xf32, #tpu.memory_space<vmem>>, vector<1x1x64xf32>
    %20 = vector.shape_cast %19 : vector<1x1x64xf32> to vector<1x64xf32>
    %c0_27 = arith.constant 0 : index
    %c0_28 = arith.constant 0 : index
    %c0_29 = arith.constant 0 : index
    %21 = vector.load %arg12[%c0_27, %c0_28, %c0_29] : memref<1x64x32xbf16, #tpu.memory_space<vmem>>, vector<1x64x32xbf16>
    %22 = vector.shape_cast %21 : vector<1x64x32xbf16> to vector<64x32xbf16>
    %c0_30 = arith.constant 0 : index
    %c0_31 = arith.constant 0 : index
    %c0_32 = arith.constant 0 : index
    %23 = vector.load %arg13[%c0_30, %c0_31, %c0_32] : memref<1x1x32xf32, #tpu.memory_space<vmem>>, vector<1x1x32xf32>
    %24 = vector.shape_cast %23 : vector<1x1x32xf32> to vector<1x32xf32>
    %c0_33 = arith.constant 0 : index
    %c0_34 = arith.constant 0 : index
    %c0_35 = arith.constant 0 : index
    %25 = vector.load %arg14[%c0_33, %c0_34, %c0_35] : memref<2x6x32xf32, #tpu.memory_space<vmem>>, vector<1x6x32xf32>
    %26 = vector.shape_cast %25 : vector<1x6x32xf32> to vector<6x32xf32>
    %cst = arith.constant dense<0.000000e+00> : vector<6xf32>
    %27 = vector.multi_reduction <add>, %26, %cst [1] : vector<6x32xf32> to vector<6xf32>
    %28 = vector.shape_cast %27 : vector<6xf32> to vector<6x1xf32>
    %cst_36 = arith.constant 3.200000e+01 : f32
    %29 = vector.broadcast %cst_36 : f32 to vector<6x1xf32>
    %30 = arith.divf %28, %29 : vector<6x1xf32>
    %31 = vector.broadcast %30 : vector<6x1xf32> to vector<6x32xf32>
    %32 = arith.subf %26, %31 : vector<6x32xf32>
    %33 = arith.mulf %32, %32 : vector<6x32xf32>
    %cst_37 = arith.constant dense<0.000000e+00> : vector<6xf32>
    %34 = vector.multi_reduction <add>, %33, %cst_37 [1] : vector<6x32xf32> to vector<6xf32>
    %35 = vector.shape_cast %34 : vector<6xf32> to vector<6x1xf32>
    %cst_38 = arith.constant 3.200000e+01 : f32
    %36 = vector.broadcast %cst_38 : f32 to vector<6x1xf32>
    %37 = arith.divf %35, %36 : vector<6x1xf32>
    %cst_39 = arith.constant 9.99999974E-6 : f32
    %38 = vector.broadcast %cst_39 : f32 to vector<6x1xf32>
    %39 = arith.addf %37, %38 : vector<6x1xf32>
    %40 = math.rsqrt %39 : vector<6x1xf32>
    %41 = vector.broadcast %40 : vector<6x1xf32> to vector<6x32xf32>
    %42 = arith.mulf %32, %41 : vector<6x32xf32>
    %43 = vector.broadcast %4 : vector<1x32xf32> to vector<6x32xf32>
    %44 = arith.mulf %42, %43 : vector<6x32xf32>
    %45 = vector.broadcast %6 : vector<1x32xf32> to vector<6x32xf32>
    %46 = arith.addf %44, %45 : vector<6x32xf32>
    %47 = arith.truncf %46 : vector<6x32xf32> to vector<6x32xbf16>
    %cst_40 = arith.constant dense<0.000000e+00> : vector<6x96xf32>
    %48 = tpu.matmul %47, %8, %cst_40 {dimension_numbers = #tpu.dot_dimension_numbers<[1], [0], [0], [1], [0, 0, 1, 1], [], []>} : vector<6x32xbf16>, vector<32x96xbf16>, vector<6x96xf32> -> vector<6x96xf32>
    %49 = arith.truncf %48 : vector<6x96xf32> to vector<6x96xbf16>
    %50 = vector.extract_strided_slice %49 {offsets = [0, 0], sizes = [6, 16], strides = [1, 1]} : vector<6x96xbf16> to vector<6x16xbf16>
    %51 = vector.extract_strided_slice %49 {offsets = [0, 32], sizes = [6, 16], strides = [1, 1]} : vector<6x96xbf16> to vector<6x16xbf16>
    %52 = vector.extract_strided_slice %49 {offsets = [0, 64], sizes = [6, 16], strides = [1, 1]} : vector<6x96xbf16> to vector<6x16xbf16>
    %cst_41 = arith.constant dense<0.000000e+00> : vector<6x6xf32>
    %53 = tpu.matmul %50, %51, %cst_41 {dimension_numbers = #tpu.dot_dimension_numbers<[1], [1], [0], [0], [0, 0, 1, 0], [], []>} : vector<6x16xbf16>, vector<6x16xbf16>, vector<6x6xf32> -> vector<6x6xf32>
    %cst_42 = arith.constant 2.500000e-01 : f32
    %54 = vector.broadcast %cst_42 : f32 to vector<6x6xf32>
    %55 = arith.mulf %53, %54 : vector<6x6xf32>
    %cst_43 = arith.constant dense<0xFF800000> : vector<6xf32>
    %56 = vector.multi_reduction <maximumf>, %55, %cst_43 [1] : vector<6x6xf32> to vector<6xf32>
    %57 = vector.shape_cast %56 : vector<6xf32> to vector<6x1xf32>
    %58 = vector.broadcast %57 : vector<6x1xf32> to vector<6x6xf32>
    %59 = arith.subf %55, %58 : vector<6x6xf32>
    %60 = math.exp %59 : vector<6x6xf32>
    %cst_44 = arith.constant dense<0.000000e+00> : vector<6xf32>
    %61 = vector.multi_reduction <add>, %60, %cst_44 [1] : vector<6x6xf32> to vector<6xf32>
    %62 = vector.shape_cast %61 : vector<6xf32> to vector<6x1xf32>
    %63 = tpu.reciprocal %62 {approx = true} : vector<6x1xf32> -> vector<6x1xf32>
    %64 = vector.broadcast %63 : vector<6x1xf32> to vector<6x6xf32>
    %65 = arith.mulf %60, %64 : vector<6x6xf32>
    %66 = arith.truncf %65 : vector<6x6xf32> to vector<6x6xbf16>
    %cst_45 = arith.constant dense<0.000000e+00> : vector<6x16xf32>
    %67 = tpu.matmul %66, %52, %cst_45 {dimension_numbers = #tpu.dot_dimension_numbers<[1], [0], [0], [1], [0, 0, 1, 1], [], []>} : vector<6x6xbf16>, vector<6x16xbf16>, vector<6x16xf32> -> vector<6x16xf32>
    %68 = arith.truncf %67 : vector<6x16xf32> to vector<6x16xbf16>
    %69 = vector.extract_strided_slice %49 {offsets = [0, 16], sizes = [6, 16], strides = [1, 1]} : vector<6x96xbf16> to vector<6x16xbf16>
    %70 = vector.extract_strided_slice %49 {offsets = [0, 48], sizes = [6, 16], strides = [1, 1]} : vector<6x96xbf16> to vector<6x16xbf16>
    %71 = vector.extract_strided_slice %49 {offsets = [0, 80], sizes = [6, 16], strides = [1, 1]} : vector<6x96xbf16> to vector<6x16xbf16>
    %cst_46 = arith.constant dense<0.000000e+00> : vector<6x6xf32>
    %72 = tpu.matmul %69, %70, %cst_46 {dimension_numbers = #tpu.dot_dimension_numbers<[1], [1], [0], [0], [0, 0, 1, 0], [], []>} : vector<6x16xbf16>, vector<6x16xbf16>, vector<6x6xf32> -> vector<6x6xf32>
    %cst_47 = arith.constant 2.500000e-01 : f32
    %73 = vector.broadcast %cst_47 : f32 to vector<6x6xf32>
    %74 = arith.mulf %72, %73 : vector<6x6xf32>
    %cst_48 = arith.constant dense<0xFF800000> : vector<6xf32>
    %75 = vector.multi_reduction <maximumf>, %74, %cst_48 [1] : vector<6x6xf32> to vector<6xf32>
    %76 = vector.shape_cast %75 : vector<6xf32> to vector<6x1xf32>
    %77 = vector.broadcast %76 : vector<6x1xf32> to vector<6x6xf32>
    %78 = arith.subf %74, %77 : vector<6x6xf32>
    %79 = math.exp %78 : vector<6x6xf32>
    %cst_49 = arith.constant dense<0.000000e+00> : vector<6xf32>
    %80 = vector.multi_reduction <add>, %79, %cst_49 [1] : vector<6x6xf32> to vector<6xf32>
    %81 = vector.shape_cast %80 : vector<6xf32> to vector<6x1xf32>
    %82 = tpu.reciprocal %81 {approx = true} : vector<6x1xf32> -> vector<6x1xf32>
    %83 = vector.broadcast %82 : vector<6x1xf32> to vector<6x6xf32>
    %84 = arith.mulf %79, %83 : vector<6x6xf32>
    %85 = arith.truncf %84 : vector<6x6xf32> to vector<6x6xbf16>
    %cst_50 = arith.constant dense<0.000000e+00> : vector<6x16xf32>
    %86 = tpu.matmul %85, %71, %cst_50 {dimension_numbers = #tpu.dot_dimension_numbers<[1], [0], [0], [1], [0, 0, 1, 1], [], []>} : vector<6x6xbf16>, vector<6x16xbf16>, vector<6x16xf32> -> vector<6x16xf32>
    %87 = arith.truncf %86 : vector<6x16xf32> to vector<6x16xbf16>
    %88 = tpu.concatenate %68, %87 in 1 : vector<6x16xbf16>, vector<6x16xbf16> -> vector<6x32xbf16>
    %cst_51 = arith.constant dense<0.000000e+00> : vector<6x32xf32>
    %89 = tpu.matmul %88, %10, %cst_51 {dimension_numbers = #tpu.dot_dimension_numbers<[1], [0], [0], [1], [0, 0, 1, 1], [], []>} : vector<6x32xbf16>, vector<32x32xbf16>, vector<6x32xf32> -> vector<6x32xf32>
    %90 = arith.addf %26, %89 : vector<6x32xf32>
    %91 = vector.broadcast %12 : vector<1x32xf32> to vector<6x32xf32>
    %92 = arith.addf %90, %91 : vector<6x32xf32>
    %cst_52 = arith.constant dense<0.000000e+00> : vector<6xf32>
    %93 = vector.multi_reduction <add>, %92, %cst_52 [1] : vector<6x32xf32> to vector<6xf32>
    %94 = vector.shape_cast %93 : vector<6xf32> to vector<6x1xf32>
    %cst_53 = arith.constant 3.200000e+01 : f32
    %95 = vector.broadcast %cst_53 : f32 to vector<6x1xf32>
    %96 = arith.divf %94, %95 : vector<6x1xf32>
    %97 = vector.broadcast %96 : vector<6x1xf32> to vector<6x32xf32>
    %98 = arith.subf %92, %97 : vector<6x32xf32>
    %99 = arith.mulf %98, %98 : vector<6x32xf32>
    %cst_54 = arith.constant dense<0.000000e+00> : vector<6xf32>
    %100 = vector.multi_reduction <add>, %99, %cst_54 [1] : vector<6x32xf32> to vector<6xf32>
    %101 = vector.shape_cast %100 : vector<6xf32> to vector<6x1xf32>
    %cst_55 = arith.constant 3.200000e+01 : f32
    %102 = vector.broadcast %cst_55 : f32 to vector<6x1xf32>
    %103 = arith.divf %101, %102 : vector<6x1xf32>
    %cst_56 = arith.constant 9.99999974E-6 : f32
    %104 = vector.broadcast %cst_56 : f32 to vector<6x1xf32>
    %105 = arith.addf %103, %104 : vector<6x1xf32>
    %106 = math.rsqrt %105 : vector<6x1xf32>
    %107 = vector.broadcast %106 : vector<6x1xf32> to vector<6x32xf32>
    %108 = arith.mulf %98, %107 : vector<6x32xf32>
    %109 = vector.broadcast %14 : vector<1x32xf32> to vector<6x32xf32>
    %110 = arith.mulf %108, %109 : vector<6x32xf32>
    %111 = vector.broadcast %16 : vector<1x32xf32> to vector<6x32xf32>
    %112 = arith.addf %110, %111 : vector<6x32xf32>
    %113 = arith.truncf %112 : vector<6x32xf32> to vector<6x32xbf16>
    %cst_57 = arith.constant dense<0.000000e+00> : vector<6x64xf32>
    %114 = tpu.matmul %113, %18, %cst_57 {dimension_numbers = #tpu.dot_dimension_numbers<[1], [0], [0], [1], [0, 0, 1, 1], [], []>} : vector<6x32xbf16>, vector<32x64xbf16>, vector<6x64xf32> -> vector<6x64xf32>
    %115 = vector.broadcast %20 : vector<1x64xf32> to vector<6x64xf32>
    %116 = arith.addf %114, %115 : vector<6x64xf32>
    %cst_58 = arith.constant 5.000000e-01 : f32
    %117 = vector.broadcast %cst_58 : f32 to vector<6x64xf32>
    %118 = arith.mulf %117, %116 : vector<6x64xf32>
    %cst_59 = arith.constant 0.707106769 : f32
    %119 = vector.broadcast %cst_59 : f32 to vector<6x64xf32>
    %120 = arith.mulf %116, %119 : vector<6x64xf32>
    %121 = math.erf %120 : vector<6x64xf32>
    %cst_60 = arith.constant 1.000000e+00 : f32
    %122 = vector.broadcast %cst_60 : f32 to vector<6x64xf32>
    %123 = arith.addf %122, %121 : vector<6x64xf32>
    %124 = arith.mulf %118, %123 : vector<6x64xf32>
    %125 = arith.truncf %124 : vector<6x64xf32> to vector<6x64xbf16>
    %cst_61 = arith.constant dense<0.000000e+00> : vector<6x32xf32>
    %126 = tpu.matmul %125, %22, %cst_61 {dimension_numbers = #tpu.dot_dimension_numbers<[1], [0], [0], [1], [0, 0, 1, 1], [], []>} : vector<6x64xbf16>, vector<64x32xbf16>, vector<6x32xf32> -> vector<6x32xf32>
    %127 = vector.broadcast %24 : vector<1x32xf32> to vector<6x32xf32>
    %128 = arith.addf %126, %127 : vector<6x32xf32>
    %129 = arith.addf %92, %128 : vector<6x32xf32>
    %c0_62 = arith.constant 0 : index
    %c0_63 = arith.constant 0 : index
    %c0_64 = arith.constant 0 : index
    %130 = vector.load %arg14[%c0_62, %c0_63, %c0_64] : memref<2x6x32xf32, #tpu.memory_space<vmem>>, vector<1x6x32xf32>
    %131 = vector.shape_cast %130 : vector<1x6x32xf32> to vector<6x32xf32>
    %132 = vector.shape_cast %129 : vector<6x32xf32> to vector<1x6x32xf32>
    tpu.vector_store %arg14[%c0_62, %c0_63, %c0_64], %132 {strides = array<i32>} : memref<2x6x32xf32, #tpu.memory_space<vmem>>, vector<1x6x32xf32>,
    %c1 = arith.constant 1 : index
    %c0_65 = arith.constant 0 : index
    %c0_66 = arith.constant 0 : index
    %133 = vector.load %arg14[%c1, %c0_65, %c0_66] : memref<2x6x32xf32, #tpu.memory_space<vmem>>, vector<1x6x32xf32>
    %134 = vector.shape_cast %133 : vector<1x6x32xf32> to vector<6x32xf32>
    %cst_67 = arith.constant dense<0.000000e+00> : vector<6xf32>
    %135 = vector.multi_reduction <add>, %134, %cst_67 [1] : vector<6x32xf32> to vector<6xf32>
    %136 = vector.shape_cast %135 : vector<6xf32> to vector<6x1xf32>
    %cst_68 = arith.constant 3.200000e+01 : f32
    %137 = vector.broadcast %cst_68 : f32 to vector<6x1xf32>
    %138 = arith.divf %136, %137 : vector<6x1xf32>
    %139 = vector.broadcast %138 : vector<6x1xf32> to vector<6x32xf32>
    %140 = arith.subf %134, %139 : vector<6x32xf32>
    %141 = arith.mulf %140, %140 : vector<6x32xf32>
    %cst_69 = arith.constant dense<0.000000e+00> : vector<6xf32>
    %142 = vector.multi_reduction <add>, %141, %cst_69 [1] : vector<6x32xf32> to vector<6xf32>
    %143 = vector.shape_cast %142 : vector<6xf32> to vector<6x1xf32>
    %cst_70 = arith.constant 3.200000e+01 : f32
    %144 = vector.broadcast %cst_70 : f32 to vector<6x1xf32>
    %145 = arith.divf %143, %144 : vector<6x1xf32>
    %cst_71 = arith.constant 9.99999974E-6 : f32
    %146 = vector.broadcast %cst_71 : f32 to vector<6x1xf32>
    %147 = arith.addf %145, %146 : vector<6x1xf32>
    %148 = math.rsqrt %147 : vector<6x1xf32>
    %149 = vector.broadcast %148 : vector<6x1xf32> to vector<6x32xf32>
    %150 = arith.mulf %140, %149 : vector<6x32xf32>
    %151 = vector.broadcast %4 : vector<1x32xf32> to vector<6x32xf32>
    %152 = arith.mulf %150, %151 : vector<6x32xf32>
    %153 = vector.broadcast %6 : vector<1x32xf32> to vector<6x32xf32>
    %154 = arith.addf %152, %153 : vector<6x32xf32>
    %155 = arith.truncf %154 : vector<6x32xf32> to vector<6x32xbf16>
    %cst_72 = arith.constant dense<0.000000e+00> : vector<6x96xf32>
    %156 = tpu.matmul %155, %8, %cst_72 {dimension_numbers = #tpu.dot_dimension_numbers<[1], [0], [0], [1], [0, 0, 1, 1], [], []>} : vector<6x32xbf16>, vector<32x96xbf16>, vector<6x96xf32> -> vector<6x96xf32>
    %157 = arith.truncf %156 : vector<6x96xf32> to vector<6x96xbf16>
    %158 = vector.extract_strided_slice %157 {offsets = [0, 0], sizes = [6, 16], strides = [1, 1]} : vector<6x96xbf16> to vector<6x16xbf16>
    %159 = vector.extract_strided_slice %157 {offsets = [0, 32], sizes = [6, 16], strides = [1, 1]} : vector<6x96xbf16> to vector<6x16xbf16>
    %160 = vector.extract_strided_slice %157 {offsets = [0, 64], sizes = [6, 16], strides = [1, 1]} : vector<6x96xbf16> to vector<6x16xbf16>
    %cst_73 = arith.constant dense<0.000000e+00> : vector<6x6xf32>
    %161 = tpu.matmul %158, %159, %cst_73 {dimension_numbers = #tpu.dot_dimension_numbers<[1], [1], [0], [0], [0, 0, 1, 0], [], []>} : vector<6x16xbf16>, vector<6x16xbf16>, vector<6x6xf32> -> vector<6x6xf32>
    %cst_74 = arith.constant 2.500000e-01 : f32
    %162 = vector.broadcast %cst_74 : f32 to vector<6x6xf32>
    %163 = arith.mulf %161, %162 : vector<6x6xf32>
    %cst_75 = arith.constant dense<0xFF800000> : vector<6xf32>
    %164 = vector.multi_reduction <maximumf>, %163, %cst_75 [1] : vector<6x6xf32> to vector<6xf32>
    %165 = vector.shape_cast %164 : vector<6xf32> to vector<6x1xf32>
    %166 = vector.broadcast %165 : vector<6x1xf32> to vector<6x6xf32>
    %167 = arith.subf %163, %166 : vector<6x6xf32>
    %168 = math.exp %167 : vector<6x6xf32>
    %cst_76 = arith.constant dense<0.000000e+00> : vector<6xf32>
    %169 = vector.multi_reduction <add>, %168, %cst_76 [1] : vector<6x6xf32> to vector<6xf32>
    %170 = vector.shape_cast %169 : vector<6xf32> to vector<6x1xf32>
    %171 = tpu.reciprocal %170 {approx = true} : vector<6x1xf32> -> vector<6x1xf32>
    %172 = vector.broadcast %171 : vector<6x1xf32> to vector<6x6xf32>
    %173 = arith.mulf %168, %172 : vector<6x6xf32>
    %174 = arith.truncf %173 : vector<6x6xf32> to vector<6x6xbf16>
    %cst_77 = arith.constant dense<0.000000e+00> : vector<6x16xf32>
    %175 = tpu.matmul %174, %160, %cst_77 {dimension_numbers = #tpu.dot_dimension_numbers<[1], [0], [0], [1], [0, 0, 1, 1], [], []>} : vector<6x6xbf16>, vector<6x16xbf16>, vector<6x16xf32> -> vector<6x16xf32>
    %176 = arith.truncf %175 : vector<6x16xf32> to vector<6x16xbf16>
    %177 = vector.extract_strided_slice %157 {offsets = [0, 16], sizes = [6, 16], strides = [1, 1]} : vector<6x96xbf16> to vector<6x16xbf16>
    %178 = vector.extract_strided_slice %157 {offsets = [0, 48], sizes = [6, 16], strides = [1, 1]} : vector<6x96xbf16> to vector<6x16xbf16>
    %179 = vector.extract_strided_slice %157 {offsets = [0, 80], sizes = [6, 16], strides = [1, 1]} : vector<6x96xbf16> to vector<6x16xbf16>
    %cst_78 = arith.constant dense<0.000000e+00> : vector<6x6xf32>
    %180 = tpu.matmul %177, %178, %cst_78 {dimension_numbers = #tpu.dot_dimension_numbers<[1], [1], [0], [0], [0, 0, 1, 0], [], []>} : vector<6x16xbf16>, vector<6x16xbf16>, vector<6x6xf32> -> vector<6x6xf32>
    %cst_79 = arith.constant 2.500000e-01 : f32
    %181 = vector.broadcast %cst_79 : f32 to vector<6x6xf32>
    %182 = arith.mulf %180, %181 : vector<6x6xf32>
    %cst_80 = arith.constant dense<0xFF800000> : vector<6xf32>
    %183 = vector.multi_reduction <maximumf>, %182, %cst_80 [1] : vector<6x6xf32> to vector<6xf32>
    %184 = vector.shape_cast %183 : vector<6xf32> to vector<6x1xf32>
    %185 = vector.broadcast %184 : vector<6x1xf32> to vector<6x6xf32>
    %186 = arith.subf %182, %185 : vector<6x6xf32>
    %187 = math.exp %186 : vector<6x6xf32>
    %cst_81 = arith.constant dense<0.000000e+00> : vector<6xf32>
    %188 = vector.multi_reduction <add>, %187, %cst_81 [1] : vector<6x6xf32> to vector<6xf32>
    %189 = vector.shape_cast %188 : vector<6xf32> to vector<6x1xf32>
    %190 = tpu.reciprocal %189 {approx = true} : vector<6x1xf32> -> vector<6x1xf32>
    %191 = vector.broadcast %190 : vector<6x1xf32> to vector<6x6xf32>
    %192 = arith.mulf %187, %191 : vector<6x6xf32>
    %193 = arith.truncf %192 : vector<6x6xf32> to vector<6x6xbf16>
    %cst_82 = arith.constant dense<0.000000e+00> : vector<6x16xf32>
    %194 = tpu.matmul %193, %179, %cst_82 {dimension_numbers = #tpu.dot_dimension_numbers<[1], [0], [0], [1], [0, 0, 1, 1], [], []>} : vector<6x6xbf16>, vector<6x16xbf16>, vector<6x16xf32> -> vector<6x16xf32>
    %195 = arith.truncf %194 : vector<6x16xf32> to vector<6x16xbf16>
    %196 = tpu.concatenate %176, %195 in 1 : vector<6x16xbf16>, vector<6x16xbf16> -> vector<6x32xbf16>
    %cst_83 = arith.constant dense<0.000000e+00> : vector<6x32xf32>
    %197 = tpu.matmul %196, %10, %cst_83 {dimension_numbers = #tpu.dot_dimension_numbers<[1], [0], [0], [1], [0, 0, 1, 1], [], []>} : vector<6x32xbf16>, vector<32x32xbf16>, vector<6x32xf32> -> vector<6x32xf32>
    %198 = arith.addf %134, %197 : vector<6x32xf32>
    %199 = vector.broadcast %12 : vector<1x32xf32> to vector<6x32xf32>
    %200 = arith.addf %198, %199 : vector<6x32xf32>
    %cst_84 = arith.constant dense<0.000000e+00> : vector<6xf32>
    %201 = vector.multi_reduction <add>, %200, %cst_84 [1] : vector<6x32xf32> to vector<6xf32>
    %202 = vector.shape_cast %201 : vector<6xf32> to vector<6x1xf32>
    %cst_85 = arith.constant 3.200000e+01 : f32
    %203 = vector.broadcast %cst_85 : f32 to vector<6x1xf32>
    %204 = arith.divf %202, %203 : vector<6x1xf32>
    %205 = vector.broadcast %204 : vector<6x1xf32> to vector<6x32xf32>
    %206 = arith.subf %200, %205 : vector<6x32xf32>
    %207 = arith.mulf %206, %206 : vector<6x32xf32>
    %cst_86 = arith.constant dense<0.000000e+00> : vector<6xf32>
    %208 = vector.multi_reduction <add>, %207, %cst_86 [1] : vector<6x32xf32> to vector<6xf32>
    %209 = vector.shape_cast %208 : vector<6xf32> to vector<6x1xf32>
    %cst_87 = arith.constant 3.200000e+01 : f32
    %210 = vector.broadcast %cst_87 : f32 to vector<6x1xf32>
    %211 = arith.divf %209, %210 : vector<6x1xf32>
    %cst_88 = arith.constant 9.99999974E-6 : f32
    %212 = vector.broadcast %cst_88 : f32 to vector<6x1xf32>
    %213 = arith.addf %211, %212 : vector<6x1xf32>
    %214 = math.rsqrt %213 : vector<6x1xf32>
    %215 = vector.broadcast %214 : vector<6x1xf32> to vector<6x32xf32>
    %216 = arith.mulf %206, %215 : vector<6x32xf32>
    %217 = vector.broadcast %14 : vector<1x32xf32> to vector<6x32xf32>
    %218 = arith.mulf %216, %217 : vector<6x32xf32>
    %219 = vector.broadcast %16 : vector<1x32xf32> to vector<6x32xf32>
    %220 = arith.addf %218, %219 : vector<6x32xf32>
    %221 = arith.truncf %220 : vector<6x32xf32> to vector<6x32xbf16>
    %cst_89 = arith.constant dense<0.000000e+00> : vector<6x64xf32>
    %222 = tpu.matmul %221, %18, %cst_89 {dimension_numbers = #tpu.dot_dimension_numbers<[1], [0], [0], [1], [0, 0, 1, 1], [], []>} : vector<6x32xbf16>, vector<32x64xbf16>, vector<6x64xf32> -> vector<6x64xf32>
    %223 = vector.broadcast %20 : vector<1x64xf32> to vector<6x64xf32>
    %224 = arith.addf %222, %223 : vector<6x64xf32>
    %cst_90 = arith.constant 5.000000e-01 : f32
    %225 = vector.broadcast %cst_90 : f32 to vector<6x64xf32>
    %226 = arith.mulf %225, %224 : vector<6x64xf32>
    %cst_91 = arith.constant 0.707106769 : f32
    %227 = vector.broadcast %cst_91 : f32 to vector<6x64xf32>
    %228 = arith.mulf %224, %227 : vector<6x64xf32>
    %229 = math.erf %228 : vector<6x64xf32>
    %cst_92 = arith.constant 1.000000e+00 : f32
    %230 = vector.broadcast %cst_92 : f32 to vector<6x64xf32>
    %231 = arith.addf %230, %229 : vector<6x64xf32>
    %232 = arith.mulf %226, %231 : vector<6x64xf32>
    %233 = arith.truncf %232 : vector<6x64xf32> to vector<6x64xbf16>
    %cst_93 = arith.constant dense<0.000000e+00> : vector<6x32xf32>
    %234 = tpu.matmul %233, %22, %cst_93 {dimension_numbers = #tpu.dot_dimension_numbers<[1], [0], [0], [1], [0, 0, 1, 1], [], []>} : vector<6x64xbf16>, vector<64x32xbf16>, vector<6x32xf32> -> vector<6x32xf32>
    %235 = vector.broadcast %24 : vector<1x32xf32> to vector<6x32xf32>
    %236 = arith.addf %234, %235 : vector<6x32xf32>
    %237 = arith.addf %200, %236 : vector<6x32xf32>
    %c1_94 = arith.constant 1 : index
    %c0_95 = arith.constant 0 : index
    %c0_96 = arith.constant 0 : index
    %238 = vector.load %arg14[%c1_94, %c0_95, %c0_96] : memref<2x6x32xf32, #tpu.memory_space<vmem>>, vector<1x6x32xf32>
    %239 = vector.shape_cast %238 : vector<1x6x32xf32> to vector<6x32xf32>
    %240 = vector.shape_cast %237 : vector<6x32xf32> to vector<1x6x32xf32>
    tpu.vector_store %arg14[%c1_94, %c0_95, %c0_96], %240 {strides = array<i32>} : memref<2x6x32xf32, #tpu.memory_space<vmem>>, vector<1x6x32xf32>,
    return
  }
  func.func @transform_0(%arg0: i32, %arg1: i32) -> (i32, i32, i32) {
    %c0_i32 = arith.constant 0 : i32
    %c0_i32_0 = arith.constant 0 : i32
    %c0_i32_1 = arith.constant 0 : i32
    return %arg0, %c0_i32, %c0_i32_0 : i32, i32, i32
  }
  func.func @transform_1(%arg0: i32, %arg1: i32) -> (i32, i32, i32) {
    %c0_i32 = arith.constant 0 : i32
    %c0_i32_0 = arith.constant 0 : i32
    %c0_i32_1 = arith.constant 0 : i32
    return %arg1, %c0_i32, %c0_i32_0 : i32, i32, i32
  }
  func.func @transform_2(%arg0: i32, %arg1: i32) -> (i32, i32, i32) {
    %c0_i32 = arith.constant 0 : i32
    %c0_i32_0 = arith.constant 0 : i32
    %c0_i32_1 = arith.constant 0 : i32
    return %arg1, %c0_i32, %c0_i32_0 : i32, i32, i32
  }
  func.func @transform_3(%arg0: i32, %arg1: i32) -> (i32, i32, i32) {
    %c0_i32 = arith.constant 0 : i32
    %c0_i32_0 = arith.constant 0 : i32
    %c0_i32_1 = arith.constant 0 : i32
    return %arg1, %c0_i32, %c0_i32_0 : i32, i32, i32
  }
  func.func @transform_4(%arg0: i32, %arg1: i32) -> (i32, i32, i32) {
    %c0_i32 = arith.constant 0 : i32
    %c0_i32_0 = arith.constant 0 : i32
    %c0_i32_1 = arith.constant 0 : i32
    return %arg1, %c0_i32, %c0_i32_0 : i32, i32, i32
  }
  func.func @transform_5(%arg0: i32, %arg1: i32) -> (i32, i32, i32) {
    %c0_i32 = arith.constant 0 : i32
    %c0_i32_0 = arith.constant 0 : i32
    %c0_i32_1 = arith.constant 0 : i32
    return %arg1, %c0_i32, %c0_i32_0 : i32, i32, i32
  }
  func.func @transform_6(%arg0: i32, %arg1: i32) -> (i32, i32, i32) {
    %c0_i32 = arith.constant 0 : i32
    %c0_i32_0 = arith.constant 0 : i32
    %c0_i32_1 = arith.constant 0 : i32
    return %arg1, %c0_i32, %c0_i32_0 : i32, i32, i32
  }
  func.func @transform_7(%arg0: i32, %arg1: i32) -> (i32, i32, i32) {
    %c0_i32 = arith.constant 0 : i32
    %c0_i32_0 = arith.constant 0 : i32
    %c0_i32_1 = arith.constant 0 : i32
    return %arg1, %c0_i32, %c0_i32_0 : i32, i32, i32
  }
  func.func @transform_8(%arg0: i32, %arg1: i32) -> (i32, i32, i32) {
    %c0_i32 = arith.constant 0 : i32
    %c0_i32_0 = arith.constant 0 : i32
    %c0_i32_1 = arith.constant 0 : i32
    return %arg1, %c0_i32, %c0_i32_0 : i32, i32, i32
  }
  func.func @transform_9(%arg0: i32, %arg1: i32) -> (i32, i32, i32) {
    %c0_i32 = arith.constant 0 : i32
    %c0_i32_0 = arith.constant 0 : i32
    %c0_i32_1 = arith.constant 0 : i32
    return %arg1, %c0_i32, %c0_i32_0 : i32, i32, i32
  }
  func.func @transform_10(%arg0: i32, %arg1: i32) -> (i32, i32, i32) {
    %c0_i32 = arith.constant 0 : i32
    %c0_i32_0 = arith.constant 0 : i32
    %c0_i32_1 = arith.constant 0 : i32
    return %arg1, %c0_i32, %c0_i32_0 : i32, i32, i32
  }
  func.func @transform_11(%arg0: i32, %arg1: i32) -> (i32, i32, i32) {
    %c0_i32 = arith.constant 0 : i32
    %c0_i32_0 = arith.constant 0 : i32
    %c0_i32_1 = arith.constant 0 : i32
    return %arg1, %c0_i32, %c0_i32_0 : i32, i32, i32
  }
  func.func @transform_12(%arg0: i32, %arg1: i32) -> (i32, i32, i32) {
    %c0_i32 = arith.constant 0 : i32
    %c0_i32_0 = arith.constant 0 : i32
    %c0_i32_1 = arith.constant 0 : i32
    return %arg0, %c0_i32, %c0_i32_0 : i32, i32, i32
  }
}

module attributes {stable_mosaic.version = 11 : i64} {
  func.func @_patch_embed_kernel(%arg0: i32, %arg1: memref<2x4x192xf32, #tpu.memory_space<vmem>>, %arg2: memref<1x192xf32, #tpu.memory_space<vmem>>, %arg3: memref<1x192xf32, #tpu.memory_space<vmem>>, %arg4: memref<192x32xbf16, #tpu.memory_space<vmem>>, %arg5: memref<1x32xf32, #tpu.memory_space<vmem>>, %arg6: memref<1x32xf32, #tpu.memory_space<vmem>>, %arg7: memref<1x32xf32, #tpu.memory_space<vmem>>, %arg8: memref<1x5x32xf32, #tpu.memory_space<vmem>>, %arg9: memref<1x1x32xf32, #tpu.memory_space<vmem>>, %arg10: memref<2x5x32xf32, #tpu.memory_space<vmem>>) attributes {dimension_semantics = [#tpu.dimension_semantics<parallel>], iteration_bounds = array<i64: 1>, scalar_prefetch = 0 : i64, scratch_operands = 0 : i64, tpu.core_type = #tpu.core_type<tc>, window_params = [{transform_indices = @transform_0, window_bounds = array<i64: 2, 4, 192>}, {pipeline_mode = #tpu.pipeline_mode<synchronous>, transform_indices = @transform_1, window_bounds = array<i64: 1, 192>}, {pipeline_mode = #tpu.pipeline_mode<synchronous>, transform_indices = @transform_2, window_bounds = array<i64: 1, 192>}, {pipeline_mode = #tpu.pipeline_mode<synchronous>, transform_indices = @transform_3, window_bounds = array<i64: 192, 32>}, {pipeline_mode = #tpu.pipeline_mode<synchronous>, transform_indices = @transform_4, window_bounds = array<i64: 1, 32>}, {pipeline_mode = #tpu.pipeline_mode<synchronous>, transform_indices = @transform_5, window_bounds = array<i64: 1, 32>}, {pipeline_mode = #tpu.pipeline_mode<synchronous>, transform_indices = @transform_6, window_bounds = array<i64: 1, 32>}, {pipeline_mode = #tpu.pipeline_mode<synchronous>, transform_indices = @transform_7, window_bounds = array<i64: 1, 5, 32>}, {pipeline_mode = #tpu.pipeline_mode<synchronous>, transform_indices = @transform_8, window_bounds = array<i64: 1, 1, 32>}, {transform_indices = @transform_9, window_bounds = array<i64: 2, 5, 32>}]} {
    %c0 = arith.constant 0 : index
    %c0_0 = arith.constant 0 : index
    %c0_1 = arith.constant 0 : index
    %0 = vector.load %arg8[%c0, %c0_0, %c0_1] : memref<1x5x32xf32, #tpu.memory_space<vmem>>, vector<1x5x32xf32>
    %1 = vector.shape_cast %0 : vector<1x5x32xf32> to vector<5x32xf32>
    %c0_2 = arith.constant 0 : index
    %c0_3 = arith.constant 0 : index
    %c0_4 = arith.constant 0 : index
    %2 = vector.load %arg9[%c0_2, %c0_3, %c0_4] : memref<1x1x32xf32, #tpu.memory_space<vmem>>, vector<1x1x32xf32>
    %3 = vector.shape_cast %2 : vector<1x1x32xf32> to vector<1x32xf32>
    %4 = vector.extract_strided_slice %1 {offsets = [0, 0], sizes = [1, 32], strides = [1, 1]} : vector<5x32xf32> to vector<1x32xf32>
    %5 = arith.addf %3, %4 : vector<1x32xf32>
    %6 = vector.extract_strided_slice %1 {offsets = [1, 0], sizes = [4, 32], strides = [1, 1]} : vector<5x32xf32> to vector<4x32xf32>
    %c0_5 = arith.constant 0 : index
    %c0_6 = arith.constant 0 : index
    %7 = vector.load %arg4[%c0_5, %c0_6] : memref<192x32xbf16, #tpu.memory_space<vmem>>, vector<192x32xbf16>
    %c0_7 = arith.constant 0 : index
    %c0_8 = arith.constant 0 : index
    %8 = vector.load %arg5[%c0_7, %c0_8] : memref<1x32xf32, #tpu.memory_space<vmem>>, vector<1x32xf32>
    %c0_9 = arith.constant 0 : index
    %c0_10 = arith.constant 0 : index
    %9 = vector.load %arg2[%c0_9, %c0_10] : memref<1x192xf32, #tpu.memory_space<vmem>>, vector<1x192xf32>
    %c0_11 = arith.constant 0 : index
    %c0_12 = arith.constant 0 : index
    %10 = vector.load %arg3[%c0_11, %c0_12] : memref<1x192xf32, #tpu.memory_space<vmem>>, vector<1x192xf32>
    %c0_13 = arith.constant 0 : index
    %c0_14 = arith.constant 0 : index
    %11 = vector.load %arg6[%c0_13, %c0_14] : memref<1x32xf32, #tpu.memory_space<vmem>>, vector<1x32xf32>
    %c0_15 = arith.constant 0 : index
    %c0_16 = arith.constant 0 : index
    %12 = vector.load %arg7[%c0_15, %c0_16] : memref<1x32xf32, #tpu.memory_space<vmem>>, vector<1x32xf32>
    %c0_17 = arith.constant 0 : index
    %c0_18 = arith.constant 0 : index
    %c0_19 = arith.constant 0 : index
    %13 = vector.load %arg1[%c0_17, %c0_18, %c0_19] : memref<2x4x192xf32, #tpu.memory_space<vmem>>, vector<1x4x192xf32>
    %14 = vector.shape_cast %13 : vector<1x4x192xf32> to vector<4x192xf32>
    %cst = arith.constant dense<0.000000e+00> : vector<4xf32>
    %15 = vector.multi_reduction <add>, %14, %cst [1] : vector<4x192xf32> to vector<4xf32>
    %16 = vector.shape_cast %15 : vector<4xf32> to vector<4x1xf32>
    %cst_20 = arith.constant 1.920000e+02 : f32
    %17 = vector.broadcast %cst_20 : f32 to vector<4x1xf32>
    %18 = arith.divf %16, %17 : vector<4x1xf32>
    %19 = vector.broadcast %18 : vector<4x1xf32> to vector<4x192xf32>
    %20 = arith.subf %14, %19 : vector<4x192xf32>
    %21 = arith.mulf %20, %20 : vector<4x192xf32>
    %cst_21 = arith.constant dense<0.000000e+00> : vector<4xf32>
    %22 = vector.multi_reduction <add>, %21, %cst_21 [1] : vector<4x192xf32> to vector<4xf32>
    %23 = vector.shape_cast %22 : vector<4xf32> to vector<4x1xf32>
    %cst_22 = arith.constant 1.920000e+02 : f32
    %24 = vector.broadcast %cst_22 : f32 to vector<4x1xf32>
    %25 = arith.divf %23, %24 : vector<4x1xf32>
    %cst_23 = arith.constant 9.99999974E-6 : f32
    %26 = vector.broadcast %cst_23 : f32 to vector<4x1xf32>
    %27 = arith.addf %25, %26 : vector<4x1xf32>
    %28 = math.rsqrt %27 : vector<4x1xf32>
    %29 = vector.broadcast %28 : vector<4x1xf32> to vector<4x192xf32>
    %30 = arith.mulf %20, %29 : vector<4x192xf32>
    %31 = vector.broadcast %9 : vector<1x192xf32> to vector<4x192xf32>
    %32 = arith.mulf %30, %31 : vector<4x192xf32>
    %33 = vector.broadcast %10 : vector<1x192xf32> to vector<4x192xf32>
    %34 = arith.addf %32, %33 : vector<4x192xf32>
    %35 = arith.truncf %34 : vector<4x192xf32> to vector<4x192xbf16>
    %cst_24 = arith.constant dense<0.000000e+00> : vector<4x32xf32>
    %36 = tpu.matmul %35, %7, %cst_24 {dimension_numbers = #tpu.dot_dimension_numbers<[1], [0], [0], [1], [0, 0, 1, 1], [], []>} : vector<4x192xbf16>, vector<192x32xbf16>, vector<4x32xf32> -> vector<4x32xf32>
    %37 = vector.broadcast %8 : vector<1x32xf32> to vector<4x32xf32>
    %38 = arith.addf %36, %37 : vector<4x32xf32>
    %cst_25 = arith.constant dense<0.000000e+00> : vector<4xf32>
    %39 = vector.multi_reduction <add>, %38, %cst_25 [1] : vector<4x32xf32> to vector<4xf32>
    %40 = vector.shape_cast %39 : vector<4xf32> to vector<4x1xf32>
    %cst_26 = arith.constant 3.200000e+01 : f32
    %41 = vector.broadcast %cst_26 : f32 to vector<4x1xf32>
    %42 = arith.divf %40, %41 : vector<4x1xf32>
    %43 = vector.broadcast %42 : vector<4x1xf32> to vector<4x32xf32>
    %44 = arith.subf %38, %43 : vector<4x32xf32>
    %45 = arith.mulf %44, %44 : vector<4x32xf32>
    %cst_27 = arith.constant dense<0.000000e+00> : vector<4xf32>
    %46 = vector.multi_reduction <add>, %45, %cst_27 [1] : vector<4x32xf32> to vector<4xf32>
    %47 = vector.shape_cast %46 : vector<4xf32> to vector<4x1xf32>
    %cst_28 = arith.constant 3.200000e+01 : f32
    %48 = vector.broadcast %cst_28 : f32 to vector<4x1xf32>
    %49 = arith.divf %47, %48 : vector<4x1xf32>
    %cst_29 = arith.constant 9.99999974E-6 : f32
    %50 = vector.broadcast %cst_29 : f32 to vector<4x1xf32>
    %51 = arith.addf %49, %50 : vector<4x1xf32>
    %52 = math.rsqrt %51 : vector<4x1xf32>
    %53 = vector.broadcast %52 : vector<4x1xf32> to vector<4x32xf32>
    %54 = arith.mulf %44, %53 : vector<4x32xf32>
    %55 = vector.broadcast %11 : vector<1x32xf32> to vector<4x32xf32>
    %56 = arith.mulf %54, %55 : vector<4x32xf32>
    %57 = vector.broadcast %12 : vector<1x32xf32> to vector<4x32xf32>
    %58 = arith.addf %56, %57 : vector<4x32xf32>
    %c0_30 = arith.constant 0 : index
    %c0_31 = arith.constant 0 : index
    %c0_32 = arith.constant 0 : index
    %59 = vector.load %arg10[%c0_30, %c0_31, %c0_32] : memref<2x5x32xf32, #tpu.memory_space<vmem>>, vector<1x1x32xf32>
    %60 = vector.shape_cast %59 : vector<1x1x32xf32> to vector<1x32xf32>
    %61 = vector.shape_cast %5 : vector<1x32xf32> to vector<1x1x32xf32>
    tpu.vector_store %arg10[%c0_30, %c0_31, %c0_32], %61 {strides = array<i32>} : memref<2x5x32xf32, #tpu.memory_space<vmem>>, vector<1x1x32xf32>,
    %62 = arith.addf %58, %6 : vector<4x32xf32>
    %c0_33 = arith.constant 0 : index
    %c1 = arith.constant 1 : index
    %c0_34 = arith.constant 0 : index
    %63 = vector.load %arg10[%c0_33, %c1, %c0_34] : memref<2x5x32xf32, #tpu.memory_space<vmem>>, vector<1x4x32xf32>
    %64 = vector.shape_cast %63 : vector<1x4x32xf32> to vector<4x32xf32>
    %65 = vector.shape_cast %62 : vector<4x32xf32> to vector<1x4x32xf32>
    tpu.vector_store %arg10[%c0_33, %c1, %c0_34], %65 {strides = array<i32>} : memref<2x5x32xf32, #tpu.memory_space<vmem>>, vector<1x4x32xf32>,
    %c1_35 = arith.constant 1 : index
    %c0_36 = arith.constant 0 : index
    %c0_37 = arith.constant 0 : index
    %66 = vector.load %arg1[%c1_35, %c0_36, %c0_37] : memref<2x4x192xf32, #tpu.memory_space<vmem>>, vector<1x4x192xf32>
    %67 = vector.shape_cast %66 : vector<1x4x192xf32> to vector<4x192xf32>
    %cst_38 = arith.constant dense<0.000000e+00> : vector<4xf32>
    %68 = vector.multi_reduction <add>, %67, %cst_38 [1] : vector<4x192xf32> to vector<4xf32>
    %69 = vector.shape_cast %68 : vector<4xf32> to vector<4x1xf32>
    %cst_39 = arith.constant 1.920000e+02 : f32
    %70 = vector.broadcast %cst_39 : f32 to vector<4x1xf32>
    %71 = arith.divf %69, %70 : vector<4x1xf32>
    %72 = vector.broadcast %71 : vector<4x1xf32> to vector<4x192xf32>
    %73 = arith.subf %67, %72 : vector<4x192xf32>
    %74 = arith.mulf %73, %73 : vector<4x192xf32>
    %cst_40 = arith.constant dense<0.000000e+00> : vector<4xf32>
    %75 = vector.multi_reduction <add>, %74, %cst_40 [1] : vector<4x192xf32> to vector<4xf32>
    %76 = vector.shape_cast %75 : vector<4xf32> to vector<4x1xf32>
    %cst_41 = arith.constant 1.920000e+02 : f32
    %77 = vector.broadcast %cst_41 : f32 to vector<4x1xf32>
    %78 = arith.divf %76, %77 : vector<4x1xf32>
    %cst_42 = arith.constant 9.99999974E-6 : f32
    %79 = vector.broadcast %cst_42 : f32 to vector<4x1xf32>
    %80 = arith.addf %78, %79 : vector<4x1xf32>
    %81 = math.rsqrt %80 : vector<4x1xf32>
    %82 = vector.broadcast %81 : vector<4x1xf32> to vector<4x192xf32>
    %83 = arith.mulf %73, %82 : vector<4x192xf32>
    %84 = vector.broadcast %9 : vector<1x192xf32> to vector<4x192xf32>
    %85 = arith.mulf %83, %84 : vector<4x192xf32>
    %86 = vector.broadcast %10 : vector<1x192xf32> to vector<4x192xf32>
    %87 = arith.addf %85, %86 : vector<4x192xf32>
    %88 = arith.truncf %87 : vector<4x192xf32> to vector<4x192xbf16>
    %cst_43 = arith.constant dense<0.000000e+00> : vector<4x32xf32>
    %89 = tpu.matmul %88, %7, %cst_43 {dimension_numbers = #tpu.dot_dimension_numbers<[1], [0], [0], [1], [0, 0, 1, 1], [], []>} : vector<4x192xbf16>, vector<192x32xbf16>, vector<4x32xf32> -> vector<4x32xf32>
    %90 = vector.broadcast %8 : vector<1x32xf32> to vector<4x32xf32>
    %91 = arith.addf %89, %90 : vector<4x32xf32>
    %cst_44 = arith.constant dense<0.000000e+00> : vector<4xf32>
    %92 = vector.multi_reduction <add>, %91, %cst_44 [1] : vector<4x32xf32> to vector<4xf32>
    %93 = vector.shape_cast %92 : vector<4xf32> to vector<4x1xf32>
    %cst_45 = arith.constant 3.200000e+01 : f32
    %94 = vector.broadcast %cst_45 : f32 to vector<4x1xf32>
    %95 = arith.divf %93, %94 : vector<4x1xf32>
    %96 = vector.broadcast %95 : vector<4x1xf32> to vector<4x32xf32>
    %97 = arith.subf %91, %96 : vector<4x32xf32>
    %98 = arith.mulf %97, %97 : vector<4x32xf32>
    %cst_46 = arith.constant dense<0.000000e+00> : vector<4xf32>
    %99 = vector.multi_reduction <add>, %98, %cst_46 [1] : vector<4x32xf32> to vector<4xf32>
    %100 = vector.shape_cast %99 : vector<4xf32> to vector<4x1xf32>
    %cst_47 = arith.constant 3.200000e+01 : f32
    %101 = vector.broadcast %cst_47 : f32 to vector<4x1xf32>
    %102 = arith.divf %100, %101 : vector<4x1xf32>
    %cst_48 = arith.constant 9.99999974E-6 : f32
    %103 = vector.broadcast %cst_48 : f32 to vector<4x1xf32>
    %104 = arith.addf %102, %103 : vector<4x1xf32>
    %105 = math.rsqrt %104 : vector<4x1xf32>
    %106 = vector.broadcast %105 : vector<4x1xf32> to vector<4x32xf32>
    %107 = arith.mulf %97, %106 : vector<4x32xf32>
    %108 = vector.broadcast %11 : vector<1x32xf32> to vector<4x32xf32>
    %109 = arith.mulf %107, %108 : vector<4x32xf32>
    %110 = vector.broadcast %12 : vector<1x32xf32> to vector<4x32xf32>
    %111 = arith.addf %109, %110 : vector<4x32xf32>
    %c1_49 = arith.constant 1 : index
    %c0_50 = arith.constant 0 : index
    %c0_51 = arith.constant 0 : index
    %112 = vector.load %arg10[%c1_49, %c0_50, %c0_51] : memref<2x5x32xf32, #tpu.memory_space<vmem>>, vector<1x1x32xf32>
    %113 = vector.shape_cast %112 : vector<1x1x32xf32> to vector<1x32xf32>
    %114 = vector.shape_cast %5 : vector<1x32xf32> to vector<1x1x32xf32>
    tpu.vector_store %arg10[%c1_49, %c0_50, %c0_51], %114 {strides = array<i32>} : memref<2x5x32xf32, #tpu.memory_space<vmem>>, vector<1x1x32xf32>,
    %115 = arith.addf %111, %6 : vector<4x32xf32>
    %c1_52 = arith.constant 1 : index
    %c1_53 = arith.constant 1 : index
    %c0_54 = arith.constant 0 : index
    %116 = vector.load %arg10[%c1_52, %c1_53, %c0_54] : memref<2x5x32xf32, #tpu.memory_space<vmem>>, vector<1x4x32xf32>
    %117 = vector.shape_cast %116 : vector<1x4x32xf32> to vector<4x32xf32>
    %118 = vector.shape_cast %115 : vector<4x32xf32> to vector<1x4x32xf32>
    tpu.vector_store %arg10[%c1_52, %c1_53, %c0_54], %118 {strides = array<i32>} : memref<2x5x32xf32, #tpu.memory_space<vmem>>, vector<1x4x32xf32>,
    return
  }
  func.func @transform_0(%arg0: i32) -> (i32, i32, i32) {
    %c0_i32 = arith.constant 0 : i32
    %c0_i32_0 = arith.constant 0 : i32
    %c0_i32_1 = arith.constant 0 : i32
    return %arg0, %c0_i32, %c0_i32_0 : i32, i32, i32
  }
  func.func @transform_1(%arg0: i32) -> (i32, i32) {
    %c0_i32 = arith.constant 0 : i32
    %c0_i32_0 = arith.constant 0 : i32
    %c0_i32_1 = arith.constant 0 : i32
    return %c0_i32, %c0_i32_0 : i32, i32
  }
  func.func @transform_2(%arg0: i32) -> (i32, i32) {
    %c0_i32 = arith.constant 0 : i32
    %c0_i32_0 = arith.constant 0 : i32
    %c0_i32_1 = arith.constant 0 : i32
    return %c0_i32, %c0_i32_0 : i32, i32
  }
  func.func @transform_3(%arg0: i32) -> (i32, i32) {
    %c0_i32 = arith.constant 0 : i32
    %c0_i32_0 = arith.constant 0 : i32
    %c0_i32_1 = arith.constant 0 : i32
    return %c0_i32, %c0_i32_0 : i32, i32
  }
  func.func @transform_4(%arg0: i32) -> (i32, i32) {
    %c0_i32 = arith.constant 0 : i32
    %c0_i32_0 = arith.constant 0 : i32
    %c0_i32_1 = arith.constant 0 : i32
    return %c0_i32, %c0_i32_0 : i32, i32
  }
  func.func @transform_5(%arg0: i32) -> (i32, i32) {
    %c0_i32 = arith.constant 0 : i32
    %c0_i32_0 = arith.constant 0 : i32
    %c0_i32_1 = arith.constant 0 : i32
    return %c0_i32, %c0_i32_0 : i32, i32
  }
  func.func @transform_6(%arg0: i32) -> (i32, i32) {
    %c0_i32 = arith.constant 0 : i32
    %c0_i32_0 = arith.constant 0 : i32
    %c0_i32_1 = arith.constant 0 : i32
    return %c0_i32, %c0_i32_0 : i32, i32
  }
  func.func @transform_7(%arg0: i32) -> (i32, i32, i32) {
    %c0_i32 = arith.constant 0 : i32
    %c0_i32_0 = arith.constant 0 : i32
    %c0_i32_1 = arith.constant 0 : i32
    %c0_i32_2 = arith.constant 0 : i32
    return %c0_i32, %c0_i32_0, %c0_i32_1 : i32, i32, i32
  }
  func.func @transform_8(%arg0: i32) -> (i32, i32, i32) {
    %c0_i32 = arith.constant 0 : i32
    %c0_i32_0 = arith.constant 0 : i32
    %c0_i32_1 = arith.constant 0 : i32
    %c0_i32_2 = arith.constant 0 : i32
    return %c0_i32, %c0_i32_0, %c0_i32_1 : i32, i32, i32
  }
  func.func @transform_9(%arg0: i32) -> (i32, i32, i32) {
    %c0_i32 = arith.constant 0 : i32
    %c0_i32_0 = arith.constant 0 : i32
    %c0_i32_1 = arith.constant 0 : i32
    return %arg0, %c0_i32, %c0_i32_0 : i32, i32, i32
  }
}

module attributes {stable_mosaic.version = 11 : i64} {
  func.func @_transformer_kernel(%arg0: i32, %arg1: i32, %arg2: memref<2x5x32xf32, #tpu.memory_space<vmem>>, %arg3: memref<1x1x32xf32, #tpu.memory_space<vmem>>, %arg4: memref<1x1x32xf32, #tpu.memory_space<vmem>>, %arg5: memref<1x32x96xbf16, #tpu.memory_space<vmem>>, %arg6: memref<1x32x32xbf16, #tpu.memory_space<vmem>>, %arg7: memref<1x1x32xf32, #tpu.memory_space<vmem>>, %arg8: memref<1x1x32xf32, #tpu.memory_space<vmem>>, %arg9: memref<1x1x32xf32, #tpu.memory_space<vmem>>, %arg10: memref<1x32x64xbf16, #tpu.memory_space<vmem>>, %arg11: memref<1x1x64xf32, #tpu.memory_space<vmem>>, %arg12: memref<1x64x32xbf16, #tpu.memory_space<vmem>>, %arg13: memref<1x1x32xf32, #tpu.memory_space<vmem>>, %arg14: memref<2x5x32xf32, #tpu.memory_space<vmem>>) attributes {dimension_semantics = [#tpu.dimension_semantics<parallel>, #tpu.dimension_semantics<arbitrary>], iteration_bounds = array<i64: 1, 2>, scalar_prefetch = 0 : i64, scratch_operands = 0 : i64, tpu.core_type = #tpu.core_type<tc>, window_params = [{transform_indices = @transform_0, window_bounds = array<i64: 2, 5, 32>}, {transform_indices = @transform_1, window_bounds = array<i64: 1, 1, 32>}, {transform_indices = @transform_2, window_bounds = array<i64: 1, 1, 32>}, {transform_indices = @transform_3, window_bounds = array<i64: 1, 32, 96>}, {transform_indices = @transform_4, window_bounds = array<i64: 1, 32, 32>}, {transform_indices = @transform_5, window_bounds = array<i64: 1, 1, 32>}, {transform_indices = @transform_6, window_bounds = array<i64: 1, 1, 32>}, {transform_indices = @transform_7, window_bounds = array<i64: 1, 1, 32>}, {transform_indices = @transform_8, window_bounds = array<i64: 1, 32, 64>}, {transform_indices = @transform_9, window_bounds = array<i64: 1, 1, 64>}, {transform_indices = @transform_10, window_bounds = array<i64: 1, 64, 32>}, {transform_indices = @transform_11, window_bounds = array<i64: 1, 1, 32>}, {transform_indices = @transform_12, window_bounds = array<i64: 2, 5, 32>}]} {
    %c0_i32 = arith.constant 0 : i32
    %0 = arith.cmpi eq, %arg1, %c0_i32 : i32
    %1 = arith.extui %0 : i1 to i32
    %c0_i32_0 = arith.constant 0 : i32
    %2 = arith.cmpi ne, %1, %c0_i32_0 : i32
    scf.if %2 {
      %c0_97 = arith.constant 0 : index
      %c0_98 = arith.constant 0 : index
      %c0_99 = arith.constant 0 : index
      %241 = vector.load %arg2[%c0_97, %c0_98, %c0_99] : memref<2x5x32xf32, #tpu.memory_space<vmem>>, vector<2x5x32xf32>
      %c0_100 = arith.constant 0 : index
      %c0_101 = arith.constant 0 : index
      %c0_102 = arith.constant 0 : index
      %242 = vector.load %arg14[%c0_100, %c0_101, %c0_102] : memref<2x5x32xf32, #tpu.memory_space<vmem>>, vector<2x5x32xf32>
      tpu.vector_store %arg14[%c0_100, %c0_101, %c0_102], %241 {strides = array<i32>} : memref<2x5x32xf32, #tpu.memory_space<vmem>>, vector<2x5x32xf32>,
    } else {
    }
    %c0 = arith.constant 0 : index
    %c0_1 = arith.constant 0 : index
    %c0_2 = arith.constant 0 : index
    %3 = vector.load %arg3[%c0, %c0_1, %c0_2] : memref<1x1x32xf32, #tpu.memory_space<vmem>>, vector<1x1x32xf32>
    %4 = vector.shape_cast %3 : vector<1x1x32xf32> to vector<1x32xf32>
    %c0_3 = arith.constant 0 : index
    %c0_4 = arith.constant 0 : index
    %c0_5 = arith.constant 0 : index
    %5 = vector.load %arg4[%c0_3, %c0_4, %c0_5] : memref<1x1x32xf32, #tpu.memory_space<vmem>>, vector<1x1x32xf32>
    %6 = vector.shape_cast %5 : vector<1x1x32xf32> to vector<1x32xf32>
    %c0_6 = arith.constant 0 : index
    %c0_7 = arith.constant 0 : index
    %c0_8 = arith.constant 0 : index
    %7 = vector.load %arg5[%c0_6, %c0_7, %c0_8] : memref<1x32x96xbf16, #tpu.memory_space<vmem>>, vector<1x32x96xbf16>
    %8 = vector.shape_cast %7 : vector<1x32x96xbf16> to vector<32x96xbf16>
    %c0_9 = arith.constant 0 : index
    %c0_10 = arith.constant 0 : index
    %c0_11 = arith.constant 0 : index
    %9 = vector.load %arg6[%c0_9, %c0_10, %c0_11] : memref<1x32x32xbf16, #tpu.memory_space<vmem>>, vector<1x32x32xbf16>
    %10 = vector.shape_cast %9 : vector<1x32x32xbf16> to vector<32x32xbf16>
    %c0_12 = arith.constant 0 : index
    %c0_13 = arith.constant 0 : index
    %c0_14 = arith.constant 0 : index
    %11 = vector.load %arg7[%c0_12, %c0_13, %c0_14] : memref<1x1x32xf32, #tpu.memory_space<vmem>>, vector<1x1x32xf32>
    %12 = vector.shape_cast %11 : vector<1x1x32xf32> to vector<1x32xf32>
    %c0_15 = arith.constant 0 : index
    %c0_16 = arith.constant 0 : index
    %c0_17 = arith.constant 0 : index
    %13 = vector.load %arg8[%c0_15, %c0_16, %c0_17] : memref<1x1x32xf32, #tpu.memory_space<vmem>>, vector<1x1x32xf32>
    %14 = vector.shape_cast %13 : vector<1x1x32xf32> to vector<1x32xf32>
    %c0_18 = arith.constant 0 : index
    %c0_19 = arith.constant 0 : index
    %c0_20 = arith.constant 0 : index
    %15 = vector.load %arg9[%c0_18, %c0_19, %c0_20] : memref<1x1x32xf32, #tpu.memory_space<vmem>>, vector<1x1x32xf32>
    %16 = vector.shape_cast %15 : vector<1x1x32xf32> to vector<1x32xf32>
    %c0_21 = arith.constant 0 : index
    %c0_22 = arith.constant 0 : index
    %c0_23 = arith.constant 0 : index
    %17 = vector.load %arg10[%c0_21, %c0_22, %c0_23] : memref<1x32x64xbf16, #tpu.memory_space<vmem>>, vector<1x32x64xbf16>
    %18 = vector.shape_cast %17 : vector<1x32x64xbf16> to vector<32x64xbf16>
    %c0_24 = arith.constant 0 : index
    %c0_25 = arith.constant 0 : index
    %c0_26 = arith.constant 0 : index
    %19 = vector.load %arg11[%c0_24, %c0_25, %c0_26] : memref<1x1x64xf32, #tpu.memory_space<vmem>>, vector<1x1x64xf32>
    %20 = vector.shape_cast %19 : vector<1x1x64xf32> to vector<1x64xf32>
    %c0_27 = arith.constant 0 : index
    %c0_28 = arith.constant 0 : index
    %c0_29 = arith.constant 0 : index
    %21 = vector.load %arg12[%c0_27, %c0_28, %c0_29] : memref<1x64x32xbf16, #tpu.memory_space<vmem>>, vector<1x64x32xbf16>
    %22 = vector.shape_cast %21 : vector<1x64x32xbf16> to vector<64x32xbf16>
    %c0_30 = arith.constant 0 : index
    %c0_31 = arith.constant 0 : index
    %c0_32 = arith.constant 0 : index
    %23 = vector.load %arg13[%c0_30, %c0_31, %c0_32] : memref<1x1x32xf32, #tpu.memory_space<vmem>>, vector<1x1x32xf32>
    %24 = vector.shape_cast %23 : vector<1x1x32xf32> to vector<1x32xf32>
    %c0_33 = arith.constant 0 : index
    %c0_34 = arith.constant 0 : index
    %c0_35 = arith.constant 0 : index
    %25 = vector.load %arg14[%c0_33, %c0_34, %c0_35] : memref<2x5x32xf32, #tpu.memory_space<vmem>>, vector<1x5x32xf32>
    %26 = vector.shape_cast %25 : vector<1x5x32xf32> to vector<5x32xf32>
    %cst = arith.constant dense<0.000000e+00> : vector<5xf32>
    %27 = vector.multi_reduction <add>, %26, %cst [1] : vector<5x32xf32> to vector<5xf32>
    %28 = vector.shape_cast %27 : vector<5xf32> to vector<5x1xf32>
    %cst_36 = arith.constant 3.200000e+01 : f32
    %29 = vector.broadcast %cst_36 : f32 to vector<5x1xf32>
    %30 = arith.divf %28, %29 : vector<5x1xf32>
    %31 = vector.broadcast %30 : vector<5x1xf32> to vector<5x32xf32>
    %32 = arith.subf %26, %31 : vector<5x32xf32>
    %33 = arith.mulf %32, %32 : vector<5x32xf32>
    %cst_37 = arith.constant dense<0.000000e+00> : vector<5xf32>
    %34 = vector.multi_reduction <add>, %33, %cst_37 [1] : vector<5x32xf32> to vector<5xf32>
    %35 = vector.shape_cast %34 : vector<5xf32> to vector<5x1xf32>
    %cst_38 = arith.constant 3.200000e+01 : f32
    %36 = vector.broadcast %cst_38 : f32 to vector<5x1xf32>
    %37 = arith.divf %35, %36 : vector<5x1xf32>
    %cst_39 = arith.constant 9.99999974E-6 : f32
    %38 = vector.broadcast %cst_39 : f32 to vector<5x1xf32>
    %39 = arith.addf %37, %38 : vector<5x1xf32>
    %40 = math.rsqrt %39 : vector<5x1xf32>
    %41 = vector.broadcast %40 : vector<5x1xf32> to vector<5x32xf32>
    %42 = arith.mulf %32, %41 : vector<5x32xf32>
    %43 = vector.broadcast %4 : vector<1x32xf32> to vector<5x32xf32>
    %44 = arith.mulf %42, %43 : vector<5x32xf32>
    %45 = vector.broadcast %6 : vector<1x32xf32> to vector<5x32xf32>
    %46 = arith.addf %44, %45 : vector<5x32xf32>
    %47 = arith.truncf %46 : vector<5x32xf32> to vector<5x32xbf16>
    %cst_40 = arith.constant dense<0.000000e+00> : vector<5x96xf32>
    %48 = tpu.matmul %47, %8, %cst_40 {dimension_numbers = #tpu.dot_dimension_numbers<[1], [0], [0], [1], [0, 0, 1, 1], [], []>} : vector<5x32xbf16>, vector<32x96xbf16>, vector<5x96xf32> -> vector<5x96xf32>
    %49 = arith.truncf %48 : vector<5x96xf32> to vector<5x96xbf16>
    %50 = vector.extract_strided_slice %49 {offsets = [0, 0], sizes = [5, 16], strides = [1, 1]} : vector<5x96xbf16> to vector<5x16xbf16>
    %51 = vector.extract_strided_slice %49 {offsets = [0, 32], sizes = [5, 16], strides = [1, 1]} : vector<5x96xbf16> to vector<5x16xbf16>
    %52 = vector.extract_strided_slice %49 {offsets = [0, 64], sizes = [5, 16], strides = [1, 1]} : vector<5x96xbf16> to vector<5x16xbf16>
    %cst_41 = arith.constant dense<0.000000e+00> : vector<5x5xf32>
    %53 = tpu.matmul %50, %51, %cst_41 {dimension_numbers = #tpu.dot_dimension_numbers<[1], [1], [0], [0], [0, 0, 1, 0], [], []>} : vector<5x16xbf16>, vector<5x16xbf16>, vector<5x5xf32> -> vector<5x5xf32>
    %cst_42 = arith.constant 2.500000e-01 : f32
    %54 = vector.broadcast %cst_42 : f32 to vector<5x5xf32>
    %55 = arith.mulf %53, %54 : vector<5x5xf32>
    %cst_43 = arith.constant dense<0xFF800000> : vector<5xf32>
    %56 = vector.multi_reduction <maximumf>, %55, %cst_43 [1] : vector<5x5xf32> to vector<5xf32>
    %57 = vector.shape_cast %56 : vector<5xf32> to vector<5x1xf32>
    %58 = vector.broadcast %57 : vector<5x1xf32> to vector<5x5xf32>
    %59 = arith.subf %55, %58 : vector<5x5xf32>
    %60 = math.exp %59 : vector<5x5xf32>
    %cst_44 = arith.constant dense<0.000000e+00> : vector<5xf32>
    %61 = vector.multi_reduction <add>, %60, %cst_44 [1] : vector<5x5xf32> to vector<5xf32>
    %62 = vector.shape_cast %61 : vector<5xf32> to vector<5x1xf32>
    %63 = tpu.reciprocal %62 {approx = true} : vector<5x1xf32> -> vector<5x1xf32>
    %64 = vector.broadcast %63 : vector<5x1xf32> to vector<5x5xf32>
    %65 = arith.mulf %60, %64 : vector<5x5xf32>
    %66 = arith.truncf %65 : vector<5x5xf32> to vector<5x5xbf16>
    %cst_45 = arith.constant dense<0.000000e+00> : vector<5x16xf32>
    %67 = tpu.matmul %66, %52, %cst_45 {dimension_numbers = #tpu.dot_dimension_numbers<[1], [0], [0], [1], [0, 0, 1, 1], [], []>} : vector<5x5xbf16>, vector<5x16xbf16>, vector<5x16xf32> -> vector<5x16xf32>
    %68 = arith.truncf %67 : vector<5x16xf32> to vector<5x16xbf16>
    %69 = vector.extract_strided_slice %49 {offsets = [0, 16], sizes = [5, 16], strides = [1, 1]} : vector<5x96xbf16> to vector<5x16xbf16>
    %70 = vector.extract_strided_slice %49 {offsets = [0, 48], sizes = [5, 16], strides = [1, 1]} : vector<5x96xbf16> to vector<5x16xbf16>
    %71 = vector.extract_strided_slice %49 {offsets = [0, 80], sizes = [5, 16], strides = [1, 1]} : vector<5x96xbf16> to vector<5x16xbf16>
    %cst_46 = arith.constant dense<0.000000e+00> : vector<5x5xf32>
    %72 = tpu.matmul %69, %70, %cst_46 {dimension_numbers = #tpu.dot_dimension_numbers<[1], [1], [0], [0], [0, 0, 1, 0], [], []>} : vector<5x16xbf16>, vector<5x16xbf16>, vector<5x5xf32> -> vector<5x5xf32>
    %cst_47 = arith.constant 2.500000e-01 : f32
    %73 = vector.broadcast %cst_47 : f32 to vector<5x5xf32>
    %74 = arith.mulf %72, %73 : vector<5x5xf32>
    %cst_48 = arith.constant dense<0xFF800000> : vector<5xf32>
    %75 = vector.multi_reduction <maximumf>, %74, %cst_48 [1] : vector<5x5xf32> to vector<5xf32>
    %76 = vector.shape_cast %75 : vector<5xf32> to vector<5x1xf32>
    %77 = vector.broadcast %76 : vector<5x1xf32> to vector<5x5xf32>
    %78 = arith.subf %74, %77 : vector<5x5xf32>
    %79 = math.exp %78 : vector<5x5xf32>
    %cst_49 = arith.constant dense<0.000000e+00> : vector<5xf32>
    %80 = vector.multi_reduction <add>, %79, %cst_49 [1] : vector<5x5xf32> to vector<5xf32>
    %81 = vector.shape_cast %80 : vector<5xf32> to vector<5x1xf32>
    %82 = tpu.reciprocal %81 {approx = true} : vector<5x1xf32> -> vector<5x1xf32>
    %83 = vector.broadcast %82 : vector<5x1xf32> to vector<5x5xf32>
    %84 = arith.mulf %79, %83 : vector<5x5xf32>
    %85 = arith.truncf %84 : vector<5x5xf32> to vector<5x5xbf16>
    %cst_50 = arith.constant dense<0.000000e+00> : vector<5x16xf32>
    %86 = tpu.matmul %85, %71, %cst_50 {dimension_numbers = #tpu.dot_dimension_numbers<[1], [0], [0], [1], [0, 0, 1, 1], [], []>} : vector<5x5xbf16>, vector<5x16xbf16>, vector<5x16xf32> -> vector<5x16xf32>
    %87 = arith.truncf %86 : vector<5x16xf32> to vector<5x16xbf16>
    %88 = tpu.concatenate %68, %87 in 1 : vector<5x16xbf16>, vector<5x16xbf16> -> vector<5x32xbf16>
    %cst_51 = arith.constant dense<0.000000e+00> : vector<5x32xf32>
    %89 = tpu.matmul %88, %10, %cst_51 {dimension_numbers = #tpu.dot_dimension_numbers<[1], [0], [0], [1], [0, 0, 1, 1], [], []>} : vector<5x32xbf16>, vector<32x32xbf16>, vector<5x32xf32> -> vector<5x32xf32>
    %90 = arith.addf %26, %89 : vector<5x32xf32>
    %91 = vector.broadcast %12 : vector<1x32xf32> to vector<5x32xf32>
    %92 = arith.addf %90, %91 : vector<5x32xf32>
    %cst_52 = arith.constant dense<0.000000e+00> : vector<5xf32>
    %93 = vector.multi_reduction <add>, %92, %cst_52 [1] : vector<5x32xf32> to vector<5xf32>
    %94 = vector.shape_cast %93 : vector<5xf32> to vector<5x1xf32>
    %cst_53 = arith.constant 3.200000e+01 : f32
    %95 = vector.broadcast %cst_53 : f32 to vector<5x1xf32>
    %96 = arith.divf %94, %95 : vector<5x1xf32>
    %97 = vector.broadcast %96 : vector<5x1xf32> to vector<5x32xf32>
    %98 = arith.subf %92, %97 : vector<5x32xf32>
    %99 = arith.mulf %98, %98 : vector<5x32xf32>
    %cst_54 = arith.constant dense<0.000000e+00> : vector<5xf32>
    %100 = vector.multi_reduction <add>, %99, %cst_54 [1] : vector<5x32xf32> to vector<5xf32>
    %101 = vector.shape_cast %100 : vector<5xf32> to vector<5x1xf32>
    %cst_55 = arith.constant 3.200000e+01 : f32
    %102 = vector.broadcast %cst_55 : f32 to vector<5x1xf32>
    %103 = arith.divf %101, %102 : vector<5x1xf32>
    %cst_56 = arith.constant 9.99999974E-6 : f32
    %104 = vector.broadcast %cst_56 : f32 to vector<5x1xf32>
    %105 = arith.addf %103, %104 : vector<5x1xf32>
    %106 = math.rsqrt %105 : vector<5x1xf32>
    %107 = vector.broadcast %106 : vector<5x1xf32> to vector<5x32xf32>
    %108 = arith.mulf %98, %107 : vector<5x32xf32>
    %109 = vector.broadcast %14 : vector<1x32xf32> to vector<5x32xf32>
    %110 = arith.mulf %108, %109 : vector<5x32xf32>
    %111 = vector.broadcast %16 : vector<1x32xf32> to vector<5x32xf32>
    %112 = arith.addf %110, %111 : vector<5x32xf32>
    %113 = arith.truncf %112 : vector<5x32xf32> to vector<5x32xbf16>
    %cst_57 = arith.constant dense<0.000000e+00> : vector<5x64xf32>
    %114 = tpu.matmul %113, %18, %cst_57 {dimension_numbers = #tpu.dot_dimension_numbers<[1], [0], [0], [1], [0, 0, 1, 1], [], []>} : vector<5x32xbf16>, vector<32x64xbf16>, vector<5x64xf32> -> vector<5x64xf32>
    %115 = vector.broadcast %20 : vector<1x64xf32> to vector<5x64xf32>
    %116 = arith.addf %114, %115 : vector<5x64xf32>
    %cst_58 = arith.constant 5.000000e-01 : f32
    %117 = vector.broadcast %cst_58 : f32 to vector<5x64xf32>
    %118 = arith.mulf %117, %116 : vector<5x64xf32>
    %cst_59 = arith.constant 0.707106769 : f32
    %119 = vector.broadcast %cst_59 : f32 to vector<5x64xf32>
    %120 = arith.mulf %116, %119 : vector<5x64xf32>
    %121 = math.erf %120 : vector<5x64xf32>
    %cst_60 = arith.constant 1.000000e+00 : f32
    %122 = vector.broadcast %cst_60 : f32 to vector<5x64xf32>
    %123 = arith.addf %122, %121 : vector<5x64xf32>
    %124 = arith.mulf %118, %123 : vector<5x64xf32>
    %125 = arith.truncf %124 : vector<5x64xf32> to vector<5x64xbf16>
    %cst_61 = arith.constant dense<0.000000e+00> : vector<5x32xf32>
    %126 = tpu.matmul %125, %22, %cst_61 {dimension_numbers = #tpu.dot_dimension_numbers<[1], [0], [0], [1], [0, 0, 1, 1], [], []>} : vector<5x64xbf16>, vector<64x32xbf16>, vector<5x32xf32> -> vector<5x32xf32>
    %127 = vector.broadcast %24 : vector<1x32xf32> to vector<5x32xf32>
    %128 = arith.addf %126, %127 : vector<5x32xf32>
    %129 = arith.addf %92, %128 : vector<5x32xf32>
    %c0_62 = arith.constant 0 : index
    %c0_63 = arith.constant 0 : index
    %c0_64 = arith.constant 0 : index
    %130 = vector.load %arg14[%c0_62, %c0_63, %c0_64] : memref<2x5x32xf32, #tpu.memory_space<vmem>>, vector<1x5x32xf32>
    %131 = vector.shape_cast %130 : vector<1x5x32xf32> to vector<5x32xf32>
    %132 = vector.shape_cast %129 : vector<5x32xf32> to vector<1x5x32xf32>
    tpu.vector_store %arg14[%c0_62, %c0_63, %c0_64], %132 {strides = array<i32>} : memref<2x5x32xf32, #tpu.memory_space<vmem>>, vector<1x5x32xf32>,
    %c1 = arith.constant 1 : index
    %c0_65 = arith.constant 0 : index
    %c0_66 = arith.constant 0 : index
    %133 = vector.load %arg14[%c1, %c0_65, %c0_66] : memref<2x5x32xf32, #tpu.memory_space<vmem>>, vector<1x5x32xf32>
    %134 = vector.shape_cast %133 : vector<1x5x32xf32> to vector<5x32xf32>
    %cst_67 = arith.constant dense<0.000000e+00> : vector<5xf32>
    %135 = vector.multi_reduction <add>, %134, %cst_67 [1] : vector<5x32xf32> to vector<5xf32>
    %136 = vector.shape_cast %135 : vector<5xf32> to vector<5x1xf32>
    %cst_68 = arith.constant 3.200000e+01 : f32
    %137 = vector.broadcast %cst_68 : f32 to vector<5x1xf32>
    %138 = arith.divf %136, %137 : vector<5x1xf32>
    %139 = vector.broadcast %138 : vector<5x1xf32> to vector<5x32xf32>
    %140 = arith.subf %134, %139 : vector<5x32xf32>
    %141 = arith.mulf %140, %140 : vector<5x32xf32>
    %cst_69 = arith.constant dense<0.000000e+00> : vector<5xf32>
    %142 = vector.multi_reduction <add>, %141, %cst_69 [1] : vector<5x32xf32> to vector<5xf32>
    %143 = vector.shape_cast %142 : vector<5xf32> to vector<5x1xf32>
    %cst_70 = arith.constant 3.200000e+01 : f32
    %144 = vector.broadcast %cst_70 : f32 to vector<5x1xf32>
    %145 = arith.divf %143, %144 : vector<5x1xf32>
    %cst_71 = arith.constant 9.99999974E-6 : f32
    %146 = vector.broadcast %cst_71 : f32 to vector<5x1xf32>
    %147 = arith.addf %145, %146 : vector<5x1xf32>
    %148 = math.rsqrt %147 : vector<5x1xf32>
    %149 = vector.broadcast %148 : vector<5x1xf32> to vector<5x32xf32>
    %150 = arith.mulf %140, %149 : vector<5x32xf32>
    %151 = vector.broadcast %4 : vector<1x32xf32> to vector<5x32xf32>
    %152 = arith.mulf %150, %151 : vector<5x32xf32>
    %153 = vector.broadcast %6 : vector<1x32xf32> to vector<5x32xf32>
    %154 = arith.addf %152, %153 : vector<5x32xf32>
    %155 = arith.truncf %154 : vector<5x32xf32> to vector<5x32xbf16>
    %cst_72 = arith.constant dense<0.000000e+00> : vector<5x96xf32>
    %156 = tpu.matmul %155, %8, %cst_72 {dimension_numbers = #tpu.dot_dimension_numbers<[1], [0], [0], [1], [0, 0, 1, 1], [], []>} : vector<5x32xbf16>, vector<32x96xbf16>, vector<5x96xf32> -> vector<5x96xf32>
    %157 = arith.truncf %156 : vector<5x96xf32> to vector<5x96xbf16>
    %158 = vector.extract_strided_slice %157 {offsets = [0, 0], sizes = [5, 16], strides = [1, 1]} : vector<5x96xbf16> to vector<5x16xbf16>
    %159 = vector.extract_strided_slice %157 {offsets = [0, 32], sizes = [5, 16], strides = [1, 1]} : vector<5x96xbf16> to vector<5x16xbf16>
    %160 = vector.extract_strided_slice %157 {offsets = [0, 64], sizes = [5, 16], strides = [1, 1]} : vector<5x96xbf16> to vector<5x16xbf16>
    %cst_73 = arith.constant dense<0.000000e+00> : vector<5x5xf32>
    %161 = tpu.matmul %158, %159, %cst_73 {dimension_numbers = #tpu.dot_dimension_numbers<[1], [1], [0], [0], [0, 0, 1, 0], [], []>} : vector<5x16xbf16>, vector<5x16xbf16>, vector<5x5xf32> -> vector<5x5xf32>
    %cst_74 = arith.constant 2.500000e-01 : f32
    %162 = vector.broadcast %cst_74 : f32 to vector<5x5xf32>
    %163 = arith.mulf %161, %162 : vector<5x5xf32>
    %cst_75 = arith.constant dense<0xFF800000> : vector<5xf32>
    %164 = vector.multi_reduction <maximumf>, %163, %cst_75 [1] : vector<5x5xf32> to vector<5xf32>
    %165 = vector.shape_cast %164 : vector<5xf32> to vector<5x1xf32>
    %166 = vector.broadcast %165 : vector<5x1xf32> to vector<5x5xf32>
    %167 = arith.subf %163, %166 : vector<5x5xf32>
    %168 = math.exp %167 : vector<5x5xf32>
    %cst_76 = arith.constant dense<0.000000e+00> : vector<5xf32>
    %169 = vector.multi_reduction <add>, %168, %cst_76 [1] : vector<5x5xf32> to vector<5xf32>
    %170 = vector.shape_cast %169 : vector<5xf32> to vector<5x1xf32>
    %171 = tpu.reciprocal %170 {approx = true} : vector<5x1xf32> -> vector<5x1xf32>
    %172 = vector.broadcast %171 : vector<5x1xf32> to vector<5x5xf32>
    %173 = arith.mulf %168, %172 : vector<5x5xf32>
    %174 = arith.truncf %173 : vector<5x5xf32> to vector<5x5xbf16>
    %cst_77 = arith.constant dense<0.000000e+00> : vector<5x16xf32>
    %175 = tpu.matmul %174, %160, %cst_77 {dimension_numbers = #tpu.dot_dimension_numbers<[1], [0], [0], [1], [0, 0, 1, 1], [], []>} : vector<5x5xbf16>, vector<5x16xbf16>, vector<5x16xf32> -> vector<5x16xf32>
    %176 = arith.truncf %175 : vector<5x16xf32> to vector<5x16xbf16>
    %177 = vector.extract_strided_slice %157 {offsets = [0, 16], sizes = [5, 16], strides = [1, 1]} : vector<5x96xbf16> to vector<5x16xbf16>
    %178 = vector.extract_strided_slice %157 {offsets = [0, 48], sizes = [5, 16], strides = [1, 1]} : vector<5x96xbf16> to vector<5x16xbf16>
    %179 = vector.extract_strided_slice %157 {offsets = [0, 80], sizes = [5, 16], strides = [1, 1]} : vector<5x96xbf16> to vector<5x16xbf16>
    %cst_78 = arith.constant dense<0.000000e+00> : vector<5x5xf32>
    %180 = tpu.matmul %177, %178, %cst_78 {dimension_numbers = #tpu.dot_dimension_numbers<[1], [1], [0], [0], [0, 0, 1, 0], [], []>} : vector<5x16xbf16>, vector<5x16xbf16>, vector<5x5xf32> -> vector<5x5xf32>
    %cst_79 = arith.constant 2.500000e-01 : f32
    %181 = vector.broadcast %cst_79 : f32 to vector<5x5xf32>
    %182 = arith.mulf %180, %181 : vector<5x5xf32>
    %cst_80 = arith.constant dense<0xFF800000> : vector<5xf32>
    %183 = vector.multi_reduction <maximumf>, %182, %cst_80 [1] : vector<5x5xf32> to vector<5xf32>
    %184 = vector.shape_cast %183 : vector<5xf32> to vector<5x1xf32>
    %185 = vector.broadcast %184 : vector<5x1xf32> to vector<5x5xf32>
    %186 = arith.subf %182, %185 : vector<5x5xf32>
    %187 = math.exp %186 : vector<5x5xf32>
    %cst_81 = arith.constant dense<0.000000e+00> : vector<5xf32>
    %188 = vector.multi_reduction <add>, %187, %cst_81 [1] : vector<5x5xf32> to vector<5xf32>
    %189 = vector.shape_cast %188 : vector<5xf32> to vector<5x1xf32>
    %190 = tpu.reciprocal %189 {approx = true} : vector<5x1xf32> -> vector<5x1xf32>
    %191 = vector.broadcast %190 : vector<5x1xf32> to vector<5x5xf32>
    %192 = arith.mulf %187, %191 : vector<5x5xf32>
    %193 = arith.truncf %192 : vector<5x5xf32> to vector<5x5xbf16>
    %cst_82 = arith.constant dense<0.000000e+00> : vector<5x16xf32>
    %194 = tpu.matmul %193, %179, %cst_82 {dimension_numbers = #tpu.dot_dimension_numbers<[1], [0], [0], [1], [0, 0, 1, 1], [], []>} : vector<5x5xbf16>, vector<5x16xbf16>, vector<5x16xf32> -> vector<5x16xf32>
    %195 = arith.truncf %194 : vector<5x16xf32> to vector<5x16xbf16>
    %196 = tpu.concatenate %176, %195 in 1 : vector<5x16xbf16>, vector<5x16xbf16> -> vector<5x32xbf16>
    %cst_83 = arith.constant dense<0.000000e+00> : vector<5x32xf32>
    %197 = tpu.matmul %196, %10, %cst_83 {dimension_numbers = #tpu.dot_dimension_numbers<[1], [0], [0], [1], [0, 0, 1, 1], [], []>} : vector<5x32xbf16>, vector<32x32xbf16>, vector<5x32xf32> -> vector<5x32xf32>
    %198 = arith.addf %134, %197 : vector<5x32xf32>
    %199 = vector.broadcast %12 : vector<1x32xf32> to vector<5x32xf32>
    %200 = arith.addf %198, %199 : vector<5x32xf32>
    %cst_84 = arith.constant dense<0.000000e+00> : vector<5xf32>
    %201 = vector.multi_reduction <add>, %200, %cst_84 [1] : vector<5x32xf32> to vector<5xf32>
    %202 = vector.shape_cast %201 : vector<5xf32> to vector<5x1xf32>
    %cst_85 = arith.constant 3.200000e+01 : f32
    %203 = vector.broadcast %cst_85 : f32 to vector<5x1xf32>
    %204 = arith.divf %202, %203 : vector<5x1xf32>
    %205 = vector.broadcast %204 : vector<5x1xf32> to vector<5x32xf32>
    %206 = arith.subf %200, %205 : vector<5x32xf32>
    %207 = arith.mulf %206, %206 : vector<5x32xf32>
    %cst_86 = arith.constant dense<0.000000e+00> : vector<5xf32>
    %208 = vector.multi_reduction <add>, %207, %cst_86 [1] : vector<5x32xf32> to vector<5xf32>
    %209 = vector.shape_cast %208 : vector<5xf32> to vector<5x1xf32>
    %cst_87 = arith.constant 3.200000e+01 : f32
    %210 = vector.broadcast %cst_87 : f32 to vector<5x1xf32>
    %211 = arith.divf %209, %210 : vector<5x1xf32>
    %cst_88 = arith.constant 9.99999974E-6 : f32
    %212 = vector.broadcast %cst_88 : f32 to vector<5x1xf32>
    %213 = arith.addf %211, %212 : vector<5x1xf32>
    %214 = math.rsqrt %213 : vector<5x1xf32>
    %215 = vector.broadcast %214 : vector<5x1xf32> to vector<5x32xf32>
    %216 = arith.mulf %206, %215 : vector<5x32xf32>
    %217 = vector.broadcast %14 : vector<1x32xf32> to vector<5x32xf32>
    %218 = arith.mulf %216, %217 : vector<5x32xf32>
    %219 = vector.broadcast %16 : vector<1x32xf32> to vector<5x32xf32>
    %220 = arith.addf %218, %219 : vector<5x32xf32>
    %221 = arith.truncf %220 : vector<5x32xf32> to vector<5x32xbf16>
    %cst_89 = arith.constant dense<0.000000e+00> : vector<5x64xf32>
    %222 = tpu.matmul %221, %18, %cst_89 {dimension_numbers = #tpu.dot_dimension_numbers<[1], [0], [0], [1], [0, 0, 1, 1], [], []>} : vector<5x32xbf16>, vector<32x64xbf16>, vector<5x64xf32> -> vector<5x64xf32>
    %223 = vector.broadcast %20 : vector<1x64xf32> to vector<5x64xf32>
    %224 = arith.addf %222, %223 : vector<5x64xf32>
    %cst_90 = arith.constant 5.000000e-01 : f32
    %225 = vector.broadcast %cst_90 : f32 to vector<5x64xf32>
    %226 = arith.mulf %225, %224 : vector<5x64xf32>
    %cst_91 = arith.constant 0.707106769 : f32
    %227 = vector.broadcast %cst_91 : f32 to vector<5x64xf32>
    %228 = arith.mulf %224, %227 : vector<5x64xf32>
    %229 = math.erf %228 : vector<5x64xf32>
    %cst_92 = arith.constant 1.000000e+00 : f32
    %230 = vector.broadcast %cst_92 : f32 to vector<5x64xf32>
    %231 = arith.addf %230, %229 : vector<5x64xf32>
    %232 = arith.mulf %226, %231 : vector<5x64xf32>
    %233 = arith.truncf %232 : vector<5x64xf32> to vector<5x64xbf16>
    %cst_93 = arith.constant dense<0.000000e+00> : vector<5x32xf32>
    %234 = tpu.matmul %233, %22, %cst_93 {dimension_numbers = #tpu.dot_dimension_numbers<[1], [0], [0], [1], [0, 0, 1, 1], [], []>} : vector<5x64xbf16>, vector<64x32xbf16>, vector<5x32xf32> -> vector<5x32xf32>
    %235 = vector.broadcast %24 : vector<1x32xf32> to vector<5x32xf32>
    %236 = arith.addf %234, %235 : vector<5x32xf32>
    %237 = arith.addf %200, %236 : vector<5x32xf32>
    %c1_94 = arith.constant 1 : index
    %c0_95 = arith.constant 0 : index
    %c0_96 = arith.constant 0 : index
    %238 = vector.load %arg14[%c1_94, %c0_95, %c0_96] : memref<2x5x32xf32, #tpu.memory_space<vmem>>, vector<1x5x32xf32>
    %239 = vector.shape_cast %238 : vector<1x5x32xf32> to vector<5x32xf32>
    %240 = vector.shape_cast %237 : vector<5x32xf32> to vector<1x5x32xf32>
    tpu.vector_store %arg14[%c1_94, %c0_95, %c0_96], %240 {strides = array<i32>} : memref<2x5x32xf32, #tpu.memory_space<vmem>>, vector<1x5x32xf32>,
    return
  }
  func.func @transform_0(%arg0: i32, %arg1: i32) -> (i32, i32, i32) {
    %c0_i32 = arith.constant 0 : i32
    %c0_i32_0 = arith.constant 0 : i32
    %c0_i32_1 = arith.constant 0 : i32
    return %arg0, %c0_i32, %c0_i32_0 : i32, i32, i32
  }
  func.func @transform_1(%arg0: i32, %arg1: i32) -> (i32, i32, i32) {
    %c0_i32 = arith.constant 0 : i32
    %c0_i32_0 = arith.constant 0 : i32
    %c0_i32_1 = arith.constant 0 : i32
    return %arg1, %c0_i32, %c0_i32_0 : i32, i32, i32
  }
  func.func @transform_2(%arg0: i32, %arg1: i32) -> (i32, i32, i32) {
    %c0_i32 = arith.constant 0 : i32
    %c0_i32_0 = arith.constant 0 : i32
    %c0_i32_1 = arith.constant 0 : i32
    return %arg1, %c0_i32, %c0_i32_0 : i32, i32, i32
  }
  func.func @transform_3(%arg0: i32, %arg1: i32) -> (i32, i32, i32) {
    %c0_i32 = arith.constant 0 : i32
    %c0_i32_0 = arith.constant 0 : i32
    %c0_i32_1 = arith.constant 0 : i32
    return %arg1, %c0_i32, %c0_i32_0 : i32, i32, i32
  }
  func.func @transform_4(%arg0: i32, %arg1: i32) -> (i32, i32, i32) {
    %c0_i32 = arith.constant 0 : i32
    %c0_i32_0 = arith.constant 0 : i32
    %c0_i32_1 = arith.constant 0 : i32
    return %arg1, %c0_i32, %c0_i32_0 : i32, i32, i32
  }
  func.func @transform_5(%arg0: i32, %arg1: i32) -> (i32, i32, i32) {
    %c0_i32 = arith.constant 0 : i32
    %c0_i32_0 = arith.constant 0 : i32
    %c0_i32_1 = arith.constant 0 : i32
    return %arg1, %c0_i32, %c0_i32_0 : i32, i32, i32
  }
  func.func @transform_6(%arg0: i32, %arg1: i32) -> (i32, i32, i32) {
    %c0_i32 = arith.constant 0 : i32
    %c0_i32_0 = arith.constant 0 : i32
    %c0_i32_1 = arith.constant 0 : i32
    return %arg1, %c0_i32, %c0_i32_0 : i32, i32, i32
  }
  func.func @transform_7(%arg0: i32, %arg1: i32) -> (i32, i32, i32) {
    %c0_i32 = arith.constant 0 : i32
    %c0_i32_0 = arith.constant 0 : i32
    %c0_i32_1 = arith.constant 0 : i32
    return %arg1, %c0_i32, %c0_i32_0 : i32, i32, i32
  }
  func.func @transform_8(%arg0: i32, %arg1: i32) -> (i32, i32, i32) {
    %c0_i32 = arith.constant 0 : i32
    %c0_i32_0 = arith.constant 0 : i32
    %c0_i32_1 = arith.constant 0 : i32
    return %arg1, %c0_i32, %c0_i32_0 : i32, i32, i32
  }
  func.func @transform_9(%arg0: i32, %arg1: i32) -> (i32, i32, i32) {
    %c0_i32 = arith.constant 0 : i32
    %c0_i32_0 = arith.constant 0 : i32
    %c0_i32_1 = arith.constant 0 : i32
    return %arg1, %c0_i32, %c0_i32_0 : i32, i32, i32
  }
  func.func @transform_10(%arg0: i32, %arg1: i32) -> (i32, i32, i32) {
    %c0_i32 = arith.constant 0 : i32
    %c0_i32_0 = arith.constant 0 : i32
    %c0_i32_1 = arith.constant 0 : i32
    return %arg1, %c0_i32, %c0_i32_0 : i32, i32, i32
  }
  func.func @transform_11(%arg0: i32, %arg1: i32) -> (i32, i32, i32) {
    %c0_i32 = arith.constant 0 : i32
    %c0_i32_0 = arith.constant 0 : i32
    %c0_i32_1 = arith.constant 0 : i32
    return %arg1, %c0_i32, %c0_i32_0 : i32, i32, i32
  }
  func.func @transform_12(%arg0: i32, %arg1: i32) -> (i32, i32, i32) {
    %c0_i32 = arith.constant 0 : i32
    %c0_i32_0 = arith.constant 0 : i32
    %c0_i32_1 = arith.constant 0 : i32
    return %arg0, %c0_i32, %c0_i32_0 : i32, i32, i32
  }
}

module attributes {stable_mosaic.version = 11 : i64} {
  func.func @_heads_loss_kernel(%arg0: i32, %arg1: memref<2x32xf32, #tpu.memory_space<vmem>>, %arg2: memref<2x32xf32, #tpu.memory_space<vmem>>, %arg3: memref<2x32xf32, #tpu.memory_space<vmem>>, %arg4: memref<1x32xf32, #tpu.memory_space<vmem>>, %arg5: memref<1x32xf32, #tpu.memory_space<vmem>>, %arg6: memref<32x10xbf16, #tpu.memory_space<vmem>>, %arg7: memref<1x10xf32, #tpu.memory_space<vmem>>, %arg8: memref<1x32xf32, #tpu.memory_space<vmem>>, %arg9: memref<1x32xf32, #tpu.memory_space<vmem>>, %arg10: memref<32x10xbf16, #tpu.memory_space<vmem>>, %arg11: memref<1x10xf32, #tpu.memory_space<vmem>>, %arg12: memref<32x10xbf16, #tpu.memory_space<vmem>>, %arg13: memref<1x10xf32, #tpu.memory_space<vmem>>, %arg14: memref<2x10xf32, #tpu.memory_space<vmem>>, %arg15: memref<1x1xf32, #tpu.memory_space<vmem>>) attributes {dimension_semantics = [#tpu.dimension_semantics<arbitrary>], iteration_bounds = array<i64: 1>, scalar_prefetch = 0 : i64, scratch_operands = 0 : i64, tpu.core_type = #tpu.core_type<tc>, window_params = [{pipeline_mode = #tpu.pipeline_mode<synchronous>, transform_indices = @transform_0, window_bounds = array<i64: 2, 32>}, {pipeline_mode = #tpu.pipeline_mode<synchronous>, transform_indices = @transform_1, window_bounds = array<i64: 2, 32>}, {pipeline_mode = #tpu.pipeline_mode<synchronous>, transform_indices = @transform_2, window_bounds = array<i64: 2, 32>}, {pipeline_mode = #tpu.pipeline_mode<synchronous>, transform_indices = @transform_3, window_bounds = array<i64: 1, 32>}, {pipeline_mode = #tpu.pipeline_mode<synchronous>, transform_indices = @transform_4, window_bounds = array<i64: 1, 32>}, {pipeline_mode = #tpu.pipeline_mode<synchronous>, transform_indices = @transform_5, window_bounds = array<i64: 32, 10>}, {pipeline_mode = #tpu.pipeline_mode<synchronous>, transform_indices = @transform_6, window_bounds = array<i64: 1, 10>}, {pipeline_mode = #tpu.pipeline_mode<synchronous>, transform_indices = @transform_7, window_bounds = array<i64: 1, 32>}, {pipeline_mode = #tpu.pipeline_mode<synchronous>, transform_indices = @transform_8, window_bounds = array<i64: 1, 32>}, {pipeline_mode = #tpu.pipeline_mode<synchronous>, transform_indices = @transform_9, window_bounds = array<i64: 32, 10>}, {pipeline_mode = #tpu.pipeline_mode<synchronous>, transform_indices = @transform_10, window_bounds = array<i64: 1, 10>}, {pipeline_mode = #tpu.pipeline_mode<synchronous>, transform_indices = @transform_11, window_bounds = array<i64: 32, 10>}, {pipeline_mode = #tpu.pipeline_mode<synchronous>, transform_indices = @transform_12, window_bounds = array<i64: 1, 10>}, {pipeline_mode = #tpu.pipeline_mode<synchronous>, transform_indices = @transform_13, window_bounds = array<i64: 2, 10>}, {pipeline_mode = #tpu.pipeline_mode<synchronous>, transform_indices = @transform_14, window_bounds = array<i64: 1, 1>}]} {
    %c0 = arith.constant 0 : index
    %c0_0 = arith.constant 0 : index
    %0 = vector.load %arg1[%c0, %c0_0] : memref<2x32xf32, #tpu.memory_space<vmem>>, vector<2x32xf32>
    %c0_1 = arith.constant 0 : index
    %c0_2 = arith.constant 0 : index
    %1 = vector.load %arg4[%c0_1, %c0_2] : memref<1x32xf32, #tpu.memory_space<vmem>>, vector<1x32xf32>
    %c0_3 = arith.constant 0 : index
    %c0_4 = arith.constant 0 : index
    %2 = vector.load %arg5[%c0_3, %c0_4] : memref<1x32xf32, #tpu.memory_space<vmem>>, vector<1x32xf32>
    %cst = arith.constant dense<0.000000e+00> : vector<2xf32>
    %3 = vector.multi_reduction <add>, %0, %cst [1] : vector<2x32xf32> to vector<2xf32>
    %4 = vector.shape_cast %3 : vector<2xf32> to vector<2x1xf32>
    %cst_5 = arith.constant 3.200000e+01 : f32
    %5 = vector.broadcast %cst_5 : f32 to vector<2x1xf32>
    %6 = arith.divf %4, %5 : vector<2x1xf32>
    %7 = vector.broadcast %6 : vector<2x1xf32> to vector<2x32xf32>
    %8 = arith.subf %0, %7 : vector<2x32xf32>
    %9 = arith.mulf %8, %8 : vector<2x32xf32>
    %cst_6 = arith.constant dense<0.000000e+00> : vector<2xf32>
    %10 = vector.multi_reduction <add>, %9, %cst_6 [1] : vector<2x32xf32> to vector<2xf32>
    %11 = vector.shape_cast %10 : vector<2xf32> to vector<2x1xf32>
    %cst_7 = arith.constant 3.200000e+01 : f32
    %12 = vector.broadcast %cst_7 : f32 to vector<2x1xf32>
    %13 = arith.divf %11, %12 : vector<2x1xf32>
    %cst_8 = arith.constant 9.99999974E-6 : f32
    %14 = vector.broadcast %cst_8 : f32 to vector<2x1xf32>
    %15 = arith.addf %13, %14 : vector<2x1xf32>
    %16 = math.rsqrt %15 : vector<2x1xf32>
    %17 = vector.broadcast %16 : vector<2x1xf32> to vector<2x32xf32>
    %18 = arith.mulf %8, %17 : vector<2x32xf32>
    %19 = vector.broadcast %1 : vector<1x32xf32> to vector<2x32xf32>
    %20 = arith.mulf %18, %19 : vector<2x32xf32>
    %21 = vector.broadcast %2 : vector<1x32xf32> to vector<2x32xf32>
    %22 = arith.addf %20, %21 : vector<2x32xf32>
    %23 = arith.truncf %22 : vector<2x32xf32> to vector<2x32xbf16>
    %c0_9 = arith.constant 0 : index
    %c0_10 = arith.constant 0 : index
    %24 = vector.load %arg6[%c0_9, %c0_10] : memref<32x10xbf16, #tpu.memory_space<vmem>>, vector<32x10xbf16>
    %cst_11 = arith.constant dense<0.000000e+00> : vector<2x10xf32>
    %25 = tpu.matmul %23, %24, %cst_11 {dimension_numbers = #tpu.dot_dimension_numbers<[1], [0], [0], [1], [0, 0, 1, 1], [], []>} : vector<2x32xbf16>, vector<32x10xbf16>, vector<2x10xf32> -> vector<2x10xf32>
    %c0_12 = arith.constant 0 : index
    %c0_13 = arith.constant 0 : index
    %26 = vector.load %arg7[%c0_12, %c0_13] : memref<1x10xf32, #tpu.memory_space<vmem>>, vector<1x10xf32>
    %27 = vector.broadcast %26 : vector<1x10xf32> to vector<2x10xf32>
    %28 = arith.addf %25, %27 : vector<2x10xf32>
    %c0_14 = arith.constant 0 : index
    %c0_15 = arith.constant 0 : index
    %29 = vector.load %arg2[%c0_14, %c0_15] : memref<2x32xf32, #tpu.memory_space<vmem>>, vector<2x32xf32>
    %c0_16 = arith.constant 0 : index
    %c0_17 = arith.constant 0 : index
    %30 = vector.load %arg8[%c0_16, %c0_17] : memref<1x32xf32, #tpu.memory_space<vmem>>, vector<1x32xf32>
    %c0_18 = arith.constant 0 : index
    %c0_19 = arith.constant 0 : index
    %31 = vector.load %arg9[%c0_18, %c0_19] : memref<1x32xf32, #tpu.memory_space<vmem>>, vector<1x32xf32>
    %cst_20 = arith.constant dense<0.000000e+00> : vector<2xf32>
    %32 = vector.multi_reduction <add>, %29, %cst_20 [1] : vector<2x32xf32> to vector<2xf32>
    %33 = vector.shape_cast %32 : vector<2xf32> to vector<2x1xf32>
    %cst_21 = arith.constant 3.200000e+01 : f32
    %34 = vector.broadcast %cst_21 : f32 to vector<2x1xf32>
    %35 = arith.divf %33, %34 : vector<2x1xf32>
    %36 = vector.broadcast %35 : vector<2x1xf32> to vector<2x32xf32>
    %37 = arith.subf %29, %36 : vector<2x32xf32>
    %38 = arith.mulf %37, %37 : vector<2x32xf32>
    %cst_22 = arith.constant dense<0.000000e+00> : vector<2xf32>
    %39 = vector.multi_reduction <add>, %38, %cst_22 [1] : vector<2x32xf32> to vector<2xf32>
    %40 = vector.shape_cast %39 : vector<2xf32> to vector<2x1xf32>
    %cst_23 = arith.constant 3.200000e+01 : f32
    %41 = vector.broadcast %cst_23 : f32 to vector<2x1xf32>
    %42 = arith.divf %40, %41 : vector<2x1xf32>
    %cst_24 = arith.constant 9.99999974E-6 : f32
    %43 = vector.broadcast %cst_24 : f32 to vector<2x1xf32>
    %44 = arith.addf %42, %43 : vector<2x1xf32>
    %45 = math.rsqrt %44 : vector<2x1xf32>
    %46 = vector.broadcast %45 : vector<2x1xf32> to vector<2x32xf32>
    %47 = arith.mulf %37, %46 : vector<2x32xf32>
    %48 = vector.broadcast %30 : vector<1x32xf32> to vector<2x32xf32>
    %49 = arith.mulf %47, %48 : vector<2x32xf32>
    %50 = vector.broadcast %31 : vector<1x32xf32> to vector<2x32xf32>
    %51 = arith.addf %49, %50 : vector<2x32xf32>
    %52 = arith.truncf %51 : vector<2x32xf32> to vector<2x32xbf16>
    %c0_25 = arith.constant 0 : index
    %c0_26 = arith.constant 0 : index
    %53 = vector.load %arg10[%c0_25, %c0_26] : memref<32x10xbf16, #tpu.memory_space<vmem>>, vector<32x10xbf16>
    %cst_27 = arith.constant dense<0.000000e+00> : vector<2x10xf32>
    %54 = tpu.matmul %52, %53, %cst_27 {dimension_numbers = #tpu.dot_dimension_numbers<[1], [0], [0], [1], [0, 0, 1, 1], [], []>} : vector<2x32xbf16>, vector<32x10xbf16>, vector<2x10xf32> -> vector<2x10xf32>
    %c0_28 = arith.constant 0 : index
    %c0_29 = arith.constant 0 : index
    %55 = vector.load %arg11[%c0_28, %c0_29] : memref<1x10xf32, #tpu.memory_space<vmem>>, vector<1x10xf32>
    %56 = vector.broadcast %55 : vector<1x10xf32> to vector<2x10xf32>
    %57 = arith.addf %54, %56 : vector<2x10xf32>
    %c0_30 = arith.constant 0 : index
    %c0_31 = arith.constant 0 : index
    %58 = vector.load %arg3[%c0_30, %c0_31] : memref<2x32xf32, #tpu.memory_space<vmem>>, vector<2x32xf32>
    %c0_32 = arith.constant 0 : index
    %c0_33 = arith.constant 0 : index
    %59 = vector.load %arg8[%c0_32, %c0_33] : memref<1x32xf32, #tpu.memory_space<vmem>>, vector<1x32xf32>
    %c0_34 = arith.constant 0 : index
    %c0_35 = arith.constant 0 : index
    %60 = vector.load %arg9[%c0_34, %c0_35] : memref<1x32xf32, #tpu.memory_space<vmem>>, vector<1x32xf32>
    %cst_36 = arith.constant dense<0.000000e+00> : vector<2xf32>
    %61 = vector.multi_reduction <add>, %58, %cst_36 [1] : vector<2x32xf32> to vector<2xf32>
    %62 = vector.shape_cast %61 : vector<2xf32> to vector<2x1xf32>
    %cst_37 = arith.constant 3.200000e+01 : f32
    %63 = vector.broadcast %cst_37 : f32 to vector<2x1xf32>
    %64 = arith.divf %62, %63 : vector<2x1xf32>
    %65 = vector.broadcast %64 : vector<2x1xf32> to vector<2x32xf32>
    %66 = arith.subf %58, %65 : vector<2x32xf32>
    %67 = arith.mulf %66, %66 : vector<2x32xf32>
    %cst_38 = arith.constant dense<0.000000e+00> : vector<2xf32>
    %68 = vector.multi_reduction <add>, %67, %cst_38 [1] : vector<2x32xf32> to vector<2xf32>
    %69 = vector.shape_cast %68 : vector<2xf32> to vector<2x1xf32>
    %cst_39 = arith.constant 3.200000e+01 : f32
    %70 = vector.broadcast %cst_39 : f32 to vector<2x1xf32>
    %71 = arith.divf %69, %70 : vector<2x1xf32>
    %cst_40 = arith.constant 9.99999974E-6 : f32
    %72 = vector.broadcast %cst_40 : f32 to vector<2x1xf32>
    %73 = arith.addf %71, %72 : vector<2x1xf32>
    %74 = math.rsqrt %73 : vector<2x1xf32>
    %75 = vector.broadcast %74 : vector<2x1xf32> to vector<2x32xf32>
    %76 = arith.mulf %66, %75 : vector<2x32xf32>
    %77 = vector.broadcast %59 : vector<1x32xf32> to vector<2x32xf32>
    %78 = arith.mulf %76, %77 : vector<2x32xf32>
    %79 = vector.broadcast %60 : vector<1x32xf32> to vector<2x32xf32>
    %80 = arith.addf %78, %79 : vector<2x32xf32>
    %81 = arith.truncf %80 : vector<2x32xf32> to vector<2x32xbf16>
    %c0_41 = arith.constant 0 : index
    %c0_42 = arith.constant 0 : index
    %82 = vector.load %arg12[%c0_41, %c0_42] : memref<32x10xbf16, #tpu.memory_space<vmem>>, vector<32x10xbf16>
    %cst_43 = arith.constant dense<0.000000e+00> : vector<2x10xf32>
    %83 = tpu.matmul %81, %82, %cst_43 {dimension_numbers = #tpu.dot_dimension_numbers<[1], [0], [0], [1], [0, 0, 1, 1], [], []>} : vector<2x32xbf16>, vector<32x10xbf16>, vector<2x10xf32> -> vector<2x10xf32>
    %c0_44 = arith.constant 0 : index
    %c0_45 = arith.constant 0 : index
    %84 = vector.load %arg13[%c0_44, %c0_45] : memref<1x10xf32, #tpu.memory_space<vmem>>, vector<1x10xf32>
    %85 = vector.broadcast %84 : vector<1x10xf32> to vector<2x10xf32>
    %86 = arith.addf %83, %85 : vector<2x10xf32>
    %c0_46 = arith.constant 0 : index
    %c0_47 = arith.constant 0 : index
    %87 = vector.load %arg14[%c0_46, %c0_47] : memref<2x10xf32, #tpu.memory_space<vmem>>, vector<2x10xf32>
    %cst_48 = arith.constant dense<0xFF800000> : vector<2xf32>
    %88 = vector.multi_reduction <maximumf>, %57, %cst_48 [1] : vector<2x10xf32> to vector<2xf32>
    %89 = vector.shape_cast %88 : vector<2xf32> to vector<2x1xf32>
    %90 = vector.broadcast %89 : vector<2x1xf32> to vector<2x10xf32>
    %91 = arith.subf %57, %90 : vector<2x10xf32>
    %92 = math.exp %91 : vector<2x10xf32>
    %cst_49 = arith.constant dense<0.000000e+00> : vector<2xf32>
    %93 = vector.multi_reduction <add>, %92, %cst_49 [1] : vector<2x10xf32> to vector<2xf32>
    %94 = vector.shape_cast %93 : vector<2xf32> to vector<2x1xf32>
    %95 = math.log %94 : vector<2x1xf32>
    %96 = vector.broadcast %95 : vector<2x1xf32> to vector<2x10xf32>
    %97 = arith.subf %91, %96 : vector<2x10xf32>
    %98 = arith.mulf %87, %97 : vector<2x10xf32>
    %99 = vector.shape_cast %98 : vector<2x10xf32> to vector<1x2x10xf32>
    %cst_50 = arith.constant dense<0.000000e+00> : vector<1xf32>
    %100 = vector.multi_reduction <add>, %99, %cst_50 [1, 2] : vector<1x2x10xf32> to vector<1xf32>
    %101 = vector.shape_cast %100 : vector<1xf32> to vector<1x1x1xf32>
    %102 = vector.extract %101[0, 0, 0] : f32 from vector<1x1x1xf32>
    %cst_51 = arith.constant 0.000000e+00 : f32
    %103 = arith.subf %cst_51, %102 : f32
    %cst_52 = arith.constant 2.000000e+00 : f32
    %104 = arith.divf %103, %cst_52 : f32
    %cst_53 = arith.constant 1.000000e+00 : f32
    %105 = vector.broadcast %cst_53 : f32 to vector<2x10xf32>
    %106 = arith.divf %86, %105 : vector<2x10xf32>
    %cst_54 = arith.constant dense<0xFF800000> : vector<2xf32>
    %107 = vector.multi_reduction <maximumf>, %106, %cst_54 [1] : vector<2x10xf32> to vector<2xf32>
    %108 = vector.shape_cast %107 : vector<2xf32> to vector<2x1xf32>
    %109 = vector.broadcast %108 : vector<2x1xf32> to vector<2x10xf32>
    %110 = arith.subf %106, %109 : vector<2x10xf32>
    %111 = math.exp %110 : vector<2x10xf32>
    %cst_55 = arith.constant dense<0.000000e+00> : vector<2xf32>
    %112 = vector.multi_reduction <add>, %111, %cst_55 [1] : vector<2x10xf32> to vector<2xf32>
    %113 = vector.shape_cast %112 : vector<2xf32> to vector<2x1xf32>
    %114 = math.log %113 : vector<2x1xf32>
    %115 = vector.broadcast %114 : vector<2x1xf32> to vector<2x10xf32>
    %116 = arith.subf %110, %115 : vector<2x10xf32>
    %cst_56 = arith.constant 1.000000e+00 : f32
    %117 = vector.broadcast %cst_56 : f32 to vector<2x10xf32>
    %118 = arith.divf %28, %117 : vector<2x10xf32>
    %cst_57 = arith.constant dense<0xFF800000> : vector<2xf32>
    %119 = vector.multi_reduction <maximumf>, %118, %cst_57 [1] : vector<2x10xf32> to vector<2xf32>
    %120 = vector.shape_cast %119 : vector<2xf32> to vector<2x1xf32>
    %121 = vector.broadcast %120 : vector<2x1xf32> to vector<2x10xf32>
    %122 = arith.subf %118, %121 : vector<2x10xf32>
    %123 = math.exp %122 : vector<2x10xf32>
    %cst_58 = arith.constant dense<0.000000e+00> : vector<2xf32>
    %124 = vector.multi_reduction <add>, %123, %cst_58 [1] : vector<2x10xf32> to vector<2xf32>
    %125 = vector.shape_cast %124 : vector<2xf32> to vector<2x1xf32>
    %126 = math.log %125 : vector<2x1xf32>
    %127 = vector.broadcast %126 : vector<2x1xf32> to vector<2x10xf32>
    %128 = arith.subf %122, %127 : vector<2x10xf32>
    %129 = math.exp %128 : vector<2x10xf32>
    %130 = arith.subf %128, %116 : vector<2x10xf32>
    %131 = arith.mulf %129, %130 : vector<2x10xf32>
    %132 = vector.shape_cast %131 : vector<2x10xf32> to vector<1x2x10xf32>
    %cst_59 = arith.constant dense<0.000000e+00> : vector<1xf32>
    %133 = vector.multi_reduction <add>, %132, %cst_59 [1, 2] : vector<1x2x10xf32> to vector<1xf32>
    %134 = vector.shape_cast %133 : vector<1xf32> to vector<1x1x1xf32>
    %135 = vector.extract %134[0, 0, 0] : f32 from vector<1x1x1xf32>
    %cst_60 = arith.constant 2.000000e+00 : f32
    %136 = arith.divf %135, %cst_60 : f32
    %cst_61 = arith.constant 1.000000e+00 : f32
    %137 = arith.mulf %136, %cst_61 : f32
    %cst_62 = arith.constant 5.000000e-01 : f32
    %138 = arith.mulf %104, %cst_62 : f32
    %cst_63 = arith.constant 5.000000e-01 : f32
    %139 = arith.mulf %137, %cst_63 : f32
    %140 = arith.addf %138, %139 : f32
    %141 = vector.broadcast %140 : f32 to vector<1x1xf32>
    %c0_64 = arith.constant 0 : index
    %c0_65 = arith.constant 0 : index
    %142 = vector.load %arg15[%c0_64, %c0_65] : memref<1x1xf32, #tpu.memory_space<vmem>>, vector<1x1xf32>
    tpu.vector_store %arg15[%c0_64, %c0_65], %141 {strides = array<i32>} : memref<1x1xf32, #tpu.memory_space<vmem>>, vector<1x1xf32>,
    return
  }
  func.func @transform_0(%arg0: i32) -> (i32, i32) {
    %c0_i32 = arith.constant 0 : i32
    %c0_i32_0 = arith.constant 0 : i32
    %c0_i32_1 = arith.constant 0 : i32
    return %c0_i32, %c0_i32_0 : i32, i32
  }
  func.func @transform_1(%arg0: i32) -> (i32, i32) {
    %c0_i32 = arith.constant 0 : i32
    %c0_i32_0 = arith.constant 0 : i32
    %c0_i32_1 = arith.constant 0 : i32
    return %c0_i32, %c0_i32_0 : i32, i32
  }
  func.func @transform_2(%arg0: i32) -> (i32, i32) {
    %c0_i32 = arith.constant 0 : i32
    %c0_i32_0 = arith.constant 0 : i32
    %c0_i32_1 = arith.constant 0 : i32
    return %c0_i32, %c0_i32_0 : i32, i32
  }
  func.func @transform_3(%arg0: i32) -> (i32, i32) {
    %c0_i32 = arith.constant 0 : i32
    %c0_i32_0 = arith.constant 0 : i32
    %c0_i32_1 = arith.constant 0 : i32
    return %c0_i32, %c0_i32_0 : i32, i32
  }
  func.func @transform_4(%arg0: i32) -> (i32, i32) {
    %c0_i32 = arith.constant 0 : i32
    %c0_i32_0 = arith.constant 0 : i32
    %c0_i32_1 = arith.constant 0 : i32
    return %c0_i32, %c0_i32_0 : i32, i32
  }
  func.func @transform_5(%arg0: i32) -> (i32, i32) {
    %c0_i32 = arith.constant 0 : i32
    %c0_i32_0 = arith.constant 0 : i32
    %c0_i32_1 = arith.constant 0 : i32
    return %c0_i32, %c0_i32_0 : i32, i32
  }
  func.func @transform_6(%arg0: i32) -> (i32, i32) {
    %c0_i32 = arith.constant 0 : i32
    %c0_i32_0 = arith.constant 0 : i32
    %c0_i32_1 = arith.constant 0 : i32
    return %c0_i32, %c0_i32_0 : i32, i32
  }
  func.func @transform_7(%arg0: i32) -> (i32, i32) {
    %c0_i32 = arith.constant 0 : i32
    %c0_i32_0 = arith.constant 0 : i32
    %c0_i32_1 = arith.constant 0 : i32
    return %c0_i32, %c0_i32_0 : i32, i32
  }
  func.func @transform_8(%arg0: i32) -> (i32, i32) {
    %c0_i32 = arith.constant 0 : i32
    %c0_i32_0 = arith.constant 0 : i32
    %c0_i32_1 = arith.constant 0 : i32
    return %c0_i32, %c0_i32_0 : i32, i32
  }
  func.func @transform_9(%arg0: i32) -> (i32, i32) {
    %c0_i32 = arith.constant 0 : i32
    %c0_i32_0 = arith.constant 0 : i32
    %c0_i32_1 = arith.constant 0 : i32
    return %c0_i32, %c0_i32_0 : i32, i32
  }
  func.func @transform_10(%arg0: i32) -> (i32, i32) {
    %c0_i32 = arith.constant 0 : i32
    %c0_i32_0 = arith.constant 0 : i32
    %c0_i32_1 = arith.constant 0 : i32
    return %c0_i32, %c0_i32_0 : i32, i32
  }
  func.func @transform_11(%arg0: i32) -> (i32, i32) {
    %c0_i32 = arith.constant 0 : i32
    %c0_i32_0 = arith.constant 0 : i32
    %c0_i32_1 = arith.constant 0 : i32
    return %c0_i32, %c0_i32_0 : i32, i32
  }
  func.func @transform_12(%arg0: i32) -> (i32, i32) {
    %c0_i32 = arith.constant 0 : i32
    %c0_i32_0 = arith.constant 0 : i32
    %c0_i32_1 = arith.constant 0 : i32
    return %c0_i32, %c0_i32_0 : i32, i32
  }
  func.func @transform_13(%arg0: i32) -> (i32, i32) {
    %c0_i32 = arith.constant 0 : i32
    %c0_i32_0 = arith.constant 0 : i32
    %c0_i32_1 = arith.constant 0 : i32
    return %c0_i32, %c0_i32_0 : i32, i32
  }
  func.func @transform_14(%arg0: i32) -> (i32, i32) {
    %c0_i32 = arith.constant 0 : i32
    %c0_i32_0 = arith.constant 0 : i32
    %c0_i32_1 = arith.constant 0 : i32
    return %c0_i32, %c0_i32_0 : i32, i32
  }
}

</mosaic_0001>

<llo_original>
// kernel: distill_wrapper_forward.7
$region0: #{distill_wrapper_forward.7}
  #allocation0 [shape = 'u32[]', space=smem, size = 0x4, offset = 0x4, fixed_abs, tag = 'smem constant byte address 0x4 - core index']
  #allocation1 [shape = 'u32[144,128]{1,0:T(1,128)}', space=vmem, size = 0x12000, scoped, tag = 'internal scratch']
  %s0 = inlined_call_operand.vmem [shape: f32[2,4,192], index: 0, kind: input, shape index: {}]
  %s1 = inlined_call_operand.vmem [shape: f32[1,192], index: 1, kind: input, shape index: {}]
  %s2 = inlined_call_operand.vmem [shape: f32[1,192], index: 2, kind: input, shape index: {}]
  %s3 = inlined_call_operand.vmem [shape: bf16[192,32], index: 3, kind: input, shape index: {}]
  %s4 = inlined_call_operand.vmem [shape: f32[1,32], index: 4, kind: input, shape index: {}]
  %s5 = inlined_call_operand.vmem [shape: f32[1,32], index: 5, kind: input, shape index: {}]
  %s6 = inlined_call_operand.vmem [shape: f32[1,32], index: 6, kind: input, shape index: {}]
  %s7 = inlined_call_operand.vmem [shape: f32[1,5,32], index: 7, kind: input, shape index: {}]
  %s8 = inlined_call_operand.vmem [shape: f32[1,1,32], index: 8, kind: input, shape index: {}]
  %s9 = inlined_call_operand.vmem [shape: f32[1,1,32], index: 9, kind: input, shape index: {}]
  %s10 = inlined_call_operand.vmem [shape: f32[2,6,32], index: 10, kind: output, shape index: {}]
  %s11 = sld [smem:[#allocation0]]
  $region50: #{distill_wrapper_forward.7} parent=0
    _
  %s13 = ssub.s32 1, %s11
  %s14 = scalar_select 0, %s13, %s11
  // Predicated region
  $region2: #{distill_wrapper_forward.7} parent=0 // pred_check
    _
  $region3: #{distill_wrapper_forward.7} parent=0 // pred_check_branch
    %16 = sbr.rel (0) target = $region5
  $region4: #{distill_wrapper_forward.7} parent=0 // pred_region
    _
  $region5: #{distill_wrapper_forward.7} parent=0 // pred_fallthru
    _
  // Predicated region
  $region6: #{distill_wrapper_forward.7} parent=0 // pred_check
    _
  $region7: #{distill_wrapper_forward.7} parent=0 // pred_check_branch
    %18 = sbr.rel (0) target = $region9
  $region8: #{distill_wrapper_forward.7} parent=0 // pred_region
    _
  $region9: #{distill_wrapper_forward.7} parent=0 // pred_fallthru
    _
  // Predicated region
  $region10: #{distill_wrapper_forward.7} parent=0 // pred_check
    _
  $region11: #{distill_wrapper_forward.7} parent=0 // pred_check_branch
    %20 = sbr.rel (0) target = $region13
  $region12: #{distill_wrapper_forward.7} parent=0 // pred_region
    _
  $region13: #{distill_wrapper_forward.7} parent=0 // pred_fallthru
    _
  // Predicated region
  $region14: #{distill_wrapper_forward.7} parent=0 // pred_check
    _
  $region15: #{distill_wrapper_forward.7} parent=0 // pred_check_branch
    %22 = sbr.rel (0) target = $region17
  $region16: #{distill_wrapper_forward.7} parent=0 // pred_region
    _
  $region17: #{distill_wrapper_forward.7} parent=0 // pred_fallthru
    _
  // Predicated region
  $region18: #{distill_wrapper_forward.7} parent=0 // pred_check
    _
  $region19: #{distill_wrapper_forward.7} parent=0 // pred_check_branch
    %24 = sbr.rel (0) target = $region21
  $region20: #{distill_wrapper_forward.7} parent=0 // pred_region
    _
  $region21: #{distill_wrapper_forward.7} parent=0 // pred_fallthru
    _
  // Predicated region
  $region22: #{distill_wrapper_forward.7} parent=0 // pred_check
    _
  $region23: #{distill_wrapper_forward.7} parent=0 // pred_check_branch
    %26 = sbr.rel (0) target = $region25
  $region24: #{distill_wrapper_forward.7} parent=0 // pred_region
    _
  $region25: #{distill_wrapper_forward.7} parent=0 // pred_fallthru
    _
  // Predicated region
  $region26: #{distill_wrapper_forward.7} parent=0 // pred_check
    _
  $region27: #{distill_wrapper_forward.7} parent=0 // pred_check_branch
    %28 = sbr.rel (0) target = $region29
  $region28: #{distill_wrapper_forward.7} parent=0 // pred_region
    _
  $region29: #{distill_wrapper_forward.7} parent=0 // pred_fallthru
    _
  // Predicated region
  $region30: #{distill_wrapper_forward.7} parent=0 // pred_check
    _
  $region31: #{distill_wrapper_forward.7} parent=0 // pred_check_branch
    %30 = sbr.rel (0) target = $region33
  $region32: #{distill_wrapper_forward.7} parent=0 // pred_region
    _
  $region33: #{distill_wrapper_forward.7} parent=0 // pred_fallthru
    _
  // Predicated region
  $region34: #{distill_wrapper_forward.7} parent=0 // pred_check
    _
  $region35: #{distill_wrapper_forward.7} parent=0 // pred_check_branch
    %32 = sbr.rel (0) target = $region37
  $region36: #{distill_wrapper_forward.7} parent=0 // pred_region
    _
  $region37: #{distill_wrapper_forward.7} parent=0 // pred_fallthru
    _
  // Predicated region
  $region38: #{distill_wrapper_forward.7} parent=0 // pred_check
    _
  $region39: #{distill_wrapper_forward.7} parent=0 // pred_check_branch
    %34 = sbr.rel (0) target = $region41
  $region40: #{distill_wrapper_forward.7} parent=0 // pred_region
    _
  $region41: #{distill_wrapper_forward.7} parent=0 // pred_fallthru
    _
  %v36 = vld [vmem:[%s7] sm:$0x1f]
  %v37 = vld [vmem:[%s8] sm:$0x1]
  %v38 = vadd.f32 %v37, %v36
  %v39 = vld [vmem:[%s3] sm:$0xf]
  %v40 = vld [vmem:[%s3 + $0x4] sm:$0xf]
  %v41 = vld [vmem:[%s3 + $0x8] sm:$0xf]
  %v42 = vld [vmem:[%s3 + $0xc] sm:$0xf]
  %v43 = vld [vmem:[%s3 + $0x10] sm:$0xf]
  %v44 = vld [vmem:[%s3 + $0x14] sm:$0xf]
  %v45 = vld [vmem:[%s3 + $0x18] sm:$0xf]
  %v46 = vld [vmem:[%s3 + $0x1c] sm:$0xf]
  %v47 = vld [vmem:[%s3 + $0x20] sm:$0xf]
  %v48 = vld [vmem:[%s3 + $0x24] sm:$0xf]
  %v49 = vld [vmem:[%s3 + $0x28] sm:$0xf]
  %v50 = vld [vmem:[%s3 + $0x2c] sm:$0xf]
  %v51 = vld [vmem:[%s3 + $0x30] sm:$0xf]
  %v52 = vld [vmem:[%s3 + $0x34] sm:$0xf]
  %v53 = vld [vmem:[%s3 + $0x38] sm:$0xf]
  %v54 = vld [vmem:[%s3 + $0x3c] sm:$0xf]
  %v55 = vld [vmem:[%s3 + $0x40] sm:$0xf]
  %v56 = vld [vmem:[%s3 + $0x44] sm:$0xf]
  %v57 = vld [vmem:[%s3 + $0x48] sm:$0xf]
  %v58 = vld [vmem:[%s3 + $0x4c] sm:$0xf]
  %v59 = vld [vmem:[%s3 + $0x50] sm:$0xf]
  %v60 = vld [vmem:[%s3 + $0x54] sm:$0xf]
  %v61 = vld [vmem:[%s3 + $0x58] sm:$0xf]
  %v62 = vld [vmem:[%s3 + $0x5c] sm:$0xf]
  %v63 = vld [vmem:[%s4] sm:$0x1]
  %v64 = vld [vmem:[%s1] sm:$0x3]
  %v65 = vld [vmem:[%s2] sm:$0x3]
  %v66 = vld [vmem:[%s5] sm:$0x1]
  %v67 = vld [vmem:[%s6] sm:$0x1]
  %v68 = vld [vmem:[%s0] sm:$0xff]
  %v70 = vcombine.high %v68, %v68
  %vm72 = vcmask 1043456
  %v73 = vsel %vm72, %v68, 0.0
  %vm74 = vcmask 519168
  %v75 = vsel %vm74, %v70, 0.0
  %v76 = vadd.f32 %v73, %v75
  %77 = vadd.xlane.f32.xlu0 %v76
  %v78 = vpop.xlane.xlu0 %77
  %v79 = vrcp.pop 192.0
  %v80 = vmul.f32 %v78, %v79
  %v83 = vunpack.c.l.s4 839922192
  %v84 = vunpack.c.0.s8 %v83
  %v85 = vlaneseq
  %v86 = vshrl.u32 %v85, 7
  %v87 = vsub.s32 %v84, %v86
  %v88 = vrot.slane %v80, %v87
  %v90 = vsub.f32 %v68, %v88
  %v91 = vmul.f32 %v90, %v90
  %v93 = vcombine.high %v91, %v91
  %v95 = vsel %vm72, %v91, 0.0
  %v96 = vsel %vm74, %v93, 0.0
  %v97 = vadd.f32 %v95, %v96
  %98 = vadd.xlane.f32.xlu0 %v97
  %v99 = vpop.xlane.xlu0 %98
  %v100 = vmul.f32 %v99, %v79
  %v101 = vadd.f32 %v100, 1e-05
  %v102 = vrsqrt.pop %v101
  %v105 = vunpack.c.l.s4 839922192
  %v106 = vunpack.c.0.s8 %v105
  %v107 = vlaneseq
  %v108 = vshrl.u32 %v107, 7
  %v109 = vsub.s32 %v106, %v108
  %v110 = vrot.slane %v102, %v109
  %v112 = vmul.f32 %v90, %v110
  %v114 = vlaneseq
  %v115 = vshrl.u32 %v114, 7
  %v116 = vsub.s32 0, %v115
  %v117 = vrot.slane %v64, %v116
  %v118 = vlaneseq
  %v119 = vshrl.u32 %v118, 7
  %v120 = vsub.s32 1, %v119
  %v121 = vrot.slane %v64, %v120
  %v122 = vcombine.low %v117, %v121
  %v124 = vmul.f32 %v112, %v122
  %v126 = vlaneseq
  %v127 = vshrl.u32 %v126, 7
  %v128 = vsub.s32 0, %v127
  %v129 = vrot.slane %v65, %v128
  %v130 = vlaneseq
  %v131 = vshrl.u32 %v130, 7
  %v132 = vsub.s32 1, %v131
  %v133 = vrot.slane %v65, %v132
  %v134 = vcombine.low %v129, %v133
  %v136 = vadd.f32 %v124, %v134
  %v138 = vcombine.high %v136, %v136
  %v140 = vpack.c.bf16 %v136, %v136
  %v141 = vpack.c.bf16 %v138, %v138
  %v143 = vlaneseq
  %v144 = vshrl.u32 %v143, 7
  %v145 = vsub.s32 0, %v144
  %v146 = vrot.slane %v63, %v145
  %v172 = vunpack.c.l.b16 %v39
  %v173 = vunpack.c.l.b16 %v40
  %v174 = vunpack.c.l.b16 %v41
  %v175 = vunpack.c.l.b16 %v42
  %v176 = vunpack.c.l.b16 %v43
  %v177 = vunpack.c.l.b16 %v44
  %v178 = vunpack.c.l.b16 %v45
  %v179 = vunpack.c.l.b16 %v46
  %v180 = vunpack.c.l.b16 %v47
  %v181 = vunpack.c.l.b16 %v48
  %v182 = vunpack.c.l.b16 %v49
  %v183 = vunpack.c.l.b16 %v50
  %v184 = vunpack.c.l.b16 %v51
  %v185 = vunpack.c.l.b16 %v52
  %v186 = vunpack.c.l.b16 %v53
  %v187 = vunpack.c.l.b16 %v54
  %v188 = vunpack.c.l.b16 %v55
  %v189 = vunpack.c.l.b16 %v56
  %v190 = vunpack.c.l.b16 %v57
  %v191 = vunpack.c.l.b16 %v58
  %v192 = vunpack.c.l.b16 %v59
  %v193 = vunpack.c.l.b16 %v60
  %v194 = vunpack.c.l.b16 %v61
  %v195 = vunpack.c.l.b16 %v62
  %v196 = vpack.c.b16 %v173, %v172
  %v197 = vpack.c.b16 %v175, %v174
  %v198 = vpack.c.b16 %v177, %v176
  %v199 = vpack.c.b16 %v179, %v178
  %v200 = vpack.c.b16 %v181, %v180
  %v201 = vpack.c.b16 %v183, %v182
  %v202 = vpack.c.b16 %v185, %v184
  %v203 = vpack.c.b16 %v187, %v186
  %v204 = vpack.c.b16 %v189, %v188
  %v205 = vpack.c.b16 %v191, %v190
  %v206 = vpack.c.b16 %v193, %v192
  %v207 = vpack.c.b16 %v195, %v194
  %vm220 = vcmask 523264
  %v222 = vsel %vm220, %v141, 0
  %224 = vmatprep.subr.bf16.mxu0 0
  %225 = vmatpush1.bf16.msra.mxu0 %v196
  %226 = vmatprep.subr.bf16.mxu0 0
  %227 = vmatpush1.bf16.msra.mxu0 %v197
  %228 = vmatprep.subr.bf16.mxu0 0
  %229 = vmatpush1.bf16.msra.mxu0 %v198
  %230 = vmatprep.subr.bf16.mxu0 0
  %231 = vmatpush1.bf16.msra.mxu0 %v199
  %232 = vmatprep.subr.bf16.mxu0 0
  %233 = vmatpush1.bf16.msra.mxu0 %v200
  %234 = vmatprep.subr.bf16.mxu0 0
  %235 = vmatpush1.bf16.msra.mxu0 %v201
  %236 = vmatprep.subr.bf16.mxu0 0
  %237 = vmatpush1.bf16.msra.mxu0 %v202
  %238 = vmatprep.subr.bf16.mxu0 0
  %239 = vmatpush1.bf16.msra.mxu0 %v203
  %240 = vmatprep.subr.bf16.mxu0 0
  %241 = vmatpush1.bf16.msra.mxu0 %v204
  %242 = vmatprep.subr.bf16.mxu0 0
  %243 = vmatpush1.bf16.msra.mxu0 %v205
  %244 = vmatprep.subr.bf16.mxu0 0
  %245 = vmatpush1.bf16.msra.mxu0 %v206
  %246 = vmatprep.subr.bf16.mxu0 0
  %247 = vmatpush1.bf16.msra.mxu0 %v207
  %248 = vmatprep.subr.bf16.mxu0 0
  %249 = vmatpush1.bf16.msra.mxu0 0
  %250 = vmatprep.subr.bf16.mxu0 0
  %251 = vmatpush1.bf16.msra.mxu0 0
  %252 = vmatprep.subr.bf16.mxu0 0
  %253 = vmatpush1.bf16.msra.mxu0 0
  %254 = vmatprep.subr.bf16.mxu0 0
  %255 = vmatpush1.bf16.msra.mxu0 0
  %256 = vmatprep.mubr.bf16.mxu0 %v222
  %257 = vmatmul.mubr.bf16.gmra.mrb[0].mxu0 %v140
  %v258 = vpop.f32.mrb[0].mxu0
  %v259 = vadd.f32 %v146, %v258
  %v260 = vpop.f32.mrb[0].mxu0
  %v261 = vpop.f32.mrb[0].mxu0
  %v262 = vpop.f32.mrb[0].mxu0
  %263 = vdwg.mxu0
  %vm264 = vcmask 257024
  %v265 = vsel %vm264, %v259, 0.0
  %266 = vadd.xlane.f32.xlu0 %v265
  %v267 = vpop.xlane.xlu0 %266
  %v268 = vrcp.pop 32.0
  %v269 = vmul.f32 %v267, %v268
  %v270 = vsub.f32 %v259, %v269
  %v271 = vmul.f32 %v270, %v270
  %v272 = vsel %vm264, %v271, 0.0
  %273 = vadd.xlane.f32.xlu0 %v272
  %v274 = vpop.xlane.xlu0 %273
  %v275 = vmul.f32 %v274, %v268
  %v276 = vadd.f32 %v275, 1e-05
  %v277 = vrsqrt.pop %v276
  %v278 = vmul.f32 %v270, %v277
  %v280 = vlaneseq
  %v281 = vshrl.u32 %v280, 7
  %v282 = vsub.s32 0, %v281
  %v283 = vrot.slane %v66, %v282
  %v285 = vmul.f32 %v278, %v283
  %v287 = vlaneseq
  %v288 = vshrl.u32 %v287, 7
  %v289 = vsub.s32 0, %v288
  %v290 = vrot.slane %v67, %v289
  %v292 = vadd.f32 %v285, %v290
  %vm293 = vcmask 253952
  %294 = vst.msk [vmem:[%s10] sm:$0x1] %vm293, %v38
  %v296 = vrot.slane %v36, 1
  %v298 = vadd.f32 %v292, %v296
  %299 = vst.msk [vmem:[%s10 + $0x1] sm:$0xf] %vm264, %v298
  %v300 = vld [vmem:[%s9] sm:$0x1]
  %301 = vst.msk [vmem:[%s10 + $0x5] sm:$0x1] %vm293, %v300
  %s302 = scalar_lea.vmem %s0, 8
  %v303 = vld [vmem:[%s302] sm:$0xff]
  %v305 = vcombine.high %v303, %v303
  %v307 = vsel %vm72, %v303, 0.0
  %v308 = vsel %vm74, %v305, 0.0
  %v309 = vadd.f32 %v307, %v308
  %310 = vadd.xlane.f32.xlu0 %v309
  %v311 = vpop.xlane.xlu0 %310
  %v312 = vmul.f32 %v311, %v79
  %v315 = vunpack.c.l.s4 839922192
  %v316 = vunpack.c.0.s8 %v315
  %v317 = vlaneseq
  %v318 = vshrl.u32 %v317, 7
  %v319 = vsub.s32 %v316, %v318
  %v320 = vrot.slane %v312, %v319
  %v322 = vsub.f32 %v303, %v320
  %v323 = vmul.f32 %v322, %v322
  %v325 = vcombine.high %v323, %v323
  %v327 = vsel %vm72, %v323, 0.0
  %v328 = vsel %vm74, %v325, 0.0
  %v329 = vadd.f32 %v327, %v328
  %330 = vadd.xlane.f32.xlu0 %v329
  %v331 = vpop.xlane.xlu0 %330
  %v332 = vmul.f32 %v331, %v79
  %v333 = vadd.f32 %v332, 1e-05
  %v334 = vrsqrt.pop %v333
  %v337 = vunpack.c.l.s4 839922192
  %v338 = vunpack.c.0.s8 %v337
  %v339 = vlaneseq
  %v340 = vshrl.u32 %v339, 7
  %v341 = vsub.s32 %v338, %v340
  %v342 = vrot.slane %v334, %v341
  %v344 = vmul.f32 %v322, %v342
  %v345 = vmul.f32 %v344, %v122
  %v346 = vadd.f32 %v345, %v134
  %v348 = vcombine.high %v346, %v346
  %v350 = vpack.c.bf16 %v346, %v346
  %v351 = vpack.c.bf16 %v348, %v348
  %v353 = vsel %vm220, %v351, 0
  %355 = vmatprep.subr.bf16.mxu0 0
  %356 = vmatpush1.bf16.msra.mxu0 %v196
  %357 = vmatprep.subr.bf16.mxu0 0
  %358 = vmatpush1.bf16.msra.mxu0 %v197
  %359 = vmatprep.subr.bf16.mxu0 0
  %360 = vmatpush1.bf16.msra.mxu0 %v198
  %361 = vmatprep.subr.bf16.mxu0 0
  %362 = vmatpush1.bf16.msra.mxu0 %v199
  %363 = vmatprep.subr.bf16.mxu0 0
  %364 = vmatpush1.bf16.msra.mxu0 %v200
  %365 = vmatprep.subr.bf16.mxu0 0
  %366 = vmatpush1.bf16.msra.mxu0 %v201
  %367 = vmatprep.subr.bf16.mxu0 0
  %368 = vmatpush1.bf16.msra.mxu0 %v202
  %369 = vmatprep.subr.bf16.mxu0 0
  %370 = vmatpush1.bf16.msra.mxu0 %v203
  %371 = vmatprep.subr.bf16.mxu0 0
  %372 = vmatpush1.bf16.msra.mxu0 %v204
  %373 = vmatprep.subr.bf16.mxu0 0
  %374 = vmatpush1.bf16.msra.mxu0 %v205
  %375 = vmatprep.subr.bf16.mxu0 0
  %376 = vmatpush1.bf16.msra.mxu0 %v206
  %377 = vmatprep.subr.bf16.mxu0 0
  %378 = vmatpush1.bf16.msra.mxu0 %v207
  %379 = vmatprep.subr.bf16.mxu0 0
  %380 = vmatpush1.bf16.msra.mxu0 0
  %381 = vmatprep.subr.bf16.mxu0 0
  %382 = vmatpush1.bf16.msra.mxu0 0
  %383 = vmatprep.subr.bf16.mxu0 0
  %384 = vmatpush1.bf16.msra.mxu0 0
  %385 = vmatprep.subr.bf16.mxu0 0
  %386 = vmatpush1.bf16.msra.mxu0 0
  %387 = vmatprep.mubr.bf16.mxu0 %v353
  %388 = vmatmul.mubr.bf16.gmra.mrb[0].mxu0 %v350
  %v389 = vpop.f32.mrb[0].mxu0
  %v390 = vadd.f32 %v146, %v389
  %v391 = vpop.f32.mrb[0].mxu0
  %v392 = vpop.f32.mrb[0].mxu0
  %v393 = vpop.f32.mrb[0].mxu0
  %394 = vdwg.mxu0
  %v395 = vsel %vm264, %v390, 0.0
  %396 = vadd.xlane.f32.xlu0 %v395
  %v397 = vpop.xlane.xlu0 %396
  %v398 = vmul.f32 %v397, %v268
  %v399 = vsub.f32 %v390, %v398
  %v400 = vmul.f32 %v399, %v399
  %v401 = vsel %vm264, %v400, 0.0
  %402 = vadd.xlane.f32.xlu0 %v401
  %v403 = vpop.xlane.xlu0 %402
  %v404 = vmul.f32 %v403, %v268
  %v405 = vadd.f32 %v404, 1e-05
  %v406 = vrsqrt.pop %v405
  %v407 = vmul.f32 %v399, %v406
  %v408 = vmul.f32 %v407, %v283
  %v409 = vadd.f32 %v408, %v290
  %s410 = scalar_lea.vmem %s10, 8
  %411 = vst.msk [vmem:[%s410] sm:$0x1] %vm293, %v38
  %v412 = vadd.f32 %v409, %v296
  %413 = vst.msk [vmem:[%s410 + $0x1] sm:$0xf] %vm264, %v412
  %v414 = vld [vmem:[%s9] sm:$0x1]
  %415 = vst.msk [vmem:[%s410 + $0x5] sm:$0x1] %vm293, %v414
  // Predicated region
  $region42: #{distill_wrapper_forward.7} parent=0 // pred_check
    _
  $region43: #{distill_wrapper_forward.7} parent=0 // pred_check_branch
    %417 = sbr.rel (0) target = $region45
  $region44: #{distill_wrapper_forward.7} parent=0 // pred_region
    _
  $region45: #{distill_wrapper_forward.7} parent=0 // pred_fallthru
    _
  // Predicated region
  $region46: #{distill_wrapper_forward.7} parent=0 // pred_check
    _
  $region47: #{distill_wrapper_forward.7} parent=0 // pred_check_branch
    %419 = sbr.rel (0) target = $region49
  $region48: #{distill_wrapper_forward.7} parent=0 // pred_region
    _
  $region49: #{distill_wrapper_forward.7} parent=0 // pred_fallthru
    _

// kernel: distill_wrapper_forward.8
$region0: #{distill_wrapper_forward.8}
  #allocation0 [shape = 'u32[]', space=smem, size = 0x4, offset = 0x4, fixed_abs, tag = 'smem constant byte address 0x4 - core index']
  #allocation1 [shape = 'u32[144,128]{1,0:T(1,128)}', space=vmem, size = 0x12000, scoped, tag = 'internal scratch']
  %s0 = inlined_call_operand.vmem [shape: f32[2,6,32], index: 0, kind: input, shape index: {}]
  %s1 = inlined_call_operand.vmem [shape: f32[2,1,32], index: 1, kind: input, shape index: {}]
  %s2 = inlined_call_operand.vmem [shape: f32[2,1,32], index: 2, kind: input, shape index: {}]
  %s3 = inlined_call_operand.vmem [shape: bf16[2,32,96], index: 3, kind: input, shape index: {}]
  %s4 = inlined_call_operand.vmem [shape: bf16[2,32,32], index: 4, kind: input, shape index: {}]
  %s5 = inlined_call_operand.vmem [shape: f32[2,1,32], index: 5, kind: input, shape index: {}]
  %s6 = inlined_call_operand.vmem [shape: f32[2,1,32], index: 6, kind: input, shape index: {}]
  %s7 = inlined_call_operand.vmem [shape: f32[2,1,32], index: 7, kind: input, shape index: {}]
  %s8 = inlined_call_operand.vmem [shape: bf16[2,32,64], index: 8, kind: input, shape index: {}]
  %s9 = inlined_call_operand.vmem [shape: f32[2,1,64], index: 9, kind: input, shape index: {}]
  %s10 = inlined_call_operand.vmem [shape: bf16[2,64,32], index: 10, kind: input, shape index: {}]
  %s11 = inlined_call_operand.vmem [shape: f32[2,1,32], index: 11, kind: input, shape index: {}]
  %s12 = inlined_call_operand.vmem [shape: f32[2,6,32], index: 12, kind: output, shape index: {}]
  %s13 = sld [smem:[#allocation0]]
  $region85: #{distill_wrapper_forward.8} parent=0
    _
  %s15 = ssub.s32 1, %s13
  %s16 = scalar_select 0, %s15, %s13
  loop: start=0, step=1, limit=4
  $region2: #{distill_wrapper_forward.8} parent=0 // loop_pre_header
    _
  $region3: #{distill_wrapper_forward.8} parent=0 // loop_header
    %s18 = sphi 0, %s22
    %p19 = scmp.ge.s32.totalorder %s18, 4
    %s25 = sphi 0, %s37
    %s26 = sphi 0, %s33
    %s27 = sphi 0, %s25
    %s28 = sphi 0, %s26
    %s29 = sphi 0, %s27
    %s30 = sphi 0, %s28
    %s40 = sphi 0, %s42
    %s43 = sphi 0, %s40
    %s44 = sphi 0, %s43
    %s60 = sphi 0, %s44
    %s66 = sphi 0, %s68
    %s69 = sphi 0, %s66
    %s70 = sphi 0, %s69
    %s86 = sphi 0, %s70
    %s92 = sphi 0, %s94
    %s95 = sphi 0, %s92
    %s96 = sphi 0, %s95
    %s112 = sphi 0, %s96
    %s118 = sphi 0, %s120
    %s121 = sphi 0, %s118
    %s122 = sphi 0, %s121
    %s138 = sphi 0, %s122
    %s144 = sphi 0, %s146
    %s147 = sphi 0, %s144
    %s148 = sphi 0, %s147
    %s164 = sphi 0, %s148
    %s170 = sphi 0, %s172
    %s173 = sphi 0, %s170
    %s174 = sphi 0, %s173
    %s190 = sphi 0, %s174
    %s196 = sphi 0, %s198
    %s199 = sphi 0, %s196
    %s200 = sphi 0, %s199
    %s216 = sphi 0, %s200
    %s222 = sphi 0, %s224
    %s225 = sphi 0, %s222
    %s226 = sphi 0, %s225
    %s242 = sphi 0, %s226
    %s248 = sphi 0, %s250
    %s251 = sphi 0, %s248
    %s252 = sphi 0, %s251
    %s268 = sphi 0, %s252
    %s274 = sphi 0, %s276
    %s277 = sphi 0, %s274
    %s278 = sphi 0, %s277
    %s294 = sphi 0, %s278
    %s300 = sphi 0, %s302
    %s303 = sphi 0, %s300
    %s304 = sphi 0, %s303
    %s320 = sphi 0, %s304
    %s326 = sphi 0, %s328
    %s329 = sphi 0, %s326
    %s330 = sphi 0, %s329
    %s346 = sphi 0, %s330
    %s352 = sphi 0, %s354
    %s355 = sphi 0, %s352
    %s356 = sphi 0, %s355
    %s372 = sphi 0, %s356
  $region4: #{distill_wrapper_forward.8} parent=0 // loop_header_branch
    %21 = sbr.rel (%p19) target = $region8
  $region5: #{distill_wrapper_forward.8} parent=0 // loop_body
    %s23 = ssub.s32 %s18, 1
    %s24 = ssub.s32 %s18, 2
    %s31 = sadd.s32 1, %s26
    %p32 = scmp.ge.s32.totalorder %s31, 2
    %s33 = scalar_select %p32, 0, %s31
    %s34 = sadd.s32 1, %s25
    %s35 = scalar_select %p32, %s34, %s25
    %p36 = scmp.ge.s32.totalorder %s35, 1
    %s37 = scalar_select %p36, 0, %s35
    %s38 = ssub.s32 %s25, %s37
    %p39 = scmp.eq.s32.totalorder %s38, 0
    %s41 = sadd.s32 %s40, 1
    %s42 = scalar_select %p39, %s40, %s41
    %p45 = pneg %p39
    %p46 = scmp.eq.s32.totalorder %s18, 1
    %p47 = por %p45, %p46
    %p48 = scmp.ne.s32.totalorder %s40, %s43
    %p49 = scmp.eq.s32.totalorder %s18, 0
    %p50 = por %p48, %p49
    %p51 = scmp.ne.s32.totalorder %s40, %s43
    %p52 = scmp.eq.s32.totalorder %s23, 1
    %p53 = por %p51, %p52
    %p54 = scmp.ne.s32.totalorder %s43, %s44
    %p55 = scmp.eq.s32.totalorder %s23, 0
    %p56 = por %p54, %p55
    %p57 = scmp.ne.s32.totalorder %s43, %s44
    %p58 = scmp.eq.s32.totalorder %s24, 1
    %p59 = por %p57, %p58
    %p61 = scmp.ne.s32.totalorder %s44, %s60
    %p62 = scmp.eq.s32.totalorder %s24, 0
    %p63 = por %p61, %p62
    %s64 = ssub.s32 %s26, %s33
    %p65 = scmp.eq.s32.totalorder %s64, 0
    %s67 = sadd.s32 %s66, 1
    %s68 = scalar_select %p65, %s66, %s67
    %p71 = pneg %p65
    %p72 = scmp.eq.s32.totalorder %s18, 1
    %p73 = por %p71, %p72
    %p74 = scmp.ne.s32.totalorder %s66, %s69
    %p75 = scmp.eq.s32.totalorder %s18, 0
    %p76 = por %p74, %p75
    %p77 = scmp.ne.s32.totalorder %s66, %s69
    %p78 = scmp.eq.s32.totalorder %s23, 1
    %p79 = por %p77, %p78
    %p80 = scmp.ne.s32.totalorder %s69, %s70
    %p81 = scmp.eq.s32.totalorder %s23, 0
    %p82 = por %p80, %p81
    %p83 = scmp.ne.s32.totalorder %s69, %s70
    %p84 = scmp.eq.s32.totalorder %s24, 1
    %p85 = por %p83, %p84
    %p87 = scmp.ne.s32.totalorder %s70, %s86
    %p88 = scmp.eq.s32.totalorder %s24, 0
    %p89 = por %p87, %p88
    %s90 = ssub.s32 %s26, %s33
    %p91 = scmp.eq.s32.totalorder %s90, 0
    %s93 = sadd.s32 %s92, 1
    %s94 = scalar_select %p91, %s92, %s93
    %p97 = pneg %p91
    %p98 = scmp.eq.s32.totalorder %s18, 1
    %p99 = por %p97, %p98
    %p100 = scmp.ne.s32.totalorder %s92, %s95
    %p101 = scmp.eq.s32.totalorder %s18, 0
    %p102 = por %p100, %p101
    %p103 = scmp.ne.s32.totalorder %s92, %s95
    %p104 = scmp.eq.s32.totalorder %s23, 1
    %p105 = por %p103, %p104
    %p106 = scmp.ne.s32.totalorder %s95, %s96
    %p107 = scmp.eq.s32.totalorder %s23, 0
    %p108 = por %p106, %p107
    %p109 = scmp.ne.s32.totalorder %s95, %s96
    %p110 = scmp.eq.s32.totalorder %s24, 1
    %p111 = por %p109, %p110
    %p113 = scmp.ne.s32.totalorder %s96, %s112
    %p114 = scmp.eq.s32.totalorder %s24, 0
    %p115 = por %p113, %p114
    %s116 = ssub.s32 %s26, %s33
    %p117 = scmp.eq.s32.totalorder %s116, 0
    %s119 = sadd.s32 %s118, 1
    %s120 = scalar_select %p117, %s118, %s119
    %p123 = pneg %p117
    %p124 = scmp.eq.s32.totalorder %s18, 1
    %p125 = por %p123, %p124
    %p126 = scmp.ne.s32.totalorder %s118, %s121
    %p127 = scmp.eq.s32.totalorder %s18, 0
    %p128 = por %p126, %p127
    %p129 = scmp.ne.s32.totalorder %s118, %s121
    %p130 = scmp.eq.s32.totalorder %s23, 1
    %p131 = por %p129, %p130
    %p132 = scmp.ne.s32.totalorder %s121, %s122
    %p133 = scmp.eq.s32.totalorder %s23, 0
    %p134 = por %p132, %p133
    %p135 = scmp.ne.s32.totalorder %s121, %s122
    %p136 = scmp.eq.s32.totalorder %s24, 1
    %p137 = por %p135, %p136
    %p139 = scmp.ne.s32.totalorder %s122, %s138
    %p140 = scmp.eq.s32.totalorder %s24, 0
    %p141 = por %p139, %p140
    %s142 = ssub.s32 %s26, %s33
    %p143 = scmp.eq.s32.totalorder %s142, 0
    %s145 = sadd.s32 %s144, 1
    %s146 = scalar_select %p143, %s144, %s145
    %p149 = pneg %p143
    %p150 = scmp.eq.s32.totalorder %s18, 1
    %p151 = por %p149, %p150
    %p152 = scmp.ne.s32.totalorder %s144, %s147
    %p153 = scmp.eq.s32.totalorder %s18, 0
    %p154 = por %p152, %p153
    %p155 = scmp.ne.s32.totalorder %s144, %s147
    %p156 = scmp.eq.s32.totalorder %s23, 1
    %p157 = por %p155, %p156
    %p158 = scmp.ne.s32.totalorder %s147, %s148
    %p159 = scmp.eq.s32.totalorder %s23, 0
    %p160 = por %p158, %p159
    %p161 = scmp.ne.s32.totalorder %s147, %s148
    %p162 = scmp.eq.s32.totalorder %s24, 1
    %p163 = por %p161, %p162
    %p165 = scmp.ne.s32.totalorder %s148, %s164
    %p166 = scmp.eq.s32.totalorder %s24, 0
    %p167 = por %p165, %p166
    %s168 = ssub.s32 %s26, %s33
    %p169 = scmp.eq.s32.totalorder %s168, 0
    %s171 = sadd.s32 %s170, 1
    %s172 = scalar_select %p169, %s170, %s171
    %p175 = pneg %p169
    %p176 = scmp.eq.s32.totalorder %s18, 1
    %p177 = por %p175, %p176
    %p178 = scmp.ne.s32.totalorder %s170, %s173
    %p179 = scmp.eq.s32.totalorder %s18, 0
    %p180 = por %p178, %p179
    %p181 = scmp.ne.s32.totalorder %s170, %s173
    %p182 = scmp.eq.s32.totalorder %s23, 1
    %p183 = por %p181, %p182
    %p184 = scmp.ne.s32.totalorder %s173, %s174
    %p185 = scmp.eq.s32.totalorder %s23, 0
    %p186 = por %p184, %p185
    %p187 = scmp.ne.s32.totalorder %s173, %s174
    %p188 = scmp.eq.s32.totalorder %s24, 1
    %p189 = por %p187, %p188
    %p191 = scmp.ne.s32.totalorder %s174, %s190
    %p192 = scmp.eq.s32.totalorder %s24, 0
    %p193 = por %p191, %p192
    %s194 = ssub.s32 %s26, %s33
    %p195 = scmp.eq.s32.totalorder %s194, 0
    %s197 = sadd.s32 %s196, 1
    %s198 = scalar_select %p195, %s196, %s197
    %p201 = pneg %p195
    %p202 = scmp.eq.s32.totalorder %s18, 1
    %p203 = por %p201, %p202
    %p204 = scmp.ne.s32.totalorder %s196, %s199
    %p205 = scmp.eq.s32.totalorder %s18, 0
    %p206 = por %p204, %p205
    %p207 = scmp.ne.s32.totalorder %s196, %s199
    %p208 = scmp.eq.s32.totalorder %s23, 1
    %p209 = por %p207, %p208
    %p210 = scmp.ne.s32.totalorder %s199, %s200
    %p211 = scmp.eq.s32.totalorder %s23, 0
    %p212 = por %p210, %p211
    %p213 = scmp.ne.s32.totalorder %s199, %s200
    %p214 = scmp.eq.s32.totalorder %s24, 1
    %p215 = por %p213, %p214
    %p217 = scmp.ne.s32.totalorder %s200, %s216
    %p218 = scmp.eq.s32.totalorder %s24, 0
    %p219 = por %p217, %p218
    %s220 = ssub.s32 %s26, %s33
    %p221 = scmp.eq.s32.totalorder %s220, 0
    %s223 = sadd.s32 %s222, 1
    %s224 = scalar_select %p221, %s222, %s223
    %p227 = pneg %p221
    %p228 = scmp.eq.s32.totalorder %s18, 1
    %p229 = por %p227, %p228
    %p230 = scmp.ne.s32.totalorder %s222, %s225
    %p231 = scmp.eq.s32.totalorder %s18, 0
    %p232 = por %p230, %p231
    %p233 = scmp.ne.s32.totalorder %s222, %s225
    %p234 = scmp.eq.s32.totalorder %s23, 1
    %p235 = por %p233, %p234
    %p236 = scmp.ne.s32.totalorder %s225, %s226
    %p237 = scmp.eq.s32.totalorder %s23, 0
    %p238 = por %p236, %p237
    %p239 = scmp.ne.s32.totalorder %s225, %s226
    %p240 = scmp.eq.s32.totalorder %s24, 1
    %p241 = por %p239, %p240
    %p243 = scmp.ne.s32.totalorder %s226, %s242
    %p244 = scmp.eq.s32.totalorder %s24, 0
    %p245 = por %p243, %p244
    %s246 = ssub.s32 %s26, %s33
    %p247 = scmp.eq.s32.totalorder %s246, 0
    %s249 = sadd.s32 %s248, 1
    %s250 = scalar_select %p247, %s248, %s249
    %p253 = pneg %p247
    %p254 = scmp.eq.s32.totalorder %s18, 1
    %p255 = por %p253, %p254
    %p256 = scmp.ne.s32.totalorder %s248, %s251
    %p257 = scmp.eq.s32.totalorder %s18, 0
    %p258 = por %p256, %p257
    %p259 = scmp.ne.s32.totalorder %s248, %s251
    %p260 = scmp.eq.s32.totalorder %s23, 1
    %p261 = por %p259, %p260
    %p262 = scmp.ne.s32.totalorder %s251, %s252
    %p263 = scmp.eq.s32.totalorder %s23, 0
    %p264 = por %p262, %p263
    %p265 = scmp.ne.s32.totalorder %s251, %s252
    %p266 = scmp.eq.s32.totalorder %s24, 1
    %p267 = por %p265, %p266
    %p269 = scmp.ne.s32.totalorder %s252, %s268
    %p270 = scmp.eq.s32.totalorder %s24, 0
    %p271 = por %p269, %p270
    %s272 = ssub.s32 %s26, %s33
    %p273 = scmp.eq.s32.totalorder %s272, 0
    %s275 = sadd.s32 %s274, 1
    %s276 = scalar_select %p273, %s274, %s275
    %p279 = pneg %p273
    %p280 = scmp.eq.s32.totalorder %s18, 1
    %p281 = por %p279, %p280
    %p282 = scmp.ne.s32.totalorder %s274, %s277
    %p283 = scmp.eq.s32.totalorder %s18, 0
    %p284 = por %p282, %p283
    %p285 = scmp.ne.s32.totalorder %s274, %s277
    %p286 = scmp.eq.s32.totalorder %s23, 1
    %p287 = por %p285, %p286
    %p288 = scmp.ne.s32.totalorder %s277, %s278
    %p289 = scmp.eq.s32.totalorder %s23, 0
    %p290 = por %p288, %p289
    %p291 = scmp.ne.s32.totalorder %s277, %s278
    %p292 = scmp.eq.s32.totalorder %s24, 1
    %p293 = por %p291, %p292
    %p295 = scmp.ne.s32.totalorder %s278, %s294
    %p296 = scmp.eq.s32.totalorder %s24, 0
    %p297 = por %p295, %p296
    %s298 = ssub.s32 %s26, %s33
    %p299 = scmp.eq.s32.totalorder %s298, 0
    %s301 = sadd.s32 %s300, 1
    %s302 = scalar_select %p299, %s300, %s301
    %p305 = pneg %p299
    %p306 = scmp.eq.s32.totalorder %s18, 1
    %p307 = por %p305, %p306
    %p308 = scmp.ne.s32.totalorder %s300, %s303
    %p309 = scmp.eq.s32.totalorder %s18, 0
    %p310 = por %p308, %p309
    %p311 = scmp.ne.s32.totalorder %s300, %s303
    %p312 = scmp.eq.s32.totalorder %s23, 1
    %p313 = por %p311, %p312
    %p314 = scmp.ne.s32.totalorder %s303, %s304
    %p315 = scmp.eq.s32.totalorder %s23, 0
    %p316 = por %p314, %p315
    %p317 = scmp.ne.s32.totalorder %s303, %s304
    %p318 = scmp.eq.s32.totalorder %s24, 1
    %p319 = por %p317, %p318
    %p321 = scmp.ne.s32.totalorder %s304, %s320
    %p322 = scmp.eq.s32.totalorder %s24, 0
    %p323 = por %p321, %p322
    %s324 = ssub.s32 %s26, %s33
    %p325 = scmp.eq.s32.totalorder %s324, 0
    %s327 = sadd.s32 %s326, 1
    %s328 = scalar_select %p325, %s326, %s327
    %p331 = pneg %p325
    %p332 = scmp.eq.s32.totalorder %s18, 1
    %p333 = por %p331, %p332
    %p334 = scmp.ne.s32.totalorder %s326, %s329
    %p335 = scmp.eq.s32.totalorder %s18, 0
    %p336 = por %p334, %p335
    %p337 = scmp.ne.s32.totalorder %s326, %s329
    %p338 = scmp.eq.s32.totalorder %s23, 1
    %p339 = por %p337, %p338
    %p340 = scmp.ne.s32.totalorder %s329, %s330
    %p341 = scmp.eq.s32.totalorder %s23, 0
    %p342 = por %p340, %p341
    %p343 = scmp.ne.s32.totalorder %s329, %s330
    %p344 = scmp.eq.s32.totalorder %s24, 1
    %p345 = por %p343, %p344
    %p347 = scmp.ne.s32.totalorder %s330, %s346
    %p348 = scmp.eq.s32.totalorder %s24, 0
    %p349 = por %p347, %p348
    %s350 = ssub.s32 %s25, %s37
    %p351 = scmp.eq.s32.totalorder %s350, 0
    %s353 = sadd.s32 %s352, 1
    %s354 = scalar_select %p351, %s352, %s353
    %p357 = pneg %p351
    %p358 = scmp.eq.s32.totalorder %s18, 1
    %p359 = por %p357, %p358
    %p360 = scmp.ne.s32.totalorder %s352, %s355
    %p361 = scmp.eq.s32.totalorder %s18, 0
    %p362 = por %p360, %p361
    %p363 = scmp.ne.s32.totalorder %s352, %s355
    %p364 = scmp.eq.s32.totalorder %s23, 1
    %p365 = por %p363, %p364
    %p366 = scmp.ne.s32.totalorder %s355, %s356
    %p367 = scmp.eq.s32.totalorder %s23, 0
    %p368 = por %p366, %p367
    %p369 = scmp.ne.s32.totalorder %s355, %s356
    %p370 = scmp.eq.s32.totalorder %s24, 1
    %p371 = por %p369, %p370
    %p373 = scmp.ne.s32.totalorder %s356, %s372
    %p374 = scmp.eq.s32.totalorder %s24, 0
    %p375 = por %p373, %p374
    %p376 = scmp.le.s32.totalorder 1, %s18
    %p377 = scmp.lt.s32.totalorder %s18, 3
    %p378 = pnand %p376, %p377
    %p379 = pneg %p378
    // Predicated region
    $region9: #{distill_wrapper_forward.8} parent=5 // pred_check
      _
    $region10: #{distill_wrapper_forward.8} parent=5 // pred_check_branch
      %381 = sbr.rel (%p378) target = $region12
    $region11: #{distill_wrapper_forward.8} parent=5 // pred_region
      %s382 = ssub.s32 %s18, 1
      // Predicated region
      $region13: #{distill_wrapper_forward.8} parent=11 // pred_check
        %p383 = pneg %p56
      $region14: #{distill_wrapper_forward.8} parent=11 // pred_check_branch
        %385 = sbr.rel (%p383) target = $region16
      $region15: #{distill_wrapper_forward.8} parent=11 // pred_region
        %s386 = smul.u32 2, %s27
        %p387 = scmp.lt.s32.totalorder %s386, 1
        %s388 = scalar_select %p387, %s386, 1
        %s389 = smul.addr %s388, 8
        %s390 = scalar_lea.vmem %s0, %s389
        %s391 = smul.u32 2, %s27
      $region16: #{distill_wrapper_forward.8} parent=11 // pred_fallthru
        _
    $region12: #{distill_wrapper_forward.8} parent=5 // pred_fallthru
      _
    %p392 = scmp.lt.s32.totalorder %s18, 2
    // Predicated region
    $region17: #{distill_wrapper_forward.8} parent=5 // pred_check
      %p393 = pneg %p392
    $region18: #{distill_wrapper_forward.8} parent=5 // pred_check_branch
      %395 = sbr.rel (%p393) target = $region20
    $region19: #{distill_wrapper_forward.8} parent=5 // pred_region
      // Predicated region
      $region21: #{distill_wrapper_forward.8} parent=19 // pred_check
        %p396 = pneg %p76
      $region22: #{distill_wrapper_forward.8} parent=19 // pred_check_branch
        %398 = sbr.rel (%p396) target = $region24
      $region23: #{distill_wrapper_forward.8} parent=19 // pred_region
        %p399 = scmp.lt.s32.totalorder %s26, 1
        %s400 = scalar_select %p399, %s26, 1
        %s401 = scalar_lea.vmem %s1, %s400
      $region24: #{distill_wrapper_forward.8} parent=19 // pred_fallthru
        _
      // Predicated region
      $region25: #{distill_wrapper_forward.8} parent=19 // pred_check
        %p402 = pneg %p102
      $region26: #{distill_wrapper_forward.8} parent=19 // pred_check_branch
        %404 = sbr.rel (%p402) target = $region28
      $region27: #{distill_wrapper_forward.8} parent=19 // pred_region
        %p405 = scmp.lt.s32.totalorder %s26, 1
        %s406 = scalar_select %p405, %s26, 1
        %s407 = scalar_lea.vmem %s2, %s406
      $region28: #{distill_wrapper_forward.8} parent=19 // pred_fallthru
        _
      // Predicated region
      $region29: #{distill_wrapper_forward.8} parent=19 // pred_check
        %p408 = pneg %p128
      $region30: #{distill_wrapper_forward.8} parent=19 // pred_check_branch
        %410 = sbr.rel (%p408) target = $region32
      $region31: #{distill_wrapper_forward.8} parent=19 // pred_region
        %p411 = scmp.lt.s32.totalorder %s26, 1
        %s412 = scalar_select %p411, %s26, 1
        %s413 = smul.addr %s412, 4
        %s414 = smul.addr %s413, 4
        %s415 = scalar_lea.vmem %s3, %s414
      $region32: #{distill_wrapper_forward.8} parent=19 // pred_fallthru
        _
      // Predicated region
      $region33: #{distill_wrapper_forward.8} parent=19 // pred_check
        %p416 = pneg %p154
      $region34: #{distill_wrapper_forward.8} parent=19 // pred_check_branch
        %418 = sbr.rel (%p416) target = $region36
      $region35: #{distill_wrapper_forward.8} parent=19 // pred_region
        %p419 = scmp.lt.s32.totalorder %s26, 1
        %s420 = scalar_select %p419, %s26, 1
        %s421 = smul.addr %s420, 4
        %s422 = smul.addr %s421, 4
        %s423 = scalar_lea.vmem %s4, %s422
      $region36: #{distill_wrapper_forward.8} parent=19 // pred_fallthru
        _
      // Predicated region
      $region37: #{distill_wrapper_forward.8} parent=19 // pred_check
        %p424 = pneg %p180
      $region38: #{distill_wrapper_forward.8} parent=19 // pred_check_branch
        %426 = sbr.rel (%p424) target = $region40
      $region39: #{distill_wrapper_forward.8} parent=19 // pred_region
        %p427 = scmp.lt.s32.totalorder %s26, 1
        %s428 = scalar_select %p427, %s26, 1
        %s429 = scalar_lea.vmem %s5, %s428
      $region40: #{distill_wrapper_forward.8} parent=19 // pred_fallthru
        _
      // Predicated region
      $region41: #{distill_wrapper_forward.8} parent=19 // pred_check
        %p430 = pneg %p206
      $region42: #{distill_wrapper_forward.8} parent=19 // pred_check_branch
        %432 = sbr.rel (%p430) target = $region44
      $region43: #{distill_wrapper_forward.8} parent=19 // pred_region
        %p433 = scmp.lt.s32.totalorder %s26, 1
        %s434 = scalar_select %p433, %s26, 1
        %s435 = scalar_lea.vmem %s6, %s434
      $region44: #{distill_wrapper_forward.8} parent=19 // pred_fallthru
        _
      // Predicated region
      $region45: #{distill_wrapper_forward.8} parent=19 // pred_check
        %p436 = pneg %p232
      $region46: #{distill_wrapper_forward.8} parent=19 // pred_check_branch
        %438 = sbr.rel (%p436) target = $region48
      $region47: #{distill_wrapper_forward.8} parent=19 // pred_region
        %p439 = scmp.lt.s32.totalorder %s26, 1
        %s440 = scalar_select %p439, %s26, 1
        %s441 = scalar_lea.vmem %s7, %s440
      $region48: #{distill_wrapper_forward.8} parent=19 // pred_fallthru
        _
      // Predicated region
      $region49: #{distill_wrapper_forward.8} parent=19 // pred_check
        %p442 = pneg %p258
      $region50: #{distill_wrapper_forward.8} parent=19 // pred_check_branch
        %444 = sbr.rel (%p442) target = $region52
      $region51: #{distill_wrapper_forward.8} parent=19 // pred_region
        %p445 = scmp.lt.s32.totalorder %s26, 1
        %s446 = scalar_select %p445, %s26, 1
        %s447 = smul.addr %s446, 4
        %s448 = smul.addr %s447, 4
        %s449 = scalar_lea.vmem %s8, %s448
      $region52: #{distill_wrapper_forward.8} parent=19 // pred_fallthru
        _
      // Predicated region
      $region53: #{distill_wrapper_forward.8} parent=19 // pred_check
        %p450 = pneg %p284
      $region54: #{distill_wrapper_forward.8} parent=19 // pred_check_branch
        %452 = sbr.rel (%p450) target = $region56
      $region55: #{distill_wrapper_forward.8} parent=19 // pred_region
        %p453 = scmp.lt.s32.totalorder %s26, 1
        %s454 = scalar_select %p453, %s26, 1
        %s455 = scalar_lea.vmem %s9, %s454
      $region56: #{distill_wrapper_forward.8} parent=19 // pred_fallthru
        _
      // Predicated region
      $region57: #{distill_wrapper_forward.8} parent=19 // pred_check
        %p456 = pneg %p310
      $region58: #{distill_wrapper_forward.8} parent=19 // pred_check_branch
        %458 = sbr.rel (%p456) target = $region60
      $region59: #{distill_wrapper_forward.8} parent=19 // pred_region
        %p459 = scmp.lt.s32.totalorder %s26, 1
        %s460 = scalar_select %p459, %s26, 1
        %s461 = smul.addr %s460, 8
        %s462 = smul.addr %s461, 4
        %s463 = scalar_lea.vmem %s10, %s462
      $region60: #{distill_wrapper_forward.8} parent=19 // pred_fallthru
        _
      // Predicated region
      $region61: #{distill_wrapper_forward.8} parent=19 // pred_check
        %p464 = pneg %p336
      $region62: #{distill_wrapper_forward.8} parent=19 // pred_check_branch
        %466 = sbr.rel (%p464) target = $region64
      $region63: #{distill_wrapper_forward.8} parent=19 // pred_region
        %p467 = scmp.lt.s32.totalorder %s26, 1
        %s468 = scalar_select %p467, %s26, 1
        %s469 = scalar_lea.vmem %s11, %s468
      $region64: #{distill_wrapper_forward.8} parent=19 // pred_fallthru
        _
    $region20: #{distill_wrapper_forward.8} parent=5 // pred_fallthru
      _
    %p470 = scmp.le.s32.totalorder 1, %s18
    %p471 = scmp.lt.s32.totalorder %s18, 3
    %p472 = pnand %p470, %p471
    %p473 = pneg %p472
    // Predicated region
    $region65: #{distill_wrapper_forward.8} parent=5 // pred_check
      _
    $region66: #{distill_wrapper_forward.8} parent=5 // pred_check_branch
      %475 = sbr.rel (%p472) target = $region68
    $region67: #{distill_wrapper_forward.8} parent=5 // pred_region
      %s476 = ssub.s32 %s18, 1
      %s477 = smul.u32 2, %s27
      %p478 = scmp.lt.s32.totalorder %s477, 1
      %s479 = scalar_select %p478, %s477, 1
      %s480 = smul.addr %s479, 8
      %s481 = scalar_lea.vmem %s0, %s480
      %p482 = pneg %p56
      %p483 = pneg %p53
      %p484 = scmp.lt.s32.totalorder %s28, 1
      %s485 = scalar_select %p484, %s28, 1
      %s486 = scalar_lea.vmem %s1, %s485
      %p487 = pneg %p82
      %p488 = pneg %p79
      %p489 = scmp.lt.s32.totalorder %s28, 1
      %s490 = scalar_select %p489, %s28, 1
      %s491 = scalar_lea.vmem %s2, %s490
      %p492 = pneg %p108
      %p493 = pneg %p105
      %p494 = scmp.lt.s32.totalorder %s28, 1
      %s495 = scalar_select %p494, %s28, 1
      %s496 = smul.addr %s495, 4
      %s497 = smul.addr %s496, 4
      %s498 = scalar_lea.vmem %s3, %s497
      %p499 = pneg %p134
      %p500 = pneg %p131
      %p501 = scmp.lt.s32.totalorder %s28, 1
      %s502 = scalar_select %p501, %s28, 1
      %s503 = smul.addr %s502, 4
      %s504 = smul.addr %s503, 4
      %s505 = scalar_lea.vmem %s4, %s504
      %p506 = pneg %p160
      %p507 = pneg %p157
      %p508 = scmp.lt.s32.totalorder %s28, 1
      %s509 = scalar_select %p508, %s28, 1
      %s510 = scalar_lea.vmem %s5, %s509
      %p511 = pneg %p186
      %p512 = pneg %p183
      %p513 = scmp.lt.s32.totalorder %s28, 1
      %s514 = scalar_select %p513, %s28, 1
      %s515 = scalar_lea.vmem %s6, %s514
      %p516 = pneg %p212
      %p517 = pneg %p209
      %p518 = scmp.lt.s32.totalorder %s28, 1
      %s519 = scalar_select %p518, %s28, 1
      %s520 = scalar_lea.vmem %s7, %s519
      %p521 = pneg %p238
      %p522 = pneg %p235
      %p523 = scmp.lt.s32.totalorder %s28, 1
      %s524 = scalar_select %p523, %s28, 1
      %s525 = smul.addr %s524, 4
      %s526 = smul.addr %s525, 4
      %s527 = scalar_lea.vmem %s8, %s526
      %p528 = pneg %p264
      %p529 = pneg %p261
      %p530 = scmp.lt.s32.totalorder %s28, 1
      %s531 = scalar_select %p530, %s28, 1
      %s532 = scalar_lea.vmem %s9, %s531
      %p533 = pneg %p290
      %p534 = pneg %p287
      %p535 = scmp.lt.s32.totalorder %s28, 1
      %s536 = scalar_select %p535, %s28, 1
      %s537 = smul.addr %s536, 8
      %s538 = smul.addr %s537, 4
      %s539 = scalar_lea.vmem %s10, %s538
      %p540 = pneg %p316
      %p541 = pneg %p313
      %p542 = scmp.lt.s32.totalorder %s28, 1
      %s543 = scalar_select %p542, %s28, 1
      %s544 = scalar_lea.vmem %s11, %s543
      %p545 = pneg %p342
      %p546 = pneg %p339
      %p547 = pneg %p368
      %p548 = pneg %p365
      %s549 = smul.u32 2, %s27
      %p550 = scmp.lt.s32.totalorder %s549, 1
      %s551 = scalar_select %p550, %s549, 1
      %s552 = smul.addr %s551, 8
      %s553 = scalar_lea.vmem %s12, %s552
      %s554 = smul.u32 2, %s27
      %p555 = scmp.lt.s32.totalorder %s554, 1
      %s556 = scalar_select %p555, %s554, 1
      %s557 = smul.addr %s556, 8
      %s558 = scalar_lea.vmem %s0, %s557
      %s559 = smul.u32 2, %s27
      %p560 = scmp.lt.s32.totalorder %s28, 1
      %s561 = scalar_select %p560, %s28, 1
      %s562 = scalar_lea.vmem %s1, %s561
      %p563 = scmp.lt.s32.totalorder %s28, 1
      %s564 = scalar_select %p563, %s28, 1
      %s565 = scalar_lea.vmem %s2, %s564
      %p566 = scmp.lt.s32.totalorder %s28, 1
      %s567 = scalar_select %p566, %s28, 1
      %s568 = smul.addr %s567, 4
      %s569 = smul.addr %s568, 4
      %s570 = scalar_lea.vmem %s3, %s569
      %p571 = scmp.lt.s32.totalorder %s28, 1
      %s572 = scalar_select %p571, %s28, 1
      %s573 = smul.addr %s572, 4
      %s574 = smul.addr %s573, 4
      %s575 = scalar_lea.vmem %s4, %s574
      %p576 = scmp.lt.s32.totalorder %s28, 1
      %s577 = scalar_select %p576, %s28, 1
      %s578 = scalar_lea.vmem %s5, %s577
      %p579 = scmp.lt.s32.totalorder %s28, 1
      %s580 = scalar_select %p579, %s28, 1
      %s581 = scalar_lea.vmem %s6, %s580
      %p582 = scmp.lt.s32.totalorder %s28, 1
      %s583 = scalar_select %p582, %s28, 1
      %s584 = scalar_lea.vmem %s7, %s583
      %p585 = scmp.lt.s32.totalorder %s28, 1
      %s586 = scalar_select %p585, %s28, 1
      %s587 = smul.addr %s586, 4
      %s588 = smul.addr %s587, 4
      %s589 = scalar_lea.vmem %s8, %s588
      %p590 = scmp.lt.s32.totalorder %s28, 1
      %s591 = scalar_select %p590, %s28, 1
      %s592 = scalar_lea.vmem %s9, %s591
      %p593 = scmp.lt.s32.totalorder %s28, 1
      %s594 = scalar_select %p593, %s28, 1
      %s595 = smul.addr %s594, 8
      %s596 = smul.addr %s595, 4
      %s597 = scalar_lea.vmem %s10, %s596
      %p598 = scmp.lt.s32.totalorder %s28, 1
      %s599 = scalar_select %p598, %s28, 1
      %s600 = scalar_lea.vmem %s11, %s599
      %s601 = smul.u32 2, %s27
      %p602 = scmp.lt.s32.totalorder %s601, 1
      %s603 = scalar_select %p602, %s601, 1
      %s604 = smul.addr %s603, 8
      %s605 = scalar_lea.vmem %s12, %s604
      %s606 = smul.u32 2, %s27
      %p608 = scmp.eq.s32.totalorder %s28, 0
      // Predicated region
      $region69: #{distill_wrapper_forward.8} parent=67 // pred_check
        %p609 = pneg %p608
      $region70: #{distill_wrapper_forward.8} parent=67 // pred_check_branch
        %611 = sbr.rel (%p609) target = $region72
      $region71: #{distill_wrapper_forward.8} parent=67 // pred_region
        %v612 = vld [vmem:[%s558] sm:$0x3f]
        %v613 = vld [vmem:[%s558 + $0x8] sm:$0x3f]
        %vm614 = vcmask 259072
        %615 = vst.msk [vmem:[%s605] sm:$0x3f] %vm614, %v612
        %616 = vst.msk [vmem:[%s605 + $0x8] sm:$0x3f] %vm614, %v613
      $region72: #{distill_wrapper_forward.8} parent=67 // pred_fallthru
        _
      %v617 = vld [vmem:[%s562] sm:$0x1]
      %v618 = vld [vmem:[%s565] sm:$0x1]
      %v619 = vld [vmem:[%s570] sm:$0xf]
      %v620 = vld [vmem:[%s570 + $0x4] sm:$0xf]
      %v621 = vld [vmem:[%s570 + $0x8] sm:$0xf]
      %v622 = vld [vmem:[%s570 + $0xc] sm:$0xf]
      %v623 = vld [vmem:[%s575] sm:$0xf]
      %v624 = vld [vmem:[%s575 + $0x4] sm:$0xf]
      %v625 = vld [vmem:[%s575 + $0x8] sm:$0xf]
      %v626 = vld [vmem:[%s575 + $0xc] sm:$0xf]
      %v627 = vld [vmem:[%s578] sm:$0x1]
      %v628 = vld [vmem:[%s581] sm:$0x1]
      %v629 = vld [vmem:[%s584] sm:$0x1]
      %v630 = vld [vmem:[%s589] sm:$0xf]
      %v631 = vld [vmem:[%s589 + $0x4] sm:$0xf]
      %v632 = vld [vmem:[%s589 + $0x8] sm:$0xf]
      %v633 = vld [vmem:[%s589 + $0xc] sm:$0xf]
      %v634 = vld [vmem:[%s592] sm:$0x1]
      %v635 = vld [vmem:[%s597] sm:$0xf]
      %v636 = vld [vmem:[%s597 + $0x4] sm:$0xf]
      %v637 = vld [vmem:[%s597 + $0x8] sm:$0xf]
      %v638 = vld [vmem:[%s597 + $0xc] sm:$0xf]
      %v639 = vld [vmem:[%s597 + $0x10] sm:$0xf]
      %v640 = vld [vmem:[%s597 + $0x14] sm:$0xf]
      %v641 = vld [vmem:[%s597 + $0x18] sm:$0xf]
      %v642 = vld [vmem:[%s597 + $0x1c] sm:$0xf]
      %v643 = vld [vmem:[%s600] sm:$0x1]
      %v644 = vld [vmem:[%s605] sm:$0x3f]
      %vm645 = vcmask 259072
      %v646 = vsel %vm645, %v644, 0.0
      %647 = vadd.xlane.f32.xlu0 %v646
      %v648 = vpop.xlane.xlu0 %647
      %v649 = vrcp.pop 32.0
      %v650 = vmul.f32 %v648, %v649
      %v651 = vsub.f32 %v644, %v650
      %v652 = vmul.f32 %v651, %v651
      %v653 = vsel %vm645, %v652, 0.0
      %654 = vadd.xlane.f32.xlu0 %v653
      %v655 = vpop.xlane.xlu0 %654
      %v656 = vmul.f32 %v655, %v649
      %v657 = vadd.f32 %v656, 1e-05
      %v658 = vrsqrt.pop %v657
      %v659 = vmul.f32 %v651, %v658
      %v661 = vlaneseq
      %v662 = vshrl.u32 %v661, 7
      %v663 = vsub.s32 0, %v662
      %v664 = vrot.slane %v617, %v663
      %v666 = vmul.f32 %v659, %v664
      %v668 = vlaneseq
      %v669 = vshrl.u32 %v668, 7
      %v670 = vsub.s32 0, %v669
      %v671 = vrot.slane %v618, %v670
      %v673 = vadd.f32 %v666, %v671
      %v674 = vpack.c.bf16 %v673, %v673
      %v679 = vunpack.c.l.b16 %v619
      %v680 = vunpack.c.l.b16 %v620
      %v681 = vunpack.c.l.b16 %v621
      %v682 = vunpack.c.l.b16 %v622
      %v683 = vpack.c.b16 %v680, %v679
      %v684 = vpack.c.b16 %v682, %v681
      %vm687 = vcmask 261120
      %v689 = vsel %vm687, %v674, 0
      %691 = vmatprep.subr.bf16.mxu0 0
      %692 = vmatpush1.bf16.msra.mxu0 %v683
      %693 = vmatprep.subr.bf16.mxu0 0
      %694 = vmatpush1.bf16.msra.mxu0 %v684
      %695 = vmatprep.subr.bf16.mxu0 0
      %696 = vmatpush1.bf16.msra.mxu0 0
      %697 = vmatprep.subr.bf16.mxu0 0
      %698 = vmatpush1.bf16.msra.mxu0 0
      %699 = vmatprep.subr.bf16.mxu0 0
      %700 = vmatpush1.bf16.msra.mxu0 0
      %701 = vmatprep.subr.bf16.mxu0 0
      %702 = vmatpush1.bf16.msra.mxu0 0
      %703 = vmatprep.subr.bf16.mxu0 0
      %704 = vmatpush1.bf16.msra.mxu0 0
      %705 = vmatprep.subr.bf16.mxu0 0
      %706 = vmatpush1.bf16.msra.mxu0 0
      %707 = vmatprep.subr.bf16.mxu0 0
      %708 = vmatpush1.bf16.msra.mxu0 0
      %709 = vmatprep.subr.bf16.mxu0 0
      %710 = vmatpush1.bf16.msra.mxu0 0
      %711 = vmatprep.subr.bf16.mxu0 0
      %712 = vmatpush1.bf16.msra.mxu0 0
      %713 = vmatprep.subr.bf16.mxu0 0
      %714 = vmatpush1.bf16.msra.mxu0 0
      %715 = vmatprep.subr.bf16.mxu0 0
      %716 = vmatpush1.bf16.msra.mxu0 0
      %717 = vmatprep.subr.bf16.mxu0 0
      %718 = vmatpush1.bf16.msra.mxu0 0
      %719 = vmatprep.subr.bf16.mxu0 0
      %720 = vmatpush1.bf16.msra.mxu0 0
      %721 = vmatprep.subr.bf16.mxu0 0
      %722 = vmatpush1.bf16.msra.mxu0 0
      %723 = vmatprep.mubr.bf16.mxu0 0
      %724 = vmatmul.mubr.bf16.gmra.mrb[0].mxu0 %v689
      %v725 = vpop.f32.mrb[0].mxu0
      %v726 = vadd.f32 0.0, %v725
      %v727 = vpop.f32.mrb[0].mxu0
      %v728 = vpop.f32.mrb[0].mxu0
      %v729 = vpop.f32.mrb[0].mxu0
      %730 = vdwg.mxu0
      %v731 = vpack.c.bf16 %v726, %v726
      %733 = vrot.lane.b32.xlu0 %v731, 96
      %v734 = vpop.permute.xlu0 %733
      %vm735 = vcmask 130048
      %v737 = vsel %vm735, %v731, 0
      %v740 = vsel %vm735, %v734, 0
      %742 = vmatprep.subr.bf16.mxu0 0
      %743 = vmatpush1.bf16.xpose.msra.mxu0 %v740
      %744 = vmatprep.subr.bf16.mxu0 0
      %745 = vmatpush1.bf16.xpose.msra.mxu0 0
      %746 = vmatprep.subr.bf16.mxu0 0
      %747 = vmatpush1.bf16.xpose.msra.mxu0 0
      %748 = vmatprep.subr.bf16.mxu0 0
      %749 = vmatpush1.bf16.xpose.msra.mxu0 0
      %750 = vmatprep.subr.bf16.mxu0 0
      %751 = vmatpush1.bf16.xpose.msra.mxu0 0
      %752 = vmatprep.subr.bf16.mxu0 0
      %753 = vmatpush1.bf16.xpose.msra.mxu0 0
      %754 = vmatprep.subr.bf16.mxu0 0
      %755 = vmatpush1.bf16.xpose.msra.mxu0 0
      %756 = vmatprep.subr.bf16.mxu0 0
      %757 = vmatpush1.bf16.xpose.msra.mxu0 0
      %758 = vmatprep.subr.bf16.mxu0 0
      %759 = vmatpush1.bf16.xpose.msra.mxu0 0
      %760 = vmatprep.subr.bf16.mxu0 0
      %761 = vmatpush1.bf16.xpose.msra.mxu0 0
      %762 = vmatprep.subr.bf16.mxu0 0
      %763 = vmatpush1.bf16.xpose.msra.mxu0 0
      %764 = vmatprep.subr.bf16.mxu0 0
      %765 = vmatpush1.bf16.xpose.msra.mxu0 0
      %766 = vmatprep.subr.bf16.mxu0 0
      %767 = vmatpush1.bf16.xpose.msra.mxu0 0
      %768 = vmatprep.subr.bf16.mxu0 0
      %769 = vmatpush1.bf16.xpose.msra.mxu0 0
      %770 = vmatprep.subr.bf16.mxu0 0
      %771 = vmatpush1.bf16.xpose.msra.mxu0 0
      %772 = vmatprep.subr.bf16.mxu0 0
      %773 = vmatpush1.bf16.xpose.msra.mxu0 0
      %774 = vmatprep.mubr.bf16.mxu0 0
      %775 = vmatmul.mubr.bf16.gmra.mrb[0].mxu0 %v737
      %v776 = vpop.f32.mrb[0].mxu0
      %v777 = vadd.f32 0.0, %v776
      %v778 = vpop.f32.mrb[0].mxu0
      %v779 = vpop.f32.mrb[0].mxu0
      %v780 = vpop.f32.mrb[0].mxu0
      %781 = vdwg.mxu0
      %v782 = vmul.f32 %v777, 0.25
      %vm783 = vcmask 46080
      %v784 = vsel %vm783, %v782, -inf
      %785 = vmax.xlane.f32.xlu0 %v784
      %v786 = vpop.xlane.xlu0 %785
      %v787 = vsub.f32 %v782, %v786
      %v788 = vmul.f32 %v787, 1.442695
      %v789 = vpow.pop %v788
      %v790 = vsel %vm783, %v789, 0.0
      %791 = vadd.xlane.f32.xlu0 %v790
      %v792 = vpop.xlane.xlu0 %791
      %v793 = vrcp.pop %v792
      %v794 = vmul.f32 %v789, %v793
      %v795 = vpack.c.bf16 %v794, %v794
      %796 = vrot.lane.b32.xlu0 %v731, 64
      %v797 = vpop.permute.xlu0 %796
      %vm798 = vcmask 48128
      %v800 = vsel %vm798, %v795, 0
      %vm802 = vcmask 1042432
      %v804 = vsel %vm802, %v797, 0
      %806 = vmatprep.subr.bf16.mxu0 0
      %807 = vmatpush1.bf16.msra.mxu0 %v804
      %808 = vmatprep.subr.bf16.mxu0 0
      %809 = vmatpush1.bf16.msra.mxu0 0
      %810 = vmatprep.subr.bf16.mxu0 0
      %811 = vmatpush1.bf16.msra.mxu0 0
      %812 = vmatprep.subr.bf16.mxu0 0
      %813 = vmatpush1.bf16.msra.mxu0 0
      %814 = vmatprep.subr.bf16.mxu0 0
      %815 = vmatpush1.bf16.msra.mxu0 0
      %816 = vmatprep.subr.bf16.mxu0 0
      %817 = vmatpush1.bf16.msra.mxu0 0
      %818 = vmatprep.subr.bf16.mxu0 0
      %819 = vmatpush1.bf16.msra.mxu0 0
      %820 = vmatprep.subr.bf16.mxu0 0
      %821 = vmatpush1.bf16.msra.mxu0 0
      %822 = vmatprep.subr.bf16.mxu0 0
      %823 = vmatpush1.bf16.msra.mxu0 0
      %824 = vmatprep.subr.bf16.mxu0 0
      %825 = vmatpush1.bf16.msra.mxu0 0
      %826 = vmatprep.subr.bf16.mxu0 0
      %827 = vmatpush1.bf16.msra.mxu0 0
      %828 = vmatprep.subr.bf16.mxu0 0
      %829 = vmatpush1.bf16.msra.mxu0 0
      %830 = vmatprep.subr.bf16.mxu0 0
      %831 = vmatpush1.bf16.msra.mxu0 0
      %832 = vmatprep.subr.bf16.mxu0 0
      %833 = vmatpush1.bf16.msra.mxu0 0
      %834 = vmatprep.subr.bf16.mxu0 0
      %835 = vmatpush1.bf16.msra.mxu0 0
      %836 = vmatprep.subr.bf16.mxu0 0
      %837 = vmatpush1.bf16.msra.mxu0 0
      %838 = vmatprep.mubr.bf16.mxu0 0
      %839 = vmatmul.mubr.bf16.gmra.mrb[0].mxu0 %v800
      %v840 = vpop.f32.mrb[0].mxu0
      %v841 = vadd.f32 0.0, %v840
      %v842 = vpop.f32.mrb[0].mxu0
      %v843 = vpop.f32.mrb[0].mxu0
      %v844 = vpop.f32.mrb[0].mxu0
      %845 = vdwg.mxu0
      %v846 = vpack.c.bf16 %v841, %v841
      %847 = vrot.lane.b32.xlu0 %v731, 112
      %v848 = vpop.permute.xlu0 %847
      %849 = vrot.lane.b32.xlu0 %v731, 80
      %v850 = vpop.permute.xlu0 %849
      %v852 = vsel %vm735, %v848, 0
      %v855 = vsel %vm735, %v850, 0
      %857 = vmatprep.subr.bf16.mxu0 0
      %858 = vmatpush1.bf16.xpose.msra.mxu0 %v855
      %859 = vmatprep.subr.bf16.mxu0 0
      %860 = vmatpush1.bf16.xpose.msra.mxu0 0
      %861 = vmatprep.subr.bf16.mxu0 0
      %862 = vmatpush1.bf16.xpose.msra.mxu0 0
      %863 = vmatprep.subr.bf16.mxu0 0
      %864 = vmatpush1.bf16.xpose.msra.mxu0 0
      %865 = vmatprep.subr.bf16.mxu0 0
      %866 = vmatpush1.bf16.xpose.msra.mxu0 0
      %867 = vmatprep.subr.bf16.mxu0 0
      %868 = vmatpush1.bf16.xpose.msra.mxu0 0
      %869 = vmatprep.subr.bf16.mxu0 0
      %870 = vmatpush1.bf16.xpose.msra.mxu0 0
      %871 = vmatprep.subr.bf16.mxu0 0
      %872 = vmatpush1.bf16.xpose.msra.mxu0 0
      %873 = vmatprep.subr.bf16.mxu0 0
      %874 = vmatpush1.bf16.xpose.msra.mxu0 0
      %875 = vmatprep.subr.bf16.mxu0 0
      %876 = vmatpush1.bf16.xpose.msra.mxu0 0
      %877 = vmatprep.subr.bf16.mxu0 0
      %878 = vmatpush1.bf16.xpose.msra.mxu0 0
      %879 = vmatprep.subr.bf16.mxu0 0
      %880 = vmatpush1.bf16.xpose.msra.mxu0 0
      %881 = vmatprep.subr.bf16.mxu0 0
      %882 = vmatpush1.bf16.xpose.msra.mxu0 0
      %883 = vmatprep.subr.bf16.mxu0 0
      %884 = vmatpush1.bf16.xpose.msra.mxu0 0
      %885 = vmatprep.subr.bf16.mxu0 0
      %886 = vmatpush1.bf16.xpose.msra.mxu0 0
      %887 = vmatprep.subr.bf16.mxu0 0
      %888 = vmatpush1.bf16.xpose.msra.mxu0 0
      %889 = vmatprep.mubr.bf16.mxu0 0
      %890 = vmatmul.mubr.bf16.gmra.mrb[0].mxu0 %v852
      %v891 = vpop.f32.mrb[0].mxu0
      %v892 = vadd.f32 0.0, %v891
      %v893 = vpop.f32.mrb[0].mxu0
      %v894 = vpop.f32.mrb[0].mxu0
      %v895 = vpop.f32.mrb[0].mxu0
      %896 = vdwg.mxu0
      %v897 = vmul.f32 %v892, 0.25
      %v898 = vsel %vm783, %v897, -inf
      %899 = vmax.xlane.f32.xlu0 %v898
      %v900 = vpop.xlane.xlu0 %899
      %v901 = vsub.f32 %v897, %v900
      %v902 = vmul.f32 %v901, 1.442695
      %v903 = vpow.pop %v902
      %v904 = vsel %vm783, %v903, 0.0
      %905 = vadd.xlane.f32.xlu0 %v904
      %v906 = vpop.xlane.xlu0 %905
      %v907 = vrcp.pop %v906
      %v908 = vmul.f32 %v903, %v907
      %v909 = vpack.c.bf16 %v908, %v908
      %910 = vrot.lane.b32.xlu0 %v731, 48
      %v911 = vpop.permute.xlu0 %910
      %v913 = vsel %vm798, %v909, 0
      %v916 = vsel %vm802, %v911, 0
      %918 = vmatprep.subr.bf16.mxu0 0
      %919 = vmatpush1.bf16.msra.mxu0 %v916
      %920 = vmatprep.subr.bf16.mxu0 0
      %921 = vmatpush1.bf16.msra.mxu0 0
      %922 = vmatprep.subr.bf16.mxu0 0
      %923 = vmatpush1.bf16.msra.mxu0 0
      %924 = vmatprep.subr.bf16.mxu0 0
      %925 = vmatpush1.bf16.msra.mxu0 0
      %926 = vmatprep.subr.bf16.mxu0 0
      %927 = vmatpush1.bf16.msra.mxu0 0
      %928 = vmatprep.subr.bf16.mxu0 0
      %929 = vmatpush1.bf16.msra.mxu0 0
      %930 = vmatprep.subr.bf16.mxu0 0
      %931 = vmatpush1.bf16.msra.mxu0 0
      %932 = vmatprep.subr.bf16.mxu0 0
      %933 = vmatpush1.bf16.msra.mxu0 0
      %934 = vmatprep.subr.bf16.mxu0 0
      %935 = vmatpush1.bf16.msra.mxu0 0
      %936 = vmatprep.subr.bf16.mxu0 0
      %937 = vmatpush1.bf16.msra.mxu0 0
      %938 = vmatprep.subr.bf16.mxu0 0
      %939 = vmatpush1.bf16.msra.mxu0 0
      %940 = vmatprep.subr.bf16.mxu0 0
      %941 = vmatpush1.bf16.msra.mxu0 0
      %942 = vmatprep.subr.bf16.mxu0 0
      %943 = vmatpush1.bf16.msra.mxu0 0
      %944 = vmatprep.subr.bf16.mxu0 0
      %945 = vmatpush1.bf16.msra.mxu0 0
      %946 = vmatprep.subr.bf16.mxu0 0
      %947 = vmatpush1.bf16.msra.mxu0 0
      %948 = vmatprep.subr.bf16.mxu0 0
      %949 = vmatpush1.bf16.msra.mxu0 0
      %950 = vmatprep.mubr.bf16.mxu0 0
      %951 = vmatmul.mubr.bf16.gmra.mrb[0].mxu0 %v913
      %v952 = vpop.f32.mrb[0].mxu0
      %v953 = vadd.f32 0.0, %v952
      %v954 = vpop.f32.mrb[0].mxu0
      %v955 = vpop.f32.mrb[0].mxu0
      %v956 = vpop.f32.mrb[0].mxu0
      %957 = vdwg.mxu0
      %v958 = vpack.c.bf16 %v953, %v953
      %960 = vrot.lane.b32.xlu0 %v958, 16
      %v961 = vpop.permute.xlu0 %960
      %v964 = vsel %vm735, %v846, %v961
      %v969 = vunpack.c.l.b16 %v623
      %v970 = vunpack.c.l.b16 %v624
      %v971 = vunpack.c.l.b16 %v625
      %v972 = vunpack.c.l.b16 %v626
      %v973 = vpack.c.b16 %v970, %v969
      %v974 = vpack.c.b16 %v972, %v971
      %v977 = vsel %vm687, %v964, 0
      %979 = vmatprep.subr.bf16.mxu0 0
      %980 = vmatpush1.bf16.msra.mxu0 %v973
      %981 = vmatprep.subr.bf16.mxu0 0
      %982 = vmatpush1.bf16.msra.mxu0 %v974
      %983 = vmatprep.subr.bf16.mxu0 0
      %984 = vmatpush1.bf16.msra.mxu0 0
      %985 = vmatprep.subr.bf16.mxu0 0
      %986 = vmatpush1.bf16.msra.mxu0 0
      %987 = vmatprep.subr.bf16.mxu0 0
      %988 = vmatpush1.bf16.msra.mxu0 0
      %989 = vmatprep.subr.bf16.mxu0 0
      %990 = vmatpush1.bf16.msra.mxu0 0
      %991 = vmatprep.subr.bf16.mxu0 0
      %992 = vmatpush1.bf16.msra.mxu0 0
      %993 = vmatprep.subr.bf16.mxu0 0
      %994 = vmatpush1.bf16.msra.mxu0 0
      %995 = vmatprep.subr.bf16.mxu0 0
      %996 = vmatpush1.bf16.msra.mxu0 0
      %997 = vmatprep.subr.bf16.mxu0 0
      %998 = vmatpush1.bf16.msra.mxu0 0
      %999 = vmatprep.subr.bf16.mxu0 0
      %1000 = vmatpush1.bf16.msra.mxu0 0
      %1001 = vmatprep.subr.bf16.mxu0 0
      %1002 = vmatpush1.bf16.msra.mxu0 0
      %1003 = vmatprep.subr.bf16.mxu0 0
      %1004 = vmatpush1.bf16.msra.mxu0 0
      %1005 = vmatprep.subr.bf16.mxu0 0
      %1006 = vmatpush1.bf16.msra.mxu0 0
      %1007 = vmatprep.subr.bf16.mxu0 0
      %1008 = vmatpush1.bf16.msra.mxu0 0
      %1009 = vmatprep.subr.bf16.mxu0 0
      %1010 = vmatpush1.bf16.msra.mxu0 0
      %1011 = vmatprep.mubr.bf16.mxu0 0
      %1012 = vmatmul.mubr.bf16.gmra.mrb[0].mxu0 %v977
      %v1013 = vpop.f32.mrb[0].mxu0
      %v1014 = vadd.f32 0.0, %v1013
      %v1015 = vpop.f32.mrb[0].mxu0
      %v1016 = vpop.f32.mrb[0].mxu0
      %v1017 = vpop.f32.mrb[0].mxu0
      %1018 = vdwg.mxu0
      %v1019 = vadd.f32 %v644, %v1014
      %v1021 = vlaneseq
      %v1022 = vshrl.u32 %v1021, 7
      %v1023 = vsub.s32 0, %v1022
      %v1024 = vrot.slane %v627, %v1023
      %v1026 = vadd.f32 %v1019, %v1024
      %v1027 = vsel %vm645, %v1026, 0.0
      %1028 = vadd.xlane.f32.xlu0 %v1027
      %v1029 = vpop.xlane.xlu0 %1028
      %v1030 = vmul.f32 %v1029, %v649
      %v1031 = vsub.f32 %v1026, %v1030
      %v1032 = vmul.f32 %v1031, %v1031
      %v1033 = vsel %vm645, %v1032, 0.0
      %1034 = vadd.xlane.f32.xlu0 %v1033
      %v1035 = vpop.xlane.xlu0 %1034
      %v1036 = vmul.f32 %v1035, %v649
      %v1037 = vadd.f32 %v1036, 1e-05
      %v1038 = vrsqrt.pop %v1037
      %v1039 = vmul.f32 %v1031, %v1038
      %v1041 = vlaneseq
      %v1042 = vshrl.u32 %v1041, 7
      %v1043 = vsub.s32 0, %v1042
      %v1044 = vrot.slane %v628, %v1043
      %v1046 = vmul.f32 %v1039, %v1044
      %v1048 = vlaneseq
      %v1049 = vshrl.u32 %v1048, 7
      %v1050 = vsub.s32 0, %v1049
      %v1051 = vrot.slane %v629, %v1050
      %v1053 = vadd.f32 %v1046, %v1051
      %v1054 = vpack.c.bf16 %v1053, %v1053
      %v1056 = vlaneseq
      %v1057 = vshrl.u32 %v1056, 7
      %v1058 = vsub.s32 0, %v1057
      %v1059 = vrot.slane %v634, %v1058
      %v1065 = vunpack.c.l.b16 %v630
      %v1066 = vunpack.c.l.b16 %v631
      %v1067 = vunpack.c.l.b16 %v632
      %v1068 = vunpack.c.l.b16 %v633
      %v1069 = vpack.c.b16 %v1066, %v1065
      %v1070 = vpack.c.b16 %v1068, %v1067
      %v1074 = vsel %vm687, %v1054, 0
      %1076 = vmatprep.subr.bf16.mxu0 0
      %1077 = vmatpush1.bf16.msra.mxu0 %v1069
      %1078 = vmatprep.subr.bf16.mxu0 0
      %1079 = vmatpush1.bf16.msra.mxu0 %v1070
      %1080 = vmatprep.subr.bf16.mxu0 0
      %1081 = vmatpush1.bf16.msra.mxu0 0
      %1082 = vmatprep.subr.bf16.mxu0 0
      %1083 = vmatpush1.bf16.msra.mxu0 0
      %1084 = vmatprep.subr.bf16.mxu0 0
      %1085 = vmatpush1.bf16.msra.mxu0 0
      %1086 = vmatprep.subr.bf16.mxu0 0
      %1087 = vmatpush1.bf16.msra.mxu0 0
      %1088 = vmatprep.subr.bf16.mxu0 0
      %1089 = vmatpush1.bf16.msra.mxu0 0
      %1090 = vmatprep.subr.bf16.mxu0 0
      %1091 = vmatpush1.bf16.msra.mxu0 0
      %1092 = vmatprep.subr.bf16.mxu0 0
      %1093 = vmatpush1.bf16.msra.mxu0 0
      %1094 = vmatprep.subr.bf16.mxu0 0
      %1095 = vmatpush1.bf16.msra.mxu0 0
      %1096 = vmatprep.subr.bf16.mxu0 0
      %1097 = vmatpush1.bf16.msra.mxu0 0
      %1098 = vmatprep.subr.bf16.mxu0 0
      %1099 = vmatpush1.bf16.msra.mxu0 0
      %1100 = vmatprep.subr.bf16.mxu0 0
      %1101 = vmatpush1.bf16.msra.mxu0 0
      %1102 = vmatprep.subr.bf16.mxu0 0
      %1103 = vmatpush1.bf16.msra.mxu0 0
      %1104 = vmatprep.subr.bf16.mxu0 0
      %1105 = vmatpush1.bf16.msra.mxu0 0
      %1106 = vmatprep.subr.bf16.mxu0 0
      %1107 = vmatpush1.bf16.msra.mxu0 0
      %1108 = vmatprep.mubr.bf16.mxu0 0
      %1109 = vmatmul.mubr.bf16.gmra.mrb[0].mxu0 %v1074
      %v1110 = vpop.f32.mrb[0].mxu0
      %v1111 = vadd.f32 %v1059, %v1110
      %v1112 = vpop.f32.mrb[0].mxu0
      %v1113 = vpop.f32.mrb[0].mxu0
      %v1114 = vpop.f32.mrb[0].mxu0
      %1115 = vdwg.mxu0
      %v1116 = vmul.f32 %v1111, 0.5
      %v1117 = vmul.f32 %v1111, 0.70710677
      %v1118 = verf.f32.pop %v1117
      %v1119 = vadd.f32 %v1118, 1.0
      %v1120 = vmul.f32 %v1116, %v1119
      %v1121 = vpack.c.bf16 %v1120, %v1120
      %v1123 = vlaneseq
      %v1124 = vshrl.u32 %v1123, 7
      %v1125 = vsub.s32 0, %v1124
      %v1126 = vrot.slane %v643, %v1125
      %v1136 = vunpack.c.l.b16 %v635
      %v1137 = vunpack.c.l.b16 %v636
      %v1138 = vunpack.c.l.b16 %v637
      %v1139 = vunpack.c.l.b16 %v638
      %v1140 = vunpack.c.l.b16 %v639
      %v1141 = vunpack.c.l.b16 %v640
      %v1142 = vunpack.c.l.b16 %v641
      %v1143 = vunpack.c.l.b16 %v642
      %v1144 = vpack.c.b16 %v1137, %v1136
      %v1145 = vpack.c.b16 %v1139, %v1138
      %v1146 = vpack.c.b16 %v1141, %v1140
      %v1147 = vpack.c.b16 %v1143, %v1142
      %vm1152 = vcmask 523264
      %v1154 = vsel %vm1152, %v1121, 0
      %1156 = vmatprep.subr.bf16.mxu0 0
      %1157 = vmatpush1.bf16.msra.mxu0 %v1144
      %1158 = vmatprep.subr.bf16.mxu0 0
      %1159 = vmatpush1.bf16.msra.mxu0 %v1145
      %1160 = vmatprep.subr.bf16.mxu0 0
      %1161 = vmatpush1.bf16.msra.mxu0 %v1146
      %1162 = vmatprep.subr.bf16.mxu0 0
      %1163 = vmatpush1.bf16.msra.mxu0 %v1147
      %1164 = vmatprep.subr.bf16.mxu0 0
      %1165 = vmatpush1.bf16.msra.mxu0 0
      %1166 = vmatprep.subr.bf16.mxu0 0
      %1167 = vmatpush1.bf16.msra.mxu0 0
      %1168 = vmatprep.subr.bf16.mxu0 0
      %1169 = vmatpush1.bf16.msra.mxu0 0
      %1170 = vmatprep.subr.bf16.mxu0 0
      %1171 = vmatpush1.bf16.msra.mxu0 0
      %1172 = vmatprep.subr.bf16.mxu0 0
      %1173 = vmatpush1.bf16.msra.mxu0 0
      %1174 = vmatprep.subr.bf16.mxu0 0
      %1175 = vmatpush1.bf16.msra.mxu0 0
      %1176 = vmatprep.subr.bf16.mxu0 0
      %1177 = vmatpush1.bf16.msra.mxu0 0
      %1178 = vmatprep.subr.bf16.mxu0 0
      %1179 = vmatpush1.bf16.msra.mxu0 0
      %1180 = vmatprep.subr.bf16.mxu0 0
      %1181 = vmatpush1.bf16.msra.mxu0 0
      %1182 = vmatprep.subr.bf16.mxu0 0
      %1183 = vmatpush1.bf16.msra.mxu0 0
      %1184 = vmatprep.subr.bf16.mxu0 0
      %1185 = vmatpush1.bf16.msra.mxu0 0
      %1186 = vmatprep.subr.bf16.mxu0 0
      %1187 = vmatpush1.bf16.msra.mxu0 0
      %1188 = vmatprep.mubr.bf16.mxu0 0
      %1189 = vmatmul.mubr.bf16.gmra.mrb[0].mxu0 %v1154
      %v1190 = vpop.f32.mrb[0].mxu0
      %v1191 = vadd.f32 %v1126, %v1190
      %v1192 = vpop.f32.mrb[0].mxu0
      %v1193 = vpop.f32.mrb[0].mxu0
      %v1194 = vpop.f32.mrb[0].mxu0
      %1195 = vdwg.mxu0
      %v1196 = vadd.f32 %v1026, %v1191
      %1197 = vst.msk [vmem:[%s605] sm:$0x3f] %vm645, %v1196
      %s1198 = scalar_lea.vmem %s605, 8
      %v1199 = vld [vmem:[%s1198] sm:$0x3f]
      %v1200 = vsel %vm645, %v1199, 0.0
      %1201 = vadd.xlane.f32.xlu0 %v1200
      %v1202 = vpop.xlane.xlu0 %1201
      %v1203 = vmul.f32 %v1202, %v649
      %v1204 = vsub.f32 %v1199, %v1203
      %v1205 = vmul.f32 %v1204, %v1204
      %v1206 = vsel %vm645, %v1205, 0.0
      %1207 = vadd.xlane.f32.xlu0 %v1206
      %v1208 = vpop.xlane.xlu0 %1207
      %v1209 = vmul.f32 %v1208, %v649
      %v1210 = vadd.f32 %v1209, 1e-05
      %v1211 = vrsqrt.pop %v1210
      %v1212 = vmul.f32 %v1204, %v1211
      %v1213 = vmul.f32 %v1212, %v664
      %v1214 = vadd.f32 %v1213, %v671
      %v1215 = vpack.c.bf16 %v1214, %v1214
      %v1217 = vsel %vm687, %v1215, 0
      %1219 = vmatprep.subr.bf16.mxu0 0
      %1220 = vmatpush1.bf16.msra.mxu0 %v683
      %1221 = vmatprep.subr.bf16.mxu0 0
      %1222 = vmatpush1.bf16.msra.mxu0 %v684
      %1223 = vmatprep.subr.bf16.mxu0 0
      %1224 = vmatpush1.bf16.msra.mxu0 0
      %1225 = vmatprep.subr.bf16.mxu0 0
      %1226 = vmatpush1.bf16.msra.mxu0 0
      %1227 = vmatprep.subr.bf16.mxu0 0
      %1228 = vmatpush1.bf16.msra.mxu0 0
      %1229 = vmatprep.subr.bf16.mxu0 0
      %1230 = vmatpush1.bf16.msra.mxu0 0
      %1231 = vmatprep.subr.bf16.mxu0 0
      %1232 = vmatpush1.bf16.msra.mxu0 0
      %1233 = vmatprep.subr.bf16.mxu0 0
      %1234 = vmatpush1.bf16.msra.mxu0 0
      %1235 = vmatprep.subr.bf16.mxu0 0
      %1236 = vmatpush1.bf16.msra.mxu0 0
      %1237 = vmatprep.subr.bf16.mxu0 0
      %1238 = vmatpush1.bf16.msra.mxu0 0
      %1239 = vmatprep.subr.bf16.mxu0 0
      %1240 = vmatpush1.bf16.msra.mxu0 0
      %1241 = vmatprep.subr.bf16.mxu0 0
      %1242 = vmatpush1.bf16.msra.mxu0 0
      %1243 = vmatprep.subr.bf16.mxu0 0
      %1244 = vmatpush1.bf16.msra.mxu0 0
      %1245 = vmatprep.subr.bf16.mxu0 0
      %1246 = vmatpush1.bf16.msra.mxu0 0
      %1247 = vmatprep.subr.bf16.mxu0 0
      %1248 = vmatpush1.bf16.msra.mxu0 0
      %1249 = vmatprep.subr.bf16.mxu0 0
      %1250 = vmatpush1.bf16.msra.mxu0 0
      %1251 = vmatprep.mubr.bf16.mxu0 0
      %1252 = vmatmul.mubr.bf16.gmra.mrb[0].mxu0 %v1217
      %v1253 = vpop.f32.mrb[0].mxu0
      %v1254 = vadd.f32 0.0, %v1253
      %v1255 = vpop.f32.mrb[0].mxu0
      %v1256 = vpop.f32.mrb[0].mxu0
      %v1257 = vpop.f32.mrb[0].mxu0
      %1258 = vdwg.mxu0
      %v1259 = vpack.c.bf16 %v1254, %v1254
      %1261 = vrot.lane.b32.xlu0 %v1259, 96
      %v1262 = vpop.permute.xlu0 %1261
      %v1264 = vsel %vm735, %v1259, 0
      %v1267 = vsel %vm735, %v1262, 0
      %1269 = vmatprep.subr.bf16.mxu0 0
      %1270 = vmatpush1.bf16.xpose.msra.mxu0 %v1267
      %1271 = vmatprep.subr.bf16.mxu0 0
      %1272 = vmatpush1.bf16.xpose.msra.mxu0 0
      %1273 = vmatprep.subr.bf16.mxu0 0
      %1274 = vmatpush1.bf16.xpose.msra.mxu0 0
      %1275 = vmatprep.subr.bf16.mxu0 0
      %1276 = vmatpush1.bf16.xpose.msra.mxu0 0
      %1277 = vmatprep.subr.bf16.mxu0 0
      %1278 = vmatpush1.bf16.xpose.msra.mxu0 0
      %1279 = vmatprep.subr.bf16.mxu0 0
      %1280 = vmatpush1.bf16.xpose.msra.mxu0 0
      %1281 = vmatprep.subr.bf16.mxu0 0
      %1282 = vmatpush1.bf16.xpose.msra.mxu0 0
      %1283 = vmatprep.subr.bf16.mxu0 0
      %1284 = vmatpush1.bf16.xpose.msra.mxu0 0
      %1285 = vmatprep.subr.bf16.mxu0 0
      %1286 = vmatpush1.bf16.xpose.msra.mxu0 0
      %1287 = vmatprep.subr.bf16.mxu0 0
      %1288 = vmatpush1.bf16.xpose.msra.mxu0 0
      %1289 = vmatprep.subr.bf16.mxu0 0
      %1290 = vmatpush1.bf16.xpose.msra.mxu0 0
      %1291 = vmatprep.subr.bf16.mxu0 0
      %1292 = vmatpush1.bf16.xpose.msra.mxu0 0
      %1293 = vmatprep.subr.bf16.mxu0 0
      %1294 = vmatpush1.bf16.xpose.msra.mxu0 0
      %1295 = vmatprep.subr.bf16.mxu0 0
      %1296 = vmatpush1.bf16.xpose.msra.mxu0 0
      %1297 = vmatprep.subr.bf16.mxu0 0
      %1298 = vmatpush1.bf16.xpose.msra.mxu0 0
      %1299 = vmatprep.subr.bf16.mxu0 0
      %1300 = vmatpush1.bf16.xpose.msra.mxu0 0
      %1301 = vmatprep.mubr.bf16.mxu0 0
      %1302 = vmatmul.mubr.bf16.gmra.mrb[0].mxu0 %v1264
      %v1303 = vpop.f32.mrb[0].mxu0
      %v1304 = vadd.f32 0.0, %v1303
      %v1305 = vpop.f32.mrb[0].mxu0
      %v1306 = vpop.f32.mrb[0].mxu0
      %v1307 = vpop.f32.mrb[0].mxu0
      %1308 = vdwg.mxu0
      %v1309 = vmul.f32 %v1304, 0.25
      %v1310 = vsel %vm783, %v1309, -inf
      %1311 = vmax.xlane.f32.xlu0 %v1310
      %v1312 = vpop.xlane.xlu0 %1311
      %v1313 = vsub.f32 %v1309, %v1312
      %v1314 = vmul.f32 %v1313, 1.442695
      %v1315 = vpow.pop %v1314
      %v1316 = vsel %vm783, %v1315, 0.0
      %1317 = vadd.xlane.f32.xlu0 %v1316
      %v1318 = vpop.xlane.xlu0 %1317
      %v1319 = vrcp.pop %v1318
      %v1320 = vmul.f32 %v1315, %v1319
      %v1321 = vpack.c.bf16 %v1320, %v1320
      %1322 = vrot.lane.b32.xlu0 %v1259, 64
      %v1323 = vpop.permute.xlu0 %1322
      %v1325 = vsel %vm798, %v1321, 0
      %v1328 = vsel %vm802, %v1323, 0
      %1330 = vmatprep.subr.bf16.mxu0 0
      %1331 = vmatpush1.bf16.msra.mxu0 %v1328
      %1332 = vmatprep.subr.bf16.mxu0 0
      %1333 = vmatpush1.bf16.msra.mxu0 0
      %1334 = vmatprep.subr.bf16.mxu0 0
      %1335 = vmatpush1.bf16.msra.mxu0 0
      %1336 = vmatprep.subr.bf16.mxu0 0
      %1337 = vmatpush1.bf16.msra.mxu0 0
      %1338 = vmatprep.subr.bf16.mxu0 0
      %1339 = vmatpush1.bf16.msra.mxu0 0
      %1340 = vmatprep.subr.bf16.mxu0 0
      %1341 = vmatpush1.bf16.msra.mxu0 0
      %1342 = vmatprep.subr.bf16.mxu0 0
      %1343 = vmatpush1.bf16.msra.mxu0 0
      %1344 = vmatprep.subr.bf16.mxu0 0
      %1345 = vmatpush1.bf16.msra.mxu0 0
      %1346 = vmatprep.subr.bf16.mxu0 0
      %1347 = vmatpush1.bf16.msra.mxu0 0
      %1348 = vmatprep.subr.bf16.mxu0 0
      %1349 = vmatpush1.bf16.msra.mxu0 0
      %1350 = vmatprep.subr.bf16.mxu0 0
      %1351 = vmatpush1.bf16.msra.mxu0 0
      %1352 = vmatprep.subr.bf16.mxu0 0
      %1353 = vmatpush1.bf16.msra.mxu0 0
      %1354 = vmatprep.subr.bf16.mxu0 0
      %1355 = vmatpush1.bf16.msra.mxu0 0
      %1356 = vmatprep.subr.bf16.mxu0 0
      %1357 = vmatpush1.bf16.msra.mxu0 0
      %1358 = vmatprep.subr.bf16.mxu0 0
      %1359 = vmatpush1.bf16.msra.mxu0 0
      %1360 = vmatprep.subr.bf16.mxu0 0
      %1361 = vmatpush1.bf16.msra.mxu0 0
      %1362 = vmatprep.mubr.bf16.mxu0 0
      %1363 = vmatmul.mubr.bf16.gmra.mrb[0].mxu0 %v1325
      %v1364 = vpop.f32.mrb[0].mxu0
      %v1365 = vadd.f32 0.0, %v1364
      %v1366 = vpop.f32.mrb[0].mxu0
      %v1367 = vpop.f32.mrb[0].mxu0
      %v1368 = vpop.f32.mrb[0].mxu0
      %1369 = vdwg.mxu0
      %v1370 = vpack.c.bf16 %v1365, %v1365
      %1371 = vrot.lane.b32.xlu0 %v1259, 112
      %v1372 = vpop.permute.xlu0 %1371
      %1373 = vrot.lane.b32.xlu0 %v1259, 80
      %v1374 = vpop.permute.xlu0 %1373
      %v1376 = vsel %vm735, %v1372, 0
      %v1379 = vsel %vm735, %v1374, 0
      %1381 = vmatprep.subr.bf16.mxu0 0
      %1382 = vmatpush1.bf16.xpose.msra.mxu0 %v1379
      %1383 = vmatprep.subr.bf16.mxu0 0
      %1384 = vmatpush1.bf16.xpose.msra.mxu0 0
      %1385 = vmatprep.subr.bf16.mxu0 0
      %1386 = vmatpush1.bf16.xpose.msra.mxu0 0
      %1387 = vmatprep.subr.bf16.mxu0 0
      %1388 = vmatpush1.bf16.xpose.msra.mxu0 0
      %1389 = vmatprep.subr.bf16.mxu0 0
      %1390 = vmatpush1.bf16.xpose.msra.mxu0 0
      %1391 = vmatprep.subr.bf16.mxu0 0
      %1392 = vmatpush1.bf16.xpose.msra.mxu0 0
      %1393 = vmatprep.subr.bf16.mxu0 0
      %1394 = vmatpush1.bf16.xpose.msra.mxu0 0
      %1395 = vmatprep.subr.bf16.mxu0 0
      %1396 = vmatpush1.bf16.xpose.msra.mxu0 0
      %1397 = vmatprep.subr.bf16.mxu0 0
      %1398 = vmatpush1.bf16.xpose.msra.mxu0 0
      %1399 = vmatprep.subr.bf16.mxu0 0
      %1400 = vmatpush1.bf16.xpose.msra.mxu0 0
      %1401 = vmatprep.subr.bf16.mxu0 0
      %1402 = vmatpush1.bf16.xpose.msra.mxu0 0
      %1403 = vmatprep.subr.bf16.mxu0 0
      %1404 = vmatpush1.bf16.xpose.msra.mxu0 0
      %1405 = vmatprep.subr.bf16.mxu0 0
      %1406 = vmatpush1.bf16.xpose.msra.mxu0 0
      %1407 = vmatprep.subr.bf16.mxu0 0
      %1408 = vmatpush1.bf16.xpose.msra.mxu0 0
      %1409 = vmatprep.subr.bf16.mxu0 0
      %1410 = vmatpush1.bf16.xpose.msra.mxu0 0
      %1411 = vmatprep.subr.bf16.mxu0 0
      %1412 = vmatpush1.bf16.xpose.msra.mxu0 0
      %1413 = vmatprep.mubr.bf16.mxu0 0
      %1414 = vmatmul.mubr.bf16.gmra.mrb[0].mxu0 %v1376
      %v1415 = vpop.f32.mrb[0].mxu0
      %v1416 = vadd.f32 0.0, %v1415
      %v1417 = vpop.f32.mrb[0].mxu0
      %v1418 = vpop.f32.mrb[0].mxu0
      %v1419 = vpop.f32.mrb[0].mxu0
      %1420 = vdwg.mxu0
      %v1421 = vmul.f32 %v1416, 0.25
      %v1422 = vsel %vm783, %v1421, -inf
      %1423 = vmax.xlane.f32.xlu0 %v1422
      %v1424 = vpop.xlane.xlu0 %1423
      %v1425 = vsub.f32 %v1421, %v1424
      %v1426 = vmul.f32 %v1425, 1.442695
      %v1427 = vpow.pop %v1426
      %v1428 = vsel %vm783, %v1427, 0.0
      %1429 = vadd.xlane.f32.xlu0 %v1428
      %v1430 = vpop.xlane.xlu0 %1429
      %v1431 = vrcp.pop %v1430
      %v1432 = vmul.f32 %v1427, %v1431
      %v1433 = vpack.c.bf16 %v1432, %v1432
      %1434 = vrot.lane.b32.xlu0 %v1259, 48
      %v1435 = vpop.permute.xlu0 %1434
      %v1437 = vsel %vm798, %v1433, 0
      %v1440 = vsel %vm802, %v1435, 0
      %1442 = vmatprep.subr.bf16.mxu0 0
      %1443 = vmatpush1.bf16.msra.mxu0 %v1440
      %1444 = vmatprep.subr.bf16.mxu0 0
      %1445 = vmatpush1.bf16.msra.mxu0 0
      %1446 = vmatprep.subr.bf16.mxu0 0
      %1447 = vmatpush1.bf16.msra.mxu0 0
      %1448 = vmatprep.subr.bf16.mxu0 0
      %1449 = vmatpush1.bf16.msra.mxu0 0
      %1450 = vmatprep.subr.bf16.mxu0 0
      %1451 = vmatpush1.bf16.msra.mxu0 0
      %1452 = vmatprep.subr.bf16.mxu0 0
      %1453 = vmatpush1.bf16.msra.mxu0 0
      %1454 = vmatprep.subr.bf16.mxu0 0
      %1455 = vmatpush1.bf16.msra.mxu0 0
      %1456 = vmatprep.subr.bf16.mxu0 0
      %1457 = vmatpush1.bf16.msra.mxu0 0
      %1458 = vmatprep.subr.bf16.mxu0 0
      %1459 = vmatpush1.bf16.msra.mxu0 0
      %1460 = vmatprep.subr.bf16.mxu0 0
      %1461 = vmatpush1.bf16.msra.mxu0 0
      %1462 = vmatprep.subr.bf16.mxu0 0
      %1463 = vmatpush1.bf16.msra.mxu0 0
      %1464 = vmatprep.subr.bf16.mxu0 0
      %1465 = vmatpush1.bf16.msra.mxu0 0
      %1466 = vmatprep.subr.bf16.mxu0 0
      %1467 = vmatpush1.bf16.msra.mxu0 0
      %1468 = vmatprep.subr.bf16.mxu0 0
      %1469 = vmatpush1.bf16.msra.mxu0 0
      %1470 = vmatprep.subr.bf16.mxu0 0
      %1471 = vmatpush1.bf16.msra.mxu0 0
      %1472 = vmatprep.subr.bf16.mxu0 0
      %1473 = vmatpush1.bf16.msra.mxu0 0
      %1474 = vmatprep.mubr.bf16.mxu0 0
      %1475 = vmatmul.mubr.bf16.gmra.mrb[0].mxu0 %v1437
      %v1476 = vpop.f32.mrb[0].mxu0
      %v1477 = vadd.f32 0.0, %v1476
      %v1478 = vpop.f32.mrb[0].mxu0
      %v1479 = vpop.f32.mrb[0].mxu0
      %v1480 = vpop.f32.mrb[0].mxu0
      %1481 = vdwg.mxu0
      %v1482 = vpack.c.bf16 %v1477, %v1477
      %1484 = vrot.lane.b32.xlu0 %v1482, 16
      %v1485 = vpop.permute.xlu0 %1484
      %v1488 = vsel %vm735, %v1370, %v1485
      %v1489 = vsel %vm687, %v1488, 0
      %1491 = vmatprep.subr.bf16.mxu0 0
      %1492 = vmatpush1.bf16.msra.mxu0 %v973
      %1493 = vmatprep.subr.bf16.mxu0 0
      %1494 = vmatpush1.bf16.msra.mxu0 %v974
      %1495 = vmatprep.subr.bf16.mxu0 0
      %1496 = vmatpush1.bf16.msra.mxu0 0
      %1497 = vmatprep.subr.bf16.mxu0 0
      %1498 = vmatpush1.bf16.msra.mxu0 0
      %1499 = vmatprep.subr.bf16.mxu0 0
      %1500 = vmatpush1.bf16.msra.mxu0 0
      %1501 = vmatprep.subr.bf16.mxu0 0
      %1502 = vmatpush1.bf16.msra.mxu0 0
      %1503 = vmatprep.subr.bf16.mxu0 0
      %1504 = vmatpush1.bf16.msra.mxu0 0
      %1505 = vmatprep.subr.bf16.mxu0 0
      %1506 = vmatpush1.bf16.msra.mxu0 0
      %1507 = vmatprep.subr.bf16.mxu0 0
      %1508 = vmatpush1.bf16.msra.mxu0 0
      %1509 = vmatprep.subr.bf16.mxu0 0
      %1510 = vmatpush1.bf16.msra.mxu0 0
      %1511 = vmatprep.subr.bf16.mxu0 0
      %1512 = vmatpush1.bf16.msra.mxu0 0
      %1513 = vmatprep.subr.bf16.mxu0 0
      %1514 = vmatpush1.bf16.msra.mxu0 0
      %1515 = vmatprep.subr.bf16.mxu0 0
      %1516 = vmatpush1.bf16.msra.mxu0 0
      %1517 = vmatprep.subr.bf16.mxu0 0
      %1518 = vmatpush1.bf16.msra.mxu0 0
      %1519 = vmatprep.subr.bf16.mxu0 0
      %1520 = vmatpush1.bf16.msra.mxu0 0
      %1521 = vmatprep.subr.bf16.mxu0 0
      %1522 = vmatpush1.bf16.msra.mxu0 0
      %1523 = vmatprep.mubr.bf16.mxu0 0
      %1524 = vmatmul.mubr.bf16.gmra.mrb[0].mxu0 %v1489
      %v1525 = vpop.f32.mrb[0].mxu0
      %v1526 = vadd.f32 0.0, %v1525
      %v1527 = vpop.f32.mrb[0].mxu0
      %v1528 = vpop.f32.mrb[0].mxu0
      %v1529 = vpop.f32.mrb[0].mxu0
      %1530 = vdwg.mxu0
      %v1531 = vadd.f32 %v1199, %v1526
      %v1532 = vadd.f32 %v1531, %v1024
      %v1533 = vsel %vm645, %v1532, 0.0
      %1534 = vadd.xlane.f32.xlu0 %v1533
      %v1535 = vpop.xlane.xlu0 %1534
      %v1536 = vmul.f32 %v1535, %v649
      %v1537 = vsub.f32 %v1532, %v1536
      %v1538 = vmul.f32 %v1537, %v1537
      %v1539 = vsel %vm645, %v1538, 0.0
      %1540 = vadd.xlane.f32.xlu0 %v1539
      %v1541 = vpop.xlane.xlu0 %1540
      %v1542 = vmul.f32 %v1541, %v649
      %v1543 = vadd.f32 %v1542, 1e-05
      %v1544 = vrsqrt.pop %v1543
      %v1545 = vmul.f32 %v1537, %v1544
      %v1546 = vmul.f32 %v1545, %v1044
      %v1547 = vadd.f32 %v1546, %v1051
      %v1548 = vpack.c.bf16 %v1547, %v1547
      %v1550 = vsel %vm687, %v1548, 0
      %1552 = vmatprep.subr.bf16.mxu0 0
      %1553 = vmatpush1.bf16.msra.mxu0 %v1069
      %1554 = vmatprep.subr.bf16.mxu0 0
      %1555 = vmatpush1.bf16.msra.mxu0 %v1070
      %1556 = vmatprep.subr.bf16.mxu0 0
      %1557 = vmatpush1.bf16.msra.mxu0 0
      %1558 = vmatprep.subr.bf16.mxu0 0
      %1559 = vmatpush1.bf16.msra.mxu0 0
      %1560 = vmatprep.subr.bf16.mxu0 0
      %1561 = vmatpush1.bf16.msra.mxu0 0
      %1562 = vmatprep.subr.bf16.mxu0 0
      %1563 = vmatpush1.bf16.msra.mxu0 0
      %1564 = vmatprep.subr.bf16.mxu0 0
      %1565 = vmatpush1.bf16.msra.mxu0 0
      %1566 = vmatprep.subr.bf16.mxu0 0
      %1567 = vmatpush1.bf16.msra.mxu0 0
      %1568 = vmatprep.subr.bf16.mxu0 0
      %1569 = vmatpush1.bf16.msra.mxu0 0
      %1570 = vmatprep.subr.bf16.mxu0 0
      %1571 = vmatpush1.bf16.msra.mxu0 0
      %1572 = vmatprep.subr.bf16.mxu0 0
      %1573 = vmatpush1.bf16.msra.mxu0 0
      %1574 = vmatprep.subr.bf16.mxu0 0
      %1575 = vmatpush1.bf16.msra.mxu0 0
      %1576 = vmatprep.subr.bf16.mxu0 0
      %1577 = vmatpush1.bf16.msra.mxu0 0
      %1578 = vmatprep.subr.bf16.mxu0 0
      %1579 = vmatpush1.bf16.msra.mxu0 0
      %1580 = vmatprep.subr.bf16.mxu0 0
      %1581 = vmatpush1.bf16.msra.mxu0 0
      %1582 = vmatprep.subr.bf16.mxu0 0
      %1583 = vmatpush1.bf16.msra.mxu0 0
      %1584 = vmatprep.mubr.bf16.mxu0 0
      %1585 = vmatmul.mubr.bf16.gmra.mrb[0].mxu0 %v1550
      %v1586 = vpop.f32.mrb[0].mxu0
      %v1587 = vadd.f32 %v1059, %v1586
      %v1588 = vpop.f32.mrb[0].mxu0
      %v1589 = vpop.f32.mrb[0].mxu0
      %v1590 = vpop.f32.mrb[0].mxu0
      %1591 = vdwg.mxu0
      %v1592 = vmul.f32 %v1587, 0.5
      %v1593 = vmul.f32 %v1587, 0.70710677
      %v1594 = verf.f32.pop %v1593
      %v1595 = vadd.f32 %v1594, 1.0
      %v1596 = vmul.f32 %v1592, %v1595
      %v1597 = vpack.c.bf16 %v1596, %v1596
      %v1599 = vsel %vm1152, %v1597, 0
      %1601 = vmatprep.subr.bf16.mxu0 0
      %1602 = vmatpush1.bf16.msra.mxu0 %v1144
      %1603 = vmatprep.subr.bf16.mxu0 0
      %1604 = vmatpush1.bf16.msra.mxu0 %v1145
      %1605 = vmatprep.subr.bf16.mxu0 0
      %1606 = vmatpush1.bf16.msra.mxu0 %v1146
      %1607 = vmatprep.subr.bf16.mxu0 0
      %1608 = vmatpush1.bf16.msra.mxu0 %v1147
      %1609 = vmatprep.subr.bf16.mxu0 0
      %1610 = vmatpush1.bf16.msra.mxu0 0
      %1611 = vmatprep.subr.bf16.mxu0 0
      %1612 = vmatpush1.bf16.msra.mxu0 0
      %1613 = vmatprep.subr.bf16.mxu0 0
      %1614 = vmatpush1.bf16.msra.mxu0 0
      %1615 = vmatprep.subr.bf16.mxu0 0
      %1616 = vmatpush1.bf16.msra.mxu0 0
      %1617 = vmatprep.subr.bf16.mxu0 0
      %1618 = vmatpush1.bf16.msra.mxu0 0
      %1619 = vmatprep.subr.bf16.mxu0 0
      %1620 = vmatpush1.bf16.msra.mxu0 0
      %1621 = vmatprep.subr.bf16.mxu0 0
      %1622 = vmatpush1.bf16.msra.mxu0 0
      %1623 = vmatprep.subr.bf16.mxu0 0
      %1624 = vmatpush1.bf16.msra.mxu0 0
      %1625 = vmatprep.subr.bf16.mxu0 0
      %1626 = vmatpush1.bf16.msra.mxu0 0
      %1627 = vmatprep.subr.bf16.mxu0 0
      %1628 = vmatpush1.bf16.msra.mxu0 0
      %1629 = vmatprep.subr.bf16.mxu0 0
      %1630 = vmatpush1.bf16.msra.mxu0 0
      %1631 = vmatprep.subr.bf16.mxu0 0
      %1632 = vmatpush1.bf16.msra.mxu0 0
      %1633 = vmatprep.mubr.bf16.mxu0 0
      %1634 = vmatmul.mubr.bf16.gmra.mrb[0].mxu0 %v1599
      %v1635 = vpop.f32.mrb[0].mxu0
      %v1636 = vadd.f32 %v1126, %v1635
      %v1637 = vpop.f32.mrb[0].mxu0
      %v1638 = vpop.f32.mrb[0].mxu0
      %v1639 = vpop.f32.mrb[0].mxu0
      %1640 = vdwg.mxu0
      %v1641 = vadd.f32 %v1532, %v1636
      %1642 = vst.msk [vmem:[%s1198] sm:$0x3f] %vm645, %v1641
      %s1643 = smul.u32 2, %s27
      %p1644 = scmp.lt.s32.totalorder %s1643, 1
      %s1645 = scalar_select %p1644, %s1643, 1
      %s1646 = smul.addr %s1645, 8
      %s1647 = scalar_lea.vmem %s12, %s1646
      // Predicated region
      $region73: #{distill_wrapper_forward.8} parent=67 // pred_check
        %p1648 = pneg %p365
      $region74: #{distill_wrapper_forward.8} parent=67 // pred_check_branch
        %1650 = sbr.rel (%p1648) target = $region76
      $region75: #{distill_wrapper_forward.8} parent=67 // pred_region
        %s1651 = smul.u32 2, %s27
      $region76: #{distill_wrapper_forward.8} parent=67 // pred_fallthru
        _
      // Predicated region
      $region77: #{distill_wrapper_forward.8} parent=67 // pred_check
        %p1652 = pneg %p365
      $region78: #{distill_wrapper_forward.8} parent=67 // pred_check_branch
        %1654 = sbr.rel (%p1652) target = $region80
      $region79: #{distill_wrapper_forward.8} parent=67 // pred_region
        %s1655 = smul.u32 2, %s27
        %p1656 = scmp.lt.s32.totalorder %s1655, 1
        %s1657 = scalar_select %p1656, %s1655, 1
        %s1658 = smul.addr %s1657, 8
        %s1659 = scalar_lea.vmem %s12, %s1658
      $region80: #{distill_wrapper_forward.8} parent=67 // pred_fallthru
        _
    $region68: #{distill_wrapper_forward.8} parent=5 // pred_fallthru
      _
    %p1660 = scmp.le.s32.totalorder 2, %s18
    // Predicated region
    $region81: #{distill_wrapper_forward.8} parent=5 // pred_check
      %p1661 = pneg %p1660
    $region82: #{distill_wrapper_forward.8} parent=5 // pred_check_branch
      %1663 = sbr.rel (%p1661) target = $region84
    $region83: #{distill_wrapper_forward.8} parent=5 // pred_region
      %s1664 = ssub.s32 %s18, 2
    $region84: #{distill_wrapper_forward.8} parent=5 // pred_fallthru
      _
  $region6: #{distill_wrapper_forward.8} parent=0 // loop_footer
    %s22 = sadd.s32 1, %s18
  $region7: #{distill_wrapper_forward.8} parent=0 // loop_footer_branch
    %17 = sbr.rel target = $region3
  $region8: #{distill_wrapper_forward.8} parent=0 // loop_exit
    _

// kernel: distill_wrapper_forward.5
$region0: #{distill_wrapper_forward.5}
  #allocation0 [shape = 'u32[]', space=smem, size = 0x4, offset = 0x4, fixed_abs, tag = 'smem constant byte address 0x4 - core index']
  #allocation1 [shape = 'u32[144,128]{1,0:T(1,128)}', space=vmem, size = 0x12000, scoped, tag = 'internal scratch']
  %s0 = inlined_call_operand.vmem [shape: f32[2,4,192], index: 0, kind: input, shape index: {}]
  %s1 = inlined_call_operand.vmem [shape: f32[1,192], index: 1, kind: input, shape index: {}]
  %s2 = inlined_call_operand.vmem [shape: f32[1,192], index: 2, kind: input, shape index: {}]
  %s3 = inlined_call_operand.vmem [shape: bf16[192,32], index: 3, kind: input, shape index: {}]
  %s4 = inlined_call_operand.vmem [shape: f32[1,32], index: 4, kind: input, shape index: {}]
  %s5 = inlined_call_operand.vmem [shape: f32[1,32], index: 5, kind: input, shape index: {}]
  %s6 = inlined_call_operand.vmem [shape: f32[1,32], index: 6, kind: input, shape index: {}]
  %s7 = inlined_call_operand.vmem [shape: f32[1,5,32], index: 7, kind: input, shape index: {}]
  %s8 = inlined_call_operand.vmem [shape: f32[1,1,32], index: 8, kind: input, shape index: {}]
  %s9 = inlined_call_operand.vmem [shape: f32[2,5,32], index: 9, kind: output, shape index: {}]
  %s10 = sld [smem:[#allocation0]]
  $region46: #{distill_wrapper_forward.5} parent=0
    _
  %s12 = ssub.s32 1, %s10
  %s13 = scalar_select 0, %s12, %s10
  // Predicated region
  $region2: #{distill_wrapper_forward.5} parent=0 // pred_check
    _
  $region3: #{distill_wrapper_forward.5} parent=0 // pred_check_branch
    %15 = sbr.rel (0) target = $region5
  $region4: #{distill_wrapper_forward.5} parent=0 // pred_region
    _
  $region5: #{distill_wrapper_forward.5} parent=0 // pred_fallthru
    _
  // Predicated region
  $region6: #{distill_wrapper_forward.5} parent=0 // pred_check
    _
  $region7: #{distill_wrapper_forward.5} parent=0 // pred_check_branch
    %17 = sbr.rel (0) target = $region9
  $region8: #{distill_wrapper_forward.5} parent=0 // pred_region
    _
  $region9: #{distill_wrapper_forward.5} parent=0 // pred_fallthru
    _
  // Predicated region
  $region10: #{distill_wrapper_forward.5} parent=0 // pred_check
    _
  $region11: #{distill_wrapper_forward.5} parent=0 // pred_check_branch
    %19 = sbr.rel (0) target = $region13
  $region12: #{distill_wrapper_forward.5} parent=0 // pred_region
    _
  $region13: #{distill_wrapper_forward.5} parent=0 // pred_fallthru
    _
  // Predicated region
  $region14: #{distill_wrapper_forward.5} parent=0 // pred_check
    _
  $region15: #{distill_wrapper_forward.5} parent=0 // pred_check_branch
    %21 = sbr.rel (0) target = $region17
  $region16: #{distill_wrapper_forward.5} parent=0 // pred_region
    _
  $region17: #{distill_wrapper_forward.5} parent=0 // pred_fallthru
    _
  // Predicated region
  $region18: #{distill_wrapper_forward.5} parent=0 // pred_check
    _
  $region19: #{distill_wrapper_forward.5} parent=0 // pred_check_branch
    %23 = sbr.rel (0) target = $region21
  $region20: #{distill_wrapper_forward.5} parent=0 // pred_region
    _
  $region21: #{distill_wrapper_forward.5} parent=0 // pred_fallthru
    _
  // Predicated region
  $region22: #{distill_wrapper_forward.5} parent=0 // pred_check
    _
  $region23: #{distill_wrapper_forward.5} parent=0 // pred_check_branch
    %25 = sbr.rel (0) target = $region25
  $region24: #{distill_wrapper_forward.5} parent=0 // pred_region
    _
  $region25: #{distill_wrapper_forward.5} parent=0 // pred_fallthru
    _
  // Predicated region
  $region26: #{distill_wrapper_forward.5} parent=0 // pred_check
    _
  $region27: #{distill_wrapper_forward.5} parent=0 // pred_check_branch
    %27 = sbr.rel (0) target = $region29
  $region28: #{distill_wrapper_forward.5} parent=0 // pred_region
    _
  $region29: #{distill_wrapper_forward.5} parent=0 // pred_fallthru
    _
  // Predicated region
  $region30: #{distill_wrapper_forward.5} parent=0 // pred_check
    _
  $region31: #{distill_wrapper_forward.5} parent=0 // pred_check_branch
    %29 = sbr.rel (0) target = $region33
  $region32: #{distill_wrapper_forward.5} parent=0 // pred_region
    _
  $region33: #{distill_wrapper_forward.5} parent=0 // pred_fallthru
    _
  // Predicated region
  $region34: #{distill_wrapper_forward.5} parent=0 // pred_check
    _
  $region35: #{distill_wrapper_forward.5} parent=0 // pred_check_branch
    %31 = sbr.rel (0) target = $region37
  $region36: #{distill_wrapper_forward.5} parent=0 // pred_region
    _
  $region37: #{distill_wrapper_forward.5} parent=0 // pred_fallthru
    _
  %v33 = vld [vmem:[%s7] sm:$0x1f]
  %v34 = vld [vmem:[%s8] sm:$0x1]
  %v35 = vadd.f32 %v34, %v33
  %v36 = vld [vmem:[%s3] sm:$0xf]
  %v37 = vld [vmem:[%s3 + $0x4] sm:$0xf]
  %v38 = vld [vmem:[%s3 + $0x8] sm:$0xf]
  %v39 = vld [vmem:[%s3 + $0xc] sm:$0xf]
  %v40 = vld [vmem:[%s3 + $0x10] sm:$0xf]
  %v41 = vld [vmem:[%s3 + $0x14] sm:$0xf]
  %v42 = vld [vmem:[%s3 + $0x18] sm:$0xf]
  %v43 = vld [vmem:[%s3 + $0x1c] sm:$0xf]
  %v44 = vld [vmem:[%s3 + $0x20] sm:$0xf]
  %v45 = vld [vmem:[%s3 + $0x24] sm:$0xf]
  %v46 = vld [vmem:[%s3 + $0x28] sm:$0xf]
  %v47 = vld [vmem:[%s3 + $0x2c] sm:$0xf]
  %v48 = vld [vmem:[%s3 + $0x30] sm:$0xf]
  %v49 = vld [vmem:[%s3 + $0x34] sm:$0xf]
  %v50 = vld [vmem:[%s3 + $0x38] sm:$0xf]
  %v51 = vld [vmem:[%s3 + $0x3c] sm:$0xf]
  %v52 = vld [vmem:[%s3 + $0x40] sm:$0xf]
  %v53 = vld [vmem:[%s3 + $0x44] sm:$0xf]
  %v54 = vld [vmem:[%s3 + $0x48] sm:$0xf]
  %v55 = vld [vmem:[%s3 + $0x4c] sm:$0xf]
  %v56 = vld [vmem:[%s3 + $0x50] sm:$0xf]
  %v57 = vld [vmem:[%s3 + $0x54] sm:$0xf]
  %v58 = vld [vmem:[%s3 + $0x58] sm:$0xf]
  %v59 = vld [vmem:[%s3 + $0x5c] sm:$0xf]
  %v60 = vld [vmem:[%s4] sm:$0x1]
  %v61 = vld [vmem:[%s1] sm:$0x3]
  %v62 = vld [vmem:[%s2] sm:$0x3]
  %v63 = vld [vmem:[%s5] sm:$0x1]
  %v64 = vld [vmem:[%s6] sm:$0x1]
  %v65 = vld [vmem:[%s0] sm:$0xff]
  %v67 = vcombine.high %v65, %v65
  %vm69 = vcmask 1043456
  %v70 = vsel %vm69, %v65, 0.0
  %vm71 = vcmask 519168
  %v72 = vsel %vm71, %v67, 0.0
  %v73 = vadd.f32 %v70, %v72
  %74 = vadd.xlane.f32.xlu0 %v73
  %v75 = vpop.xlane.xlu0 %74
  %v76 = vrcp.pop 192.0
  %v77 = vmul.f32 %v75, %v76
  %v80 = vunpack.c.l.s4 839922192
  %v81 = vunpack.c.0.s8 %v80
  %v82 = vlaneseq
  %v83 = vshrl.u32 %v82, 7
  %v84 = vsub.s32 %v81, %v83
  %v85 = vrot.slane %v77, %v84
  %v87 = vsub.f32 %v65, %v85
  %v88 = vmul.f32 %v87, %v87
  %v90 = vcombine.high %v88, %v88
  %v92 = vsel %vm69, %v88, 0.0
  %v93 = vsel %vm71, %v90, 0.0
  %v94 = vadd.f32 %v92, %v93
  %95 = vadd.xlane.f32.xlu0 %v94
  %v96 = vpop.xlane.xlu0 %95
  %v97 = vmul.f32 %v96, %v76
  %v98 = vadd.f32 %v97, 1e-05
  %v99 = vrsqrt.pop %v98
  %v102 = vunpack.c.l.s4 839922192
  %v103 = vunpack.c.0.s8 %v102
  %v104 = vlaneseq
  %v105 = vshrl.u32 %v104, 7
  %v106 = vsub.s32 %v103, %v105
  %v107 = vrot.slane %v99, %v106
  %v109 = vmul.f32 %v87, %v107
  %v111 = vlaneseq
  %v112 = vshrl.u32 %v111, 7
  %v113 = vsub.s32 0, %v112
  %v114 = vrot.slane %v61, %v113
  %v115 = vlaneseq
  %v116 = vshrl.u32 %v115, 7
  %v117 = vsub.s32 1, %v116
  %v118 = vrot.slane %v61, %v117
  %v119 = vcombine.low %v114, %v118
  %v121 = vmul.f32 %v109, %v119
  %v123 = vlaneseq
  %v124 = vshrl.u32 %v123, 7
  %v125 = vsub.s32 0, %v124
  %v126 = vrot.slane %v62, %v125
  %v127 = vlaneseq
  %v128 = vshrl.u32 %v127, 7
  %v129 = vsub.s32 1, %v128
  %v130 = vrot.slane %v62, %v129
  %v131 = vcombine.low %v126, %v130
  %v133 = vadd.f32 %v121, %v131
  %v135 = vcombine.high %v133, %v133
  %v137 = vpack.c.bf16 %v133, %v133
  %v138 = vpack.c.bf16 %v135, %v135
  %v140 = vlaneseq
  %v141 = vshrl.u32 %v140, 7
  %v142 = vsub.s32 0, %v141
  %v143 = vrot.slane %v60, %v142
  %v169 = vunpack.c.l.b16 %v36
  %v170 = vunpack.c.l.b16 %v37
  %v171 = vunpack.c.l.b16 %v38
  %v172 = vunpack.c.l.b16 %v39
  %v173 = vunpack.c.l.b16 %v40
  %v174 = vunpack.c.l.b16 %v41
  %v175 = vunpack.c.l.b16 %v42
  %v176 = vunpack.c.l.b16 %v43
  %v177 = vunpack.c.l.b16 %v44
  %v178 = vunpack.c.l.b16 %v45
  %v179 = vunpack.c.l.b16 %v46
  %v180 = vunpack.c.l.b16 %v47
  %v181 = vunpack.c.l.b16 %v48
  %v182 = vunpack.c.l.b16 %v49
  %v183 = vunpack.c.l.b16 %v50
  %v184 = vunpack.c.l.b16 %v51
  %v185 = vunpack.c.l.b16 %v52
  %v186 = vunpack.c.l.b16 %v53
  %v187 = vunpack.c.l.b16 %v54
  %v188 = vunpack.c.l.b16 %v55
  %v189 = vunpack.c.l.b16 %v56
  %v190 = vunpack.c.l.b16 %v57
  %v191 = vunpack.c.l.b16 %v58
  %v192 = vunpack.c.l.b16 %v59
  %v193 = vpack.c.b16 %v170, %v169
  %v194 = vpack.c.b16 %v172, %v171
  %v195 = vpack.c.b16 %v174, %v173
  %v196 = vpack.c.b16 %v176, %v175
  %v197 = vpack.c.b16 %v178, %v177
  %v198 = vpack.c.b16 %v180, %v179
  %v199 = vpack.c.b16 %v182, %v181
  %v200 = vpack.c.b16 %v184, %v183
  %v201 = vpack.c.b16 %v186, %v185
  %v202 = vpack.c.b16 %v188, %v187
  %v203 = vpack.c.b16 %v190, %v189
  %v204 = vpack.c.b16 %v192, %v191
  %vm217 = vcmask 523264
  %v219 = vsel %vm217, %v138, 0
  %221 = vmatprep.subr.bf16.mxu0 0
  %222 = vmatpush1.bf16.msra.mxu0 %v193
  %223 = vmatprep.subr.bf16.mxu0 0
  %224 = vmatpush1.bf16.msra.mxu0 %v194
  %225 = vmatprep.subr.bf16.mxu0 0
  %226 = vmatpush1.bf16.msra.mxu0 %v195
  %227 = vmatprep.subr.bf16.mxu0 0
  %228 = vmatpush1.bf16.msra.mxu0 %v196
  %229 = vmatprep.subr.bf16.mxu0 0
  %230 = vmatpush1.bf16.msra.mxu0 %v197
  %231 = vmatprep.subr.bf16.mxu0 0
  %232 = vmatpush1.bf16.msra.mxu0 %v198
  %233 = vmatprep.subr.bf16.mxu0 0
  %234 = vmatpush1.bf16.msra.mxu0 %v199
  %235 = vmatprep.subr.bf16.mxu0 0
  %236 = vmatpush1.bf16.msra.mxu0 %v200
  %237 = vmatprep.subr.bf16.mxu0 0
  %238 = vmatpush1.bf16.msra.mxu0 %v201
  %239 = vmatprep.subr.bf16.mxu0 0
  %240 = vmatpush1.bf16.msra.mxu0 %v202
  %241 = vmatprep.subr.bf16.mxu0 0
  %242 = vmatpush1.bf16.msra.mxu0 %v203
  %243 = vmatprep.subr.bf16.mxu0 0
  %244 = vmatpush1.bf16.msra.mxu0 %v204
  %245 = vmatprep.subr.bf16.mxu0 0
  %246 = vmatpush1.bf16.msra.mxu0 0
  %247 = vmatprep.subr.bf16.mxu0 0
  %248 = vmatpush1.bf16.msra.mxu0 0
  %249 = vmatprep.subr.bf16.mxu0 0
  %250 = vmatpush1.bf16.msra.mxu0 0
  %251 = vmatprep.subr.bf16.mxu0 0
  %252 = vmatpush1.bf16.msra.mxu0 0
  %253 = vmatprep.mubr.bf16.mxu0 %v219
  %254 = vmatmul.mubr.bf16.gmra.mrb[0].mxu0 %v137
  %v255 = vpop.f32.mrb[0].mxu0
  %v256 = vadd.f32 %v143, %v255
  %v257 = vpop.f32.mrb[0].mxu0
  %v258 = vpop.f32.mrb[0].mxu0
  %v259 = vpop.f32.mrb[0].mxu0
  %260 = vdwg.mxu0
  %vm261 = vcmask 257024
  %v262 = vsel %vm261, %v256, 0.0
  %263 = vadd.xlane.f32.xlu0 %v262
  %v264 = vpop.xlane.xlu0 %263
  %v265 = vrcp.pop 32.0
  %v266 = vmul.f32 %v264, %v265
  %v267 = vsub.f32 %v256, %v266
  %v268 = vmul.f32 %v267, %v267
  %v269 = vsel %vm261, %v268, 0.0
  %270 = vadd.xlane.f32.xlu0 %v269
  %v271 = vpop.xlane.xlu0 %270
  %v272 = vmul.f32 %v271, %v265
  %v273 = vadd.f32 %v272, 1e-05
  %v274 = vrsqrt.pop %v273
  %v275 = vmul.f32 %v267, %v274
  %v277 = vlaneseq
  %v278 = vshrl.u32 %v277, 7
  %v279 = vsub.s32 0, %v278
  %v280 = vrot.slane %v63, %v279
  %v282 = vmul.f32 %v275, %v280
  %v284 = vlaneseq
  %v285 = vshrl.u32 %v284, 7
  %v286 = vsub.s32 0, %v285
  %v287 = vrot.slane %v64, %v286
  %v289 = vadd.f32 %v282, %v287
  %vm290 = vcmask 253952
  %291 = vst.msk [vmem:[%s9] sm:$0x1] %vm290, %v35
  %v293 = vrot.slane %v33, 1
  %v295 = vadd.f32 %v289, %v293
  %296 = vst.msk [vmem:[%s9 + $0x1] sm:$0xf] %vm261, %v295
  %s297 = scalar_lea.vmem %s0, 8
  %v298 = vld [vmem:[%s297] sm:$0xff]
  %v300 = vcombine.high %v298, %v298
  %v302 = vsel %vm69, %v298, 0.0
  %v303 = vsel %vm71, %v300, 0.0
  %v304 = vadd.f32 %v302, %v303
  %305 = vadd.xlane.f32.xlu0 %v304
  %v306 = vpop.xlane.xlu0 %305
  %v307 = vmul.f32 %v306, %v76
  %v310 = vunpack.c.l.s4 839922192
  %v311 = vunpack.c.0.s8 %v310
  %v312 = vlaneseq
  %v313 = vshrl.u32 %v312, 7
  %v314 = vsub.s32 %v311, %v313
  %v315 = vrot.slane %v307, %v314
  %v317 = vsub.f32 %v298, %v315
  %v318 = vmul.f32 %v317, %v317
  %v320 = vcombine.high %v318, %v318
  %v322 = vsel %vm69, %v318, 0.0
  %v323 = vsel %vm71, %v320, 0.0
  %v324 = vadd.f32 %v322, %v323
  %325 = vadd.xlane.f32.xlu0 %v324
  %v326 = vpop.xlane.xlu0 %325
  %v327 = vmul.f32 %v326, %v76
  %v328 = vadd.f32 %v327, 1e-05
  %v329 = vrsqrt.pop %v328
  %v332 = vunpack.c.l.s4 839922192
  %v333 = vunpack.c.0.s8 %v332
  %v334 = vlaneseq
  %v335 = vshrl.u32 %v334, 7
  %v336 = vsub.s32 %v333, %v335
  %v337 = vrot.slane %v329, %v336
  %v339 = vmul.f32 %v317, %v337
  %v340 = vmul.f32 %v339, %v119
  %v341 = vadd.f32 %v340, %v131
  %v343 = vcombine.high %v341, %v341
  %v345 = vpack.c.bf16 %v341, %v341
  %v346 = vpack.c.bf16 %v343, %v343
  %v348 = vsel %vm217, %v346, 0
  %350 = vmatprep.subr.bf16.mxu0 0
  %351 = vmatpush1.bf16.msra.mxu0 %v193
  %352 = vmatprep.subr.bf16.mxu0 0
  %353 = vmatpush1.bf16.msra.mxu0 %v194
  %354 = vmatprep.subr.bf16.mxu0 0
  %355 = vmatpush1.bf16.msra.mxu0 %v195
  %356 = vmatprep.subr.bf16.mxu0 0
  %357 = vmatpush1.bf16.msra.mxu0 %v196
  %358 = vmatprep.subr.bf16.mxu0 0
  %359 = vmatpush1.bf16.msra.mxu0 %v197
  %360 = vmatprep.subr.bf16.mxu0 0
  %361 = vmatpush1.bf16.msra.mxu0 %v198
  %362 = vmatprep.subr.bf16.mxu0 0
  %363 = vmatpush1.bf16.msra.mxu0 %v199
  %364 = vmatprep.subr.bf16.mxu0 0
  %365 = vmatpush1.bf16.msra.mxu0 %v200
  %366 = vmatprep.subr.bf16.mxu0 0
  %367 = vmatpush1.bf16.msra.mxu0 %v201
  %368 = vmatprep.subr.bf16.mxu0 0
  %369 = vmatpush1.bf16.msra.mxu0 %v202
  %370 = vmatprep.subr.bf16.mxu0 0
  %371 = vmatpush1.bf16.msra.mxu0 %v203
  %372 = vmatprep.subr.bf16.mxu0 0
  %373 = vmatpush1.bf16.msra.mxu0 %v204
  %374 = vmatprep.subr.bf16.mxu0 0
  %375 = vmatpush1.bf16.msra.mxu0 0
  %376 = vmatprep.subr.bf16.mxu0 0
  %377 = vmatpush1.bf16.msra.mxu0 0
  %378 = vmatprep.subr.bf16.mxu0 0
  %379 = vmatpush1.bf16.msra.mxu0 0
  %380 = vmatprep.subr.bf16.mxu0 0
  %381 = vmatpush1.bf16.msra.mxu0 0
  %382 = vmatprep.mubr.bf16.mxu0 %v348
  %383 = vmatmul.mubr.bf16.gmra.mrb[0].mxu0 %v345
  %v384 = vpop.f32.mrb[0].mxu0
  %v385 = vadd.f32 %v143, %v384
  %v386 = vpop.f32.mrb[0].mxu0
  %v387 = vpop.f32.mrb[0].mxu0
  %v388 = vpop.f32.mrb[0].mxu0
  %389 = vdwg.mxu0
  %v390 = vsel %vm261, %v385, 0.0
  %391 = vadd.xlane.f32.xlu0 %v390
  %v392 = vpop.xlane.xlu0 %391
  %v393 = vmul.f32 %v392, %v265
  %v394 = vsub.f32 %v385, %v393
  %v395 = vmul.f32 %v394, %v394
  %v396 = vsel %vm261, %v395, 0.0
  %397 = vadd.xlane.f32.xlu0 %v396
  %v398 = vpop.xlane.xlu0 %397
  %v399 = vmul.f32 %v398, %v265
  %v400 = vadd.f32 %v399, 1e-05
  %v401 = vrsqrt.pop %v400
  %v402 = vmul.f32 %v394, %v401
  %v403 = vmul.f32 %v402, %v280
  %v404 = vadd.f32 %v403, %v287
  %s405 = scalar_lea.vmem %s9, 8
  %406 = vst.msk [vmem:[%s405] sm:$0x1] %vm290, %v35
  %v407 = vadd.f32 %v404, %v293
  %408 = vst.msk [vmem:[%s405 + $0x1] sm:$0xf] %vm261, %v407
  // Predicated region
  $region38: #{distill_wrapper_forward.5} parent=0 // pred_check
    _
  $region39: #{distill_wrapper_forward.5} parent=0 // pred_check_branch
    %410 = sbr.rel (0) target = $region41
  $region40: #{distill_wrapper_forward.5} parent=0 // pred_region
    _
  $region41: #{distill_wrapper_forward.5} parent=0 // pred_fallthru
    _
  // Predicated region
  $region42: #{distill_wrapper_forward.5} parent=0 // pred_check
    _
  $region43: #{distill_wrapper_forward.5} parent=0 // pred_check_branch
    %412 = sbr.rel (0) target = $region45
  $region44: #{distill_wrapper_forward.5} parent=0 // pred_region
    _
  $region45: #{distill_wrapper_forward.5} parent=0 // pred_fallthru
    _

// kernel: distill_wrapper_forward.6
$region0: #{distill_wrapper_forward.6}
  #allocation0 [shape = 'u32[]', space=smem, size = 0x4, offset = 0x4, fixed_abs, tag = 'smem constant byte address 0x4 - core index']
  #allocation1 [shape = 'u32[144,128]{1,0:T(1,128)}', space=vmem, size = 0x12000, scoped, tag = 'internal scratch']
  %s0 = inlined_call_operand.vmem [shape: f32[2,5,32], index: 0, kind: input, shape index: {}]
  %s1 = inlined_call_operand.vmem [shape: f32[2,1,32], index: 1, kind: input, shape index: {}]
  %s2 = inlined_call_operand.vmem [shape: f32[2,1,32], index: 2, kind: input, shape index: {}]
  %s3 = inlined_call_operand.vmem [shape: bf16[2,32,96], index: 3, kind: input, shape index: {}]
  %s4 = inlined_call_operand.vmem [shape: bf16[2,32,32], index: 4, kind: input, shape index: {}]
  %s5 = inlined_call_operand.vmem [shape: f32[2,1,32], index: 5, kind: input, shape index: {}]
  %s6 = inlined_call_operand.vmem [shape: f32[2,1,32], index: 6, kind: input, shape index: {}]
  %s7 = inlined_call_operand.vmem [shape: f32[2,1,32], index: 7, kind: input, shape index: {}]
  %s8 = inlined_call_operand.vmem [shape: bf16[2,32,64], index: 8, kind: input, shape index: {}]
  %s9 = inlined_call_operand.vmem [shape: f32[2,1,64], index: 9, kind: input, shape index: {}]
  %s10 = inlined_call_operand.vmem [shape: bf16[2,64,32], index: 10, kind: input, shape index: {}]
  %s11 = inlined_call_operand.vmem [shape: f32[2,1,32], index: 11, kind: input, shape index: {}]
  %s12 = inlined_call_operand.vmem [shape: f32[2,5,32], index: 12, kind: output, shape index: {}]
  %s13 = sld [smem:[#allocation0]]
  $region85: #{distill_wrapper_forward.6} parent=0
    _
  %s15 = ssub.s32 1, %s13
  %s16 = scalar_select 0, %s15, %s13
  loop: start=0, step=1, limit=4
  $region2: #{distill_wrapper_forward.6} parent=0 // loop_pre_header
    _
  $region3: #{distill_wrapper_forward.6} parent=0 // loop_header
    %s18 = sphi 0, %s22
    %p19 = scmp.ge.s32.totalorder %s18, 4
    %s25 = sphi 0, %s37
    %s26 = sphi 0, %s33
    %s27 = sphi 0, %s25
    %s28 = sphi 0, %s26
    %s29 = sphi 0, %s27
    %s30 = sphi 0, %s28
    %s40 = sphi 0, %s42
    %s43 = sphi 0, %s40
    %s44 = sphi 0, %s43
    %s60 = sphi 0, %s44
    %s66 = sphi 0, %s68
    %s69 = sphi 0, %s66
    %s70 = sphi 0, %s69
    %s86 = sphi 0, %s70
    %s92 = sphi 0, %s94
    %s95 = sphi 0, %s92
    %s96 = sphi 0, %s95
    %s112 = sphi 0, %s96
    %s118 = sphi 0, %s120
    %s121 = sphi 0, %s118
    %s122 = sphi 0, %s121
    %s138 = sphi 0, %s122
    %s144 = sphi 0, %s146
    %s147 = sphi 0, %s144
    %s148 = sphi 0, %s147
    %s164 = sphi 0, %s148
    %s170 = sphi 0, %s172
    %s173 = sphi 0, %s170
    %s174 = sphi 0, %s173
    %s190 = sphi 0, %s174
    %s196 = sphi 0, %s198
    %s199 = sphi 0, %s196
    %s200 = sphi 0, %s199
    %s216 = sphi 0, %s200
    %s222 = sphi 0, %s224
    %s225 = sphi 0, %s222
    %s226 = sphi 0, %s225
    %s242 = sphi 0, %s226
    %s248 = sphi 0, %s250
    %s251 = sphi 0, %s248
    %s252 = sphi 0, %s251
    %s268 = sphi 0, %s252
    %s274 = sphi 0, %s276
    %s277 = sphi 0, %s274
    %s278 = sphi 0, %s277
    %s294 = sphi 0, %s278
    %s300 = sphi 0, %s302
    %s303 = sphi 0, %s300
    %s304 = sphi 0, %s303
    %s320 = sphi 0, %s304
    %s326 = sphi 0, %s328
    %s329 = sphi 0, %s326
    %s330 = sphi 0, %s329
    %s346 = sphi 0, %s330
    %s352 = sphi 0, %s354
    %s355 = sphi 0, %s352
    %s356 = sphi 0, %s355
    %s372 = sphi 0, %s356
  $region4: #{distill_wrapper_forward.6} parent=0 // loop_header_branch
    %21 = sbr.rel (%p19) target = $region8
  $region5: #{distill_wrapper_forward.6} parent=0 // loop_body
    %s23 = ssub.s32 %s18, 1
    %s24 = ssub.s32 %s18, 2
    %s31 = sadd.s32 1, %s26
    %p32 = scmp.ge.s32.totalorder %s31, 2
    %s33 = scalar_select %p32, 0, %s31
    %s34 = sadd.s32 1, %s25
    %s35 = scalar_select %p32, %s34, %s25
    %p36 = scmp.ge.s32.totalorder %s35, 1
    %s37 = scalar_select %p36, 0, %s35
    %s38 = ssub.s32 %s25, %s37
    %p39 = scmp.eq.s32.totalorder %s38, 0
    %s41 = sadd.s32 %s40, 1
    %s42 = scalar_select %p39, %s40, %s41
    %p45 = pneg %p39
    %p46 = scmp.eq.s32.totalorder %s18, 1
    %p47 = por %p45, %p46
    %p48 = scmp.ne.s32.totalorder %s40, %s43
    %p49 = scmp.eq.s32.totalorder %s18, 0
    %p50 = por %p48, %p49
    %p51 = scmp.ne.s32.totalorder %s40, %s43
    %p52 = scmp.eq.s32.totalorder %s23, 1
    %p53 = por %p51, %p52
    %p54 = scmp.ne.s32.totalorder %s43, %s44
    %p55 = scmp.eq.s32.totalorder %s23, 0
    %p56 = por %p54, %p55
    %p57 = scmp.ne.s32.totalorder %s43, %s44
    %p58 = scmp.eq.s32.totalorder %s24, 1
    %p59 = por %p57, %p58
    %p61 = scmp.ne.s32.totalorder %s44, %s60
    %p62 = scmp.eq.s32.totalorder %s24, 0
    %p63 = por %p61, %p62
    %s64 = ssub.s32 %s26, %s33
    %p65 = scmp.eq.s32.totalorder %s64, 0
    %s67 = sadd.s32 %s66, 1
    %s68 = scalar_select %p65, %s66, %s67
    %p71 = pneg %p65
    %p72 = scmp.eq.s32.totalorder %s18, 1
    %p73 = por %p71, %p72
    %p74 = scmp.ne.s32.totalorder %s66, %s69
    %p75 = scmp.eq.s32.totalorder %s18, 0
    %p76 = por %p74, %p75
    %p77 = scmp.ne.s32.totalorder %s66, %s69
    %p78 = scmp.eq.s32.totalorder %s23, 1
    %p79 = por %p77, %p78
    %p80 = scmp.ne.s32.totalorder %s69, %s70
    %p81 = scmp.eq.s32.totalorder %s23, 0
    %p82 = por %p80, %p81
    %p83 = scmp.ne.s32.totalorder %s69, %s70
    %p84 = scmp.eq.s32.totalorder %s24, 1
    %p85 = por %p83, %p84
    %p87 = scmp.ne.s32.totalorder %s70, %s86
    %p88 = scmp.eq.s32.totalorder %s24, 0
    %p89 = por %p87, %p88
    %s90 = ssub.s32 %s26, %s33
    %p91 = scmp.eq.s32.totalorder %s90, 0
    %s93 = sadd.s32 %s92, 1
    %s94 = scalar_select %p91, %s92, %s93
    %p97 = pneg %p91
    %p98 = scmp.eq.s32.totalorder %s18, 1
    %p99 = por %p97, %p98
    %p100 = scmp.ne.s32.totalorder %s92, %s95
    %p101 = scmp.eq.s32.totalorder %s18, 0
    %p102 = por %p100, %p101
    %p103 = scmp.ne.s32.totalorder %s92, %s95
    %p104 = scmp.eq.s32.totalorder %s23, 1
    %p105 = por %p103, %p104
    %p106 = scmp.ne.s32.totalorder %s95, %s96
    %p107 = scmp.eq.s32.totalorder %s23, 0
    %p108 = por %p106, %p107
    %p109 = scmp.ne.s32.totalorder %s95, %s96
    %p110 = scmp.eq.s32.totalorder %s24, 1
    %p111 = por %p109, %p110
    %p113 = scmp.ne.s32.totalorder %s96, %s112
    %p114 = scmp.eq.s32.totalorder %s24, 0
    %p115 = por %p113, %p114
    %s116 = ssub.s32 %s26, %s33
    %p117 = scmp.eq.s32.totalorder %s116, 0
    %s119 = sadd.s32 %s118, 1
    %s120 = scalar_select %p117, %s118, %s119
    %p123 = pneg %p117
    %p124 = scmp.eq.s32.totalorder %s18, 1
    %p125 = por %p123, %p124
    %p126 = scmp.ne.s32.totalorder %s118, %s121
    %p127 = scmp.eq.s32.totalorder %s18, 0
    %p128 = por %p126, %p127
    %p129 = scmp.ne.s32.totalorder %s118, %s121
    %p130 = scmp.eq.s32.totalorder %s23, 1
    %p131 = por %p129, %p130
    %p132 = scmp.ne.s32.totalorder %s121, %s122
    %p133 = scmp.eq.s32.totalorder %s23, 0
    %p134 = por %p132, %p133
    %p135 = scmp.ne.s32.totalorder %s121, %s122
    %p136 = scmp.eq.s32.totalorder %s24, 1
    %p137 = por %p135, %p136
    %p139 = scmp.ne.s32.totalorder %s122, %s138
    %p140 = scmp.eq.s32.totalorder %s24, 0
    %p141 = por %p139, %p140
    %s142 = ssub.s32 %s26, %s33
    %p143 = scmp.eq.s32.totalorder %s142, 0
    %s145 = sadd.s32 %s144, 1
    %s146 = scalar_select %p143, %s144, %s145
    %p149 = pneg %p143
    %p150 = scmp.eq.s32.totalorder %s18, 1
    %p151 = por %p149, %p150
    %p152 = scmp.ne.s32.totalorder %s144, %s147
    %p153 = scmp.eq.s32.totalorder %s18, 0
    %p154 = por %p152, %p153
    %p155 = scmp.ne.s32.totalorder %s144, %s147
    %p156 = scmp.eq.s32.totalorder %s23, 1
    %p157 = por %p155, %p156
    %p158 = scmp.ne.s32.totalorder %s147, %s148
    %p159 = scmp.eq.s32.totalorder %s23, 0
    %p160 = por %p158, %p159
    %p161 = scmp.ne.s32.totalorder %s147, %s148
    %p162 = scmp.eq.s32.totalorder %s24, 1
    %p163 = por %p161, %p162
    %p165 = scmp.ne.s32.totalorder %s148, %s164
    %p166 = scmp.eq.s32.totalorder %s24, 0
    %p167 = por %p165, %p166
    %s168 = ssub.s32 %s26, %s33
    %p169 = scmp.eq.s32.totalorder %s168, 0
    %s171 = sadd.s32 %s170, 1
    %s172 = scalar_select %p169, %s170, %s171
    %p175 = pneg %p169
    %p176 = scmp.eq.s32.totalorder %s18, 1
    %p177 = por %p175, %p176
    %p178 = scmp.ne.s32.totalorder %s170, %s173
    %p179 = scmp.eq.s32.totalorder %s18, 0
    %p180 = por %p178, %p179
    %p181 = scmp.ne.s32.totalorder %s170, %s173
    %p182 = scmp.eq.s32.totalorder %s23, 1
    %p183 = por %p181, %p182
    %p184 = scmp.ne.s32.totalorder %s173, %s174
    %p185 = scmp.eq.s32.totalorder %s23, 0
    %p186 = por %p184, %p185
    %p187 = scmp.ne.s32.totalorder %s173, %s174
    %p188 = scmp.eq.s32.totalorder %s24, 1
    %p189 = por %p187, %p188
    %p191 = scmp.ne.s32.totalorder %s174, %s190
    %p192 = scmp.eq.s32.totalorder %s24, 0
    %p193 = por %p191, %p192
    %s194 = ssub.s32 %s26, %s33
    %p195 = scmp.eq.s32.totalorder %s194, 0
    %s197 = sadd.s32 %s196, 1
    %s198 = scalar_select %p195, %s196, %s197
    %p201 = pneg %p195
    %p202 = scmp.eq.s32.totalorder %s18, 1
    %p203 = por %p201, %p202
    %p204 = scmp.ne.s32.totalorder %s196, %s199
    %p205 = scmp.eq.s32.totalorder %s18, 0
    %p206 = por %p204, %p205
    %p207 = scmp.ne.s32.totalorder %s196, %s199
    %p208 = scmp.eq.s32.totalorder %s23, 1
    %p209 = por %p207, %p208
    %p210 = scmp.ne.s32.totalorder %s199, %s200
    %p211 = scmp.eq.s32.totalorder %s23, 0
    %p212 = por %p210, %p211
    %p213 = scmp.ne.s32.totalorder %s199, %s200
    %p214 = scmp.eq.s32.totalorder %s24, 1
    %p215 = por %p213, %p214
    %p217 = scmp.ne.s32.totalorder %s200, %s216
    %p218 = scmp.eq.s32.totalorder %s24, 0
    %p219 = por %p217, %p218
    %s220 = ssub.s32 %s26, %s33
    %p221 = scmp.eq.s32.totalorder %s220, 0
    %s223 = sadd.s32 %s222, 1
    %s224 = scalar_select %p221, %s222, %s223
    %p227 = pneg %p221
    %p228 = scmp.eq.s32.totalorder %s18, 1
    %p229 = por %p227, %p228
    %p230 = scmp.ne.s32.totalorder %s222, %s225
    %p231 = scmp.eq.s32.totalorder %s18, 0
    %p232 = por %p230, %p231
    %p233 = scmp.ne.s32.totalorder %s222, %s225
    %p234 = scmp.eq.s32.totalorder %s23, 1
    %p235 = por %p233, %p234
    %p236 = scmp.ne.s32.totalorder %s225, %s226
    %p237 = scmp.eq.s32.totalorder %s23, 0
    %p238 = por %p236, %p237
    %p239 = scmp.ne.s32.totalorder %s225, %s226
    %p240 = scmp.eq.s32.totalorder %s24, 1
    %p241 = por %p239, %p240
    %p243 = scmp.ne.s32.totalorder %s226, %s242
    %p244 = scmp.eq.s32.totalorder %s24, 0
    %p245 = por %p243, %p244
    %s246 = ssub.s32 %s26, %s33
    %p247 = scmp.eq.s32.totalorder %s246, 0
    %s249 = sadd.s32 %s248, 1
    %s250 = scalar_select %p247, %s248, %s249
    %p253 = pneg %p247
    %p254 = scmp.eq.s32.totalorder %s18, 1
    %p255 = por %p253, %p254
    %p256 = scmp.ne.s32.totalorder %s248, %s251
    %p257 = scmp.eq.s32.totalorder %s18, 0
    %p258 = por %p256, %p257
    %p259 = scmp.ne.s32.totalorder %s248, %s251
    %p260 = scmp.eq.s32.totalorder %s23, 1
    %p261 = por %p259, %p260
    %p262 = scmp.ne.s32.totalorder %s251, %s252
    %p263 = scmp.eq.s32.totalorder %s23, 0
    %p264 = por %p262, %p263
    %p265 = scmp.ne.s32.totalorder %s251, %s252
    %p266 = scmp.eq.s32.totalorder %s24, 1
    %p267 = por %p265, %p266
    %p269 = scmp.ne.s32.totalorder %s252, %s268
    %p270 = scmp.eq.s32.totalorder %s24, 0
    %p271 = por %p269, %p270
    %s272 = ssub.s32 %s26, %s33
    %p273 = scmp.eq.s32.totalorder %s272, 0
    %s275 = sadd.s32 %s274, 1
    %s276 = scalar_select %p273, %s274, %s275
    %p279 = pneg %p273
    %p280 = scmp.eq.s32.totalorder %s18, 1
    %p281 = por %p279, %p280
    %p282 = scmp.ne.s32.totalorder %s274, %s277
    %p283 = scmp.eq.s32.totalorder %s18, 0
    %p284 = por %p282, %p283
    %p285 = scmp.ne.s32.totalorder %s274, %s277
    %p286 = scmp.eq.s32.totalorder %s23, 1
    %p287 = por %p285, %p286
    %p288 = scmp.ne.s32.totalorder %s277, %s278
    %p289 = scmp.eq.s32.totalorder %s23, 0
    %p290 = por %p288, %p289
    %p291 = scmp.ne.s32.totalorder %s277, %s278
    %p292 = scmp.eq.s32.totalorder %s24, 1
    %p293 = por %p291, %p292
    %p295 = scmp.ne.s32.totalorder %s278, %s294
    %p296 = scmp.eq.s32.totalorder %s24, 0
    %p297 = por %p295, %p296
    %s298 = ssub.s32 %s26, %s33
    %p299 = scmp.eq.s32.totalorder %s298, 0
    %s301 = sadd.s32 %s300, 1
    %s302 = scalar_select %p299, %s300, %s301
    %p305 = pneg %p299
    %p306 = scmp.eq.s32.totalorder %s18, 1
    %p307 = por %p305, %p306
    %p308 = scmp.ne.s32.totalorder %s300, %s303
    %p309 = scmp.eq.s32.totalorder %s18, 0
    %p310 = por %p308, %p309
    %p311 = scmp.ne.s32.totalorder %s300, %s303
    %p312 = scmp.eq.s32.totalorder %s23, 1
    %p313 = por %p311, %p312
    %p314 = scmp.ne.s32.totalorder %s303, %s304
    %p315 = scmp.eq.s32.totalorder %s23, 0
    %p316 = por %p314, %p315
    %p317 = scmp.ne.s32.totalorder %s303, %s304
    %p318 = scmp.eq.s32.totalorder %s24, 1
    %p319 = por %p317, %p318
    %p321 = scmp.ne.s32.totalorder %s304, %s320
    %p322 = scmp.eq.s32.totalorder %s24, 0
    %p323 = por %p321, %p322
    %s324 = ssub.s32 %s26, %s33
    %p325 = scmp.eq.s32.totalorder %s324, 0
    %s327 = sadd.s32 %s326, 1
    %s328 = scalar_select %p325, %s326, %s327
    %p331 = pneg %p325
    %p332 = scmp.eq.s32.totalorder %s18, 1
    %p333 = por %p331, %p332
    %p334 = scmp.ne.s32.totalorder %s326, %s329
    %p335 = scmp.eq.s32.totalorder %s18, 0
    %p336 = por %p334, %p335
    %p337 = scmp.ne.s32.totalorder %s326, %s329
    %p338 = scmp.eq.s32.totalorder %s23, 1
    %p339 = por %p337, %p338
    %p340 = scmp.ne.s32.totalorder %s329, %s330
    %p341 = scmp.eq.s32.totalorder %s23, 0
    %p342 = por %p340, %p341
    %p343 = scmp.ne.s32.totalorder %s329, %s330
    %p344 = scmp.eq.s32.totalorder %s24, 1
    %p345 = por %p343, %p344
    %p347 = scmp.ne.s32.totalorder %s330, %s346
    %p348 = scmp.eq.s32.totalorder %s24, 0
    %p349 = por %p347, %p348
    %s350 = ssub.s32 %s25, %s37
    %p351 = scmp.eq.s32.totalorder %s350, 0
    %s353 = sadd.s32 %s352, 1
    %s354 = scalar_select %p351, %s352, %s353
    %p357 = pneg %p351
    %p358 = scmp.eq.s32.totalorder %s18, 1
    %p359 = por %p357, %p358
    %p360 = scmp.ne.s32.totalorder %s352, %s355
    %p361 = scmp.eq.s32.totalorder %s18, 0
    %p362 = por %p360, %p361
    %p363 = scmp.ne.s32.totalorder %s352, %s355
    %p364 = scmp.eq.s32.totalorder %s23, 1
    %p365 = por %p363, %p364
    %p366 = scmp.ne.s32.totalorder %s355, %s356
    %p367 = scmp.eq.s32.totalorder %s23, 0
    %p368 = por %p366, %p367
    %p369 = scmp.ne.s32.totalorder %s355, %s356
    %p370 = scmp.eq.s32.totalorder %s24, 1
    %p371 = por %p369, %p370
    %p373 = scmp.ne.s32.totalorder %s356, %s372
    %p374 = scmp.eq.s32.totalorder %s24, 0
    %p375 = por %p373, %p374
    %p376 = scmp.le.s32.totalorder 1, %s18
    %p377 = scmp.lt.s32.totalorder %s18, 3
    %p378 = pnand %p376, %p377
    %p379 = pneg %p378
    // Predicated region
    $region9: #{distill_wrapper_forward.6} parent=5 // pred_check
      _
    $region10: #{distill_wrapper_forward.6} parent=5 // pred_check_branch
      %381 = sbr.rel (%p378) target = $region12
    $region11: #{distill_wrapper_forward.6} parent=5 // pred_region
      %s382 = ssub.s32 %s18, 1
      // Predicated region
      $region13: #{distill_wrapper_forward.6} parent=11 // pred_check
        %p383 = pneg %p56
      $region14: #{distill_wrapper_forward.6} parent=11 // pred_check_branch
        %385 = sbr.rel (%p383) target = $region16
      $region15: #{distill_wrapper_forward.6} parent=11 // pred_region
        %s386 = smul.u32 2, %s27
        %p387 = scmp.lt.s32.totalorder %s386, 1
        %s388 = scalar_select %p387, %s386, 1
        %s389 = smul.addr %s388, 8
        %s390 = scalar_lea.vmem %s0, %s389
        %s391 = smul.u32 2, %s27
      $region16: #{distill_wrapper_forward.6} parent=11 // pred_fallthru
        _
    $region12: #{distill_wrapper_forward.6} parent=5 // pred_fallthru
      _
    %p392 = scmp.lt.s32.totalorder %s18, 2
    // Predicated region
    $region17: #{distill_wrapper_forward.6} parent=5 // pred_check
      %p393 = pneg %p392
    $region18: #{distill_wrapper_forward.6} parent=5 // pred_check_branch
      %395 = sbr.rel (%p393) target = $region20
    $region19: #{distill_wrapper_forward.6} parent=5 // pred_region
      // Predicated region
      $region21: #{distill_wrapper_forward.6} parent=19 // pred_check
        %p396 = pneg %p76
      $region22: #{distill_wrapper_forward.6} parent=19 // pred_check_branch
        %398 = sbr.rel (%p396) target = $region24
      $region23: #{distill_wrapper_forward.6} parent=19 // pred_region
        %p399 = scmp.lt.s32.totalorder %s26, 1
        %s400 = scalar_select %p399, %s26, 1
        %s401 = scalar_lea.vmem %s1, %s400
      $region24: #{distill_wrapper_forward.6} parent=19 // pred_fallthru
        _
      // Predicated region
      $region25: #{distill_wrapper_forward.6} parent=19 // pred_check
        %p402 = pneg %p102
      $region26: #{distill_wrapper_forward.6} parent=19 // pred_check_branch
        %404 = sbr.rel (%p402) target = $region28
      $region27: #{distill_wrapper_forward.6} parent=19 // pred_region
        %p405 = scmp.lt.s32.totalorder %s26, 1
        %s406 = scalar_select %p405, %s26, 1
        %s407 = scalar_lea.vmem %s2, %s406
      $region28: #{distill_wrapper_forward.6} parent=19 // pred_fallthru
        _
      // Predicated region
      $region29: #{distill_wrapper_forward.6} parent=19 // pred_check
        %p408 = pneg %p128
      $region30: #{distill_wrapper_forward.6} parent=19 // pred_check_branch
        %410 = sbr.rel (%p408) target = $region32
      $region31: #{distill_wrapper_forward.6} parent=19 // pred_region
        %p411 = scmp.lt.s32.totalorder %s26, 1
        %s412 = scalar_select %p411, %s26, 1
        %s413 = smul.addr %s412, 4
        %s414 = smul.addr %s413, 4
        %s415 = scalar_lea.vmem %s3, %s414
      $region32: #{distill_wrapper_forward.6} parent=19 // pred_fallthru
        _
      // Predicated region
      $region33: #{distill_wrapper_forward.6} parent=19 // pred_check
        %p416 = pneg %p154
      $region34: #{distill_wrapper_forward.6} parent=19 // pred_check_branch
        %418 = sbr.rel (%p416) target = $region36
      $region35: #{distill_wrapper_forward.6} parent=19 // pred_region
        %p419 = scmp.lt.s32.totalorder %s26, 1
        %s420 = scalar_select %p419, %s26, 1
        %s421 = smul.addr %s420, 4
        %s422 = smul.addr %s421, 4
        %s423 = scalar_lea.vmem %s4, %s422
      $region36: #{distill_wrapper_forward.6} parent=19 // pred_fallthru
        _
      // Predicated region
      $region37: #{distill_wrapper_forward.6} parent=19 // pred_check
        %p424 = pneg %p180
      $region38: #{distill_wrapper_forward.6} parent=19 // pred_check_branch
        %426 = sbr.rel (%p424) target = $region40
      $region39: #{distill_wrapper_forward.6} parent=19 // pred_region
        %p427 = scmp.lt.s32.totalorder %s26, 1
        %s428 = scalar_select %p427, %s26, 1
        %s429 = scalar_lea.vmem %s5, %s428
      $region40: #{distill_wrapper_forward.6} parent=19 // pred_fallthru
        _
      // Predicated region
      $region41: #{distill_wrapper_forward.6} parent=19 // pred_check
        %p430 = pneg %p206
      $region42: #{distill_wrapper_forward.6} parent=19 // pred_check_branch
        %432 = sbr.rel (%p430) target = $region44
      $region43: #{distill_wrapper_forward.6} parent=19 // pred_region
        %p433 = scmp.lt.s32.totalorder %s26, 1
        %s434 = scalar_select %p433, %s26, 1
        %s435 = scalar_lea.vmem %s6, %s434
      $region44: #{distill_wrapper_forward.6} parent=19 // pred_fallthru
        _
      // Predicated region
      $region45: #{distill_wrapper_forward.6} parent=19 // pred_check
        %p436 = pneg %p232
      $region46: #{distill_wrapper_forward.6} parent=19 // pred_check_branch
        %438 = sbr.rel (%p436) target = $region48
      $region47: #{distill_wrapper_forward.6} parent=19 // pred_region
        %p439 = scmp.lt.s32.totalorder %s26, 1
        %s440 = scalar_select %p439, %s26, 1
        %s441 = scalar_lea.vmem %s7, %s440
      $region48: #{distill_wrapper_forward.6} parent=19 // pred_fallthru
        _
      // Predicated region
      $region49: #{distill_wrapper_forward.6} parent=19 // pred_check
        %p442 = pneg %p258
      $region50: #{distill_wrapper_forward.6} parent=19 // pred_check_branch
        %444 = sbr.rel (%p442) target = $region52
      $region51: #{distill_wrapper_forward.6} parent=19 // pred_region
        %p445 = scmp.lt.s32.totalorder %s26, 1
        %s446 = scalar_select %p445, %s26, 1
        %s447 = smul.addr %s446, 4
        %s448 = smul.addr %s447, 4
        %s449 = scalar_lea.vmem %s8, %s448
      $region52: #{distill_wrapper_forward.6} parent=19 // pred_fallthru
        _
      // Predicated region
      $region53: #{distill_wrapper_forward.6} parent=19 // pred_check
        %p450 = pneg %p284
      $region54: #{distill_wrapper_forward.6} parent=19 // pred_check_branch
        %452 = sbr.rel (%p450) target = $region56
      $region55: #{distill_wrapper_forward.6} parent=19 // pred_region
        %p453 = scmp.lt.s32.totalorder %s26, 1
        %s454 = scalar_select %p453, %s26, 1
        %s455 = scalar_lea.vmem %s9, %s454
      $region56: #{distill_wrapper_forward.6} parent=19 // pred_fallthru
        _
      // Predicated region
      $region57: #{distill_wrapper_forward.6} parent=19 // pred_check
        %p456 = pneg %p310
      $region58: #{distill_wrapper_forward.6} parent=19 // pred_check_branch
        %458 = sbr.rel (%p456) target = $region60
      $region59: #{distill_wrapper_forward.6} parent=19 // pred_region
        %p459 = scmp.lt.s32.totalorder %s26, 1
        %s460 = scalar_select %p459, %s26, 1
        %s461 = smul.addr %s460, 8
        %s462 = smul.addr %s461, 4
        %s463 = scalar_lea.vmem %s10, %s462
      $region60: #{distill_wrapper_forward.6} parent=19 // pred_fallthru
        _
      // Predicated region
      $region61: #{distill_wrapper_forward.6} parent=19 // pred_check
        %p464 = pneg %p336
      $region62: #{distill_wrapper_forward.6} parent=19 // pred_check_branch
        %466 = sbr.rel (%p464) target = $region64
      $region63: #{distill_wrapper_forward.6} parent=19 // pred_region
        %p467 = scmp.lt.s32.totalorder %s26, 1
        %s468 = scalar_select %p467, %s26, 1
        %s469 = scalar_lea.vmem %s11, %s468
      $region64: #{distill_wrapper_forward.6} parent=19 // pred_fallthru
        _
    $region20: #{distill_wrapper_forward.6} parent=5 // pred_fallthru
      _
    %p470 = scmp.le.s32.totalorder 1, %s18
    %p471 = scmp.lt.s32.totalorder %s18, 3
    %p472 = pnand %p470, %p471
    %p473 = pneg %p472
    // Predicated region
    $region65: #{distill_wrapper_forward.6} parent=5 // pred_check
      _
    $region66: #{distill_wrapper_forward.6} parent=5 // pred_check_branch
      %475 = sbr.rel (%p472) target = $region68
    $region67: #{distill_wrapper_forward.6} parent=5 // pred_region
      %s476 = ssub.s32 %s18, 1
      %s477 = smul.u32 2, %s27
      %p478 = scmp.lt.s32.totalorder %s477, 1
      %s479 = scalar_select %p478, %s477, 1
      %s480 = smul.addr %s479, 8
      %s481 = scalar_lea.vmem %s0, %s480
      %p482 = pneg %p56
      %p483 = pneg %p53
      %p484 = scmp.lt.s32.totalorder %s28, 1
      %s485 = scalar_select %p484, %s28, 1
      %s486 = scalar_lea.vmem %s1, %s485
      %p487 = pneg %p82
      %p488 = pneg %p79
      %p489 = scmp.lt.s32.totalorder %s28, 1
      %s490 = scalar_select %p489, %s28, 1
      %s491 = scalar_lea.vmem %s2, %s490
      %p492 = pneg %p108
      %p493 = pneg %p105
      %p494 = scmp.lt.s32.totalorder %s28, 1
      %s495 = scalar_select %p494, %s28, 1
      %s496 = smul.addr %s495, 4
      %s497 = smul.addr %s496, 4
      %s498 = scalar_lea.vmem %s3, %s497
      %p499 = pneg %p134
      %p500 = pneg %p131
      %p501 = scmp.lt.s32.totalorder %s28, 1
      %s502 = scalar_select %p501, %s28, 1
      %s503 = smul.addr %s502, 4
      %s504 = smul.addr %s503, 4
      %s505 = scalar_lea.vmem %s4, %s504
      %p506 = pneg %p160
      %p507 = pneg %p157
      %p508 = scmp.lt.s32.totalorder %s28, 1
      %s509 = scalar_select %p508, %s28, 1
      %s510 = scalar_lea.vmem %s5, %s509
      %p511 = pneg %p186
      %p512 = pneg %p183
      %p513 = scmp.lt.s32.totalorder %s28, 1
      %s514 = scalar_select %p513, %s28, 1
      %s515 = scalar_lea.vmem %s6, %s514
      %p516 = pneg %p212
      %p517 = pneg %p209
      %p518 = scmp.lt.s32.totalorder %s28, 1
      %s519 = scalar_select %p518, %s28, 1
      %s520 = scalar_lea.vmem %s7, %s519
      %p521 = pneg %p238
      %p522 = pneg %p235
      %p523 = scmp.lt.s32.totalorder %s28, 1
      %s524 = scalar_select %p523, %s28, 1
      %s525 = smul.addr %s524, 4
      %s526 = smul.addr %s525, 4
      %s527 = scalar_lea.vmem %s8, %s526
      %p528 = pneg %p264
      %p529 = pneg %p261
      %p530 = scmp.lt.s32.totalorder %s28, 1
      %s531 = scalar_select %p530, %s28, 1
      %s532 = scalar_lea.vmem %s9, %s531
      %p533 = pneg %p290
      %p534 = pneg %p287
      %p535 = scmp.lt.s32.totalorder %s28, 1
      %s536 = scalar_select %p535, %s28, 1
      %s537 = smul.addr %s536, 8
      %s538 = smul.addr %s537, 4
      %s539 = scalar_lea.vmem %s10, %s538
      %p540 = pneg %p316
      %p541 = pneg %p313
      %p542 = scmp.lt.s32.totalorder %s28, 1
      %s543 = scalar_select %p542, %s28, 1
      %s544 = scalar_lea.vmem %s11, %s543
      %p545 = pneg %p342
      %p546 = pneg %p339
      %p547 = pneg %p368
      %p548 = pneg %p365
      %s549 = smul.u32 2, %s27
      %p550 = scmp.lt.s32.totalorder %s549, 1
      %s551 = scalar_select %p550, %s549, 1
      %s552 = smul.addr %s551, 8
      %s553 = scalar_lea.vmem %s12, %s552
      %s554 = smul.u32 2, %s27
      %p555 = scmp.lt.s32.totalorder %s554, 1
      %s556 = scalar_select %p555, %s554, 1
      %s557 = smul.addr %s556, 8
      %s558 = scalar_lea.vmem %s0, %s557
      %s559 = smul.u32 2, %s27
      %p560 = scmp.lt.s32.totalorder %s28, 1
      %s561 = scalar_select %p560, %s28, 1
      %s562 = scalar_lea.vmem %s1, %s561
      %p563 = scmp.lt.s32.totalorder %s28, 1
      %s564 = scalar_select %p563, %s28, 1
      %s565 = scalar_lea.vmem %s2, %s564
      %p566 = scmp.lt.s32.totalorder %s28, 1
      %s567 = scalar_select %p566, %s28, 1
      %s568 = smul.addr %s567, 4
      %s569 = smul.addr %s568, 4
      %s570 = scalar_lea.vmem %s3, %s569
      %p571 = scmp.lt.s32.totalorder %s28, 1
      %s572 = scalar_select %p571, %s28, 1
      %s573 = smul.addr %s572, 4
      %s574 = smul.addr %s573, 4
      %s575 = scalar_lea.vmem %s4, %s574
      %p576 = scmp.lt.s32.totalorder %s28, 1
      %s577 = scalar_select %p576, %s28, 1
      %s578 = scalar_lea.vmem %s5, %s577
      %p579 = scmp.lt.s32.totalorder %s28, 1
      %s580 = scalar_select %p579, %s28, 1
      %s581 = scalar_lea.vmem %s6, %s580
      %p582 = scmp.lt.s32.totalorder %s28, 1
      %s583 = scalar_select %p582, %s28, 1
      %s584 = scalar_lea.vmem %s7, %s583
      %p585 = scmp.lt.s32.totalorder %s28, 1
      %s586 = scalar_select %p585, %s28, 1
      %s587 = smul.addr %s586, 4
      %s588 = smul.addr %s587, 4
      %s589 = scalar_lea.vmem %s8, %s588
      %p590 = scmp.lt.s32.totalorder %s28, 1
      %s591 = scalar_select %p590, %s28, 1
      %s592 = scalar_lea.vmem %s9, %s591
      %p593 = scmp.lt.s32.totalorder %s28, 1
      %s594 = scalar_select %p593, %s28, 1
      %s595 = smul.addr %s594, 8
      %s596 = smul.addr %s595, 4
      %s597 = scalar_lea.vmem %s10, %s596
      %p598 = scmp.lt.s32.totalorder %s28, 1
      %s599 = scalar_select %p598, %s28, 1
      %s600 = scalar_lea.vmem %s11, %s599
      %s601 = smul.u32 2, %s27
      %p602 = scmp.lt.s32.totalorder %s601, 1
      %s603 = scalar_select %p602, %s601, 1
      %s604 = smul.addr %s603, 8
      %s605 = scalar_lea.vmem %s12, %s604
      %s606 = smul.u32 2, %s27
      %p608 = scmp.eq.s32.totalorder %s28, 0
      // Predicated region
      $region69: #{distill_wrapper_forward.6} parent=67 // pred_check
        %p609 = pneg %p608
      $region70: #{distill_wrapper_forward.6} parent=67 // pred_check_branch
        %611 = sbr.rel (%p609) target = $region72
      $region71: #{distill_wrapper_forward.6} parent=67 // pred_region
        %v612 = vld [vmem:[%s558] sm:$0x1f]
        %v613 = vld [vmem:[%s558 + $0x8] sm:$0x1f]
        %vm614 = vcmask 258048
        %615 = vst.msk [vmem:[%s605] sm:$0x1f] %vm614, %v612
        %616 = vst.msk [vmem:[%s605 + $0x8] sm:$0x1f] %vm614, %v613
      $region72: #{distill_wrapper_forward.6} parent=67 // pred_fallthru
        _
      %v617 = vld [vmem:[%s562] sm:$0x1]
      %v618 = vld [vmem:[%s565] sm:$0x1]
      %v619 = vld [vmem:[%s570] sm:$0xf]
      %v620 = vld [vmem:[%s570 + $0x4] sm:$0xf]
      %v621 = vld [vmem:[%s570 + $0x8] sm:$0xf]
      %v622 = vld [vmem:[%s570 + $0xc] sm:$0xf]
      %v623 = vld [vmem:[%s575] sm:$0xf]
      %v624 = vld [vmem:[%s575 + $0x4] sm:$0xf]
      %v625 = vld [vmem:[%s575 + $0x8] sm:$0xf]
      %v626 = vld [vmem:[%s575 + $0xc] sm:$0xf]
      %v627 = vld [vmem:[%s578] sm:$0x1]
      %v628 = vld [vmem:[%s581] sm:$0x1]
      %v629 = vld [vmem:[%s584] sm:$0x1]
      %v630 = vld [vmem:[%s589] sm:$0xf]
      %v631 = vld [vmem:[%s589 + $0x4] sm:$0xf]
      %v632 = vld [vmem:[%s589 + $0x8] sm:$0xf]
      %v633 = vld [vmem:[%s589 + $0xc] sm:$0xf]
      %v634 = vld [vmem:[%s592] sm:$0x1]
      %v635 = vld [vmem:[%s597] sm:$0xf]
      %v636 = vld [vmem:[%s597 + $0x4] sm:$0xf]
      %v637 = vld [vmem:[%s597 + $0x8] sm:$0xf]
      %v638 = vld [vmem:[%s597 + $0xc] sm:$0xf]
      %v639 = vld [vmem:[%s597 + $0x10] sm:$0xf]
      %v640 = vld [vmem:[%s597 + $0x14] sm:$0xf]
      %v641 = vld [vmem:[%s597 + $0x18] sm:$0xf]
      %v642 = vld [vmem:[%s597 + $0x1c] sm:$0xf]
      %v643 = vld [vmem:[%s600] sm:$0x1]
      %v644 = vld [vmem:[%s605] sm:$0x1f]
      %vm645 = vcmask 258048
      %v646 = vsel %vm645, %v644, 0.0
      %647 = vadd.xlane.f32.xlu0 %v646
      %v648 = vpop.xlane.xlu0 %647
      %v649 = vrcp.pop 32.0
      %v650 = vmul.f32 %v648, %v649
      %v651 = vsub.f32 %v644, %v650
      %v652 = vmul.f32 %v651, %v651
      %v653 = vsel %vm645, %v652, 0.0
      %654 = vadd.xlane.f32.xlu0 %v653
      %v655 = vpop.xlane.xlu0 %654
      %v656 = vmul.f32 %v655, %v649
      %v657 = vadd.f32 %v656, 1e-05
      %v658 = vrsqrt.pop %v657
      %v659 = vmul.f32 %v651, %v658
      %v661 = vlaneseq
      %v662 = vshrl.u32 %v661, 7
      %v663 = vsub.s32 0, %v662
      %v664 = vrot.slane %v617, %v663
      %v666 = vmul.f32 %v659, %v664
      %v668 = vlaneseq
      %v669 = vshrl.u32 %v668, 7
      %v670 = vsub.s32 0, %v669
      %v671 = vrot.slane %v618, %v670
      %v673 = vadd.f32 %v666, %v671
      %v674 = vpack.c.bf16 %v673, %v673
      %v679 = vunpack.c.l.b16 %v619
      %v680 = vunpack.c.l.b16 %v620
      %v681 = vunpack.c.l.b16 %v621
      %v682 = vunpack.c.l.b16 %v622
      %v683 = vpack.c.b16 %v680, %v679
      %v684 = vpack.c.b16 %v682, %v681
      %vm687 = vcmask 261120
      %v689 = vsel %vm687, %v674, 0
      %691 = vmatprep.subr.bf16.mxu0 0
      %692 = vmatpush1.bf16.msra.mxu0 %v683
      %693 = vmatprep.subr.bf16.mxu0 0
      %694 = vmatpush1.bf16.msra.mxu0 %v684
      %695 = vmatprep.subr.bf16.mxu0 0
      %696 = vmatpush1.bf16.msra.mxu0 0
      %697 = vmatprep.subr.bf16.mxu0 0
      %698 = vmatpush1.bf16.msra.mxu0 0
      %699 = vmatprep.subr.bf16.mxu0 0
      %700 = vmatpush1.bf16.msra.mxu0 0
      %701 = vmatprep.subr.bf16.mxu0 0
      %702 = vmatpush1.bf16.msra.mxu0 0
      %703 = vmatprep.subr.bf16.mxu0 0
      %704 = vmatpush1.bf16.msra.mxu0 0
      %705 = vmatprep.subr.bf16.mxu0 0
      %706 = vmatpush1.bf16.msra.mxu0 0
      %707 = vmatprep.subr.bf16.mxu0 0
      %708 = vmatpush1.bf16.msra.mxu0 0
      %709 = vmatprep.subr.bf16.mxu0 0
      %710 = vmatpush1.bf16.msra.mxu0 0
      %711 = vmatprep.subr.bf16.mxu0 0
      %712 = vmatpush1.bf16.msra.mxu0 0
      %713 = vmatprep.subr.bf16.mxu0 0
      %714 = vmatpush1.bf16.msra.mxu0 0
      %715 = vmatprep.subr.bf16.mxu0 0
      %716 = vmatpush1.bf16.msra.mxu0 0
      %717 = vmatprep.subr.bf16.mxu0 0
      %718 = vmatpush1.bf16.msra.mxu0 0
      %719 = vmatprep.subr.bf16.mxu0 0
      %720 = vmatpush1.bf16.msra.mxu0 0
      %721 = vmatprep.subr.bf16.mxu0 0
      %722 = vmatpush1.bf16.msra.mxu0 0
      %723 = vmatprep.mubr.bf16.mxu0 0
      %724 = vmatmul.mubr.bf16.gmra.mrb[0].mxu0 %v689
      %v725 = vpop.f32.mrb[0].mxu0
      %v726 = vadd.f32 0.0, %v725
      %v727 = vpop.f32.mrb[0].mxu0
      %v728 = vpop.f32.mrb[0].mxu0
      %v729 = vpop.f32.mrb[0].mxu0
      %730 = vdwg.mxu0
      %v731 = vpack.c.bf16 %v726, %v726
      %733 = vrot.lane.b32.xlu0 %v731, 96
      %v734 = vpop.permute.xlu0 %733
      %vm735 = vcmask 130048
      %v737 = vsel %vm735, %v731, 0
      %v740 = vsel %vm735, %v734, 0
      %742 = vmatprep.subr.bf16.mxu0 0
      %743 = vmatpush1.bf16.xpose.msra.mxu0 %v740
      %744 = vmatprep.subr.bf16.mxu0 0
      %745 = vmatpush1.bf16.xpose.msra.mxu0 0
      %746 = vmatprep.subr.bf16.mxu0 0
      %747 = vmatpush1.bf16.xpose.msra.mxu0 0
      %748 = vmatprep.subr.bf16.mxu0 0
      %749 = vmatpush1.bf16.xpose.msra.mxu0 0
      %750 = vmatprep.subr.bf16.mxu0 0
      %751 = vmatpush1.bf16.xpose.msra.mxu0 0
      %752 = vmatprep.subr.bf16.mxu0 0
      %753 = vmatpush1.bf16.xpose.msra.mxu0 0
      %754 = vmatprep.subr.bf16.mxu0 0
      %755 = vmatpush1.bf16.xpose.msra.mxu0 0
      %756 = vmatprep.subr.bf16.mxu0 0
      %757 = vmatpush1.bf16.xpose.msra.mxu0 0
      %758 = vmatprep.subr.bf16.mxu0 0
      %759 = vmatpush1.bf16.xpose.msra.mxu0 0
      %760 = vmatprep.subr.bf16.mxu0 0
      %761 = vmatpush1.bf16.xpose.msra.mxu0 0
      %762 = vmatprep.subr.bf16.mxu0 0
      %763 = vmatpush1.bf16.xpose.msra.mxu0 0
      %764 = vmatprep.subr.bf16.mxu0 0
      %765 = vmatpush1.bf16.xpose.msra.mxu0 0
      %766 = vmatprep.subr.bf16.mxu0 0
      %767 = vmatpush1.bf16.xpose.msra.mxu0 0
      %768 = vmatprep.subr.bf16.mxu0 0
      %769 = vmatpush1.bf16.xpose.msra.mxu0 0
      %770 = vmatprep.subr.bf16.mxu0 0
      %771 = vmatpush1.bf16.xpose.msra.mxu0 0
      %772 = vmatprep.subr.bf16.mxu0 0
      %773 = vmatpush1.bf16.xpose.msra.mxu0 0
      %774 = vmatprep.mubr.bf16.mxu0 0
      %775 = vmatmul.mubr.bf16.gmra.mrb[0].mxu0 %v737
      %v776 = vpop.f32.mrb[0].mxu0
      %v777 = vadd.f32 0.0, %v776
      %v778 = vpop.f32.mrb[0].mxu0
      %v779 = vpop.f32.mrb[0].mxu0
      %v780 = vpop.f32.mrb[0].mxu0
      %781 = vdwg.mxu0
      %v782 = vmul.f32 %v777, 0.25
      %vm783 = vcmask 36864
      %v784 = vsel %vm783, %v782, -inf
      %785 = vmax.xlane.f32.xlu0 %v784
      %v786 = vpop.xlane.xlu0 %785
      %v787 = vsub.f32 %v782, %v786
      %v788 = vmul.f32 %v787, 1.442695
      %v789 = vpow.pop %v788
      %v790 = vsel %vm783, %v789, 0.0
      %791 = vadd.xlane.f32.xlu0 %v790
      %v792 = vpop.xlane.xlu0 %791
      %v793 = vrcp.pop %v792
      %v794 = vmul.f32 %v789, %v793
      %v795 = vpack.c.bf16 %v794, %v794
      %796 = vrot.lane.b32.xlu0 %v731, 64
      %v797 = vpop.permute.xlu0 %796
      %vm798 = vcmask 39936
      %v800 = vsel %vm798, %v795, 0
      %vm802 = vcmask 1041408
      %vm803 = vcmask 1042432
      %v804 = vsel %vm802, 4294967295, 65535
      %v805 = vsel %vm803, %v804, 0
      %v807 = vand.u32 %v797, %v805
      %809 = vmatprep.subr.bf16.mxu0 0
      %810 = vmatpush1.bf16.msra.mxu0 %v807
      %811 = vmatprep.subr.bf16.mxu0 0
      %812 = vmatpush1.bf16.msra.mxu0 0
      %813 = vmatprep.subr.bf16.mxu0 0
      %814 = vmatpush1.bf16.msra.mxu0 0
      %815 = vmatprep.subr.bf16.mxu0 0
      %816 = vmatpush1.bf16.msra.mxu0 0
      %817 = vmatprep.subr.bf16.mxu0 0
      %818 = vmatpush1.bf16.msra.mxu0 0
      %819 = vmatprep.subr.bf16.mxu0 0
      %820 = vmatpush1.bf16.msra.mxu0 0
      %821 = vmatprep.subr.bf16.mxu0 0
      %822 = vmatpush1.bf16.msra.mxu0 0
      %823 = vmatprep.subr.bf16.mxu0 0
      %824 = vmatpush1.bf16.msra.mxu0 0
      %825 = vmatprep.subr.bf16.mxu0 0
      %826 = vmatpush1.bf16.msra.mxu0 0
      %827 = vmatprep.subr.bf16.mxu0 0
      %828 = vmatpush1.bf16.msra.mxu0 0
      %829 = vmatprep.subr.bf16.mxu0 0
      %830 = vmatpush1.bf16.msra.mxu0 0
      %831 = vmatprep.subr.bf16.mxu0 0
      %832 = vmatpush1.bf16.msra.mxu0 0
      %833 = vmatprep.subr.bf16.mxu0 0
      %834 = vmatpush1.bf16.msra.mxu0 0
      %835 = vmatprep.subr.bf16.mxu0 0
      %836 = vmatpush1.bf16.msra.mxu0 0
      %837 = vmatprep.subr.bf16.mxu0 0
      %838 = vmatpush1.bf16.msra.mxu0 0
      %839 = vmatprep.subr.bf16.mxu0 0
      %840 = vmatpush1.bf16.msra.mxu0 0
      %841 = vmatprep.mubr.bf16.mxu0 0
      %842 = vmatmul.mubr.bf16.gmra.mrb[0].mxu0 %v800
      %v843 = vpop.f32.mrb[0].mxu0
      %v844 = vadd.f32 0.0, %v843
      %v845 = vpop.f32.mrb[0].mxu0
      %v846 = vpop.f32.mrb[0].mxu0
      %v847 = vpop.f32.mrb[0].mxu0
      %848 = vdwg.mxu0
      %v849 = vpack.c.bf16 %v844, %v844
      %850 = vrot.lane.b32.xlu0 %v731, 112
      %v851 = vpop.permute.xlu0 %850
      %852 = vrot.lane.b32.xlu0 %v731, 80
      %v853 = vpop.permute.xlu0 %852
      %v855 = vsel %vm735, %v851, 0
      %v858 = vsel %vm735, %v853, 0
      %860 = vmatprep.subr.bf16.mxu0 0
      %861 = vmatpush1.bf16.xpose.msra.mxu0 %v858
      %862 = vmatprep.subr.bf16.mxu0 0
      %863 = vmatpush1.bf16.xpose.msra.mxu0 0
      %864 = vmatprep.subr.bf16.mxu0 0
      %865 = vmatpush1.bf16.xpose.msra.mxu0 0
      %866 = vmatprep.subr.bf16.mxu0 0
      %867 = vmatpush1.bf16.xpose.msra.mxu0 0
      %868 = vmatprep.subr.bf16.mxu0 0
      %869 = vmatpush1.bf16.xpose.msra.mxu0 0
      %870 = vmatprep.subr.bf16.mxu0 0
      %871 = vmatpush1.bf16.xpose.msra.mxu0 0
      %872 = vmatprep.subr.bf16.mxu0 0
      %873 = vmatpush1.bf16.xpose.msra.mxu0 0
      %874 = vmatprep.subr.bf16.mxu0 0
      %875 = vmatpush1.bf16.xpose.msra.mxu0 0
      %876 = vmatprep.subr.bf16.mxu0 0
      %877 = vmatpush1.bf16.xpose.msra.mxu0 0
      %878 = vmatprep.subr.bf16.mxu0 0
      %879 = vmatpush1.bf16.xpose.msra.mxu0 0
      %880 = vmatprep.subr.bf16.mxu0 0
      %881 = vmatpush1.bf16.xpose.msra.mxu0 0
      %882 = vmatprep.subr.bf16.mxu0 0
      %883 = vmatpush1.bf16.xpose.msra.mxu0 0
      %884 = vmatprep.subr.bf16.mxu0 0
      %885 = vmatpush1.bf16.xpose.msra.mxu0 0
      %886 = vmatprep.subr.bf16.mxu0 0
      %887 = vmatpush1.bf16.xpose.msra.mxu0 0
      %888 = vmatprep.subr.bf16.mxu0 0
      %889 = vmatpush1.bf16.xpose.msra.mxu0 0
      %890 = vmatprep.subr.bf16.mxu0 0
      %891 = vmatpush1.bf16.xpose.msra.mxu0 0
      %892 = vmatprep.mubr.bf16.mxu0 0
      %893 = vmatmul.mubr.bf16.gmra.mrb[0].mxu0 %v855
      %v894 = vpop.f32.mrb[0].mxu0
      %v895 = vadd.f32 0.0, %v894
      %v896 = vpop.f32.mrb[0].mxu0
      %v897 = vpop.f32.mrb[0].mxu0
      %v898 = vpop.f32.mrb[0].mxu0
      %899 = vdwg.mxu0
      %v900 = vmul.f32 %v895, 0.25
      %v901 = vsel %vm783, %v900, -inf
      %902 = vmax.xlane.f32.xlu0 %v901
      %v903 = vpop.xlane.xlu0 %902
      %v904 = vsub.f32 %v900, %v903
      %v905 = vmul.f32 %v904, 1.442695
      %v906 = vpow.pop %v905
      %v907 = vsel %vm783, %v906, 0.0
      %908 = vadd.xlane.f32.xlu0 %v907
      %v909 = vpop.xlane.xlu0 %908
      %v910 = vrcp.pop %v909
      %v911 = vmul.f32 %v906, %v910
      %v912 = vpack.c.bf16 %v911, %v911
      %913 = vrot.lane.b32.xlu0 %v731, 48
      %v914 = vpop.permute.xlu0 %913
      %v916 = vsel %vm798, %v912, 0
      %v919 = vand.u32 %v914, %v805
      %921 = vmatprep.subr.bf16.mxu0 0
      %922 = vmatpush1.bf16.msra.mxu0 %v919
      %923 = vmatprep.subr.bf16.mxu0 0
      %924 = vmatpush1.bf16.msra.mxu0 0
      %925 = vmatprep.subr.bf16.mxu0 0
      %926 = vmatpush1.bf16.msra.mxu0 0
      %927 = vmatprep.subr.bf16.mxu0 0
      %928 = vmatpush1.bf16.msra.mxu0 0
      %929 = vmatprep.subr.bf16.mxu0 0
      %930 = vmatpush1.bf16.msra.mxu0 0
      %931 = vmatprep.subr.bf16.mxu0 0
      %932 = vmatpush1.bf16.msra.mxu0 0
      %933 = vmatprep.subr.bf16.mxu0 0
      %934 = vmatpush1.bf16.msra.mxu0 0
      %935 = vmatprep.subr.bf16.mxu0 0
      %936 = vmatpush1.bf16.msra.mxu0 0
      %937 = vmatprep.subr.bf16.mxu0 0
      %938 = vmatpush1.bf16.msra.mxu0 0
      %939 = vmatprep.subr.bf16.mxu0 0
      %940 = vmatpush1.bf16.msra.mxu0 0
      %941 = vmatprep.subr.bf16.mxu0 0
      %942 = vmatpush1.bf16.msra.mxu0 0
      %943 = vmatprep.subr.bf16.mxu0 0
      %944 = vmatpush1.bf16.msra.mxu0 0
      %945 = vmatprep.subr.bf16.mxu0 0
      %946 = vmatpush1.bf16.msra.mxu0 0
      %947 = vmatprep.subr.bf16.mxu0 0
      %948 = vmatpush1.bf16.msra.mxu0 0
      %949 = vmatprep.subr.bf16.mxu0 0
      %950 = vmatpush1.bf16.msra.mxu0 0
      %951 = vmatprep.subr.bf16.mxu0 0
      %952 = vmatpush1.bf16.msra.mxu0 0
      %953 = vmatprep.mubr.bf16.mxu0 0
      %954 = vmatmul.mubr.bf16.gmra.mrb[0].mxu0 %v916
      %v955 = vpop.f32.mrb[0].mxu0
      %v956 = vadd.f32 0.0, %v955
      %v957 = vpop.f32.mrb[0].mxu0
      %v958 = vpop.f32.mrb[0].mxu0
      %v959 = vpop.f32.mrb[0].mxu0
      %960 = vdwg.mxu0
      %v961 = vpack.c.bf16 %v956, %v956
      %963 = vrot.lane.b32.xlu0 %v961, 16
      %v964 = vpop.permute.xlu0 %963
      %v967 = vsel %vm735, %v849, %v964
      %v972 = vunpack.c.l.b16 %v623
      %v973 = vunpack.c.l.b16 %v624
      %v974 = vunpack.c.l.b16 %v625
      %v975 = vunpack.c.l.b16 %v626
      %v976 = vpack.c.b16 %v973, %v972
      %v977 = vpack.c.b16 %v975, %v974
      %v980 = vsel %vm687, %v967, 0
      %982 = vmatprep.subr.bf16.mxu0 0
      %983 = vmatpush1.bf16.msra.mxu0 %v976
      %984 = vmatprep.subr.bf16.mxu0 0
      %985 = vmatpush1.bf16.msra.mxu0 %v977
      %986 = vmatprep.subr.bf16.mxu0 0
      %987 = vmatpush1.bf16.msra.mxu0 0
      %988 = vmatprep.subr.bf16.mxu0 0
      %989 = vmatpush1.bf16.msra.mxu0 0
      %990 = vmatprep.subr.bf16.mxu0 0
      %991 = vmatpush1.bf16.msra.mxu0 0
      %992 = vmatprep.subr.bf16.mxu0 0
      %993 = vmatpush1.bf16.msra.mxu0 0
      %994 = vmatprep.subr.bf16.mxu0 0
      %995 = vmatpush1.bf16.msra.mxu0 0
      %996 = vmatprep.subr.bf16.mxu0 0
      %997 = vmatpush1.bf16.msra.mxu0 0
      %998 = vmatprep.subr.bf16.mxu0 0
      %999 = vmatpush1.bf16.msra.mxu0 0
      %1000 = vmatprep.subr.bf16.mxu0 0
      %1001 = vmatpush1.bf16.msra.mxu0 0
      %1002 = vmatprep.subr.bf16.mxu0 0
      %1003 = vmatpush1.bf16.msra.mxu0 0
      %1004 = vmatprep.subr.bf16.mxu0 0
      %1005 = vmatpush1.bf16.msra.mxu0 0
      %1006 = vmatprep.subr.bf16.mxu0 0
      %1007 = vmatpush1.bf16.msra.mxu0 0
      %1008 = vmatprep.subr.bf16.mxu0 0
      %1009 = vmatpush1.bf16.msra.mxu0 0
      %1010 = vmatprep.subr.bf16.mxu0 0
      %1011 = vmatpush1.bf16.msra.mxu0 0
      %1012 = vmatprep.subr.bf16.mxu0 0
      %1013 = vmatpush1.bf16.msra.mxu0 0
      %1014 = vmatprep.mubr.bf16.mxu0 0
      %1015 = vmatmul.mubr.bf16.gmra.mrb[0].mxu0 %v980
      %v1016 = vpop.f32.mrb[0].mxu0
      %v1017 = vadd.f32 0.0, %v1016
      %v1018 = vpop.f32.mrb[0].mxu0
      %v1019 = vpop.f32.mrb[0].mxu0
      %v1020 = vpop.f32.mrb[0].mxu0
      %1021 = vdwg.mxu0
      %v1022 = vadd.f32 %v644, %v1017
      %v1024 = vlaneseq
      %v1025 = vshrl.u32 %v1024, 7
      %v1026 = vsub.s32 0, %v1025
      %v1027 = vrot.slane %v627, %v1026
      %v1029 = vadd.f32 %v1022, %v1027
      %v1030 = vsel %vm645, %v1029, 0.0
      %1031 = vadd.xlane.f32.xlu0 %v1030
      %v1032 = vpop.xlane.xlu0 %1031
      %v1033 = vmul.f32 %v1032, %v649
      %v1034 = vsub.f32 %v1029, %v1033
      %v1035 = vmul.f32 %v1034, %v1034
      %v1036 = vsel %vm645, %v1035, 0.0
      %1037 = vadd.xlane.f32.xlu0 %v1036
      %v1038 = vpop.xlane.xlu0 %1037
      %v1039 = vmul.f32 %v1038, %v649
      %v1040 = vadd.f32 %v1039, 1e-05
      %v1041 = vrsqrt.pop %v1040
      %v1042 = vmul.f32 %v1034, %v1041
      %v1044 = vlaneseq
      %v1045 = vshrl.u32 %v1044, 7
      %v1046 = vsub.s32 0, %v1045
      %v1047 = vrot.slane %v628, %v1046
      %v1049 = vmul.f32 %v1042, %v1047
      %v1051 = vlaneseq
      %v1052 = vshrl.u32 %v1051, 7
      %v1053 = vsub.s32 0, %v1052
      %v1054 = vrot.slane %v629, %v1053
      %v1056 = vadd.f32 %v1049, %v1054
      %v1057 = vpack.c.bf16 %v1056, %v1056
      %v1059 = vlaneseq
      %v1060 = vshrl.u32 %v1059, 7
      %v1061 = vsub.s32 0, %v1060
      %v1062 = vrot.slane %v634, %v1061
      %v1068 = vunpack.c.l.b16 %v630
      %v1069 = vunpack.c.l.b16 %v631
      %v1070 = vunpack.c.l.b16 %v632
      %v1071 = vunpack.c.l.b16 %v633
      %v1072 = vpack.c.b16 %v1069, %v1068
      %v1073 = vpack.c.b16 %v1071, %v1070
      %v1077 = vsel %vm687, %v1057, 0
      %1079 = vmatprep.subr.bf16.mxu0 0
      %1080 = vmatpush1.bf16.msra.mxu0 %v1072
      %1081 = vmatprep.subr.bf16.mxu0 0
      %1082 = vmatpush1.bf16.msra.mxu0 %v1073
      %1083 = vmatprep.subr.bf16.mxu0 0
      %1084 = vmatpush1.bf16.msra.mxu0 0
      %1085 = vmatprep.subr.bf16.mxu0 0
      %1086 = vmatpush1.bf16.msra.mxu0 0
      %1087 = vmatprep.subr.bf16.mxu0 0
      %1088 = vmatpush1.bf16.msra.mxu0 0
      %1089 = vmatprep.subr.bf16.mxu0 0
      %1090 = vmatpush1.bf16.msra.mxu0 0
      %1091 = vmatprep.subr.bf16.mxu0 0
      %1092 = vmatpush1.bf16.msra.mxu0 0
      %1093 = vmatprep.subr.bf16.mxu0 0
      %1094 = vmatpush1.bf16.msra.mxu0 0
      %1095 = vmatprep.subr.bf16.mxu0 0
      %1096 = vmatpush1.bf16.msra.mxu0 0
      %1097 = vmatprep.subr.bf16.mxu0 0
      %1098 = vmatpush1.bf16.msra.mxu0 0
      %1099 = vmatprep.subr.bf16.mxu0 0
      %1100 = vmatpush1.bf16.msra.mxu0 0
      %1101 = vmatprep.subr.bf16.mxu0 0
      %1102 = vmatpush1.bf16.msra.mxu0 0
      %1103 = vmatprep.subr.bf16.mxu0 0
      %1104 = vmatpush1.bf16.msra.mxu0 0
      %1105 = vmatprep.subr.bf16.mxu0 0
      %1106 = vmatpush1.bf16.msra.mxu0 0
      %1107 = vmatprep.subr.bf16.mxu0 0
      %1108 = vmatpush1.bf16.msra.mxu0 0
      %1109 = vmatprep.subr.bf16.mxu0 0
      %1110 = vmatpush1.bf16.msra.mxu0 0
      %1111 = vmatprep.mubr.bf16.mxu0 0
      %1112 = vmatmul.mubr.bf16.gmra.mrb[0].mxu0 %v1077
      %v1113 = vpop.f32.mrb[0].mxu0
      %v1114 = vadd.f32 %v1062, %v1113
      %v1115 = vpop.f32.mrb[0].mxu0
      %v1116 = vpop.f32.mrb[0].mxu0
      %v1117 = vpop.f32.mrb[0].mxu0
      %1118 = vdwg.mxu0
      %v1119 = vmul.f32 %v1114, 0.5
      %v1120 = vmul.f32 %v1114, 0.70710677
      %v1121 = verf.f32.pop %v1120
      %v1122 = vadd.f32 %v1121, 1.0
      %v1123 = vmul.f32 %v1119, %v1122
      %v1124 = vpack.c.bf16 %v1123, %v1123
      %v1126 = vlaneseq
      %v1127 = vshrl.u32 %v1126, 7
      %v1128 = vsub.s32 0, %v1127
      %v1129 = vrot.slane %v643, %v1128
      %v1139 = vunpack.c.l.b16 %v635
      %v1140 = vunpack.c.l.b16 %v636
      %v1141 = vunpack.c.l.b16 %v637
      %v1142 = vunpack.c.l.b16 %v638
      %v1143 = vunpack.c.l.b16 %v639
      %v1144 = vunpack.c.l.b16 %v640
      %v1145 = vunpack.c.l.b16 %v641
      %v1146 = vunpack.c.l.b16 %v642
      %v1147 = vpack.c.b16 %v1140, %v1139
      %v1148 = vpack.c.b16 %v1142, %v1141
      %v1149 = vpack.c.b16 %v1144, %v1143
      %v1150 = vpack.c.b16 %v1146, %v1145
      %vm1155 = vcmask 523264
      %v1157 = vsel %vm1155, %v1124, 0
      %1159 = vmatprep.subr.bf16.mxu0 0
      %1160 = vmatpush1.bf16.msra.mxu0 %v1147
      %1161 = vmatprep.subr.bf16.mxu0 0
      %1162 = vmatpush1.bf16.msra.mxu0 %v1148
      %1163 = vmatprep.subr.bf16.mxu0 0
      %1164 = vmatpush1.bf16.msra.mxu0 %v1149
      %1165 = vmatprep.subr.bf16.mxu0 0
      %1166 = vmatpush1.bf16.msra.mxu0 %v1150
      %1167 = vmatprep.subr.bf16.mxu0 0
      %1168 = vmatpush1.bf16.msra.mxu0 0
      %1169 = vmatprep.subr.bf16.mxu0 0
      %1170 = vmatpush1.bf16.msra.mxu0 0
      %1171 = vmatprep.subr.bf16.mxu0 0
      %1172 = vmatpush1.bf16.msra.mxu0 0
      %1173 = vmatprep.subr.bf16.mxu0 0
      %1174 = vmatpush1.bf16.msra.mxu0 0
      %1175 = vmatprep.subr.bf16.mxu0 0
      %1176 = vmatpush1.bf16.msra.mxu0 0
      %1177 = vmatprep.subr.bf16.mxu0 0
      %1178 = vmatpush1.bf16.msra.mxu0 0
      %1179 = vmatprep.subr.bf16.mxu0 0
      %1180 = vmatpush1.bf16.msra.mxu0 0
      %1181 = vmatprep.subr.bf16.mxu0 0
      %1182 = vmatpush1.bf16.msra.mxu0 0
      %1183 = vmatprep.subr.bf16.mxu0 0
      %1184 = vmatpush1.bf16.msra.mxu0 0
      %1185 = vmatprep.subr.bf16.mxu0 0
      %1186 = vmatpush1.bf16.msra.mxu0 0
      %1187 = vmatprep.subr.bf16.mxu0 0
      %1188 = vmatpush1.bf16.msra.mxu0 0
      %1189 = vmatprep.subr.bf16.mxu0 0
      %1190 = vmatpush1.bf16.msra.mxu0 0
      %1191 = vmatprep.mubr.bf16.mxu0 0
      %1192 = vmatmul.mubr.bf16.gmra.mrb[0].mxu0 %v1157
      %v1193 = vpop.f32.mrb[0].mxu0
      %v1194 = vadd.f32 %v1129, %v1193
      %v1195 = vpop.f32.mrb[0].mxu0
      %v1196 = vpop.f32.mrb[0].mxu0
      %v1197 = vpop.f32.mrb[0].mxu0
      %1198 = vdwg.mxu0
      %v1199 = vadd.f32 %v1029, %v1194
      %1200 = vst.msk [vmem:[%s605] sm:$0x1f] %vm645, %v1199
      %s1201 = scalar_lea.vmem %s605, 8
      %v1202 = vld [vmem:[%s1201] sm:$0x1f]
      %v1203 = vsel %vm645, %v1202, 0.0
      %1204 = vadd.xlane.f32.xlu0 %v1203
      %v1205 = vpop.xlane.xlu0 %1204
      %v1206 = vmul.f32 %v1205, %v649
      %v1207 = vsub.f32 %v1202, %v1206
      %v1208 = vmul.f32 %v1207, %v1207
      %v1209 = vsel %vm645, %v1208, 0.0
      %1210 = vadd.xlane.f32.xlu0 %v1209
      %v1211 = vpop.xlane.xlu0 %1210
      %v1212 = vmul.f32 %v1211, %v649
      %v1213 = vadd.f32 %v1212, 1e-05
      %v1214 = vrsqrt.pop %v1213
      %v1215 = vmul.f32 %v1207, %v1214
      %v1216 = vmul.f32 %v1215, %v664
      %v1217 = vadd.f32 %v1216, %v671
      %v1218 = vpack.c.bf16 %v1217, %v1217
      %v1220 = vsel %vm687, %v1218, 0
      %1222 = vmatprep.subr.bf16.mxu0 0
      %1223 = vmatpush1.bf16.msra.mxu0 %v683
      %1224 = vmatprep.subr.bf16.mxu0 0
      %1225 = vmatpush1.bf16.msra.mxu0 %v684
      %1226 = vmatprep.subr.bf16.mxu0 0
      %1227 = vmatpush1.bf16.msra.mxu0 0
      %1228 = vmatprep.subr.bf16.mxu0 0
      %1229 = vmatpush1.bf16.msra.mxu0 0
      %1230 = vmatprep.subr.bf16.mxu0 0
      %1231 = vmatpush1.bf16.msra.mxu0 0
      %1232 = vmatprep.subr.bf16.mxu0 0
      %1233 = vmatpush1.bf16.msra.mxu0 0
      %1234 = vmatprep.subr.bf16.mxu0 0
      %1235 = vmatpush1.bf16.msra.mxu0 0
      %1236 = vmatprep.subr.bf16.mxu0 0
      %1237 = vmatpush1.bf16.msra.mxu0 0
      %1238 = vmatprep.subr.bf16.mxu0 0
      %1239 = vmatpush1.bf16.msra.mxu0 0
      %1240 = vmatprep.subr.bf16.mxu0 0
      %1241 = vmatpush1.bf16.msra.mxu0 0
      %1242 = vmatprep.subr.bf16.mxu0 0
      %1243 = vmatpush1.bf16.msra.mxu0 0
      %1244 = vmatprep.subr.bf16.mxu0 0
      %1245 = vmatpush1.bf16.msra.mxu0 0
      %1246 = vmatprep.subr.bf16.mxu0 0
      %1247 = vmatpush1.bf16.msra.mxu0 0
      %1248 = vmatprep.subr.bf16.mxu0 0
      %1249 = vmatpush1.bf16.msra.mxu0 0
      %1250 = vmatprep.subr.bf16.mxu0 0
      %1251 = vmatpush1.bf16.msra.mxu0 0
      %1252 = vmatprep.subr.bf16.mxu0 0
      %1253 = vmatpush1.bf16.msra.mxu0 0
      %1254 = vmatprep.mubr.bf16.mxu0 0
      %1255 = vmatmul.mubr.bf16.gmra.mrb[0].mxu0 %v1220
      %v1256 = vpop.f32.mrb[0].mxu0
      %v1257 = vadd.f32 0.0, %v1256
      %v1258 = vpop.f32.mrb[0].mxu0
      %v1259 = vpop.f32.mrb[0].mxu0
      %v1260 = vpop.f32.mrb[0].mxu0
      %1261 = vdwg.mxu0
      %v1262 = vpack.c.bf16 %v1257, %v1257
      %1264 = vrot.lane.b32.xlu0 %v1262, 96
      %v1265 = vpop.permute.xlu0 %1264
      %v1267 = vsel %vm735, %v1262, 0
      %v1270 = vsel %vm735, %v1265, 0
      %1272 = vmatprep.subr.bf16.mxu0 0
      %1273 = vmatpush1.bf16.xpose.msra.mxu0 %v1270
      %1274 = vmatprep.subr.bf16.mxu0 0
      %1275 = vmatpush1.bf16.xpose.msra.mxu0 0
      %1276 = vmatprep.subr.bf16.mxu0 0
      %1277 = vmatpush1.bf16.xpose.msra.mxu0 0
      %1278 = vmatprep.subr.bf16.mxu0 0
      %1279 = vmatpush1.bf16.xpose.msra.mxu0 0
      %1280 = vmatprep.subr.bf16.mxu0 0
      %1281 = vmatpush1.bf16.xpose.msra.mxu0 0
      %1282 = vmatprep.subr.bf16.mxu0 0
      %1283 = vmatpush1.bf16.xpose.msra.mxu0 0
      %1284 = vmatprep.subr.bf16.mxu0 0
      %1285 = vmatpush1.bf16.xpose.msra.mxu0 0
      %1286 = vmatprep.subr.bf16.mxu0 0
      %1287 = vmatpush1.bf16.xpose.msra.mxu0 0
      %1288 = vmatprep.subr.bf16.mxu0 0
      %1289 = vmatpush1.bf16.xpose.msra.mxu0 0
      %1290 = vmatprep.subr.bf16.mxu0 0
      %1291 = vmatpush1.bf16.xpose.msra.mxu0 0
      %1292 = vmatprep.subr.bf16.mxu0 0
      %1293 = vmatpush1.bf16.xpose.msra.mxu0 0
      %1294 = vmatprep.subr.bf16.mxu0 0
      %1295 = vmatpush1.bf16.xpose.msra.mxu0 0
      %1296 = vmatprep.subr.bf16.mxu0 0
      %1297 = vmatpush1.bf16.xpose.msra.mxu0 0
      %1298 = vmatprep.subr.bf16.mxu0 0
      %1299 = vmatpush1.bf16.xpose.msra.mxu0 0
      %1300 = vmatprep.subr.bf16.mxu0 0
      %1301 = vmatpush1.bf16.xpose.msra.mxu0 0
      %1302 = vmatprep.subr.bf16.mxu0 0
      %1303 = vmatpush1.bf16.xpose.msra.mxu0 0
      %1304 = vmatprep.mubr.bf16.mxu0 0
      %1305 = vmatmul.mubr.bf16.gmra.mrb[0].mxu0 %v1267
      %v1306 = vpop.f32.mrb[0].mxu0
      %v1307 = vadd.f32 0.0, %v1306
      %v1308 = vpop.f32.mrb[0].mxu0
      %v1309 = vpop.f32.mrb[0].mxu0
      %v1310 = vpop.f32.mrb[0].mxu0
      %1311 = vdwg.mxu0
      %v1312 = vmul.f32 %v1307, 0.25
      %v1313 = vsel %vm783, %v1312, -inf
      %1314 = vmax.xlane.f32.xlu0 %v1313
      %v1315 = vpop.xlane.xlu0 %1314
      %v1316 = vsub.f32 %v1312, %v1315
      %v1317 = vmul.f32 %v1316, 1.442695
      %v1318 = vpow.pop %v1317
      %v1319 = vsel %vm783, %v1318, 0.0
      %1320 = vadd.xlane.f32.xlu0 %v1319
      %v1321 = vpop.xlane.xlu0 %1320
      %v1322 = vrcp.pop %v1321
      %v1323 = vmul.f32 %v1318, %v1322
      %v1324 = vpack.c.bf16 %v1323, %v1323
      %1325 = vrot.lane.b32.xlu0 %v1262, 64
      %v1326 = vpop.permute.xlu0 %1325
      %v1328 = vsel %vm798, %v1324, 0
      %v1331 = vand.u32 %v1326, %v805
      %1333 = vmatprep.subr.bf16.mxu0 0
      %1334 = vmatpush1.bf16.msra.mxu0 %v1331
      %1335 = vmatprep.subr.bf16.mxu0 0
      %1336 = vmatpush1.bf16.msra.mxu0 0
      %1337 = vmatprep.subr.bf16.mxu0 0
      %1338 = vmatpush1.bf16.msra.mxu0 0
      %1339 = vmatprep.subr.bf16.mxu0 0
      %1340 = vmatpush1.bf16.msra.mxu0 0
      %1341 = vmatprep.subr.bf16.mxu0 0
      %1342 = vmatpush1.bf16.msra.mxu0 0
      %1343 = vmatprep.subr.bf16.mxu0 0
      %1344 = vmatpush1.bf16.msra.mxu0 0
      %1345 = vmatprep.subr.bf16.mxu0 0
      %1346 = vmatpush1.bf16.msra.mxu0 0
      %1347 = vmatprep.subr.bf16.mxu0 0
      %1348 = vmatpush1.bf16.msra.mxu0 0
      %1349 = vmatprep.subr.bf16.mxu0 0
      %1350 = vmatpush1.bf16.msra.mxu0 0
      %1351 = vmatprep.subr.bf16.mxu0 0
      %1352 = vmatpush1.bf16.msra.mxu0 0
      %1353 = vmatprep.subr.bf16.mxu0 0
      %1354 = vmatpush1.bf16.msra.mxu0 0
      %1355 = vmatprep.subr.bf16.mxu0 0
      %1356 = vmatpush1.bf16.msra.mxu0 0
      %1357 = vmatprep.subr.bf16.mxu0 0
      %1358 = vmatpush1.bf16.msra.mxu0 0
      %1359 = vmatprep.subr.bf16.mxu0 0
      %1360 = vmatpush1.bf16.msra.mxu0 0
      %1361 = vmatprep.subr.bf16.mxu0 0
      %1362 = vmatpush1.bf16.msra.mxu0 0
      %1363 = vmatprep.subr.bf16.mxu0 0
      %1364 = vmatpush1.bf16.msra.mxu0 0
      %1365 = vmatprep.mubr.bf16.mxu0 0
      %1366 = vmatmul.mubr.bf16.gmra.mrb[0].mxu0 %v1328
      %v1367 = vpop.f32.mrb[0].mxu0
      %v1368 = vadd.f32 0.0, %v1367
      %v1369 = vpop.f32.mrb[0].mxu0
      %v1370 = vpop.f32.mrb[0].mxu0
      %v1371 = vpop.f32.mrb[0].mxu0
      %1372 = vdwg.mxu0
      %v1373 = vpack.c.bf16 %v1368, %v1368
      %1374 = vrot.lane.b32.xlu0 %v1262, 112
      %v1375 = vpop.permute.xlu0 %1374
      %1376 = vrot.lane.b32.xlu0 %v1262, 80
      %v1377 = vpop.permute.xlu0 %1376
      %v1379 = vsel %vm735, %v1375, 0
      %v1382 = vsel %vm735, %v1377, 0
      %1384 = vmatprep.subr.bf16.mxu0 0
      %1385 = vmatpush1.bf16.xpose.msra.mxu0 %v1382
      %1386 = vmatprep.subr.bf16.mxu0 0
      %1387 = vmatpush1.bf16.xpose.msra.mxu0 0
      %1388 = vmatprep.subr.bf16.mxu0 0
      %1389 = vmatpush1.bf16.xpose.msra.mxu0 0
      %1390 = vmatprep.subr.bf16.mxu0 0
      %1391 = vmatpush1.bf16.xpose.msra.mxu0 0
      %1392 = vmatprep.subr.bf16.mxu0 0
      %1393 = vmatpush1.bf16.xpose.msra.mxu0 0
      %1394 = vmatprep.subr.bf16.mxu0 0
      %1395 = vmatpush1.bf16.xpose.msra.mxu0 0
      %1396 = vmatprep.subr.bf16.mxu0 0
      %1397 = vmatpush1.bf16.xpose.msra.mxu0 0
      %1398 = vmatprep.subr.bf16.mxu0 0
      %1399 = vmatpush1.bf16.xpose.msra.mxu0 0
      %1400 = vmatprep.subr.bf16.mxu0 0
      %1401 = vmatpush1.bf16.xpose.msra.mxu0 0
      %1402 = vmatprep.subr.bf16.mxu0 0
      %1403 = vmatpush1.bf16.xpose.msra.mxu0 0
      %1404 = vmatprep.subr.bf16.mxu0 0
      %1405 = vmatpush1.bf16.xpose.msra.mxu0 0
      %1406 = vmatprep.subr.bf16.mxu0 0
      %1407 = vmatpush1.bf16.xpose.msra.mxu0 0
      %1408 = vmatprep.subr.bf16.mxu0 0
      %1409 = vmatpush1.bf16.xpose.msra.mxu0 0
      %1410 = vmatprep.subr.bf16.mxu0 0
      %1411 = vmatpush1.bf16.xpose.msra.mxu0 0
      %1412 = vmatprep.subr.bf16.mxu0 0
      %1413 = vmatpush1.bf16.xpose.msra.mxu0 0
      %1414 = vmatprep.subr.bf16.mxu0 0
      %1415 = vmatpush1.bf16.xpose.msra.mxu0 0
      %1416 = vmatprep.mubr.bf16.mxu0 0
      %1417 = vmatmul.mubr.bf16.gmra.mrb[0].mxu0 %v1379
      %v1418 = vpop.f32.mrb[0].mxu0
      %v1419 = vadd.f32 0.0, %v1418
      %v1420 = vpop.f32.mrb[0].mxu0
      %v1421 = vpop.f32.mrb[0].mxu0
      %v1422 = vpop.f32.mrb[0].mxu0
      %1423 = vdwg.mxu0
      %v1424 = vmul.f32 %v1419, 0.25
      %v1425 = vsel %vm783, %v1424, -inf
      %1426 = vmax.xlane.f32.xlu0 %v1425
      %v1427 = vpop.xlane.xlu0 %1426
      %v1428 = vsub.f32 %v1424, %v1427
      %v1429 = vmul.f32 %v1428, 1.442695
      %v1430 = vpow.pop %v1429
      %v1431 = vsel %vm783, %v1430, 0.0
      %1432 = vadd.xlane.f32.xlu0 %v1431
      %v1433 = vpop.xlane.xlu0 %1432
      %v1434 = vrcp.pop %v1433
      %v1435 = vmul.f32 %v1430, %v1434
      %v1436 = vpack.c.bf16 %v1435, %v1435
      %1437 = vrot.lane.b32.xlu0 %v1262, 48
      %v1438 = vpop.permute.xlu0 %1437
      %v1440 = vsel %vm798, %v1436, 0
      %v1443 = vand.u32 %v1438, %v805
      %1445 = vmatprep.subr.bf16.mxu0 0
      %1446 = vmatpush1.bf16.msra.mxu0 %v1443
      %1447 = vmatprep.subr.bf16.mxu0 0
      %1448 = vmatpush1.bf16.msra.mxu0 0
      %1449 = vmatprep.subr.bf16.mxu0 0
      %1450 = vmatpush1.bf16.msra.mxu0 0
      %1451 = vmatprep.subr.bf16.mxu0 0
      %1452 = vmatpush1.bf16.msra.mxu0 0
      %1453 = vmatprep.subr.bf16.mxu0 0
      %1454 = vmatpush1.bf16.msra.mxu0 0
      %1455 = vmatprep.subr.bf16.mxu0 0
      %1456 = vmatpush1.bf16.msra.mxu0 0
      %1457 = vmatprep.subr.bf16.mxu0 0
      %1458 = vmatpush1.bf16.msra.mxu0 0
      %1459 = vmatprep.subr.bf16.mxu0 0
      %1460 = vmatpush1.bf16.msra.mxu0 0
      %1461 = vmatprep.subr.bf16.mxu0 0
      %1462 = vmatpush1.bf16.msra.mxu0 0
      %1463 = vmatprep.subr.bf16.mxu0 0
      %1464 = vmatpush1.bf16.msra.mxu0 0
      %1465 = vmatprep.subr.bf16.mxu0 0
      %1466 = vmatpush1.bf16.msra.mxu0 0
      %1467 = vmatprep.subr.bf16.mxu0 0
      %1468 = vmatpush1.bf16.msra.mxu0 0
      %1469 = vmatprep.subr.bf16.mxu0 0
      %1470 = vmatpush1.bf16.msra.mxu0 0
      %1471 = vmatprep.subr.bf16.mxu0 0
      %1472 = vmatpush1.bf16.msra.mxu0 0
      %1473 = vmatprep.subr.bf16.mxu0 0
      %1474 = vmatpush1.bf16.msra.mxu0 0
      %1475 = vmatprep.subr.bf16.mxu0 0
      %1476 = vmatpush1.bf16.msra.mxu0 0
      %1477 = vmatprep.mubr.bf16.mxu0 0
      %1478 = vmatmul.mubr.bf16.gmra.mrb[0].mxu0 %v1440
      %v1479 = vpop.f32.mrb[0].mxu0
      %v1480 = vadd.f32 0.0, %v1479
      %v1481 = vpop.f32.mrb[0].mxu0
      %v1482 = vpop.f32.mrb[0].mxu0
      %v1483 = vpop.f32.mrb[0].mxu0
      %1484 = vdwg.mxu0
      %v1485 = vpack.c.bf16 %v1480, %v1480
      %1487 = vrot.lane.b32.xlu0 %v1485, 16
      %v1488 = vpop.permute.xlu0 %1487
      %v1491 = vsel %vm735, %v1373, %v1488
      %v1492 = vsel %vm687, %v1491, 0
      %1494 = vmatprep.subr.bf16.mxu0 0
      %1495 = vmatpush1.bf16.msra.mxu0 %v976
      %1496 = vmatprep.subr.bf16.mxu0 0
      %1497 = vmatpush1.bf16.msra.mxu0 %v977
      %1498 = vmatprep.subr.bf16.mxu0 0
      %1499 = vmatpush1.bf16.msra.mxu0 0
      %1500 = vmatprep.subr.bf16.mxu0 0
      %1501 = vmatpush1.bf16.msra.mxu0 0
      %1502 = vmatprep.subr.bf16.mxu0 0
      %1503 = vmatpush1.bf16.msra.mxu0 0
      %1504 = vmatprep.subr.bf16.mxu0 0
      %1505 = vmatpush1.bf16.msra.mxu0 0
      %1506 = vmatprep.subr.bf16.mxu0 0
      %1507 = vmatpush1.bf16.msra.mxu0 0
      %1508 = vmatprep.subr.bf16.mxu0 0
      %1509 = vmatpush1.bf16.msra.mxu0 0
      %1510 = vmatprep.subr.bf16.mxu0 0
      %1511 = vmatpush1.bf16.msra.mxu0 0
      %1512 = vmatprep.subr.bf16.mxu0 0
      %1513 = vmatpush1.bf16.msra.mxu0 0
      %1514 = vmatprep.subr.bf16.mxu0 0
      %1515 = vmatpush1.bf16.msra.mxu0 0
      %1516 = vmatprep.subr.bf16.mxu0 0
      %1517 = vmatpush1.bf16.msra.mxu0 0
      %1518 = vmatprep.subr.bf16.mxu0 0
      %1519 = vmatpush1.bf16.msra.mxu0 0
      %1520 = vmatprep.subr.bf16.mxu0 0
      %1521 = vmatpush1.bf16.msra.mxu0 0
      %1522 = vmatprep.subr.bf16.mxu0 0
      %1523 = vmatpush1.bf16.msra.mxu0 0
      %1524 = vmatprep.subr.bf16.mxu0 0
      %1525 = vmatpush1.bf16.msra.mxu0 0
      %1526 = vmatprep.mubr.bf16.mxu0 0
      %1527 = vmatmul.mubr.bf16.gmra.mrb[0].mxu0 %v1492
      %v1528 = vpop.f32.mrb[0].mxu0
      %v1529 = vadd.f32 0.0, %v1528
      %v1530 = vpop.f32.mrb[0].mxu0
      %v1531 = vpop.f32.mrb[0].mxu0
      %v1532 = vpop.f32.mrb[0].mxu0
      %1533 = vdwg.mxu0
      %v1534 = vadd.f32 %v1202, %v1529
      %v1535 = vadd.f32 %v1534, %v1027
      %v1536 = vsel %vm645, %v1535, 0.0
      %1537 = vadd.xlane.f32.xlu0 %v1536
      %v1538 = vpop.xlane.xlu0 %1537
      %v1539 = vmul.f32 %v1538, %v649
      %v1540 = vsub.f32 %v1535, %v1539
      %v1541 = vmul.f32 %v1540, %v1540
      %v1542 = vsel %vm645, %v1541, 0.0
      %1543 = vadd.xlane.f32.xlu0 %v1542
      %v1544 = vpop.xlane.xlu0 %1543
      %v1545 = vmul.f32 %v1544, %v649
      %v1546 = vadd.f32 %v1545, 1e-05
      %v1547 = vrsqrt.pop %v1546
      %v1548 = vmul.f32 %v1540, %v1547
      %v1549 = vmul.f32 %v1548, %v1047
      %v1550 = vadd.f32 %v1549, %v1054
      %v1551 = vpack.c.bf16 %v1550, %v1550
      %v1553 = vsel %vm687, %v1551, 0
      %1555 = vmatprep.subr.bf16.mxu0 0
      %1556 = vmatpush1.bf16.msra.mxu0 %v1072
      %1557 = vmatprep.subr.bf16.mxu0 0
      %1558 = vmatpush1.bf16.msra.mxu0 %v1073
      %1559 = vmatprep.subr.bf16.mxu0 0
      %1560 = vmatpush1.bf16.msra.mxu0 0
      %1561 = vmatprep.subr.bf16.mxu0 0
      %1562 = vmatpush1.bf16.msra.mxu0 0
      %1563 = vmatprep.subr.bf16.mxu0 0
      %1564 = vmatpush1.bf16.msra.mxu0 0
      %1565 = vmatprep.subr.bf16.mxu0 0
      %1566 = vmatpush1.bf16.msra.mxu0 0
      %1567 = vmatprep.subr.bf16.mxu0 0
      %1568 = vmatpush1.bf16.msra.mxu0 0
      %1569 = vmatprep.subr.bf16.mxu0 0
      %1570 = vmatpush1.bf16.msra.mxu0 0
      %1571 = vmatprep.subr.bf16.mxu0 0
      %1572 = vmatpush1.bf16.msra.mxu0 0
      %1573 = vmatprep.subr.bf16.mxu0 0
      %1574 = vmatpush1.bf16.msra.mxu0 0
      %1575 = vmatprep.subr.bf16.mxu0 0
      %1576 = vmatpush1.bf16.msra.mxu0 0
      %1577 = vmatprep.subr.bf16.mxu0 0
      %1578 = vmatpush1.bf16.msra.mxu0 0
      %1579 = vmatprep.subr.bf16.mxu0 0
      %1580 = vmatpush1.bf16.msra.mxu0 0
      %1581 = vmatprep.subr.bf16.mxu0 0
      %1582 = vmatpush1.bf16.msra.mxu0 0
      %1583 = vmatprep.subr.bf16.mxu0 0
      %1584 = vmatpush1.bf16.msra.mxu0 0
      %1585 = vmatprep.subr.bf16.mxu0 0
      %1586 = vmatpush1.bf16.msra.mxu0 0
      %1587 = vmatprep.mubr.bf16.mxu0 0
      %1588 = vmatmul.mubr.bf16.gmra.mrb[0].mxu0 %v1553
      %v1589 = vpop.f32.mrb[0].mxu0
      %v1590 = vadd.f32 %v1062, %v1589
      %v1591 = vpop.f32.mrb[0].mxu0
      %v1592 = vpop.f32.mrb[0].mxu0
      %v1593 = vpop.f32.mrb[0].mxu0
      %1594 = vdwg.mxu0
      %v1595 = vmul.f32 %v1590, 0.5
      %v1596 = vmul.f32 %v1590, 0.70710677
      %v1597 = verf.f32.pop %v1596
      %v1598 = vadd.f32 %v1597, 1.0
      %v1599 = vmul.f32 %v1595, %v1598
      %v1600 = vpack.c.bf16 %v1599, %v1599
      %v1602 = vsel %vm1155, %v1600, 0
      %1604 = vmatprep.subr.bf16.mxu0 0
      %1605 = vmatpush1.bf16.msra.mxu0 %v1147
      %1606 = vmatprep.subr.bf16.mxu0 0
      %1607 = vmatpush1.bf16.msra.mxu0 %v1148
      %1608 = vmatprep.subr.bf16.mxu0 0
      %1609 = vmatpush1.bf16.msra.mxu0 %v1149
      %1610 = vmatprep.subr.bf16.mxu0 0
      %1611 = vmatpush1.bf16.msra.mxu0 %v1150
      %1612 = vmatprep.subr.bf16.mxu0 0
      %1613 = vmatpush1.bf16.msra.mxu0 0
      %1614 = vmatprep.subr.bf16.mxu0 0
      %1615 = vmatpush1.bf16.msra.mxu0 0
      %1616 = vmatprep.subr.bf16.mxu0 0
      %1617 = vmatpush1.bf16.msra.mxu0 0
      %1618 = vmatprep.subr.bf16.mxu0 0
      %1619 = vmatpush1.bf16.msra.mxu0 0
      %1620 = vmatprep.subr.bf16.mxu0 0
      %1621 = vmatpush1.bf16.msra.mxu0 0
      %1622 = vmatprep.subr.bf16.mxu0 0
      %1623 = vmatpush1.bf16.msra.mxu0 0
      %1624 = vmatprep.subr.bf16.mxu0 0
      %1625 = vmatpush1.bf16.msra.mxu0 0
      %1626 = vmatprep.subr.bf16.mxu0 0
      %1627 = vmatpush1.bf16.msra.mxu0 0
      %1628 = vmatprep.subr.bf16.mxu0 0
      %1629 = vmatpush1.bf16.msra.mxu0 0
      %1630 = vmatprep.subr.bf16.mxu0 0
      %1631 = vmatpush1.bf16.msra.mxu0 0
      %1632 = vmatprep.subr.bf16.mxu0 0
      %1633 = vmatpush1.bf16.msra.mxu0 0
      %1634 = vmatprep.subr.bf16.mxu0 0
      %1635 = vmatpush1.bf16.msra.mxu0 0
      %1636 = vmatprep.mubr.bf16.mxu0 0
      %1637 = vmatmul.mubr.bf16.gmra.mrb[0].mxu0 %v1602
      %v1638 = vpop.f32.mrb[0].mxu0
      %v1639 = vadd.f32 %v1129, %v1638
      %v1640 = vpop.f32.mrb[0].mxu0
      %v1641 = vpop.f32.mrb[0].mxu0
      %v1642 = vpop.f32.mrb[0].mxu0
      %1643 = vdwg.mxu0
      %v1644 = vadd.f32 %v1535, %v1639
      %1645 = vst.msk [vmem:[%s1201] sm:$0x1f] %vm645, %v1644
      %s1646 = smul.u32 2, %s27
      %p1647 = scmp.lt.s32.totalorder %s1646, 1
      %s1648 = scalar_select %p1647, %s1646, 1
      %s1649 = smul.addr %s1648, 8
      %s1650 = scalar_lea.vmem %s12, %s1649
      // Predicated region
      $region73: #{distill_wrapper_forward.6} parent=67 // pred_check
        %p1651 = pneg %p365
      $region74: #{distill_wrapper_forward.6} parent=67 // pred_check_branch
        %1653 = sbr.rel (%p1651) target = $region76
      $region75: #{distill_wrapper_forward.6} parent=67 // pred_region
        %s1654 = smul.u32 2, %s27
      $region76: #{distill_wrapper_forward.6} parent=67 // pred_fallthru
        _
      // Predicated region
      $region77: #{distill_wrapper_forward.6} parent=67 // pred_check
        %p1655 = pneg %p365
      $region78: #{distill_wrapper_forward.6} parent=67 // pred_check_branch
        %1657 = sbr.rel (%p1655) target = $region80
      $region79: #{distill_wrapper_forward.6} parent=67 // pred_region
        %s1658 = smul.u32 2, %s27
        %p1659 = scmp.lt.s32.totalorder %s1658, 1
        %s1660 = scalar_select %p1659, %s1658, 1
        %s1661 = smul.addr %s1660, 8
        %s1662 = scalar_lea.vmem %s12, %s1661
      $region80: #{distill_wrapper_forward.6} parent=67 // pred_fallthru
        _
    $region68: #{distill_wrapper_forward.6} parent=5 // pred_fallthru
      _
    %p1663 = scmp.le.s32.totalorder 2, %s18
    // Predicated region
    $region81: #{distill_wrapper_forward.6} parent=5 // pred_check
      %p1664 = pneg %p1663
    $region82: #{distill_wrapper_forward.6} parent=5 // pred_check_branch
      %1666 = sbr.rel (%p1664) target = $region84
    $region83: #{distill_wrapper_forward.6} parent=5 // pred_region
      %s1667 = ssub.s32 %s18, 2
    $region84: #{distill_wrapper_forward.6} parent=5 // pred_fallthru
      _
  $region6: #{distill_wrapper_forward.6} parent=0 // loop_footer
    %s22 = sadd.s32 1, %s18
  $region7: #{distill_wrapper_forward.6} parent=0 // loop_footer_branch
    %17 = sbr.rel target = $region3
  $region8: #{distill_wrapper_forward.6} parent=0 // loop_exit
    _

// kernel: distill_wrapper_forward.9
$region0: #{distill_wrapper_forward.9}
  #allocation0 [shape = 'u32[]', space=smem, size = 0x4, offset = 0x4, fixed_abs, tag = 'smem constant byte address 0x4 - core index']
  #allocation1 [shape = 'u32[144,128]{1,0:T(1,128)}', space=vmem, size = 0x12000, scoped, tag = 'internal scratch']
  %s0 = inlined_call_operand.vmem [shape: f32[2,32], index: 0, kind: input, shape index: {}]
  %s1 = inlined_call_operand.vmem [shape: f32[2,32], index: 1, kind: input, shape index: {}]
  %s2 = inlined_call_operand.vmem [shape: f32[2,32], index: 2, kind: input, shape index: {}]
  %s3 = inlined_call_operand.vmem [shape: f32[1,32], index: 3, kind: input, shape index: {}]
  %s4 = inlined_call_operand.vmem [shape: f32[1,32], index: 4, kind: input, shape index: {}]
  %s5 = inlined_call_operand.vmem [shape: bf16[32,10], index: 5, kind: input, shape index: {}]
  %s6 = inlined_call_operand.vmem [shape: f32[1,10], index: 6, kind: input, shape index: {}]
  %s7 = inlined_call_operand.vmem [shape: f32[1,32], index: 7, kind: input, shape index: {}]
  %s8 = inlined_call_operand.vmem [shape: f32[1,32], index: 8, kind: input, shape index: {}]
  %s9 = inlined_call_operand.vmem [shape: bf16[32,10], index: 9, kind: input, shape index: {}]
  %s10 = inlined_call_operand.vmem [shape: f32[1,10], index: 10, kind: input, shape index: {}]
  %s11 = inlined_call_operand.vmem [shape: bf16[32,10], index: 11, kind: input, shape index: {}]
  %s12 = inlined_call_operand.vmem [shape: f32[1,10], index: 12, kind: input, shape index: {}]
  %s13 = inlined_call_operand.vmem [shape: f32[2,10], index: 13, kind: input, shape index: {}]
  %s14 = inlined_call_operand.hbm [shape: f32[1,1], index: 14, kind: output, shape index: {}]
  %s15 = sld [smem:[#allocation0]]
  $region66: #{distill_wrapper_forward.9} parent=0
    _
  %s17 = ssub.s32 1, %s15
  %s18 = scalar_select 0, %s17, %s15
  $region1: #{distill_wrapper_forward.9} parent=0
    #allocation2 [shape = 'u8[512]{0}', space=vmem, size = 0x400, scoped, tag = 'output window, operand 0, single buffered']
    #allocation3 [shape = 's32[1]{0}', space=sflag, size = 0x4, scoped, tag = 'scoped memory for distill_wrapper_forward.9']
    %19 = vsyncpa [#allocation3], 0
    // Predicated region
    $region2: #{distill_wrapper_forward.9} parent=1 // pred_check
      _
    $region3: #{distill_wrapper_forward.9} parent=1 // pred_check_branch
      %21 = sbr.rel (0) target = $region5
    $region4: #{distill_wrapper_forward.9} parent=1 // pred_region
      _
    $region5: #{distill_wrapper_forward.9} parent=1 // pred_fallthru
      _
    // Predicated region
    $region6: #{distill_wrapper_forward.9} parent=1 // pred_check
      _
    $region7: #{distill_wrapper_forward.9} parent=1 // pred_check_branch
      %23 = sbr.rel (0) target = $region9
    $region8: #{distill_wrapper_forward.9} parent=1 // pred_region
      _
    $region9: #{distill_wrapper_forward.9} parent=1 // pred_fallthru
      _
    // Predicated region
    $region10: #{distill_wrapper_forward.9} parent=1 // pred_check
      _
    $region11: #{distill_wrapper_forward.9} parent=1 // pred_check_branch
      %25 = sbr.rel (0) target = $region13
    $region12: #{distill_wrapper_forward.9} parent=1 // pred_region
      _
    $region13: #{distill_wrapper_forward.9} parent=1 // pred_fallthru
      _
    // Predicated region
    $region14: #{distill_wrapper_forward.9} parent=1 // pred_check
      _
    $region15: #{distill_wrapper_forward.9} parent=1 // pred_check_branch
      %27 = sbr.rel (0) target = $region17
    $region16: #{distill_wrapper_forward.9} parent=1 // pred_region
      _
    $region17: #{distill_wrapper_forward.9} parent=1 // pred_fallthru
      _
    // Predicated region
    $region18: #{distill_wrapper_forward.9} parent=1 // pred_check
      _
    $region19: #{distill_wrapper_forward.9} parent=1 // pred_check_branch
      %29 = sbr.rel (0) target = $region21
    $region20: #{distill_wrapper_forward.9} parent=1 // pred_region
      _
    $region21: #{distill_wrapper_forward.9} parent=1 // pred_fallthru
      _
    // Predicated region
    $region22: #{distill_wrapper_forward.9} parent=1 // pred_check
      _
    $region23: #{distill_wrapper_forward.9} parent=1 // pred_check_branch
      %31 = sbr.rel (0) target = $region25
    $region24: #{distill_wrapper_forward.9} parent=1 // pred_region
      _
    $region25: #{distill_wrapper_forward.9} parent=1 // pred_fallthru
      _
    // Predicated region
    $region26: #{distill_wrapper_forward.9} parent=1 // pred_check
      _
    $region27: #{distill_wrapper_forward.9} parent=1 // pred_check_branch
      %33 = sbr.rel (0) target = $region29
    $region28: #{distill_wrapper_forward.9} parent=1 // pred_region
      _
    $region29: #{distill_wrapper_forward.9} parent=1 // pred_fallthru
      _
    // Predicated region
    $region30: #{distill_wrapper_forward.9} parent=1 // pred_check
      _
    $region31: #{distill_wrapper_forward.9} parent=1 // pred_check_branch
      %35 = sbr.rel (0) target = $region33
    $region32: #{distill_wrapper_forward.9} parent=1 // pred_region
      _
    $region33: #{distill_wrapper_forward.9} parent=1 // pred_fallthru
      _
    // Predicated region
    $region34: #{distill_wrapper_forward.9} parent=1 // pred_check
      _
    $region35: #{distill_wrapper_forward.9} parent=1 // pred_check_branch
      %37 = sbr.rel (0) target = $region37
    $region36: #{distill_wrapper_forward.9} parent=1 // pred_region
      _
    $region37: #{distill_wrapper_forward.9} parent=1 // pred_fallthru
      _
    // Predicated region
    $region38: #{distill_wrapper_forward.9} parent=1 // pred_check
      _
    $region39: #{distill_wrapper_forward.9} parent=1 // pred_check_branch
      %39 = sbr.rel (0) target = $region41
    $region40: #{distill_wrapper_forward.9} parent=1 // pred_region
      _
    $region41: #{distill_wrapper_forward.9} parent=1 // pred_fallthru
      _
    // Predicated region
    $region42: #{distill_wrapper_forward.9} parent=1 // pred_check
      _
    $region43: #{distill_wrapper_forward.9} parent=1 // pred_check_branch
      %41 = sbr.rel (0) target = $region45
    $region44: #{distill_wrapper_forward.9} parent=1 // pred_region
      _
    $region45: #{distill_wrapper_forward.9} parent=1 // pred_fallthru
      _
    // Predicated region
    $region46: #{distill_wrapper_forward.9} parent=1 // pred_check
      _
    $region47: #{distill_wrapper_forward.9} parent=1 // pred_check_branch
      %43 = sbr.rel (0) target = $region49
    $region48: #{distill_wrapper_forward.9} parent=1 // pred_region
      _
    $region49: #{distill_wrapper_forward.9} parent=1 // pred_fallthru
      _
    // Predicated region
    $region50: #{distill_wrapper_forward.9} parent=1 // pred_check
      _
    $region51: #{distill_wrapper_forward.9} parent=1 // pred_check_branch
      %45 = sbr.rel (0) target = $region53
    $region52: #{distill_wrapper_forward.9} parent=1 // pred_region
      _
    $region53: #{distill_wrapper_forward.9} parent=1 // pred_fallthru
      _
    // Predicated region
    $region54: #{distill_wrapper_forward.9} parent=1 // pred_check
      _
    $region55: #{distill_wrapper_forward.9} parent=1 // pred_check_branch
      %47 = sbr.rel (0) target = $region57
    $region56: #{distill_wrapper_forward.9} parent=1 // pred_region
      _
    $region57: #{distill_wrapper_forward.9} parent=1 // pred_fallthru
      _
    %v49 = vld [vmem:[%s0] sm:$0x3]
    %v50 = vld [vmem:[%s3] sm:$0x1]
    %v51 = vld [vmem:[%s4] sm:$0x1]
    %vm52 = vcmask 254976
    %v53 = vsel %vm52, %v49, 0.0
    %54 = vadd.xlane.f32.xlu0 %v53
    %v55 = vpop.xlane.xlu0 %54
    %v56 = vrcp.pop 32.0
    %v57 = vmul.f32 %v55, %v56
    %v58 = vsub.f32 %v49, %v57
    %v59 = vmul.f32 %v58, %v58
    %v60 = vsel %vm52, %v59, 0.0
    %61 = vadd.xlane.f32.xlu0 %v60
    %v62 = vpop.xlane.xlu0 %61
    %v63 = vmul.f32 %v62, %v56
    %v64 = vadd.f32 %v63, 1e-05
    %v65 = vrsqrt.pop %v64
    %v66 = vmul.f32 %v58, %v65
    %v68 = vlaneseq
    %v69 = vshrl.u32 %v68, 7
    %v70 = vsub.s32 0, %v69
    %v71 = vrot.slane %v50, %v70
    %v73 = vmul.f32 %v66, %v71
    %v75 = vlaneseq
    %v76 = vshrl.u32 %v75, 7
    %v77 = vsub.s32 0, %v76
    %v78 = vrot.slane %v51, %v77
    %v80 = vadd.f32 %v73, %v78
    %v81 = vpack.c.bf16 %v80, %v80
    %v82 = vld [vmem:[%s5] sm:$0xf]
    %v83 = vld [vmem:[%s5 + $0x4] sm:$0xf]
    %v84 = vld [vmem:[%s5 + $0x8] sm:$0xf]
    %v85 = vld [vmem:[%s5 + $0xc] sm:$0xf]
    %v86 = vld [vmem:[%s6] sm:$0x1]
    %v88 = vlaneseq
    %v89 = vshrl.u32 %v88, 7
    %v90 = vsub.s32 0, %v89
    %v91 = vrot.slane %v86, %v90
    %v97 = vunpack.c.l.b16 %v82
    %v98 = vunpack.c.l.b16 %v83
    %v99 = vunpack.c.l.b16 %v84
    %v100 = vunpack.c.l.b16 %v85
    %v101 = vpack.c.b16 %v98, %v97
    %v102 = vpack.c.b16 %v100, %v99
    %vm105 = vcmask 261120
    %v107 = vsel %vm105, %v81, 0
    %109 = vmatprep.subr.bf16.mxu0 0
    %110 = vmatpush1.bf16.msra.mxu0 %v101
    %111 = vmatprep.subr.bf16.mxu0 0
    %112 = vmatpush1.bf16.msra.mxu0 %v102
    %113 = vmatprep.subr.bf16.mxu0 0
    %114 = vmatpush1.bf16.msra.mxu0 0
    %115 = vmatprep.subr.bf16.mxu0 0
    %116 = vmatpush1.bf16.msra.mxu0 0
    %117 = vmatprep.subr.bf16.mxu0 0
    %118 = vmatpush1.bf16.msra.mxu0 0
    %119 = vmatprep.subr.bf16.mxu0 0
    %120 = vmatpush1.bf16.msra.mxu0 0
    %121 = vmatprep.subr.bf16.mxu0 0
    %122 = vmatpush1.bf16.msra.mxu0 0
    %123 = vmatprep.subr.bf16.mxu0 0
    %124 = vmatpush1.bf16.msra.mxu0 0
    %125 = vmatprep.subr.bf16.mxu0 0
    %126 = vmatpush1.bf16.msra.mxu0 0
    %127 = vmatprep.subr.bf16.mxu0 0
    %128 = vmatpush1.bf16.msra.mxu0 0
    %129 = vmatprep.subr.bf16.mxu0 0
    %130 = vmatpush1.bf16.msra.mxu0 0
    %131 = vmatprep.subr.bf16.mxu0 0
    %132 = vmatpush1.bf16.msra.mxu0 0
    %133 = vmatprep.subr.bf16.mxu0 0
    %134 = vmatpush1.bf16.msra.mxu0 0
    %135 = vmatprep.subr.bf16.mxu0 0
    %136 = vmatpush1.bf16.msra.mxu0 0
    %137 = vmatprep.subr.bf16.mxu0 0
    %138 = vmatpush1.bf16.msra.mxu0 0
    %139 = vmatprep.subr.bf16.mxu0 0
    %140 = vmatpush1.bf16.msra.mxu0 0
    %141 = vmatprep.mubr.bf16.mxu0 0
    %142 = vmatmul.mubr.bf16.gmra.mrb[0].mxu0 %v107
    %v143 = vpop.f32.mrb[0].mxu0
    %v144 = vadd.f32 %v91, %v143
    %v145 = vpop.f32.mrb[0].mxu0
    %v146 = vpop.f32.mrb[0].mxu0
    %v147 = vpop.f32.mrb[0].mxu0
    %148 = vdwg.mxu0
    %v149 = vld [vmem:[%s1] sm:$0x3]
    %v150 = vld [vmem:[%s7] sm:$0x1]
    %v151 = vld [vmem:[%s8] sm:$0x1]
    %v152 = vsel %vm52, %v149, 0.0
    %153 = vadd.xlane.f32.xlu0 %v152
    %v154 = vpop.xlane.xlu0 %153
    %v155 = vmul.f32 %v154, %v56
    %v156 = vsub.f32 %v149, %v155
    %v157 = vmul.f32 %v156, %v156
    %v158 = vsel %vm52, %v157, 0.0
    %159 = vadd.xlane.f32.xlu0 %v158
    %v160 = vpop.xlane.xlu0 %159
    %v161 = vmul.f32 %v160, %v56
    %v162 = vadd.f32 %v161, 1e-05
    %v163 = vrsqrt.pop %v162
    %v164 = vmul.f32 %v156, %v163
    %v166 = vlaneseq
    %v167 = vshrl.u32 %v166, 7
    %v168 = vsub.s32 0, %v167
    %v169 = vrot.slane %v150, %v168
    %v171 = vmul.f32 %v164, %v169
    %v173 = vlaneseq
    %v174 = vshrl.u32 %v173, 7
    %v175 = vsub.s32 0, %v174
    %v176 = vrot.slane %v151, %v175
    %v178 = vadd.f32 %v171, %v176
    %v179 = vpack.c.bf16 %v178, %v178
    %v180 = vld [vmem:[%s9] sm:$0xf]
    %v181 = vld [vmem:[%s9 + $0x4] sm:$0xf]
    %v182 = vld [vmem:[%s9 + $0x8] sm:$0xf]
    %v183 = vld [vmem:[%s9 + $0xc] sm:$0xf]
    %v184 = vld [vmem:[%s10] sm:$0x1]
    %v186 = vlaneseq
    %v187 = vshrl.u32 %v186, 7
    %v188 = vsub.s32 0, %v187
    %v189 = vrot.slane %v184, %v188
    %v195 = vunpack.c.l.b16 %v180
    %v196 = vunpack.c.l.b16 %v181
    %v197 = vunpack.c.l.b16 %v182
    %v198 = vunpack.c.l.b16 %v183
    %v199 = vpack.c.b16 %v196, %v195
    %v200 = vpack.c.b16 %v198, %v197
    %v204 = vsel %vm105, %v179, 0
    %206 = vmatprep.subr.bf16.mxu0 0
    %207 = vmatpush1.bf16.msra.mxu0 %v199
    %208 = vmatprep.subr.bf16.mxu0 0
    %209 = vmatpush1.bf16.msra.mxu0 %v200
    %210 = vmatprep.subr.bf16.mxu0 0
    %211 = vmatpush1.bf16.msra.mxu0 0
    %212 = vmatprep.subr.bf16.mxu0 0
    %213 = vmatpush1.bf16.msra.mxu0 0
    %214 = vmatprep.subr.bf16.mxu0 0
    %215 = vmatpush1.bf16.msra.mxu0 0
    %216 = vmatprep.subr.bf16.mxu0 0
    %217 = vmatpush1.bf16.msra.mxu0 0
    %218 = vmatprep.subr.bf16.mxu0 0
    %219 = vmatpush1.bf16.msra.mxu0 0
    %220 = vmatprep.subr.bf16.mxu0 0
    %221 = vmatpush1.bf16.msra.mxu0 0
    %222 = vmatprep.subr.bf16.mxu0 0
    %223 = vmatpush1.bf16.msra.mxu0 0
    %224 = vmatprep.subr.bf16.mxu0 0
    %225 = vmatpush1.bf16.msra.mxu0 0
    %226 = vmatprep.subr.bf16.mxu0 0
    %227 = vmatpush1.bf16.msra.mxu0 0
    %228 = vmatprep.subr.bf16.mxu0 0
    %229 = vmatpush1.bf16.msra.mxu0 0
    %230 = vmatprep.subr.bf16.mxu0 0
    %231 = vmatpush1.bf16.msra.mxu0 0
    %232 = vmatprep.subr.bf16.mxu0 0
    %233 = vmatpush1.bf16.msra.mxu0 0
    %234 = vmatprep.subr.bf16.mxu0 0
    %235 = vmatpush1.bf16.msra.mxu0 0
    %236 = vmatprep.subr.bf16.mxu0 0
    %237 = vmatpush1.bf16.msra.mxu0 0
    %238 = vmatprep.mubr.bf16.mxu0 0
    %239 = vmatmul.mubr.bf16.gmra.mrb[0].mxu0 %v204
    %v240 = vpop.f32.mrb[0].mxu0
    %v241 = vadd.f32 %v189, %v240
    %v242 = vpop.f32.mrb[0].mxu0
    %v243 = vpop.f32.mrb[0].mxu0
    %v244 = vpop.f32.mrb[0].mxu0
    %245 = vdwg.mxu0
    %v246 = vld [vmem:[%s2] sm:$0x3]
    %v247 = vsel %vm52, %v246, 0.0
    %248 = vadd.xlane.f32.xlu0 %v247
    %v249 = vpop.xlane.xlu0 %248
    %v250 = vmul.f32 %v249, %v56
    %v251 = vsub.f32 %v246, %v250
    %v252 = vmul.f32 %v251, %v251
    %v253 = vsel %vm52, %v252, 0.0
    %254 = vadd.xlane.f32.xlu0 %v253
    %v255 = vpop.xlane.xlu0 %254
    %v256 = vmul.f32 %v255, %v56
    %v257 = vadd.f32 %v256, 1e-05
    %v258 = vrsqrt.pop %v257
    %v259 = vmul.f32 %v251, %v258
    %v260 = vmul.f32 %v259, %v169
    %v261 = vadd.f32 %v260, %v176
    %v262 = vpack.c.bf16 %v261, %v261
    %v263 = vld [vmem:[%s11] sm:$0xf]
    %v264 = vld [vmem:[%s11 + $0x4] sm:$0xf]
    %v265 = vld [vmem:[%s11 + $0x8] sm:$0xf]
    %v266 = vld [vmem:[%s11 + $0xc] sm:$0xf]
    %v267 = vld [vmem:[%s12] sm:$0x1]
    %v269 = vlaneseq
    %v270 = vshrl.u32 %v269, 7
    %v271 = vsub.s32 0, %v270
    %v272 = vrot.slane %v267, %v271
    %v278 = vunpack.c.l.b16 %v263
    %v279 = vunpack.c.l.b16 %v264
    %v280 = vunpack.c.l.b16 %v265
    %v281 = vunpack.c.l.b16 %v266
    %v282 = vpack.c.b16 %v279, %v278
    %v283 = vpack.c.b16 %v281, %v280
    %v287 = vsel %vm105, %v262, 0
    %289 = vmatprep.subr.bf16.mxu0 0
    %290 = vmatpush1.bf16.msra.mxu0 %v282
    %291 = vmatprep.subr.bf16.mxu0 0
    %292 = vmatpush1.bf16.msra.mxu0 %v283
    %293 = vmatprep.subr.bf16.mxu0 0
    %294 = vmatpush1.bf16.msra.mxu0 0
    %295 = vmatprep.subr.bf16.mxu0 0
    %296 = vmatpush1.bf16.msra.mxu0 0
    %297 = vmatprep.subr.bf16.mxu0 0
    %298 = vmatpush1.bf16.msra.mxu0 0
    %299 = vmatprep.subr.bf16.mxu0 0
    %300 = vmatpush1.bf16.msra.mxu0 0
    %301 = vmatprep.subr.bf16.mxu0 0
    %302 = vmatpush1.bf16.msra.mxu0 0
    %303 = vmatprep.subr.bf16.mxu0 0
    %304 = vmatpush1.bf16.msra.mxu0 0
    %305 = vmatprep.subr.bf16.mxu0 0
    %306 = vmatpush1.bf16.msra.mxu0 0
    %307 = vmatprep.subr.bf16.mxu0 0
    %308 = vmatpush1.bf16.msra.mxu0 0
    %309 = vmatprep.subr.bf16.mxu0 0
    %310 = vmatpush1.bf16.msra.mxu0 0
    %311 = vmatprep.subr.bf16.mxu0 0
    %312 = vmatpush1.bf16.msra.mxu0 0
    %313 = vmatprep.subr.bf16.mxu0 0
    %314 = vmatpush1.bf16.msra.mxu0 0
    %315 = vmatprep.subr.bf16.mxu0 0
    %316 = vmatpush1.bf16.msra.mxu0 0
    %317 = vmatprep.subr.bf16.mxu0 0
    %318 = vmatpush1.bf16.msra.mxu0 0
    %319 = vmatprep.subr.bf16.mxu0 0
    %320 = vmatpush1.bf16.msra.mxu0 0
    %321 = vmatprep.mubr.bf16.mxu0 0
    %322 = vmatmul.mubr.bf16.gmra.mrb[0].mxu0 %v287
    %v323 = vpop.f32.mrb[0].mxu0
    %v324 = vadd.f32 %v272, %v323
    %v325 = vpop.f32.mrb[0].mxu0
    %v326 = vpop.f32.mrb[0].mxu0
    %v327 = vpop.f32.mrb[0].mxu0
    %328 = vdwg.mxu0
    %v329 = vld [vmem:[%s13] sm:$0x3]
    %vm330 = vcmask 74752
    %v331 = vsel %vm330, %v241, -inf
    %332 = vmax.xlane.f32.xlu0 %v331
    %v333 = vpop.xlane.xlu0 %332
    %v334 = vsub.f32 %v241, %v333
    %v335 = vmul.f32 %v334, 1.442695
    %v336 = vpow.pop %v335
    %v337 = vsel %vm330, %v336, 0.0
    %338 = vadd.xlane.f32.xlu0 %v337
    %v339 = vpop.xlane.xlu0 %338
    %v340 = vlog2.pop %v339
    %v341 = vmul.f32 %v340, 0.6931472
    %v342 = vsub.f32 %v334, %v341
    %v343 = vmul.f32 %v329, %v342
    %v344 = vsel %vm330, %v343, 0.0
    %345 = vadd.xlane.f32.xlu0 %v344
    %v346 = vpop.xlane.xlu0 %345
    %v347 = vrot.slane %v346, 4
    %v348 = vadd.f32 %v346, %v347
    %v349 = vrot.slane %v348, 2
    %v350 = vadd.f32 %v348, %v349
    %v351 = vrot.slane %v350, 1
    %v352 = vadd.f32 %v350, %v351
    %s353 = vtos %v352
    %s354 = ssub.f32 0.0, %s353
    %v355 = vrcp.pop 2.0
    %s356 = vtos %v355
    %s357 = smul.f32 %s354, %s356
    %v358 = vsel %vm330, %v324, -inf
    %359 = vmax.xlane.f32.xlu0 %v358
    %v360 = vpop.xlane.xlu0 %359
    %v361 = vsub.f32 %v324, %v360
    %v362 = vmul.f32 %v361, 1.442695
    %v363 = vpow.pop %v362
    %v364 = vsel %vm330, %v363, 0.0
    %365 = vadd.xlane.f32.xlu0 %v364
    %v366 = vpop.xlane.xlu0 %365
    %v367 = vlog2.pop %v366
    %v368 = vmul.f32 %v367, 0.6931472
    %v369 = vsub.f32 %v361, %v368
    %v370 = vsel %vm330, %v144, -inf
    %371 = vmax.xlane.f32.xlu0 %v370
    %v372 = vpop.xlane.xlu0 %371
    %v373 = vsub.f32 %v144, %v372
    %v374 = vmul.f32 %v373, 1.442695
    %v375 = vpow.pop %v374
    %v376 = vsel %vm330, %v375, 0.0
    %377 = vadd.xlane.f32.xlu0 %v376
    %v378 = vpop.xlane.xlu0 %377
    %v379 = vlog2.pop %v378
    %v380 = vmul.f32 %v379, 0.6931472
    %v381 = vsub.f32 %v373, %v380
    %v382 = vmul.f32 %v381, 1.442695
    %v383 = vpow.pop %v382
    %v384 = vsub.f32 %v381, %v369
    %v385 = vmul.f32 %v383, %v384
    %v386 = vsel %vm330, %v385, 0.0
    %387 = vadd.xlane.f32.xlu0 %v386
    %v388 = vpop.xlane.xlu0 %387
    %v389 = vrot.slane %v388, 4
    %v390 = vadd.f32 %v388, %v389
    %v391 = vrot.slane %v390, 2
    %v392 = vadd.f32 %v390, %v391
    %v393 = vrot.slane %v392, 1
    %v394 = vadd.f32 %v392, %v393
    %s395 = vtos %v394
    %v396 = vrcp.pop 2.0
    %s397 = vtos %v396
    %s398 = smul.f32 %s395, %s397
    %s399 = smul.f32 %s357, 0.5
    %s400 = smul.f32 %s398, 0.5
    %s401 = sadd.f32 %s399, %s400
    %v402 = vstv %s401
    %vm403 = vcmask 0
    %404 = vst.msk [vmem:[#allocation2] sm:$0x1] %vm403, %v402
    // Predicated region
    $region58: #{distill_wrapper_forward.9} parent=1 // pred_check
      _
    $region59: #{distill_wrapper_forward.9} parent=1 // pred_check_branch
      %406 = sbr.rel (0) target = $region61
    $region60: #{distill_wrapper_forward.9} parent=1 // pred_region
      %s408 = ssub.s32 16, 16
      %409 = vsyncadd [#allocation3], %s408
      %s411 = sshll.u32 [#allocation2], 4
      %s412 = int_to_ptr.vmem [resolvable:$true] %s411
      %414 = dma.vmem_to_hbm [thread:$0]  %s412, 16, %s14, [#allocation3]
    $region61: #{distill_wrapper_forward.9} parent=1 // pred_fallthru
      _
    // Predicated region
    $region62: #{distill_wrapper_forward.9} parent=1 // pred_check
      _
    $region63: #{distill_wrapper_forward.9} parent=1 // pred_check_branch
      %416 = sbr.rel (0) target = $region65
    $region64: #{distill_wrapper_forward.9} parent=1 // pred_region
      %417 = dma.done [#allocation3], 16
    $region65: #{distill_wrapper_forward.9} parent=1 // pred_fallthru
      _
    %418 = vsyncpa [#allocation3], 1

</llo_original>
